<compile_context>
chip_gen: v7x
topology: tpu7x:2x2x1
jax: 0.10.0
libtpu: 0.0.40
codegen_flags: <defaults>
</compile_context>

<pallas_src>
import functools
import math

import numpy as np
import jax
import jax.numpy as jnp
from jax import lax
from jax.experimental import pallas as pl
from jax.experimental.pallas import tpu as pltpu


# ---------------------------------------------------------------------------
# Parameter construction (plain JAX / numpy glue, deterministic)
# ---------------------------------------------------------------------------
def positionalencoding2d(d_model, height, width):
    d_model_orig = d_model
    if d_model % 4 != 0:
        d_model = d_model + 2
    pe = np.zeros((d_model, height, width), dtype=np.float32)
    d_half = d_model // 2
    div_term = np.exp(np.arange(0.0, d_half, 2) * -(math.log(10000.0) / d_half))
    pos_w = np.arange(0.0, width)[:, None]
    pos_h = np.arange(0.0, height)[:, None]
    pe[0:d_half:2, :, :] = np.repeat(np.sin(pos_w * div_term).T[:, None, :], height, axis=1)
    pe[1:d_half:2, :, :] = np.repeat(np.cos(pos_w * div_term).T[:, None, :], height, axis=1)
    pe[d_half::2, :, :] = np.repeat(np.sin(pos_h * div_term).T[:, :, None], width, axis=2)
    pe[d_half + 1::2, :, :] = np.repeat(np.cos(pos_h * div_term).T[:, :, None], width, axis=2)
    return pe[:d_model_orig, :, :]


def lcg_like(m, n, seed):
    # TODO(synk): original LCG() loads 'RAE_LCG_weights.pkl'; replaced with a
    # deterministic standardized pseudo-random init of the same shape/stats.
    if m * n == 1:
        return jnp.ones((1, 1), dtype=jnp.float32)
    key = jax.random.PRNGKey(seed)
    v = jax.random.normal(key, (m * n,), dtype=jnp.float32)
    v = (v - jnp.mean(v)) / jnp.std(v)
    return v.reshape(m, n)


def make_orthogonal(t):
    rows, cols = t.shape
    flattened = t.T if rows < cols else t
    q, r = jnp.linalg.qr(flattened)
    d = jnp.diag(r)
    q = q * jnp.sign(d)
    if rows < cols:
        q = q.T
    return q


# ---------------------------------------------------------------------------
# Pallas kernel: one batch element per grid step, lstsq solve fused in-kernel
# ---------------------------------------------------------------------------
def _make_rae_kernel(T, P, Q, pos_encoding, n_iters):
    def kernel(*refs):
        # pos_encoding=True : (x_ref, enc_ref, w_ref, b_ref, out_ref)
        # pos_encoding=False: (x_ref,          w_ref, b_ref, out_ref)
        if pos_encoding:
            x_ref, enc_ref, w_ref, b_ref, out_ref = refs
        else:
            x_ref, w_ref, b_ref, out_ref = refs

        x = x_ref[0]                                              # (T, P)
        xb = x + enc_ref[...] if pos_encoding else x              # (T, P)

        # Hidden projection: contract over P against W stored as (Q, P)
        # (no wrapper transpose; MXU takes either orientation via dim numbers).
        pre = lax.dot_general(xb, w_ref[...], (((1,), (1,)), ((), ())),
                              preferred_element_type=jnp.float32)  # (T, Q)
        h = jax.nn.sigmoid(pre + b_ref[...])                       # (T, Q), f32

        # Separate Gram products, contracting over T (no h.T, no concat):
        G = lax.dot_general(h, h, (((0,), (0,)), ((), ())),
                            preferred_element_type=jnp.float32)    # (Q, Q) = H^T H
        R = lax.dot_general(h, xb, (((0,), (0,)), ((), ())),
                            preferred_element_type=jnp.float32)    # (Q, P) = H^T X

        # Fused lstsq solve via Newton-Schulz (pure MXU matmuls):
        #   V_0 = alpha * H^T,  V_{k+1} = (2I - V_k H) V_k  ->  pinv(H)
        # tracking only S_k = V_k X (Q,P) and E_k = V_k H (Q,Q):
        #   S_{k+1} = 2 S_k - E_k S_k,   E_{k+1} = 2 E_k - E_k E_k
        # alpha = 1/||G||_inf guarantees eig(E_0) in (0, 1] -> convergence.
        norm = jnp.max(jnp.sum(jnp.abs(G), axis=1, keepdims=True),
                       axis=0, keepdims=True)                      # (1,1) >= lambda_max
        alpha = 1.0 / (norm + 1e-30)
        E = alpha * G                                              # (Q, Q)
        S = alpha * R                                              # (Q, P)
        for _ in range(n_iters):                                   # static unroll, tiny
            S = 2.0 * S - jnp.dot(E, S, preferred_element_type=jnp.float32)
            E = 2.0 * E - jnp.dot(E, E, preferred_element_type=jnp.float32)

        out_ref[0] = S                                             # (Q, P)

    return kernel


@functools.partial(jax.jit, static_argnames=("pos_encoding",))
def rae_forward(x, encoding, W, bias, pos_encoding=True):
    x = jnp.asarray(x, jnp.float32)
    B, T, P = x.shape
    Q = W.shape[0]
    w = jnp.asarray(W, jnp.float32)                    # (Q, P), untransposed
    b2 = jnp.asarray(bias, jnp.float32).reshape(1, Q)

    n_iters = 36  # fixed-count; over-iterating is numerically neutral

    args = [x]
    in_specs = [pl.BlockSpec((1, T, P), lambda b: (b, 0, 0))]
    if pos_encoding:
        args.append(jnp.asarray(encoding, jnp.float32))            # (T, P)
        in_specs.append(pl.BlockSpec((T, P), lambda b: (0, 0)))
    args += [w, b2]
    in_specs += [pl.BlockSpec((Q, P), lambda b: (0, 0)),
                 pl.BlockSpec((1, Q), lambda b: (0, 0))]

    flops = B * (2 * T * P * Q            # projection
                 + 2 * T * Q * Q          # H^T H
                 + 2 * T * Q * P          # H^T X
                 + n_iters * (2 * Q * Q * Q + 2 * Q * Q * P))
    bytes_accessed = 4 * (B * T * P + (T * P if pos_encoding else 0)
                          + Q * P + Q + B * Q * P)
    cost = pl.CostEstimate(flops=flops, transcendentals=B * T * Q,
                           bytes_accessed=bytes_accessed)

    # Per-step VMEM footprint is a few hundred KB at these shapes; if B/T/P are
    # scaled up, keep this per-batch tiling (and set vmem_limit_bytes) so the
    # 64 MiB v7x VMEM ceiling is respected.
    sol = pl.pallas_call(
        _make_rae_kernel(T, P, Q, pos_encoding, n_iters),
        out_shape=jax.ShapeDtypeStruct((B, Q, P), jnp.float32),
        grid=(B,),
        in_specs=in_specs,
        out_specs=pl.BlockSpec((1, Q, P), lambda b: (b, 0, 0)),
        compiler_params=pltpu.CompilerParams(
            dimension_semantics=("parallel",)),     # v7x: batch across both TCs
        cost_estimate=cost,
    )(*args)

    # Contiguous reshape -> metadata-only, no extra copy.
    return sol.reshape(B, Q * P)


# ---------------------------------------------------------------------------
if __name__ == "__main__":
    # Small shapes consistent with the module:
    #   P (input features) = 16, Q (hidden) = 32,
    #   ntks = 64 (8x8 window), depth = 2  ->  T = 128 tokens, batch = 2
    batch, P, Q = 2, 16, 32
    ntks, depth = 64, 2
    T = ntks * depth
    window = int(math.sqrt(ntks))
    seed = 0

    # Parameters (deterministic, as in __init__)
    enc2d = positionalencoding2d(P, window, window).reshape(P, ntks).T     # (ntks, P)
    encoding = jnp.asarray(np.vstack([enc2d for _ in range(depth)]))       # (T, P)
    W = make_orthogonal(lcg_like(Q, P, seed))                              # (Q, P)
    bias = jnp.ones((Q,), dtype=jnp.float32)

    # Example input
    key = jax.random.PRNGKey(0)
    x = jax.random.normal(key, (batch, T, P), dtype=jnp.float32)

    out = rae_forward(x, encoding, W, bias, pos_encoding=True)
    out = jax.block_until_ready(out)
    assert out.shape == (batch, Q * P)
    assert bool(jnp.all(jnp.isfinite(out)))
    print("KERNEL_OK")
</pallas_src>

<mosaic_0001>
module attributes {stable_mosaic.version = 11 : i64} {
  func.func @kernel(%arg0: i32, %arg1: memref<1x128x16xf32, #tpu.memory_space<vmem>>, %arg2: memref<128x16xf32, #tpu.memory_space<vmem>>, %arg3: memref<32x16xf32, #tpu.memory_space<vmem>>, %arg4: memref<1x32xf32, #tpu.memory_space<vmem>>, %arg5: memref<1x32x16xf32, #tpu.memory_space<vmem>>) attributes {dimension_semantics = [#tpu.dimension_semantics<parallel>], iteration_bounds = array<i64: 2>, scalar_prefetch = 0 : i64, scratch_operands = 0 : i64, tpu.core_type = #tpu.core_type<tc>, window_params = [{transform_indices = @transform_0, window_bounds = array<i64: 1, 128, 16>}, {pipeline_mode = #tpu.pipeline_mode<synchronous>, transform_indices = @transform_1, window_bounds = array<i64: 128, 16>}, {pipeline_mode = #tpu.pipeline_mode<synchronous>, transform_indices = @transform_2, window_bounds = array<i64: 32, 16>}, {pipeline_mode = #tpu.pipeline_mode<synchronous>, transform_indices = @transform_3, window_bounds = array<i64: 1, 32>}, {transform_indices = @transform_4, window_bounds = array<i64: 1, 32, 16>}]} {
    %c0 = arith.constant 0 : index
    %c0_0 = arith.constant 0 : index
    %c0_1 = arith.constant 0 : index
    %0 = vector.load %arg1[%c0, %c0_0, %c0_1] : memref<1x128x16xf32, #tpu.memory_space<vmem>>, vector<1x128x16xf32>
    %1 = vector.shape_cast %0 : vector<1x128x16xf32> to vector<128x16xf32>
    %c0_2 = arith.constant 0 : index
    %c0_3 = arith.constant 0 : index
    %2 = vector.load %arg2[%c0_2, %c0_3] : memref<128x16xf32, #tpu.memory_space<vmem>>, vector<128x16xf32>
    %3 = arith.addf %1, %2 : vector<128x16xf32>
    %c0_4 = arith.constant 0 : index
    %c0_5 = arith.constant 0 : index
    %4 = vector.load %arg3[%c0_4, %c0_5] : memref<32x16xf32, #tpu.memory_space<vmem>>, vector<32x16xf32>
    %cst = arith.constant dense<0.000000e+00> : vector<128x32xf32>
    %5 = tpu.matmul %3, %4, %cst {dimension_numbers = #tpu.dot_dimension_numbers<[1], [1], [0], [0], [0, 0, 1, 0], [], []>} : vector<128x16xf32>, vector<32x16xf32>, vector<128x32xf32> -> vector<128x32xf32>
    %c0_6 = arith.constant 0 : index
    %c0_7 = arith.constant 0 : index
    %6 = vector.load %arg4[%c0_6, %c0_7] : memref<1x32xf32, #tpu.memory_space<vmem>>, vector<1x32xf32>
    %7 = vector.broadcast %6 : vector<1x32xf32> to vector<128x32xf32>
    %8 = arith.addf %5, %7 : vector<128x32xf32>
    %9 = arith.negf %8 : vector<128x32xf32>
    %10 = math.exp %9 : vector<128x32xf32>
    %cst_8 = arith.constant 1.000000e+00 : f32
    %11 = vector.broadcast %cst_8 : f32 to vector<128x32xf32>
    %12 = arith.addf %11, %10 : vector<128x32xf32>
    %13 = arith.divf %11, %12 : vector<128x32xf32>
    %cst_9 = arith.constant dense<0.000000e+00> : vector<32x32xf32>
    %14 = tpu.matmul %13, %13, %cst_9 {dimension_numbers = #tpu.dot_dimension_numbers<[0], [0], [1], [1], [0, 1, 1, 1], [], []>} : vector<128x32xf32>, vector<128x32xf32>, vector<32x32xf32> -> vector<32x32xf32>
    %cst_10 = arith.constant dense<0.000000e+00> : vector<32x16xf32>
    %15 = tpu.matmul %13, %3, %cst_10 {dimension_numbers = #tpu.dot_dimension_numbers<[0], [0], [1], [1], [0, 1, 1, 1], [], []>} : vector<128x32xf32>, vector<128x16xf32>, vector<32x16xf32> -> vector<32x16xf32>
    %16 = math.absf %14 : vector<32x32xf32>
    %cst_11 = arith.constant dense<0.000000e+00> : vector<32xf32>
    %17 = vector.multi_reduction <add>, %16, %cst_11 [1] : vector<32x32xf32> to vector<32xf32>
    %18 = vector.shape_cast %17 : vector<32xf32> to vector<32x1xf32>
    %cst_12 = arith.constant dense<0xFF800000> : vector<1xf32>
    %19 = vector.multi_reduction <maximumf>, %18, %cst_12 [0] : vector<32x1xf32> to vector<1xf32>
    %20 = vector.shape_cast %19 : vector<1xf32> to vector<1x1xf32>
    %cst_13 = arith.constant 1.000000e-30 : f32
    %21 = vector.broadcast %cst_13 : f32 to vector<1x1xf32>
    %22 = arith.addf %20, %21 : vector<1x1xf32>
    %cst_14 = arith.constant 1.000000e+00 : f32
    %23 = vector.broadcast %cst_14 : f32 to vector<1x1xf32>
    %24 = arith.divf %23, %22 : vector<1x1xf32>
    %25 = vector.broadcast %24 : vector<1x1xf32> to vector<32x32xf32>
    %26 = arith.mulf %25, %14 : vector<32x32xf32>
    %27 = vector.broadcast %24 : vector<1x1xf32> to vector<32x16xf32>
    %28 = arith.mulf %27, %15 : vector<32x16xf32>
    %cst_15 = arith.constant 2.000000e+00 : f32
    %29 = vector.broadcast %cst_15 : f32 to vector<32x16xf32>
    %30 = arith.mulf %29, %28 : vector<32x16xf32>
    %cst_16 = arith.constant dense<0.000000e+00> : vector<32x16xf32>
    %31 = tpu.matmul %26, %28, %cst_16 {dimension_numbers = #tpu.dot_dimension_numbers<[1], [0], [0], [1], [0, 0, 1, 1], [], []>} : vector<32x32xf32>, vector<32x16xf32>, vector<32x16xf32> -> vector<32x16xf32>
    %32 = arith.subf %30, %31 : vector<32x16xf32>
    %cst_17 = arith.constant 2.000000e+00 : f32
    %33 = vector.broadcast %cst_17 : f32 to vector<32x32xf32>
    %34 = arith.mulf %33, %26 : vector<32x32xf32>
    %cst_18 = arith.constant dense<0.000000e+00> : vector<32x32xf32>
    %35 = tpu.matmul %26, %26, %cst_18 {dimension_numbers = #tpu.dot_dimension_numbers<[1], [0], [0], [1], [0, 0, 1, 1], [], []>} : vector<32x32xf32>, vector<32x32xf32>, vector<32x32xf32> -> vector<32x32xf32>
    %36 = arith.subf %34, %35 : vector<32x32xf32>
    %cst_19 = arith.constant 2.000000e+00 : f32
    %37 = vector.broadcast %cst_19 : f32 to vector<32x16xf32>
    %38 = arith.mulf %37, %32 : vector<32x16xf32>
    %cst_20 = arith.constant dense<0.000000e+00> : vector<32x16xf32>
    %39 = tpu.matmul %36, %32, %cst_20 {dimension_numbers = #tpu.dot_dimension_numbers<[1], [0], [0], [1], [0, 0, 1, 1], [], []>} : vector<32x32xf32>, vector<32x16xf32>, vector<32x16xf32> -> vector<32x16xf32>
    %40 = arith.subf %38, %39 : vector<32x16xf32>
    %cst_21 = arith.constant 2.000000e+00 : f32
    %41 = vector.broadcast %cst_21 : f32 to vector<32x32xf32>
    %42 = arith.mulf %41, %36 : vector<32x32xf32>
    %cst_22 = arith.constant dense<0.000000e+00> : vector<32x32xf32>
    %43 = tpu.matmul %36, %36, %cst_22 {dimension_numbers = #tpu.dot_dimension_numbers<[1], [0], [0], [1], [0, 0, 1, 1], [], []>} : vector<32x32xf32>, vector<32x32xf32>, vector<32x32xf32> -> vector<32x32xf32>
    %44 = arith.subf %42, %43 : vector<32x32xf32>
    %cst_23 = arith.constant 2.000000e+00 : f32
    %45 = vector.broadcast %cst_23 : f32 to vector<32x16xf32>
    %46 = arith.mulf %45, %40 : vector<32x16xf32>
    %cst_24 = arith.constant dense<0.000000e+00> : vector<32x16xf32>
    %47 = tpu.matmul %44, %40, %cst_24 {dimension_numbers = #tpu.dot_dimension_numbers<[1], [0], [0], [1], [0, 0, 1, 1], [], []>} : vector<32x32xf32>, vector<32x16xf32>, vector<32x16xf32> -> vector<32x16xf32>
    %48 = arith.subf %46, %47 : vector<32x16xf32>
    %cst_25 = arith.constant 2.000000e+00 : f32
    %49 = vector.broadcast %cst_25 : f32 to vector<32x32xf32>
    %50 = arith.mulf %49, %44 : vector<32x32xf32>
    %cst_26 = arith.constant dense<0.000000e+00> : vector<32x32xf32>
    %51 = tpu.matmul %44, %44, %cst_26 {dimension_numbers = #tpu.dot_dimension_numbers<[1], [0], [0], [1], [0, 0, 1, 1], [], []>} : vector<32x32xf32>, vector<32x32xf32>, vector<32x32xf32> -> vector<32x32xf32>
    %52 = arith.subf %50, %51 : vector<32x32xf32>
    %cst_27 = arith.constant 2.000000e+00 : f32
    %53 = vector.broadcast %cst_27 : f32 to vector<32x16xf32>
    %54 = arith.mulf %53, %48 : vector<32x16xf32>
    %cst_28 = arith.constant dense<0.000000e+00> : vector<32x16xf32>
    %55 = tpu.matmul %52, %48, %cst_28 {dimension_numbers = #tpu.dot_dimension_numbers<[1], [0], [0], [1], [0, 0, 1, 1], [], []>} : vector<32x32xf32>, vector<32x16xf32>, vector<32x16xf32> -> vector<32x16xf32>
    %56 = arith.subf %54, %55 : vector<32x16xf32>
    %cst_29 = arith.constant 2.000000e+00 : f32
    %57 = vector.broadcast %cst_29 : f32 to vector<32x32xf32>
    %58 = arith.mulf %57, %52 : vector<32x32xf32>
    %cst_30 = arith.constant dense<0.000000e+00> : vector<32x32xf32>
    %59 = tpu.matmul %52, %52, %cst_30 {dimension_numbers = #tpu.dot_dimension_numbers<[1], [0], [0], [1], [0, 0, 1, 1], [], []>} : vector<32x32xf32>, vector<32x32xf32>, vector<32x32xf32> -> vector<32x32xf32>
    %60 = arith.subf %58, %59 : vector<32x32xf32>
    %cst_31 = arith.constant 2.000000e+00 : f32
    %61 = vector.broadcast %cst_31 : f32 to vector<32x16xf32>
    %62 = arith.mulf %61, %56 : vector<32x16xf32>
    %cst_32 = arith.constant dense<0.000000e+00> : vector<32x16xf32>
    %63 = tpu.matmul %60, %56, %cst_32 {dimension_numbers = #tpu.dot_dimension_numbers<[1], [0], [0], [1], [0, 0, 1, 1], [], []>} : vector<32x32xf32>, vector<32x16xf32>, vector<32x16xf32> -> vector<32x16xf32>
    %64 = arith.subf %62, %63 : vector<32x16xf32>
    %cst_33 = arith.constant 2.000000e+00 : f32
    %65 = vector.broadcast %cst_33 : f32 to vector<32x32xf32>
    %66 = arith.mulf %65, %60 : vector<32x32xf32>
    %cst_34 = arith.constant dense<0.000000e+00> : vector<32x32xf32>
    %67 = tpu.matmul %60, %60, %cst_34 {dimension_numbers = #tpu.dot_dimension_numbers<[1], [0], [0], [1], [0, 0, 1, 1], [], []>} : vector<32x32xf32>, vector<32x32xf32>, vector<32x32xf32> -> vector<32x32xf32>
    %68 = arith.subf %66, %67 : vector<32x32xf32>
    %cst_35 = arith.constant 2.000000e+00 : f32
    %69 = vector.broadcast %cst_35 : f32 to vector<32x16xf32>
    %70 = arith.mulf %69, %64 : vector<32x16xf32>
    %cst_36 = arith.constant dense<0.000000e+00> : vector<32x16xf32>
    %71 = tpu.matmul %68, %64, %cst_36 {dimension_numbers = #tpu.dot_dimension_numbers<[1], [0], [0], [1], [0, 0, 1, 1], [], []>} : vector<32x32xf32>, vector<32x16xf32>, vector<32x16xf32> -> vector<32x16xf32>
    %72 = arith.subf %70, %71 : vector<32x16xf32>
    %cst_37 = arith.constant 2.000000e+00 : f32
    %73 = vector.broadcast %cst_37 : f32 to vector<32x32xf32>
    %74 = arith.mulf %73, %68 : vector<32x32xf32>
    %cst_38 = arith.constant dense<0.000000e+00> : vector<32x32xf32>
    %75 = tpu.matmul %68, %68, %cst_38 {dimension_numbers = #tpu.dot_dimension_numbers<[1], [0], [0], [1], [0, 0, 1, 1], [], []>} : vector<32x32xf32>, vector<32x32xf32>, vector<32x32xf32> -> vector<32x32xf32>
    %76 = arith.subf %74, %75 : vector<32x32xf32>
    %cst_39 = arith.constant 2.000000e+00 : f32
    %77 = vector.broadcast %cst_39 : f32 to vector<32x16xf32>
    %78 = arith.mulf %77, %72 : vector<32x16xf32>
    %cst_40 = arith.constant dense<0.000000e+00> : vector<32x16xf32>
    %79 = tpu.matmul %76, %72, %cst_40 {dimension_numbers = #tpu.dot_dimension_numbers<[1], [0], [0], [1], [0, 0, 1, 1], [], []>} : vector<32x32xf32>, vector<32x16xf32>, vector<32x16xf32> -> vector<32x16xf32>
    %80 = arith.subf %78, %79 : vector<32x16xf32>
    %cst_41 = arith.constant 2.000000e+00 : f32
    %81 = vector.broadcast %cst_41 : f32 to vector<32x32xf32>
    %82 = arith.mulf %81, %76 : vector<32x32xf32>
    %cst_42 = arith.constant dense<0.000000e+00> : vector<32x32xf32>
    %83 = tpu.matmul %76, %76, %cst_42 {dimension_numbers = #tpu.dot_dimension_numbers<[1], [0], [0], [1], [0, 0, 1, 1], [], []>} : vector<32x32xf32>, vector<32x32xf32>, vector<32x32xf32> -> vector<32x32xf32>
    %84 = arith.subf %82, %83 : vector<32x32xf32>
    %cst_43 = arith.constant 2.000000e+00 : f32
    %85 = vector.broadcast %cst_43 : f32 to vector<32x16xf32>
    %86 = arith.mulf %85, %80 : vector<32x16xf32>
    %cst_44 = arith.constant dense<0.000000e+00> : vector<32x16xf32>
    %87 = tpu.matmul %84, %80, %cst_44 {dimension_numbers = #tpu.dot_dimension_numbers<[1], [0], [0], [1], [0, 0, 1, 1], [], []>} : vector<32x32xf32>, vector<32x16xf32>, vector<32x16xf32> -> vector<32x16xf32>
    %88 = arith.subf %86, %87 : vector<32x16xf32>
    %cst_45 = arith.constant 2.000000e+00 : f32
    %89 = vector.broadcast %cst_45 : f32 to vector<32x32xf32>
    %90 = arith.mulf %89, %84 : vector<32x32xf32>
    %cst_46 = arith.constant dense<0.000000e+00> : vector<32x32xf32>
    %91 = tpu.matmul %84, %84, %cst_46 {dimension_numbers = #tpu.dot_dimension_numbers<[1], [0], [0], [1], [0, 0, 1, 1], [], []>} : vector<32x32xf32>, vector<32x32xf32>, vector<32x32xf32> -> vector<32x32xf32>
    %92 = arith.subf %90, %91 : vector<32x32xf32>
    %cst_47 = arith.constant 2.000000e+00 : f32
    %93 = vector.broadcast %cst_47 : f32 to vector<32x16xf32>
    %94 = arith.mulf %93, %88 : vector<32x16xf32>
    %cst_48 = arith.constant dense<0.000000e+00> : vector<32x16xf32>
    %95 = tpu.matmul %92, %88, %cst_48 {dimension_numbers = #tpu.dot_dimension_numbers<[1], [0], [0], [1], [0, 0, 1, 1], [], []>} : vector<32x32xf32>, vector<32x16xf32>, vector<32x16xf32> -> vector<32x16xf32>
    %96 = arith.subf %94, %95 : vector<32x16xf32>
    %cst_49 = arith.constant 2.000000e+00 : f32
    %97 = vector.broadcast %cst_49 : f32 to vector<32x32xf32>
    %98 = arith.mulf %97, %92 : vector<32x32xf32>
    %cst_50 = arith.constant dense<0.000000e+00> : vector<32x32xf32>
    %99 = tpu.matmul %92, %92, %cst_50 {dimension_numbers = #tpu.dot_dimension_numbers<[1], [0], [0], [1], [0, 0, 1, 1], [], []>} : vector<32x32xf32>, vector<32x32xf32>, vector<32x32xf32> -> vector<32x32xf32>
    %100 = arith.subf %98, %99 : vector<32x32xf32>
    %cst_51 = arith.constant 2.000000e+00 : f32
    %101 = vector.broadcast %cst_51 : f32 to vector<32x16xf32>
    %102 = arith.mulf %101, %96 : vector<32x16xf32>
    %cst_52 = arith.constant dense<0.000000e+00> : vector<32x16xf32>
    %103 = tpu.matmul %100, %96, %cst_52 {dimension_numbers = #tpu.dot_dimension_numbers<[1], [0], [0], [1], [0, 0, 1, 1], [], []>} : vector<32x32xf32>, vector<32x16xf32>, vector<32x16xf32> -> vector<32x16xf32>
    %104 = arith.subf %102, %103 : vector<32x16xf32>
    %cst_53 = arith.constant 2.000000e+00 : f32
    %105 = vector.broadcast %cst_53 : f32 to vector<32x32xf32>
    %106 = arith.mulf %105, %100 : vector<32x32xf32>
    %cst_54 = arith.constant dense<0.000000e+00> : vector<32x32xf32>
    %107 = tpu.matmul %100, %100, %cst_54 {dimension_numbers = #tpu.dot_dimension_numbers<[1], [0], [0], [1], [0, 0, 1, 1], [], []>} : vector<32x32xf32>, vector<32x32xf32>, vector<32x32xf32> -> vector<32x32xf32>
    %108 = arith.subf %106, %107 : vector<32x32xf32>
    %cst_55 = arith.constant 2.000000e+00 : f32
    %109 = vector.broadcast %cst_55 : f32 to vector<32x16xf32>
    %110 = arith.mulf %109, %104 : vector<32x16xf32>
    %cst_56 = arith.constant dense<0.000000e+00> : vector<32x16xf32>
    %111 = tpu.matmul %108, %104, %cst_56 {dimension_numbers = #tpu.dot_dimension_numbers<[1], [0], [0], [1], [0, 0, 1, 1], [], []>} : vector<32x32xf32>, vector<32x16xf32>, vector<32x16xf32> -> vector<32x16xf32>
    %112 = arith.subf %110, %111 : vector<32x16xf32>
    %cst_57 = arith.constant 2.000000e+00 : f32
    %113 = vector.broadcast %cst_57 : f32 to vector<32x32xf32>
    %114 = arith.mulf %113, %108 : vector<32x32xf32>
    %cst_58 = arith.constant dense<0.000000e+00> : vector<32x32xf32>
    %115 = tpu.matmul %108, %108, %cst_58 {dimension_numbers = #tpu.dot_dimension_numbers<[1], [0], [0], [1], [0, 0, 1, 1], [], []>} : vector<32x32xf32>, vector<32x32xf32>, vector<32x32xf32> -> vector<32x32xf32>
    %116 = arith.subf %114, %115 : vector<32x32xf32>
    %cst_59 = arith.constant 2.000000e+00 : f32
    %117 = vector.broadcast %cst_59 : f32 to vector<32x16xf32>
    %118 = arith.mulf %117, %112 : vector<32x16xf32>
    %cst_60 = arith.constant dense<0.000000e+00> : vector<32x16xf32>
    %119 = tpu.matmul %116, %112, %cst_60 {dimension_numbers = #tpu.dot_dimension_numbers<[1], [0], [0], [1], [0, 0, 1, 1], [], []>} : vector<32x32xf32>, vector<32x16xf32>, vector<32x16xf32> -> vector<32x16xf32>
    %120 = arith.subf %118, %119 : vector<32x16xf32>
    %cst_61 = arith.constant 2.000000e+00 : f32
    %121 = vector.broadcast %cst_61 : f32 to vector<32x32xf32>
    %122 = arith.mulf %121, %116 : vector<32x32xf32>
    %cst_62 = arith.constant dense<0.000000e+00> : vector<32x32xf32>
    %123 = tpu.matmul %116, %116, %cst_62 {dimension_numbers = #tpu.dot_dimension_numbers<[1], [0], [0], [1], [0, 0, 1, 1], [], []>} : vector<32x32xf32>, vector<32x32xf32>, vector<32x32xf32> -> vector<32x32xf32>
    %124 = arith.subf %122, %123 : vector<32x32xf32>
    %cst_63 = arith.constant 2.000000e+00 : f32
    %125 = vector.broadcast %cst_63 : f32 to vector<32x16xf32>
    %126 = arith.mulf %125, %120 : vector<32x16xf32>
    %cst_64 = arith.constant dense<0.000000e+00> : vector<32x16xf32>
    %127 = tpu.matmul %124, %120, %cst_64 {dimension_numbers = #tpu.dot_dimension_numbers<[1], [0], [0], [1], [0, 0, 1, 1], [], []>} : vector<32x32xf32>, vector<32x16xf32>, vector<32x16xf32> -> vector<32x16xf32>
    %128 = arith.subf %126, %127 : vector<32x16xf32>
    %cst_65 = arith.constant 2.000000e+00 : f32
    %129 = vector.broadcast %cst_65 : f32 to vector<32x32xf32>
    %130 = arith.mulf %129, %124 : vector<32x32xf32>
    %cst_66 = arith.constant dense<0.000000e+00> : vector<32x32xf32>
    %131 = tpu.matmul %124, %124, %cst_66 {dimension_numbers = #tpu.dot_dimension_numbers<[1], [0], [0], [1], [0, 0, 1, 1], [], []>} : vector<32x32xf32>, vector<32x32xf32>, vector<32x32xf32> -> vector<32x32xf32>
    %132 = arith.subf %130, %131 : vector<32x32xf32>
    %cst_67 = arith.constant 2.000000e+00 : f32
    %133 = vector.broadcast %cst_67 : f32 to vector<32x16xf32>
    %134 = arith.mulf %133, %128 : vector<32x16xf32>
    %cst_68 = arith.constant dense<0.000000e+00> : vector<32x16xf32>
    %135 = tpu.matmul %132, %128, %cst_68 {dimension_numbers = #tpu.dot_dimension_numbers<[1], [0], [0], [1], [0, 0, 1, 1], [], []>} : vector<32x32xf32>, vector<32x16xf32>, vector<32x16xf32> -> vector<32x16xf32>
    %136 = arith.subf %134, %135 : vector<32x16xf32>
    %cst_69 = arith.constant 2.000000e+00 : f32
    %137 = vector.broadcast %cst_69 : f32 to vector<32x32xf32>
    %138 = arith.mulf %137, %132 : vector<32x32xf32>
    %cst_70 = arith.constant dense<0.000000e+00> : vector<32x32xf32>
    %139 = tpu.matmul %132, %132, %cst_70 {dimension_numbers = #tpu.dot_dimension_numbers<[1], [0], [0], [1], [0, 0, 1, 1], [], []>} : vector<32x32xf32>, vector<32x32xf32>, vector<32x32xf32> -> vector<32x32xf32>
    %140 = arith.subf %138, %139 : vector<32x32xf32>
    %cst_71 = arith.constant 2.000000e+00 : f32
    %141 = vector.broadcast %cst_71 : f32 to vector<32x16xf32>
    %142 = arith.mulf %141, %136 : vector<32x16xf32>
    %cst_72 = arith.constant dense<0.000000e+00> : vector<32x16xf32>
    %143 = tpu.matmul %140, %136, %cst_72 {dimension_numbers = #tpu.dot_dimension_numbers<[1], [0], [0], [1], [0, 0, 1, 1], [], []>} : vector<32x32xf32>, vector<32x16xf32>, vector<32x16xf32> -> vector<32x16xf32>
    %144 = arith.subf %142, %143 : vector<32x16xf32>
    %cst_73 = arith.constant 2.000000e+00 : f32
    %145 = vector.broadcast %cst_73 : f32 to vector<32x32xf32>
    %146 = arith.mulf %145, %140 : vector<32x32xf32>
    %cst_74 = arith.constant dense<0.000000e+00> : vector<32x32xf32>
    %147 = tpu.matmul %140, %140, %cst_74 {dimension_numbers = #tpu.dot_dimension_numbers<[1], [0], [0], [1], [0, 0, 1, 1], [], []>} : vector<32x32xf32>, vector<32x32xf32>, vector<32x32xf32> -> vector<32x32xf32>
    %148 = arith.subf %146, %147 : vector<32x32xf32>
    %cst_75 = arith.constant 2.000000e+00 : f32
    %149 = vector.broadcast %cst_75 : f32 to vector<32x16xf32>
    %150 = arith.mulf %149, %144 : vector<32x16xf32>
    %cst_76 = arith.constant dense<0.000000e+00> : vector<32x16xf32>
    %151 = tpu.matmul %148, %144, %cst_76 {dimension_numbers = #tpu.dot_dimension_numbers<[1], [0], [0], [1], [0, 0, 1, 1], [], []>} : vector<32x32xf32>, vector<32x16xf32>, vector<32x16xf32> -> vector<32x16xf32>
    %152 = arith.subf %150, %151 : vector<32x16xf32>
    %cst_77 = arith.constant 2.000000e+00 : f32
    %153 = vector.broadcast %cst_77 : f32 to vector<32x32xf32>
    %154 = arith.mulf %153, %148 : vector<32x32xf32>
    %cst_78 = arith.constant dense<0.000000e+00> : vector<32x32xf32>
    %155 = tpu.matmul %148, %148, %cst_78 {dimension_numbers = #tpu.dot_dimension_numbers<[1], [0], [0], [1], [0, 0, 1, 1], [], []>} : vector<32x32xf32>, vector<32x32xf32>, vector<32x32xf32> -> vector<32x32xf32>
    %156 = arith.subf %154, %155 : vector<32x32xf32>
    %cst_79 = arith.constant 2.000000e+00 : f32
    %157 = vector.broadcast %cst_79 : f32 to vector<32x16xf32>
    %158 = arith.mulf %157, %152 : vector<32x16xf32>
    %cst_80 = arith.constant dense<0.000000e+00> : vector<32x16xf32>
    %159 = tpu.matmul %156, %152, %cst_80 {dimension_numbers = #tpu.dot_dimension_numbers<[1], [0], [0], [1], [0, 0, 1, 1], [], []>} : vector<32x32xf32>, vector<32x16xf32>, vector<32x16xf32> -> vector<32x16xf32>
    %160 = arith.subf %158, %159 : vector<32x16xf32>
    %cst_81 = arith.constant 2.000000e+00 : f32
    %161 = vector.broadcast %cst_81 : f32 to vector<32x32xf32>
    %162 = arith.mulf %161, %156 : vector<32x32xf32>
    %cst_82 = arith.constant dense<0.000000e+00> : vector<32x32xf32>
    %163 = tpu.matmul %156, %156, %cst_82 {dimension_numbers = #tpu.dot_dimension_numbers<[1], [0], [0], [1], [0, 0, 1, 1], [], []>} : vector<32x32xf32>, vector<32x32xf32>, vector<32x32xf32> -> vector<32x32xf32>
    %164 = arith.subf %162, %163 : vector<32x32xf32>
    %cst_83 = arith.constant 2.000000e+00 : f32
    %165 = vector.broadcast %cst_83 : f32 to vector<32x16xf32>
    %166 = arith.mulf %165, %160 : vector<32x16xf32>
    %cst_84 = arith.constant dense<0.000000e+00> : vector<32x16xf32>
    %167 = tpu.matmul %164, %160, %cst_84 {dimension_numbers = #tpu.dot_dimension_numbers<[1], [0], [0], [1], [0, 0, 1, 1], [], []>} : vector<32x32xf32>, vector<32x16xf32>, vector<32x16xf32> -> vector<32x16xf32>
    %168 = arith.subf %166, %167 : vector<32x16xf32>
    %cst_85 = arith.constant 2.000000e+00 : f32
    %169 = vector.broadcast %cst_85 : f32 to vector<32x32xf32>
    %170 = arith.mulf %169, %164 : vector<32x32xf32>
    %cst_86 = arith.constant dense<0.000000e+00> : vector<32x32xf32>
    %171 = tpu.matmul %164, %164, %cst_86 {dimension_numbers = #tpu.dot_dimension_numbers<[1], [0], [0], [1], [0, 0, 1, 1], [], []>} : vector<32x32xf32>, vector<32x32xf32>, vector<32x32xf32> -> vector<32x32xf32>
    %172 = arith.subf %170, %171 : vector<32x32xf32>
    %cst_87 = arith.constant 2.000000e+00 : f32
    %173 = vector.broadcast %cst_87 : f32 to vector<32x16xf32>
    %174 = arith.mulf %173, %168 : vector<32x16xf32>
    %cst_88 = arith.constant dense<0.000000e+00> : vector<32x16xf32>
    %175 = tpu.matmul %172, %168, %cst_88 {dimension_numbers = #tpu.dot_dimension_numbers<[1], [0], [0], [1], [0, 0, 1, 1], [], []>} : vector<32x32xf32>, vector<32x16xf32>, vector<32x16xf32> -> vector<32x16xf32>
    %176 = arith.subf %174, %175 : vector<32x16xf32>
    %cst_89 = arith.constant 2.000000e+00 : f32
    %177 = vector.broadcast %cst_89 : f32 to vector<32x32xf32>
    %178 = arith.mulf %177, %172 : vector<32x32xf32>
    %cst_90 = arith.constant dense<0.000000e+00> : vector<32x32xf32>
    %179 = tpu.matmul %172, %172, %cst_90 {dimension_numbers = #tpu.dot_dimension_numbers<[1], [0], [0], [1], [0, 0, 1, 1], [], []>} : vector<32x32xf32>, vector<32x32xf32>, vector<32x32xf32> -> vector<32x32xf32>
    %180 = arith.subf %178, %179 : vector<32x32xf32>
    %cst_91 = arith.constant 2.000000e+00 : f32
    %181 = vector.broadcast %cst_91 : f32 to vector<32x16xf32>
    %182 = arith.mulf %181, %176 : vector<32x16xf32>
    %cst_92 = arith.constant dense<0.000000e+00> : vector<32x16xf32>
    %183 = tpu.matmul %180, %176, %cst_92 {dimension_numbers = #tpu.dot_dimension_numbers<[1], [0], [0], [1], [0, 0, 1, 1], [], []>} : vector<32x32xf32>, vector<32x16xf32>, vector<32x16xf32> -> vector<32x16xf32>
    %184 = arith.subf %182, %183 : vector<32x16xf32>
    %cst_93 = arith.constant 2.000000e+00 : f32
    %185 = vector.broadcast %cst_93 : f32 to vector<32x32xf32>
    %186 = arith.mulf %185, %180 : vector<32x32xf32>
    %cst_94 = arith.constant dense<0.000000e+00> : vector<32x32xf32>
    %187 = tpu.matmul %180, %180, %cst_94 {dimension_numbers = #tpu.dot_dimension_numbers<[1], [0], [0], [1], [0, 0, 1, 1], [], []>} : vector<32x32xf32>, vector<32x32xf32>, vector<32x32xf32> -> vector<32x32xf32>
    %188 = arith.subf %186, %187 : vector<32x32xf32>
    %cst_95 = arith.constant 2.000000e+00 : f32
    %189 = vector.broadcast %cst_95 : f32 to vector<32x16xf32>
    %190 = arith.mulf %189, %184 : vector<32x16xf32>
    %cst_96 = arith.constant dense<0.000000e+00> : vector<32x16xf32>
    %191 = tpu.matmul %188, %184, %cst_96 {dimension_numbers = #tpu.dot_dimension_numbers<[1], [0], [0], [1], [0, 0, 1, 1], [], []>} : vector<32x32xf32>, vector<32x16xf32>, vector<32x16xf32> -> vector<32x16xf32>
    %192 = arith.subf %190, %191 : vector<32x16xf32>
    %cst_97 = arith.constant 2.000000e+00 : f32
    %193 = vector.broadcast %cst_97 : f32 to vector<32x32xf32>
    %194 = arith.mulf %193, %188 : vector<32x32xf32>
    %cst_98 = arith.constant dense<0.000000e+00> : vector<32x32xf32>
    %195 = tpu.matmul %188, %188, %cst_98 {dimension_numbers = #tpu.dot_dimension_numbers<[1], [0], [0], [1], [0, 0, 1, 1], [], []>} : vector<32x32xf32>, vector<32x32xf32>, vector<32x32xf32> -> vector<32x32xf32>
    %196 = arith.subf %194, %195 : vector<32x32xf32>
    %cst_99 = arith.constant 2.000000e+00 : f32
    %197 = vector.broadcast %cst_99 : f32 to vector<32x16xf32>
    %198 = arith.mulf %197, %192 : vector<32x16xf32>
    %cst_100 = arith.constant dense<0.000000e+00> : vector<32x16xf32>
    %199 = tpu.matmul %196, %192, %cst_100 {dimension_numbers = #tpu.dot_dimension_numbers<[1], [0], [0], [1], [0, 0, 1, 1], [], []>} : vector<32x32xf32>, vector<32x16xf32>, vector<32x16xf32> -> vector<32x16xf32>
    %200 = arith.subf %198, %199 : vector<32x16xf32>
    %cst_101 = arith.constant 2.000000e+00 : f32
    %201 = vector.broadcast %cst_101 : f32 to vector<32x32xf32>
    %202 = arith.mulf %201, %196 : vector<32x32xf32>
    %cst_102 = arith.constant dense<0.000000e+00> : vector<32x32xf32>
    %203 = tpu.matmul %196, %196, %cst_102 {dimension_numbers = #tpu.dot_dimension_numbers<[1], [0], [0], [1], [0, 0, 1, 1], [], []>} : vector<32x32xf32>, vector<32x32xf32>, vector<32x32xf32> -> vector<32x32xf32>
    %204 = arith.subf %202, %203 : vector<32x32xf32>
    %cst_103 = arith.constant 2.000000e+00 : f32
    %205 = vector.broadcast %cst_103 : f32 to vector<32x16xf32>
    %206 = arith.mulf %205, %200 : vector<32x16xf32>
    %cst_104 = arith.constant dense<0.000000e+00> : vector<32x16xf32>
    %207 = tpu.matmul %204, %200, %cst_104 {dimension_numbers = #tpu.dot_dimension_numbers<[1], [0], [0], [1], [0, 0, 1, 1], [], []>} : vector<32x32xf32>, vector<32x16xf32>, vector<32x16xf32> -> vector<32x16xf32>
    %208 = arith.subf %206, %207 : vector<32x16xf32>
    %cst_105 = arith.constant 2.000000e+00 : f32
    %209 = vector.broadcast %cst_105 : f32 to vector<32x32xf32>
    %210 = arith.mulf %209, %204 : vector<32x32xf32>
    %cst_106 = arith.constant dense<0.000000e+00> : vector<32x32xf32>
    %211 = tpu.matmul %204, %204, %cst_106 {dimension_numbers = #tpu.dot_dimension_numbers<[1], [0], [0], [1], [0, 0, 1, 1], [], []>} : vector<32x32xf32>, vector<32x32xf32>, vector<32x32xf32> -> vector<32x32xf32>
    %212 = arith.subf %210, %211 : vector<32x32xf32>
    %cst_107 = arith.constant 2.000000e+00 : f32
    %213 = vector.broadcast %cst_107 : f32 to vector<32x16xf32>
    %214 = arith.mulf %213, %208 : vector<32x16xf32>
    %cst_108 = arith.constant dense<0.000000e+00> : vector<32x16xf32>
    %215 = tpu.matmul %212, %208, %cst_108 {dimension_numbers = #tpu.dot_dimension_numbers<[1], [0], [0], [1], [0, 0, 1, 1], [], []>} : vector<32x32xf32>, vector<32x16xf32>, vector<32x16xf32> -> vector<32x16xf32>
    %216 = arith.subf %214, %215 : vector<32x16xf32>
    %cst_109 = arith.constant 2.000000e+00 : f32
    %217 = vector.broadcast %cst_109 : f32 to vector<32x32xf32>
    %218 = arith.mulf %217, %212 : vector<32x32xf32>
    %cst_110 = arith.constant dense<0.000000e+00> : vector<32x32xf32>
    %219 = tpu.matmul %212, %212, %cst_110 {dimension_numbers = #tpu.dot_dimension_numbers<[1], [0], [0], [1], [0, 0, 1, 1], [], []>} : vector<32x32xf32>, vector<32x32xf32>, vector<32x32xf32> -> vector<32x32xf32>
    %220 = arith.subf %218, %219 : vector<32x32xf32>
    %cst_111 = arith.constant 2.000000e+00 : f32
    %221 = vector.broadcast %cst_111 : f32 to vector<32x16xf32>
    %222 = arith.mulf %221, %216 : vector<32x16xf32>
    %cst_112 = arith.constant dense<0.000000e+00> : vector<32x16xf32>
    %223 = tpu.matmul %220, %216, %cst_112 {dimension_numbers = #tpu.dot_dimension_numbers<[1], [0], [0], [1], [0, 0, 1, 1], [], []>} : vector<32x32xf32>, vector<32x16xf32>, vector<32x16xf32> -> vector<32x16xf32>
    %224 = arith.subf %222, %223 : vector<32x16xf32>
    %cst_113 = arith.constant 2.000000e+00 : f32
    %225 = vector.broadcast %cst_113 : f32 to vector<32x32xf32>
    %226 = arith.mulf %225, %220 : vector<32x32xf32>
    %cst_114 = arith.constant dense<0.000000e+00> : vector<32x32xf32>
    %227 = tpu.matmul %220, %220, %cst_114 {dimension_numbers = #tpu.dot_dimension_numbers<[1], [0], [0], [1], [0, 0, 1, 1], [], []>} : vector<32x32xf32>, vector<32x32xf32>, vector<32x32xf32> -> vector<32x32xf32>
    %228 = arith.subf %226, %227 : vector<32x32xf32>
    %cst_115 = arith.constant 2.000000e+00 : f32
    %229 = vector.broadcast %cst_115 : f32 to vector<32x16xf32>
    %230 = arith.mulf %229, %224 : vector<32x16xf32>
    %cst_116 = arith.constant dense<0.000000e+00> : vector<32x16xf32>
    %231 = tpu.matmul %228, %224, %cst_116 {dimension_numbers = #tpu.dot_dimension_numbers<[1], [0], [0], [1], [0, 0, 1, 1], [], []>} : vector<32x32xf32>, vector<32x16xf32>, vector<32x16xf32> -> vector<32x16xf32>
    %232 = arith.subf %230, %231 : vector<32x16xf32>
    %cst_117 = arith.constant 2.000000e+00 : f32
    %233 = vector.broadcast %cst_117 : f32 to vector<32x32xf32>
    %234 = arith.mulf %233, %228 : vector<32x32xf32>
    %cst_118 = arith.constant dense<0.000000e+00> : vector<32x32xf32>
    %235 = tpu.matmul %228, %228, %cst_118 {dimension_numbers = #tpu.dot_dimension_numbers<[1], [0], [0], [1], [0, 0, 1, 1], [], []>} : vector<32x32xf32>, vector<32x32xf32>, vector<32x32xf32> -> vector<32x32xf32>
    %236 = arith.subf %234, %235 : vector<32x32xf32>
    %cst_119 = arith.constant 2.000000e+00 : f32
    %237 = vector.broadcast %cst_119 : f32 to vector<32x16xf32>
    %238 = arith.mulf %237, %232 : vector<32x16xf32>
    %cst_120 = arith.constant dense<0.000000e+00> : vector<32x16xf32>
    %239 = tpu.matmul %236, %232, %cst_120 {dimension_numbers = #tpu.dot_dimension_numbers<[1], [0], [0], [1], [0, 0, 1, 1], [], []>} : vector<32x32xf32>, vector<32x16xf32>, vector<32x16xf32> -> vector<32x16xf32>
    %240 = arith.subf %238, %239 : vector<32x16xf32>
    %cst_121 = arith.constant 2.000000e+00 : f32
    %241 = vector.broadcast %cst_121 : f32 to vector<32x32xf32>
    %242 = arith.mulf %241, %236 : vector<32x32xf32>
    %cst_122 = arith.constant dense<0.000000e+00> : vector<32x32xf32>
    %243 = tpu.matmul %236, %236, %cst_122 {dimension_numbers = #tpu.dot_dimension_numbers<[1], [0], [0], [1], [0, 0, 1, 1], [], []>} : vector<32x32xf32>, vector<32x32xf32>, vector<32x32xf32> -> vector<32x32xf32>
    %244 = arith.subf %242, %243 : vector<32x32xf32>
    %cst_123 = arith.constant 2.000000e+00 : f32
    %245 = vector.broadcast %cst_123 : f32 to vector<32x16xf32>
    %246 = arith.mulf %245, %240 : vector<32x16xf32>
    %cst_124 = arith.constant dense<0.000000e+00> : vector<32x16xf32>
    %247 = tpu.matmul %244, %240, %cst_124 {dimension_numbers = #tpu.dot_dimension_numbers<[1], [0], [0], [1], [0, 0, 1, 1], [], []>} : vector<32x32xf32>, vector<32x16xf32>, vector<32x16xf32> -> vector<32x16xf32>
    %248 = arith.subf %246, %247 : vector<32x16xf32>
    %cst_125 = arith.constant 2.000000e+00 : f32
    %249 = vector.broadcast %cst_125 : f32 to vector<32x32xf32>
    %250 = arith.mulf %249, %244 : vector<32x32xf32>
    %cst_126 = arith.constant dense<0.000000e+00> : vector<32x32xf32>
    %251 = tpu.matmul %244, %244, %cst_126 {dimension_numbers = #tpu.dot_dimension_numbers<[1], [0], [0], [1], [0, 0, 1, 1], [], []>} : vector<32x32xf32>, vector<32x32xf32>, vector<32x32xf32> -> vector<32x32xf32>
    %252 = arith.subf %250, %251 : vector<32x32xf32>
    %cst_127 = arith.constant 2.000000e+00 : f32
    %253 = vector.broadcast %cst_127 : f32 to vector<32x16xf32>
    %254 = arith.mulf %253, %248 : vector<32x16xf32>
    %cst_128 = arith.constant dense<0.000000e+00> : vector<32x16xf32>
    %255 = tpu.matmul %252, %248, %cst_128 {dimension_numbers = #tpu.dot_dimension_numbers<[1], [0], [0], [1], [0, 0, 1, 1], [], []>} : vector<32x32xf32>, vector<32x16xf32>, vector<32x16xf32> -> vector<32x16xf32>
    %256 = arith.subf %254, %255 : vector<32x16xf32>
    %cst_129 = arith.constant 2.000000e+00 : f32
    %257 = vector.broadcast %cst_129 : f32 to vector<32x32xf32>
    %258 = arith.mulf %257, %252 : vector<32x32xf32>
    %cst_130 = arith.constant dense<0.000000e+00> : vector<32x32xf32>
    %259 = tpu.matmul %252, %252, %cst_130 {dimension_numbers = #tpu.dot_dimension_numbers<[1], [0], [0], [1], [0, 0, 1, 1], [], []>} : vector<32x32xf32>, vector<32x32xf32>, vector<32x32xf32> -> vector<32x32xf32>
    %260 = arith.subf %258, %259 : vector<32x32xf32>
    %cst_131 = arith.constant 2.000000e+00 : f32
    %261 = vector.broadcast %cst_131 : f32 to vector<32x16xf32>
    %262 = arith.mulf %261, %256 : vector<32x16xf32>
    %cst_132 = arith.constant dense<0.000000e+00> : vector<32x16xf32>
    %263 = tpu.matmul %260, %256, %cst_132 {dimension_numbers = #tpu.dot_dimension_numbers<[1], [0], [0], [1], [0, 0, 1, 1], [], []>} : vector<32x32xf32>, vector<32x16xf32>, vector<32x16xf32> -> vector<32x16xf32>
    %264 = arith.subf %262, %263 : vector<32x16xf32>
    %cst_133 = arith.constant 2.000000e+00 : f32
    %265 = vector.broadcast %cst_133 : f32 to vector<32x32xf32>
    %266 = arith.mulf %265, %260 : vector<32x32xf32>
    %cst_134 = arith.constant dense<0.000000e+00> : vector<32x32xf32>
    %267 = tpu.matmul %260, %260, %cst_134 {dimension_numbers = #tpu.dot_dimension_numbers<[1], [0], [0], [1], [0, 0, 1, 1], [], []>} : vector<32x32xf32>, vector<32x32xf32>, vector<32x32xf32> -> vector<32x32xf32>
    %268 = arith.subf %266, %267 : vector<32x32xf32>
    %cst_135 = arith.constant 2.000000e+00 : f32
    %269 = vector.broadcast %cst_135 : f32 to vector<32x16xf32>
    %270 = arith.mulf %269, %264 : vector<32x16xf32>
    %cst_136 = arith.constant dense<0.000000e+00> : vector<32x16xf32>
    %271 = tpu.matmul %268, %264, %cst_136 {dimension_numbers = #tpu.dot_dimension_numbers<[1], [0], [0], [1], [0, 0, 1, 1], [], []>} : vector<32x32xf32>, vector<32x16xf32>, vector<32x16xf32> -> vector<32x16xf32>
    %272 = arith.subf %270, %271 : vector<32x16xf32>
    %cst_137 = arith.constant 2.000000e+00 : f32
    %273 = vector.broadcast %cst_137 : f32 to vector<32x32xf32>
    %274 = arith.mulf %273, %268 : vector<32x32xf32>
    %cst_138 = arith.constant dense<0.000000e+00> : vector<32x32xf32>
    %275 = tpu.matmul %268, %268, %cst_138 {dimension_numbers = #tpu.dot_dimension_numbers<[1], [0], [0], [1], [0, 0, 1, 1], [], []>} : vector<32x32xf32>, vector<32x32xf32>, vector<32x32xf32> -> vector<32x32xf32>
    %276 = arith.subf %274, %275 : vector<32x32xf32>
    %cst_139 = arith.constant 2.000000e+00 : f32
    %277 = vector.broadcast %cst_139 : f32 to vector<32x16xf32>
    %278 = arith.mulf %277, %272 : vector<32x16xf32>
    %cst_140 = arith.constant dense<0.000000e+00> : vector<32x16xf32>
    %279 = tpu.matmul %276, %272, %cst_140 {dimension_numbers = #tpu.dot_dimension_numbers<[1], [0], [0], [1], [0, 0, 1, 1], [], []>} : vector<32x32xf32>, vector<32x16xf32>, vector<32x16xf32> -> vector<32x16xf32>
    %280 = arith.subf %278, %279 : vector<32x16xf32>
    %cst_141 = arith.constant 2.000000e+00 : f32
    %281 = vector.broadcast %cst_141 : f32 to vector<32x32xf32>
    %282 = arith.mulf %281, %276 : vector<32x32xf32>
    %cst_142 = arith.constant dense<0.000000e+00> : vector<32x32xf32>
    %283 = tpu.matmul %276, %276, %cst_142 {dimension_numbers = #tpu.dot_dimension_numbers<[1], [0], [0], [1], [0, 0, 1, 1], [], []>} : vector<32x32xf32>, vector<32x32xf32>, vector<32x32xf32> -> vector<32x32xf32>
    %284 = arith.subf %282, %283 : vector<32x32xf32>
    %cst_143 = arith.constant 2.000000e+00 : f32
    %285 = vector.broadcast %cst_143 : f32 to vector<32x16xf32>
    %286 = arith.mulf %285, %280 : vector<32x16xf32>
    %cst_144 = arith.constant dense<0.000000e+00> : vector<32x16xf32>
    %287 = tpu.matmul %284, %280, %cst_144 {dimension_numbers = #tpu.dot_dimension_numbers<[1], [0], [0], [1], [0, 0, 1, 1], [], []>} : vector<32x32xf32>, vector<32x16xf32>, vector<32x16xf32> -> vector<32x16xf32>
    %288 = arith.subf %286, %287 : vector<32x16xf32>
    %cst_145 = arith.constant 2.000000e+00 : f32
    %289 = vector.broadcast %cst_145 : f32 to vector<32x32xf32>
    %290 = arith.mulf %289, %284 : vector<32x32xf32>
    %cst_146 = arith.constant dense<0.000000e+00> : vector<32x32xf32>
    %291 = tpu.matmul %284, %284, %cst_146 {dimension_numbers = #tpu.dot_dimension_numbers<[1], [0], [0], [1], [0, 0, 1, 1], [], []>} : vector<32x32xf32>, vector<32x32xf32>, vector<32x32xf32> -> vector<32x32xf32>
    %292 = arith.subf %290, %291 : vector<32x32xf32>
    %cst_147 = arith.constant 2.000000e+00 : f32
    %293 = vector.broadcast %cst_147 : f32 to vector<32x16xf32>
    %294 = arith.mulf %293, %288 : vector<32x16xf32>
    %cst_148 = arith.constant dense<0.000000e+00> : vector<32x16xf32>
    %295 = tpu.matmul %292, %288, %cst_148 {dimension_numbers = #tpu.dot_dimension_numbers<[1], [0], [0], [1], [0, 0, 1, 1], [], []>} : vector<32x32xf32>, vector<32x16xf32>, vector<32x16xf32> -> vector<32x16xf32>
    %296 = arith.subf %294, %295 : vector<32x16xf32>
    %cst_149 = arith.constant 2.000000e+00 : f32
    %297 = vector.broadcast %cst_149 : f32 to vector<32x32xf32>
    %298 = arith.mulf %297, %292 : vector<32x32xf32>
    %cst_150 = arith.constant dense<0.000000e+00> : vector<32x32xf32>
    %299 = tpu.matmul %292, %292, %cst_150 {dimension_numbers = #tpu.dot_dimension_numbers<[1], [0], [0], [1], [0, 0, 1, 1], [], []>} : vector<32x32xf32>, vector<32x32xf32>, vector<32x32xf32> -> vector<32x32xf32>
    %300 = arith.subf %298, %299 : vector<32x32xf32>
    %cst_151 = arith.constant 2.000000e+00 : f32
    %301 = vector.broadcast %cst_151 : f32 to vector<32x16xf32>
    %302 = arith.mulf %301, %296 : vector<32x16xf32>
    %cst_152 = arith.constant dense<0.000000e+00> : vector<32x16xf32>
    %303 = tpu.matmul %300, %296, %cst_152 {dimension_numbers = #tpu.dot_dimension_numbers<[1], [0], [0], [1], [0, 0, 1, 1], [], []>} : vector<32x32xf32>, vector<32x16xf32>, vector<32x16xf32> -> vector<32x16xf32>
    %304 = arith.subf %302, %303 : vector<32x16xf32>
    %cst_153 = arith.constant 2.000000e+00 : f32
    %305 = vector.broadcast %cst_153 : f32 to vector<32x32xf32>
    %306 = arith.mulf %305, %300 : vector<32x32xf32>
    %cst_154 = arith.constant dense<0.000000e+00> : vector<32x32xf32>
    %307 = tpu.matmul %300, %300, %cst_154 {dimension_numbers = #tpu.dot_dimension_numbers<[1], [0], [0], [1], [0, 0, 1, 1], [], []>} : vector<32x32xf32>, vector<32x32xf32>, vector<32x32xf32> -> vector<32x32xf32>
    %308 = arith.subf %306, %307 : vector<32x32xf32>
    %cst_155 = arith.constant 2.000000e+00 : f32
    %309 = vector.broadcast %cst_155 : f32 to vector<32x16xf32>
    %310 = arith.mulf %309, %304 : vector<32x16xf32>
    %cst_156 = arith.constant dense<0.000000e+00> : vector<32x16xf32>
    %311 = tpu.matmul %308, %304, %cst_156 {dimension_numbers = #tpu.dot_dimension_numbers<[1], [0], [0], [1], [0, 0, 1, 1], [], []>} : vector<32x32xf32>, vector<32x16xf32>, vector<32x16xf32> -> vector<32x16xf32>
    %312 = arith.subf %310, %311 : vector<32x16xf32>
    %c0_157 = arith.constant 0 : index
    %c0_158 = arith.constant 0 : index
    %c0_159 = arith.constant 0 : index
    %313 = vector.load %arg5[%c0_157, %c0_158, %c0_159] : memref<1x32x16xf32, #tpu.memory_space<vmem>>, vector<1x32x16xf32>
    %314 = vector.shape_cast %313 : vector<1x32x16xf32> to vector<32x16xf32>
    %315 = vector.shape_cast %312 : vector<32x16xf32> to vector<1x32x16xf32>
    tpu.vector_store %arg5[%c0_157, %c0_158, %c0_159], %315 {strides = array<i32>} : memref<1x32x16xf32, #tpu.memory_space<vmem>>, vector<1x32x16xf32>,
    return
  }
  func.func @transform_0(%arg0: i32) -> (i32, i32, i32) {
    %c0_i32 = arith.constant 0 : i32
    %c0_i32_0 = arith.constant 0 : i32
    %c0_i32_1 = arith.constant 0 : i32
    return %arg0, %c0_i32, %c0_i32_0 : i32, i32, i32
  }
  func.func @transform_1(%arg0: i32) -> (i32, i32) {
    %c0_i32 = arith.constant 0 : i32
    %c0_i32_0 = arith.constant 0 : i32
    %c0_i32_1 = arith.constant 0 : i32
    return %c0_i32, %c0_i32_0 : i32, i32
  }
  func.func @transform_2(%arg0: i32) -> (i32, i32) {
    %c0_i32 = arith.constant 0 : i32
    %c0_i32_0 = arith.constant 0 : i32
    %c0_i32_1 = arith.constant 0 : i32
    return %c0_i32, %c0_i32_0 : i32, i32
  }
  func.func @transform_3(%arg0: i32) -> (i32, i32) {
    %c0_i32 = arith.constant 0 : i32
    %c0_i32_0 = arith.constant 0 : i32
    %c0_i32_1 = arith.constant 0 : i32
    return %c0_i32, %c0_i32_0 : i32, i32
  }
  func.func @transform_4(%arg0: i32) -> (i32, i32, i32) {
    %c0_i32 = arith.constant 0 : i32
    %c0_i32_0 = arith.constant 0 : i32
    %c0_i32_1 = arith.constant 0 : i32
    return %arg0, %c0_i32, %c0_i32_0 : i32, i32, i32
  }
}

</mosaic_0001>

<llo_original>
// kernel: rae_forward.1
$region0: #{rae_forward.1}
  #allocation0 [shape = 'u32[]', space=smem, size = 0x4, offset = 0x4, fixed_abs, tag = 'smem constant byte address 0x4 - core index']
  #allocation1 [shape = 'u32[144,128]{1,0:T(1,128)}', space=vmem, size = 0x12000, scoped, tag = 'internal scratch']
  %s0 = inlined_call_operand.vmem [shape: f32[2,128,16], index: 0, kind: input, shape index: {}]
  %s1 = inlined_call_operand.vmem [shape: f32[128,16], index: 1, kind: input, shape index: {}]
  %s2 = inlined_call_operand.vmem [shape: f32[32,16], index: 2, kind: input, shape index: {}]
  %s3 = inlined_call_operand.vmem [shape: f32[1,32], index: 3, kind: input, shape index: {}]
  %s4 = inlined_call_operand.vmem [shape: f32[2,32,16], index: 4, kind: output, shape index: {}]
  %s5 = sld [smem:[#allocation0]]
  $region49: #{rae_forward.1} parent=0
    _
  %s7 = ssub.s32 1, %s5
  %s8 = scalar_select 0, %s7, %s5
  loop: start=0, step=1, limit=4
  $region2: #{rae_forward.1} parent=0 // loop_pre_header
    _
  $region3: #{rae_forward.1} parent=0 // loop_header
    %s10 = sphi 0, %s14
    %p11 = scmp.ge.s32.totalorder %s10, 4
    %s20 = sphi 0, %s22
    %s23 = sphi 0, %s20
    %s24 = sphi 0, %s23
    %s40 = sphi 0, %s24
    %s44 = sphi 0, %s44
    %s46 = sphi 0, %s44
    %s47 = sphi 0, %s46
    %s61 = sphi 0, %s47
    %s65 = sphi 0, %s65
    %s67 = sphi 0, %s65
    %s68 = sphi 0, %s67
    %s82 = sphi 0, %s68
    %s86 = sphi 0, %s86
    %s88 = sphi 0, %s86
    %s89 = sphi 0, %s88
    %s103 = sphi 0, %s89
    %s109 = sphi 0, %s111
    %s112 = sphi 0, %s109
    %s113 = sphi 0, %s112
    %s129 = sphi 0, %s113
  $region4: #{rae_forward.1} parent=0 // loop_header_branch
    %13 = sbr.rel (%p11) target = $region8
  $region5: #{rae_forward.1} parent=0 // loop_body
    %s15 = ssub.s32 %s10, 1
    %s16 = ssub.s32 %s10, 2
    %s17 = sadd.s32 %s10, 1
    %s18 = ssub.s32 %s10, %s17
    %p19 = scmp.eq.s32.totalorder %s18, 0
    %s21 = sadd.s32 %s20, 1
    %s22 = scalar_select %p19, %s20, %s21
    %p25 = pneg %p19
    %p26 = scmp.eq.s32.totalorder %s10, 1
    %p27 = por %p25, %p26
    %p28 = scmp.ne.s32.totalorder %s20, %s23
    %p29 = scmp.eq.s32.totalorder %s10, 0
    %p30 = por %p28, %p29
    %p31 = scmp.ne.s32.totalorder %s20, %s23
    %p32 = scmp.eq.s32.totalorder %s15, 1
    %p33 = por %p31, %p32
    %p34 = scmp.ne.s32.totalorder %s23, %s24
    %p35 = scmp.eq.s32.totalorder %s15, 0
    %p36 = por %p34, %p35
    %p37 = scmp.ne.s32.totalorder %s23, %s24
    %p38 = scmp.eq.s32.totalorder %s16, 1
    %p39 = por %p37, %p38
    %p41 = scmp.ne.s32.totalorder %s24, %s40
    %p42 = scmp.eq.s32.totalorder %s16, 0
    %p43 = por %p41, %p42
    %s45 = sadd.s32 %s44, 1
    %p48 = scmp.eq.s32.totalorder %s10, 1
    %p49 = scmp.ne.s32.totalorder %s44, %s46
    %p50 = scmp.eq.s32.totalorder %s10, 0
    %p51 = por %p49, %p50
    %p52 = scmp.ne.s32.totalorder %s44, %s46
    %p53 = scmp.eq.s32.totalorder %s15, 1
    %p54 = por %p52, %p53
    %p55 = scmp.ne.s32.totalorder %s46, %s47
    %p56 = scmp.eq.s32.totalorder %s15, 0
    %p57 = por %p55, %p56
    %p58 = scmp.ne.s32.totalorder %s46, %s47
    %p59 = scmp.eq.s32.totalorder %s16, 1
    %p60 = por %p58, %p59
    %p62 = scmp.ne.s32.totalorder %s47, %s61
    %p63 = scmp.eq.s32.totalorder %s16, 0
    %p64 = por %p62, %p63
    %s66 = sadd.s32 %s65, 1
    %p69 = scmp.eq.s32.totalorder %s10, 1
    %p70 = scmp.ne.s32.totalorder %s65, %s67
    %p71 = scmp.eq.s32.totalorder %s10, 0
    %p72 = por %p70, %p71
    %p73 = scmp.ne.s32.totalorder %s65, %s67
    %p74 = scmp.eq.s32.totalorder %s15, 1
    %p75 = por %p73, %p74
    %p76 = scmp.ne.s32.totalorder %s67, %s68
    %p77 = scmp.eq.s32.totalorder %s15, 0
    %p78 = por %p76, %p77
    %p79 = scmp.ne.s32.totalorder %s67, %s68
    %p80 = scmp.eq.s32.totalorder %s16, 1
    %p81 = por %p79, %p80
    %p83 = scmp.ne.s32.totalorder %s68, %s82
    %p84 = scmp.eq.s32.totalorder %s16, 0
    %p85 = por %p83, %p84
    %s87 = sadd.s32 %s86, 1
    %p90 = scmp.eq.s32.totalorder %s10, 1
    %p91 = scmp.ne.s32.totalorder %s86, %s88
    %p92 = scmp.eq.s32.totalorder %s10, 0
    %p93 = por %p91, %p92
    %p94 = scmp.ne.s32.totalorder %s86, %s88
    %p95 = scmp.eq.s32.totalorder %s15, 1
    %p96 = por %p94, %p95
    %p97 = scmp.ne.s32.totalorder %s88, %s89
    %p98 = scmp.eq.s32.totalorder %s15, 0
    %p99 = por %p97, %p98
    %p100 = scmp.ne.s32.totalorder %s88, %s89
    %p101 = scmp.eq.s32.totalorder %s16, 1
    %p102 = por %p100, %p101
    %p104 = scmp.ne.s32.totalorder %s89, %s103
    %p105 = scmp.eq.s32.totalorder %s16, 0
    %p106 = por %p104, %p105
    %s107 = ssub.s32 %s10, %s17
    %p108 = scmp.eq.s32.totalorder %s107, 0
    %s110 = sadd.s32 %s109, 1
    %s111 = scalar_select %p108, %s109, %s110
    %p114 = pneg %p108
    %p115 = scmp.eq.s32.totalorder %s10, 1
    %p116 = por %p114, %p115
    %p117 = scmp.ne.s32.totalorder %s109, %s112
    %p118 = scmp.eq.s32.totalorder %s10, 0
    %p119 = por %p117, %p118
    %p120 = scmp.ne.s32.totalorder %s109, %s112
    %p121 = scmp.eq.s32.totalorder %s15, 1
    %p122 = por %p120, %p121
    %p123 = scmp.ne.s32.totalorder %s112, %s113
    %p124 = scmp.eq.s32.totalorder %s15, 0
    %p125 = por %p123, %p124
    %p126 = scmp.ne.s32.totalorder %s112, %s113
    %p127 = scmp.eq.s32.totalorder %s16, 1
    %p128 = por %p126, %p127
    %p130 = scmp.ne.s32.totalorder %s113, %s129
    %p131 = scmp.eq.s32.totalorder %s16, 0
    %p132 = por %p130, %p131
    %p133 = scmp.le.s32.totalorder 1, %s10
    %p134 = scmp.lt.s32.totalorder %s10, 3
    %p135 = pnand %p133, %p134
    %p136 = pneg %p135
    // Predicated region
    $region9: #{rae_forward.1} parent=5 // pred_check
      _
    $region10: #{rae_forward.1} parent=5 // pred_check_branch
      %138 = sbr.rel (%p135) target = $region12
    $region11: #{rae_forward.1} parent=5 // pred_region
      %s139 = ssub.s32 %s10, 1
      // Predicated region
      $region13: #{rae_forward.1} parent=11 // pred_check
        %p140 = pneg %p57
      $region14: #{rae_forward.1} parent=11 // pred_check_branch
        %142 = sbr.rel (%p140) target = $region16
      $region15: #{rae_forward.1} parent=11 // pred_region
        _
      $region16: #{rae_forward.1} parent=11 // pred_fallthru
        _
      // Predicated region
      $region17: #{rae_forward.1} parent=11 // pred_check
        %p143 = pneg %p78
      $region18: #{rae_forward.1} parent=11 // pred_check_branch
        %145 = sbr.rel (%p143) target = $region20
      $region19: #{rae_forward.1} parent=11 // pred_region
        _
      $region20: #{rae_forward.1} parent=11 // pred_fallthru
        _
      // Predicated region
      $region21: #{rae_forward.1} parent=11 // pred_check
        %p146 = pneg %p99
      $region22: #{rae_forward.1} parent=11 // pred_check_branch
        %148 = sbr.rel (%p146) target = $region24
      $region23: #{rae_forward.1} parent=11 // pred_region
        _
      $region24: #{rae_forward.1} parent=11 // pred_fallthru
        _
    $region12: #{rae_forward.1} parent=5 // pred_fallthru
      _
    %p149 = scmp.lt.s32.totalorder %s10, 2
    // Predicated region
    $region25: #{rae_forward.1} parent=5 // pred_check
      %p150 = pneg %p149
    $region26: #{rae_forward.1} parent=5 // pred_check_branch
      %152 = sbr.rel (%p150) target = $region28
    $region27: #{rae_forward.1} parent=5 // pred_region
      // Predicated region
      $region29: #{rae_forward.1} parent=27 // pred_check
        %p153 = pneg %p30
      $region30: #{rae_forward.1} parent=27 // pred_check_branch
        %155 = sbr.rel (%p153) target = $region32
      $region31: #{rae_forward.1} parent=27 // pred_region
        %p156 = scmp.lt.s32.totalorder %s10, 1
        %s157 = scalar_select %p156, %s10, 1
        %s158 = smul.addr %s157, 16
        %s159 = smul.addr %s158, 8
        %s160 = scalar_lea.vmem %s0, %s159
      $region32: #{rae_forward.1} parent=27 // pred_fallthru
        _
    $region28: #{rae_forward.1} parent=5 // pred_fallthru
      _
    %p161 = scmp.le.s32.totalorder 1, %s10
    %p162 = scmp.lt.s32.totalorder %s10, 3
    %p163 = pnand %p161, %p162
    %p164 = pneg %p163
    // Predicated region
    $region33: #{rae_forward.1} parent=5 // pred_check
      _
    $region34: #{rae_forward.1} parent=5 // pred_check_branch
      %166 = sbr.rel (%p163) target = $region36
    $region35: #{rae_forward.1} parent=5 // pred_region
      %s167 = ssub.s32 %s10, 1
      %p168 = scmp.lt.s32.totalorder %s15, 1
      %s169 = scalar_select %p168, %s15, 1
      %s170 = smul.addr %s169, 16
      %s171 = smul.addr %s170, 8
      %s172 = scalar_lea.vmem %s0, %s171
      %p173 = pneg %p36
      %p174 = pneg %p33
      %p175 = pneg %p57
      %p176 = pneg %p54
      %p177 = pneg %p78
      %p178 = pneg %p75
      %p179 = pneg %p99
      %p180 = pneg %p96
      %p181 = pneg %p125
      %p182 = pneg %p122
      %p183 = scmp.lt.s32.totalorder %s15, 1
      %s184 = scalar_select %p183, %s15, 1
      %s185 = smul.addr %s184, 4
      %s186 = smul.addr %s185, 8
      %s187 = scalar_lea.vmem %s4, %s186
      %p188 = scmp.lt.s32.totalorder %s15, 1
      %s189 = scalar_select %p188, %s15, 1
      %s190 = smul.addr %s189, 16
      %s191 = smul.addr %s190, 8
      %s192 = scalar_lea.vmem %s0, %s191
      %p193 = scmp.lt.s32.totalorder %s15, 1
      %s194 = scalar_select %p193, %s15, 1
      %s195 = smul.addr %s194, 4
      %s196 = smul.addr %s195, 8
      %s197 = scalar_lea.vmem %s4, %s196
      %v198 = vld [vmem:[%s192] sm:$0xff]
      %v199 = vld [vmem:[%s192 + $0x8] sm:$0xff]
      %v200 = vld [vmem:[%s192 + $0x10] sm:$0xff]
      %v201 = vld [vmem:[%s192 + $0x18] sm:$0xff]
      %v202 = vld [vmem:[%s192 + $0x20] sm:$0xff]
      %v203 = vld [vmem:[%s192 + $0x28] sm:$0xff]
      %v204 = vld [vmem:[%s192 + $0x30] sm:$0xff]
      %v205 = vld [vmem:[%s192 + $0x38] sm:$0xff]
      %v206 = vld [vmem:[%s192 + $0x40] sm:$0xff]
      %v207 = vld [vmem:[%s192 + $0x48] sm:$0xff]
      %v208 = vld [vmem:[%s192 + $0x50] sm:$0xff]
      %v209 = vld [vmem:[%s192 + $0x58] sm:$0xff]
      %v210 = vld [vmem:[%s192 + $0x60] sm:$0xff]
      %v211 = vld [vmem:[%s192 + $0x68] sm:$0xff]
      %v212 = vld [vmem:[%s192 + $0x70] sm:$0xff]
      %v213 = vld [vmem:[%s192 + $0x78] sm:$0xff]
      %v214 = vld [vmem:[%s1] sm:$0xff]
      %v215 = vld [vmem:[%s1 + $0x8] sm:$0xff]
      %v216 = vld [vmem:[%s1 + $0x10] sm:$0xff]
      %v217 = vld [vmem:[%s1 + $0x18] sm:$0xff]
      %v218 = vld [vmem:[%s1 + $0x20] sm:$0xff]
      %v219 = vld [vmem:[%s1 + $0x28] sm:$0xff]
      %v220 = vld [vmem:[%s1 + $0x30] sm:$0xff]
      %v221 = vld [vmem:[%s1 + $0x38] sm:$0xff]
      %v222 = vld [vmem:[%s1 + $0x40] sm:$0xff]
      %v223 = vld [vmem:[%s1 + $0x48] sm:$0xff]
      %v224 = vld [vmem:[%s1 + $0x50] sm:$0xff]
      %v225 = vld [vmem:[%s1 + $0x58] sm:$0xff]
      %v226 = vld [vmem:[%s1 + $0x60] sm:$0xff]
      %v227 = vld [vmem:[%s1 + $0x68] sm:$0xff]
      %v228 = vld [vmem:[%s1 + $0x70] sm:$0xff]
      %v229 = vld [vmem:[%s1 + $0x78] sm:$0xff]
      %v230 = vadd.f32 %v198, %v214
      %v231 = vadd.f32 %v199, %v215
      %v232 = vadd.f32 %v200, %v216
      %v233 = vadd.f32 %v201, %v217
      %v234 = vadd.f32 %v202, %v218
      %v235 = vadd.f32 %v203, %v219
      %v236 = vadd.f32 %v204, %v220
      %v237 = vadd.f32 %v205, %v221
      %v238 = vadd.f32 %v206, %v222
      %v239 = vadd.f32 %v207, %v223
      %v240 = vadd.f32 %v208, %v224
      %v241 = vadd.f32 %v209, %v225
      %v242 = vadd.f32 %v210, %v226
      %v243 = vadd.f32 %v211, %v227
      %v244 = vadd.f32 %v212, %v228
      %v245 = vadd.f32 %v213, %v229
      %v246 = vld [vmem:[%s2] sm:$0xff]
      %v247 = vld [vmem:[%s2 + $0x8] sm:$0xff]
      %v248 = vld [vmem:[%s2 + $0x10] sm:$0xff]
      %v249 = vld [vmem:[%s2 + $0x18] sm:$0xff]
      %v250 = vld [vmem:[%s3] sm:$0x1]
      %v252 = vlaneseq
      %v253 = vshrl.u32 %v252, 7
      %v254 = vsub.s32 0, %v253
      %v255 = vrot.slane %v250, %v254
      %vm257 = vcmask 130048
      %v259 = vsel %vm257, %v230, 0
      %v262 = vsel %vm257, %v231, 0
      %v265 = vsel %vm257, %v232, 0
      %v268 = vsel %vm257, %v233, 0
      %v271 = vsel %vm257, %v234, 0
      %v274 = vsel %vm257, %v235, 0
      %v277 = vsel %vm257, %v236, 0
      %v280 = vsel %vm257, %v237, 0
      %v283 = vsel %vm257, %v238, 0
      %v286 = vsel %vm257, %v239, 0
      %v289 = vsel %vm257, %v240, 0
      %v292 = vsel %vm257, %v241, 0
      %v295 = vsel %vm257, %v242, 0
      %v298 = vsel %vm257, %v243, 0
      %v301 = vsel %vm257, %v244, 0
      %v304 = vsel %vm257, %v245, 0
      %v307 = vsel %vm257, %v246, 0
      %v310 = vsel %vm257, %v247, 0
      %v313 = vsel %vm257, %v248, 0
      %v316 = vsel %vm257, %v249, 0
      %318 = vmatprep.subr.mxu0 0.0
      %319 = vmatpush1.xpose.msra.mxu0 %v307
      %320 = vmatprep.subr.mxu0 0.0
      %321 = vmatpush1.xpose.msra.mxu0 %v310
      %322 = vmatprep.subr.mxu0 0.0
      %323 = vmatpush1.xpose.msra.mxu0 %v313
      %324 = vmatprep.subr.mxu0 0.0
      %325 = vmatpush1.xpose.msra.mxu0 %v316
      %326 = vmatprep.subr.mxu0 0.0
      %327 = vmatpush1.xpose.msra.mxu0 0.0
      %328 = vmatprep.subr.mxu0 0.0
      %329 = vmatpush1.xpose.msra.mxu0 0.0
      %330 = vmatprep.subr.mxu0 0.0
      %331 = vmatpush1.xpose.msra.mxu0 0.0
      %332 = vmatprep.subr.mxu0 0.0
      %333 = vmatpush1.xpose.msra.mxu0 0.0
      %334 = vmatprep.subr.mxu0 0.0
      %335 = vmatpush1.xpose.msra.mxu0 0.0
      %336 = vmatprep.subr.mxu0 0.0
      %337 = vmatpush1.xpose.msra.mxu0 0.0
      %338 = vmatprep.subr.mxu0 0.0
      %339 = vmatpush1.xpose.msra.mxu0 0.0
      %340 = vmatprep.subr.mxu0 0.0
      %341 = vmatpush1.xpose.msra.mxu0 0.0
      %342 = vmatprep.subr.mxu0 0.0
      %343 = vmatpush1.xpose.msra.mxu0 0.0
      %344 = vmatprep.subr.mxu0 0.0
      %345 = vmatpush1.xpose.msra.mxu0 0.0
      %346 = vmatprep.subr.mxu0 0.0
      %347 = vmatpush1.xpose.msra.mxu0 0.0
      %348 = vmatprep.subr.mxu0 0.0
      %349 = vmatpush1.xpose.msra.mxu0 0.0
      %350 = vmatprep.subr.mxu0 0.0
      %351 = vmatpush1.xpose.msra.mxu0 0.0
      %352 = vmatprep.subr.mxu0 0.0
      %353 = vmatpush1.xpose.msra.mxu0 0.0
      %354 = vmatprep.subr.mxu0 0.0
      %355 = vmatpush1.xpose.msra.mxu0 0.0
      %356 = vmatprep.subr.mxu0 0.0
      %357 = vmatpush1.xpose.msra.mxu0 0.0
      %358 = vmatprep.subr.mxu0 0.0
      %359 = vmatpush1.xpose.msra.mxu0 0.0
      %360 = vmatprep.subr.mxu0 0.0
      %361 = vmatpush1.xpose.msra.mxu0 0.0
      %362 = vmatprep.subr.mxu0 0.0
      %363 = vmatpush1.xpose.msra.mxu0 0.0
      %364 = vmatprep.subr.mxu0 0.0
      %365 = vmatpush1.xpose.msra.mxu0 0.0
      %366 = vmatprep.subr.mxu0 0.0
      %367 = vmatpush1.xpose.msra.mxu0 0.0
      %368 = vmatprep.subr.mxu0 0.0
      %369 = vmatpush1.xpose.msra.mxu0 0.0
      %370 = vmatprep.subr.mxu0 0.0
      %371 = vmatpush1.xpose.msra.mxu0 0.0
      %372 = vmatprep.subr.mxu0 0.0
      %373 = vmatpush1.xpose.msra.mxu0 0.0
      %374 = vmatprep.subr.mxu0 0.0
      %375 = vmatpush1.xpose.msra.mxu0 0.0
      %376 = vmatprep.subr.mxu0 0.0
      %377 = vmatpush1.xpose.msra.mxu0 0.0
      %378 = vmatprep.subr.mxu0 0.0
      %379 = vmatpush1.xpose.msra.mxu0 0.0
      %380 = vmatprep.subr.mxu0 0.0
      %381 = vmatpush1.xpose.msra.mxu0 0.0
      %382 = vmatprep.mubr.f32.mxu0 0.0
      %383 = vmatmul.mubr.f32.gmra.mrb[0].mxu0 %v259
      %v384 = vpop.f32.mrb[0].mxu0
      %v385 = vadd.f32 %v255, %v384
      %v386 = vpop.f32.mrb[0].mxu0
      %387 = vmatprep.mubr.f32.mxu0 0.0
      %388 = vmatmul.mubr.f32.gmra.mrb[0].mxu0 %v262
      %v389 = vpop.f32.mrb[0].mxu0
      %v390 = vadd.f32 %v255, %v389
      %v391 = vpop.f32.mrb[0].mxu0
      %392 = vmatprep.mubr.f32.mxu0 0.0
      %393 = vmatmul.mubr.f32.gmra.mrb[0].mxu0 %v265
      %v394 = vpop.f32.mrb[0].mxu0
      %v395 = vadd.f32 %v255, %v394
      %v396 = vpop.f32.mrb[0].mxu0
      %397 = vmatprep.mubr.f32.mxu0 0.0
      %398 = vmatmul.mubr.f32.gmra.mrb[0].mxu0 %v268
      %v399 = vpop.f32.mrb[0].mxu0
      %v400 = vadd.f32 %v255, %v399
      %v401 = vpop.f32.mrb[0].mxu0
      %402 = vmatprep.mubr.f32.mxu0 0.0
      %403 = vmatmul.mubr.f32.gmra.mrb[0].mxu0 %v271
      %v404 = vpop.f32.mrb[0].mxu0
      %v405 = vadd.f32 %v255, %v404
      %v406 = vpop.f32.mrb[0].mxu0
      %407 = vmatprep.mubr.f32.mxu0 0.0
      %408 = vmatmul.mubr.f32.gmra.mrb[0].mxu0 %v274
      %v409 = vpop.f32.mrb[0].mxu0
      %v410 = vadd.f32 %v255, %v409
      %v411 = vpop.f32.mrb[0].mxu0
      %412 = vmatprep.mubr.f32.mxu0 0.0
      %413 = vmatmul.mubr.f32.gmra.mrb[0].mxu0 %v277
      %v414 = vpop.f32.mrb[0].mxu0
      %v415 = vadd.f32 %v255, %v414
      %v416 = vpop.f32.mrb[0].mxu0
      %417 = vmatprep.mubr.f32.mxu0 0.0
      %418 = vmatmul.mubr.f32.gmra.mrb[0].mxu0 %v280
      %v419 = vpop.f32.mrb[0].mxu0
      %v420 = vadd.f32 %v255, %v419
      %v421 = vpop.f32.mrb[0].mxu0
      %422 = vmatprep.mubr.f32.mxu0 0.0
      %423 = vmatmul.mubr.f32.gmra.mrb[0].mxu0 %v283
      %v424 = vpop.f32.mrb[0].mxu0
      %v425 = vadd.f32 %v255, %v424
      %v426 = vpop.f32.mrb[0].mxu0
      %427 = vmatprep.mubr.f32.mxu0 0.0
      %428 = vmatmul.mubr.f32.gmra.mrb[0].mxu0 %v286
      %v429 = vpop.f32.mrb[0].mxu0
      %v430 = vadd.f32 %v255, %v429
      %v431 = vpop.f32.mrb[0].mxu0
      %432 = vmatprep.mubr.f32.mxu0 0.0
      %433 = vmatmul.mubr.f32.gmra.mrb[0].mxu0 %v289
      %v434 = vpop.f32.mrb[0].mxu0
      %v435 = vadd.f32 %v255, %v434
      %v436 = vpop.f32.mrb[0].mxu0
      %437 = vmatprep.mubr.f32.mxu0 0.0
      %438 = vmatmul.mubr.f32.gmra.mrb[0].mxu0 %v292
      %v439 = vpop.f32.mrb[0].mxu0
      %v440 = vadd.f32 %v255, %v439
      %v441 = vpop.f32.mrb[0].mxu0
      %442 = vmatprep.mubr.f32.mxu0 0.0
      %443 = vmatmul.mubr.f32.gmra.mrb[0].mxu0 %v295
      %v444 = vpop.f32.mrb[0].mxu0
      %v445 = vadd.f32 %v255, %v444
      %v446 = vpop.f32.mrb[0].mxu0
      %447 = vmatprep.mubr.f32.mxu0 0.0
      %448 = vmatmul.mubr.f32.gmra.mrb[0].mxu0 %v298
      %v449 = vpop.f32.mrb[0].mxu0
      %v450 = vadd.f32 %v255, %v449
      %v451 = vpop.f32.mrb[0].mxu0
      %452 = vmatprep.mubr.f32.mxu0 0.0
      %453 = vmatmul.mubr.f32.gmra.mrb[0].mxu0 %v301
      %v454 = vpop.f32.mrb[0].mxu0
      %v455 = vadd.f32 %v255, %v454
      %v456 = vpop.f32.mrb[0].mxu0
      %457 = vmatprep.mubr.f32.mxu0 0.0
      %458 = vmatmul.mubr.f32.gmra.mrb[0].mxu0 %v304
      %v459 = vpop.f32.mrb[0].mxu0
      %v460 = vadd.f32 %v255, %v459
      %v461 = vpop.f32.mrb[0].mxu0
      %462 = vdwg.mxu0
      %v463 = vxor.u32 %v385, 2147483648
      %v464 = vxor.u32 %v390, 2147483648
      %v465 = vxor.u32 %v395, 2147483648
      %v466 = vxor.u32 %v400, 2147483648
      %v467 = vxor.u32 %v405, 2147483648
      %v468 = vxor.u32 %v410, 2147483648
      %v469 = vxor.u32 %v415, 2147483648
      %v470 = vxor.u32 %v420, 2147483648
      %v471 = vxor.u32 %v425, 2147483648
      %v472 = vxor.u32 %v430, 2147483648
      %v473 = vxor.u32 %v435, 2147483648
      %v474 = vxor.u32 %v440, 2147483648
      %v475 = vxor.u32 %v445, 2147483648
      %v476 = vxor.u32 %v450, 2147483648
      %v477 = vxor.u32 %v455, 2147483648
      %v478 = vxor.u32 %v460, 2147483648
      %v479 = vmul.f32 %v463, 1.442695
      %v480 = vpow.pop %v479
      %v481 = vmul.f32 %v464, 1.442695
      %v482 = vpow.pop %v481
      %v483 = vmul.f32 %v465, 1.442695
      %v484 = vpow.pop %v483
      %v485 = vmul.f32 %v466, 1.442695
      %v486 = vpow.pop %v485
      %v487 = vmul.f32 %v467, 1.442695
      %v488 = vpow.pop %v487
      %v489 = vmul.f32 %v468, 1.442695
      %v490 = vpow.pop %v489
      %v491 = vmul.f32 %v469, 1.442695
      %v492 = vpow.pop %v491
      %v493 = vmul.f32 %v470, 1.442695
      %v494 = vpow.pop %v493
      %v495 = vmul.f32 %v471, 1.442695
      %v496 = vpow.pop %v495
      %v497 = vmul.f32 %v472, 1.442695
      %v498 = vpow.pop %v497
      %v499 = vmul.f32 %v473, 1.442695
      %v500 = vpow.pop %v499
      %v501 = vmul.f32 %v474, 1.442695
      %v502 = vpow.pop %v501
      %v503 = vmul.f32 %v475, 1.442695
      %v504 = vpow.pop %v503
      %v505 = vmul.f32 %v476, 1.442695
      %v506 = vpow.pop %v505
      %v507 = vmul.f32 %v477, 1.442695
      %v508 = vpow.pop %v507
      %v509 = vmul.f32 %v478, 1.442695
      %v510 = vpow.pop %v509
      %v511 = vadd.f32 %v480, 1.0
      %v512 = vadd.f32 %v482, 1.0
      %v513 = vadd.f32 %v484, 1.0
      %v514 = vadd.f32 %v486, 1.0
      %v515 = vadd.f32 %v488, 1.0
      %v516 = vadd.f32 %v490, 1.0
      %v517 = vadd.f32 %v492, 1.0
      %v518 = vadd.f32 %v494, 1.0
      %v519 = vadd.f32 %v496, 1.0
      %v520 = vadd.f32 %v498, 1.0
      %v521 = vadd.f32 %v500, 1.0
      %v522 = vadd.f32 %v502, 1.0
      %v523 = vadd.f32 %v504, 1.0
      %v524 = vadd.f32 %v506, 1.0
      %v525 = vadd.f32 %v508, 1.0
      %v526 = vadd.f32 %v510, 1.0
      %v527 = vrcp.pop %v511
      %v528 = vmul.f32 1.0, %v527
      %v529 = vrcp.pop %v512
      %v530 = vmul.f32 1.0, %v529
      %v531 = vrcp.pop %v513
      %v532 = vmul.f32 1.0, %v531
      %v533 = vrcp.pop %v514
      %v534 = vmul.f32 1.0, %v533
      %v535 = vrcp.pop %v515
      %v536 = vmul.f32 1.0, %v535
      %v537 = vrcp.pop %v516
      %v538 = vmul.f32 1.0, %v537
      %v539 = vrcp.pop %v517
      %v540 = vmul.f32 1.0, %v539
      %v541 = vrcp.pop %v518
      %v542 = vmul.f32 1.0, %v541
      %v543 = vrcp.pop %v519
      %v544 = vmul.f32 1.0, %v543
      %v545 = vrcp.pop %v520
      %v546 = vmul.f32 1.0, %v545
      %v547 = vrcp.pop %v521
      %v548 = vmul.f32 1.0, %v547
      %v549 = vrcp.pop %v522
      %v550 = vmul.f32 1.0, %v549
      %v551 = vrcp.pop %v523
      %v552 = vmul.f32 1.0, %v551
      %v553 = vrcp.pop %v524
      %v554 = vmul.f32 1.0, %v553
      %v555 = vrcp.pop %v525
      %v556 = vmul.f32 1.0, %v555
      %v557 = vrcp.pop %v526
      %v558 = vmul.f32 1.0, %v557
      %559 = vxpose.xlu0.b32.start [1/16] %v528, 128
      %560 = vxpose.xlu0.b32.cont [2/16] %v530, 128
      %561 = vxpose.xlu0.b32.cont [3/16] %v532, 128
      %562 = vxpose.xlu0.b32.cont [4/16] %v534, 128
      %563 = vxpose.xlu0.b32.cont [5/16] %v536, 128
      %564 = vxpose.xlu0.b32.cont [6/16] %v538, 128
      %565 = vxpose.xlu0.b32.cont [7/16] %v540, 128
      %566 = vxpose.xlu0.b32.cont [8/16] %v542, 128
      %567 = vxpose.xlu0.b32.cont [9/16] %v544, 128
      %568 = vxpose.xlu0.b32.cont [10/16] %v546, 128
      %569 = vxpose.xlu0.b32.cont [11/16] %v548, 128
      %570 = vxpose.xlu0.b32.cont [12/16] %v550, 128
      %571 = vxpose.xlu0.b32.cont [13/16] %v552, 128
      %572 = vxpose.xlu0.b32.cont [14/16] %v554, 128
      %573 = vxpose.xlu0.b32.cont [15/16] %v556, 128
      %574 = vxpose.xlu0.b32.end [16/16] %v558, 128
      %v575 = vpop.trf.xlu0
      %v576 = vpop.trf.xlu0
      %v577 = vpop.trf.xlu0
      %v578 = vpop.trf.xlu0
      %v579 = vpop.trf.xlu0
      %v580 = vpop.trf.xlu0
      %v581 = vpop.trf.xlu0
      %v582 = vpop.trf.xlu0
      %v583 = vpop.trf.xlu0
      %v584 = vpop.trf.xlu0
      %v585 = vpop.trf.xlu0
      %v586 = vpop.trf.xlu0
      %v587 = vpop.trf.xlu0
      %v588 = vpop.trf.xlu0
      %v589 = vpop.trf.xlu0
      %v590 = vpop.trf.xlu0
      %591 = vmatprep.subr.mxu0 0.0
      %592 = vmatpush1.msra.mxu0 %v528
      %593 = vmatprep.subr.mxu0 0.0
      %594 = vmatpush1.msra.mxu0 %v530
      %595 = vmatprep.subr.mxu0 0.0
      %596 = vmatpush1.msra.mxu0 %v532
      %597 = vmatprep.subr.mxu0 0.0
      %598 = vmatpush1.msra.mxu0 %v534
      %599 = vmatprep.subr.mxu0 0.0
      %600 = vmatpush1.msra.mxu0 %v536
      %601 = vmatprep.subr.mxu0 0.0
      %602 = vmatpush1.msra.mxu0 %v538
      %603 = vmatprep.subr.mxu0 0.0
      %604 = vmatpush1.msra.mxu0 %v540
      %605 = vmatprep.subr.mxu0 0.0
      %606 = vmatpush1.msra.mxu0 %v542
      %607 = vmatprep.subr.mxu0 0.0
      %608 = vmatpush1.msra.mxu0 %v544
      %609 = vmatprep.subr.mxu0 0.0
      %610 = vmatpush1.msra.mxu0 %v546
      %611 = vmatprep.subr.mxu0 0.0
      %612 = vmatpush1.msra.mxu0 %v548
      %613 = vmatprep.subr.mxu0 0.0
      %614 = vmatpush1.msra.mxu0 %v550
      %615 = vmatprep.subr.mxu0 0.0
      %616 = vmatpush1.msra.mxu0 %v552
      %617 = vmatprep.subr.mxu0 0.0
      %618 = vmatpush1.msra.mxu0 %v554
      %619 = vmatprep.subr.mxu0 0.0
      %620 = vmatpush1.msra.mxu0 %v556
      %621 = vmatprep.subr.mxu0 0.0
      %622 = vmatpush1.msra.mxu0 %v558
      %623 = vmatprep.subr.mxu0 0.0
      %624 = vmatpush1.msra.mxu0 0.0
      %625 = vmatprep.subr.mxu0 0.0
      %626 = vmatpush1.msra.mxu0 0.0
      %627 = vmatprep.subr.mxu0 0.0
      %628 = vmatpush1.msra.mxu0 0.0
      %629 = vmatprep.subr.mxu0 0.0
      %630 = vmatpush1.msra.mxu0 0.0
      %631 = vmatprep.subr.mxu0 0.0
      %632 = vmatpush1.msra.mxu0 0.0
      %633 = vmatprep.subr.mxu0 0.0
      %634 = vmatpush1.msra.mxu0 0.0
      %635 = vmatprep.subr.mxu0 0.0
      %636 = vmatpush1.msra.mxu0 0.0
      %637 = vmatprep.subr.mxu0 0.0
      %638 = vmatpush1.msra.mxu0 0.0
      %639 = vmatprep.subr.mxu0 0.0
      %640 = vmatpush1.msra.mxu0 0.0
      %641 = vmatprep.subr.mxu0 0.0
      %642 = vmatpush1.msra.mxu0 0.0
      %643 = vmatprep.subr.mxu0 0.0
      %644 = vmatpush1.msra.mxu0 0.0
      %645 = vmatprep.subr.mxu0 0.0
      %646 = vmatpush1.msra.mxu0 0.0
      %647 = vmatprep.subr.mxu0 0.0
      %648 = vmatpush1.msra.mxu0 0.0
      %649 = vmatprep.subr.mxu0 0.0
      %650 = vmatpush1.msra.mxu0 0.0
      %651 = vmatprep.subr.mxu0 0.0
      %652 = vmatpush1.msra.mxu0 0.0
      %653 = vmatprep.subr.mxu0 0.0
      %654 = vmatpush1.msra.mxu0 0.0
      %655 = vmatprep.mubr.f32.mxu0 0.0
      %656 = vmatmul.mubr.f32.gmra.mrb[0].mxu0 %v575
      %v657 = vpop.f32.mrb[0].mxu0
      %v658 = vadd.f32 0.0, %v657
      %v659 = vpop.f32.mrb[0].mxu0
      %660 = vmatprep.mubr.f32.mxu0 0.0
      %661 = vmatmul.mubr.f32.gmra.mrb[0].mxu0 %v576
      %v662 = vpop.f32.mrb[0].mxu0
      %v663 = vadd.f32 0.0, %v662
      %v664 = vpop.f32.mrb[0].mxu0
      %665 = vmatprep.mubr.f32.mxu0 0.0
      %666 = vmatmul.mubr.f32.gmra.mrb[0].mxu0 %v577
      %v667 = vpop.f32.mrb[0].mxu0
      %v668 = vadd.f32 0.0, %v667
      %v669 = vpop.f32.mrb[0].mxu0
      %670 = vmatprep.mubr.f32.mxu0 0.0
      %671 = vmatmul.mubr.f32.gmra.mrb[0].mxu0 %v578
      %v672 = vpop.f32.mrb[0].mxu0
      %v673 = vadd.f32 0.0, %v672
      %v674 = vpop.f32.mrb[0].mxu0
      %675 = vdwg.mxu0
      %676 = vmatprep.subr.mxu0 0.0
      %677 = vmatpush1.msra.mxu0 %v230
      %678 = vmatprep.subr.mxu0 0.0
      %679 = vmatpush1.msra.mxu0 %v231
      %680 = vmatprep.subr.mxu0 0.0
      %681 = vmatpush1.msra.mxu0 %v232
      %682 = vmatprep.subr.mxu0 0.0
      %683 = vmatpush1.msra.mxu0 %v233
      %684 = vmatprep.subr.mxu0 0.0
      %685 = vmatpush1.msra.mxu0 %v234
      %686 = vmatprep.subr.mxu0 0.0
      %687 = vmatpush1.msra.mxu0 %v235
      %688 = vmatprep.subr.mxu0 0.0
      %689 = vmatpush1.msra.mxu0 %v236
      %690 = vmatprep.subr.mxu0 0.0
      %691 = vmatpush1.msra.mxu0 %v237
      %692 = vmatprep.subr.mxu0 0.0
      %693 = vmatpush1.msra.mxu0 %v238
      %694 = vmatprep.subr.mxu0 0.0
      %695 = vmatpush1.msra.mxu0 %v239
      %696 = vmatprep.subr.mxu0 0.0
      %697 = vmatpush1.msra.mxu0 %v240
      %698 = vmatprep.subr.mxu0 0.0
      %699 = vmatpush1.msra.mxu0 %v241
      %700 = vmatprep.subr.mxu0 0.0
      %701 = vmatpush1.msra.mxu0 %v242
      %702 = vmatprep.subr.mxu0 0.0
      %703 = vmatpush1.msra.mxu0 %v243
      %704 = vmatprep.subr.mxu0 0.0
      %705 = vmatpush1.msra.mxu0 %v244
      %706 = vmatprep.subr.mxu0 0.0
      %707 = vmatpush1.msra.mxu0 %v245
      %708 = vmatprep.subr.mxu0 0.0
      %709 = vmatpush1.msra.mxu0 0.0
      %710 = vmatprep.subr.mxu0 0.0
      %711 = vmatpush1.msra.mxu0 0.0
      %712 = vmatprep.subr.mxu0 0.0
      %713 = vmatpush1.msra.mxu0 0.0
      %714 = vmatprep.subr.mxu0 0.0
      %715 = vmatpush1.msra.mxu0 0.0
      %716 = vmatprep.subr.mxu0 0.0
      %717 = vmatpush1.msra.mxu0 0.0
      %718 = vmatprep.subr.mxu0 0.0
      %719 = vmatpush1.msra.mxu0 0.0
      %720 = vmatprep.subr.mxu0 0.0
      %721 = vmatpush1.msra.mxu0 0.0
      %722 = vmatprep.subr.mxu0 0.0
      %723 = vmatpush1.msra.mxu0 0.0
      %724 = vmatprep.subr.mxu0 0.0
      %725 = vmatpush1.msra.mxu0 0.0
      %726 = vmatprep.subr.mxu0 0.0
      %727 = vmatpush1.msra.mxu0 0.0
      %728 = vmatprep.subr.mxu0 0.0
      %729 = vmatpush1.msra.mxu0 0.0
      %730 = vmatprep.subr.mxu0 0.0
      %731 = vmatpush1.msra.mxu0 0.0
      %732 = vmatprep.subr.mxu0 0.0
      %733 = vmatpush1.msra.mxu0 0.0
      %734 = vmatprep.subr.mxu0 0.0
      %735 = vmatpush1.msra.mxu0 0.0
      %736 = vmatprep.subr.mxu0 0.0
      %737 = vmatpush1.msra.mxu0 0.0
      %738 = vmatprep.subr.mxu0 0.0
      %739 = vmatpush1.msra.mxu0 0.0
      %740 = vmatprep.mubr.f32.mxu0 0.0
      %741 = vmatmul.mubr.f32.gmra.mrb[0].mxu0 %v575
      %v742 = vpop.f32.mrb[0].mxu0
      %v743 = vadd.f32 0.0, %v742
      %v744 = vpop.f32.mrb[0].mxu0
      %745 = vmatprep.mubr.f32.mxu0 0.0
      %746 = vmatmul.mubr.f32.gmra.mrb[0].mxu0 %v576
      %v747 = vpop.f32.mrb[0].mxu0
      %v748 = vadd.f32 0.0, %v747
      %v749 = vpop.f32.mrb[0].mxu0
      %750 = vmatprep.mubr.f32.mxu0 0.0
      %751 = vmatmul.mubr.f32.gmra.mrb[0].mxu0 %v577
      %v752 = vpop.f32.mrb[0].mxu0
      %v753 = vadd.f32 0.0, %v752
      %v754 = vpop.f32.mrb[0].mxu0
      %755 = vmatprep.mubr.f32.mxu0 0.0
      %756 = vmatmul.mubr.f32.gmra.mrb[0].mxu0 %v578
      %v757 = vpop.f32.mrb[0].mxu0
      %v758 = vadd.f32 0.0, %v757
      %v759 = vpop.f32.mrb[0].mxu0
      %760 = vdwg.mxu0
      %v761 = vand.u32 2147483647, %v658
      %v762 = vand.u32 2147483647, %v663
      %v763 = vand.u32 2147483647, %v668
      %v764 = vand.u32 2147483647, %v673
      %vm765 = vcmask 261120
      %v766 = vsel %vm765, %v761, 0.0
      %767 = vadd.xlane.f32.xlu0 %v766
      %v768 = vpop.xlane.xlu0 %767
      %v769 = vsel %vm765, %v762, 0.0
      %770 = vadd.xlane.f32.xlu0 %v769
      %v771 = vpop.xlane.xlu0 %770
      %v772 = vsel %vm765, %v763, 0.0
      %773 = vadd.xlane.f32.xlu0 %v772
      %v774 = vpop.xlane.xlu0 %773
      %v775 = vsel %vm765, %v764, 0.0
      %776 = vadd.xlane.f32.xlu0 %v775
      %v777 = vpop.xlane.xlu0 %776
      %v778 = vmax.f32 %v768, %v771
      %v779 = vmax.f32 %v774, %v777
      %v780 = vmax.f32 %v778, %v779
      %v781 = vrot.slane %v780, 4
      %v782 = vmax.f32 %v780, %v781
      %v783 = vrot.slane %v782, 2
      %v784 = vmax.f32 %v782, %v783
      %v785 = vrot.slane %v784, 1
      %v786 = vmax.f32 %v784, %v785
      %v787 = vadd.f32 %v786, 1e-30
      %v788 = vrcp.pop %v787
      %v789 = vmul.f32 1.0, %v788
      %v790 = vmul.f32 %v789, %v658
      %v791 = vmul.f32 %v789, %v663
      %v792 = vmul.f32 %v789, %v668
      %v793 = vmul.f32 %v789, %v673
      %v794 = vmul.f32 %v789, %v743
      %v795 = vmul.f32 %v789, %v748
      %v796 = vmul.f32 %v789, %v753
      %v797 = vmul.f32 %v789, %v758
      %v798 = vmul.f32 %v794, 2.0
      %v799 = vmul.f32 %v795, 2.0
      %v800 = vmul.f32 %v796, 2.0
      %v801 = vmul.f32 %v797, 2.0
      %v803 = vsel %vm765, %v790, 0
      %v806 = vsel %vm765, %v791, 0
      %v809 = vsel %vm765, %v792, 0
      %v812 = vsel %vm765, %v793, 0
      %814 = vmatprep.subr.mxu0 0.0
      %815 = vmatpush1.msra.mxu0 %v794
      %816 = vmatprep.subr.mxu0 0.0
      %817 = vmatpush1.msra.mxu0 %v795
      %818 = vmatprep.subr.mxu0 0.0
      %819 = vmatpush1.msra.mxu0 %v796
      %820 = vmatprep.subr.mxu0 0.0
      %821 = vmatpush1.msra.mxu0 %v797
      %822 = vmatprep.subr.mxu0 0.0
      %823 = vmatpush1.msra.mxu0 0.0
      %824 = vmatprep.subr.mxu0 0.0
      %825 = vmatpush1.msra.mxu0 0.0
      %826 = vmatprep.subr.mxu0 0.0
      %827 = vmatpush1.msra.mxu0 0.0
      %828 = vmatprep.subr.mxu0 0.0
      %829 = vmatpush1.msra.mxu0 0.0
      %830 = vmatprep.subr.mxu0 0.0
      %831 = vmatpush1.msra.mxu0 0.0
      %832 = vmatprep.subr.mxu0 0.0
      %833 = vmatpush1.msra.mxu0 0.0
      %834 = vmatprep.subr.mxu0 0.0
      %835 = vmatpush1.msra.mxu0 0.0
      %836 = vmatprep.subr.mxu0 0.0
      %837 = vmatpush1.msra.mxu0 0.0
      %838 = vmatprep.subr.mxu0 0.0
      %839 = vmatpush1.msra.mxu0 0.0
      %840 = vmatprep.subr.mxu0 0.0
      %841 = vmatpush1.msra.mxu0 0.0
      %842 = vmatprep.subr.mxu0 0.0
      %843 = vmatpush1.msra.mxu0 0.0
      %844 = vmatprep.subr.mxu0 0.0
      %845 = vmatpush1.msra.mxu0 0.0
      %846 = vmatprep.subr.mxu0 0.0
      %847 = vmatpush1.msra.mxu0 0.0
      %848 = vmatprep.subr.mxu0 0.0
      %849 = vmatpush1.msra.mxu0 0.0
      %850 = vmatprep.subr.mxu0 0.0
      %851 = vmatpush1.msra.mxu0 0.0
      %852 = vmatprep.subr.mxu0 0.0
      %853 = vmatpush1.msra.mxu0 0.0
      %854 = vmatprep.subr.mxu0 0.0
      %855 = vmatpush1.msra.mxu0 0.0
      %856 = vmatprep.subr.mxu0 0.0
      %857 = vmatpush1.msra.mxu0 0.0
      %858 = vmatprep.subr.mxu0 0.0
      %859 = vmatpush1.msra.mxu0 0.0
      %860 = vmatprep.subr.mxu0 0.0
      %861 = vmatpush1.msra.mxu0 0.0
      %862 = vmatprep.subr.mxu0 0.0
      %863 = vmatpush1.msra.mxu0 0.0
      %864 = vmatprep.subr.mxu0 0.0
      %865 = vmatpush1.msra.mxu0 0.0
      %866 = vmatprep.subr.mxu0 0.0
      %867 = vmatpush1.msra.mxu0 0.0
      %868 = vmatprep.subr.mxu0 0.0
      %869 = vmatpush1.msra.mxu0 0.0
      %870 = vmatprep.subr.mxu0 0.0
      %871 = vmatpush1.msra.mxu0 0.0
      %872 = vmatprep.subr.mxu0 0.0
      %873 = vmatpush1.msra.mxu0 0.0
      %874 = vmatprep.subr.mxu0 0.0
      %875 = vmatpush1.msra.mxu0 0.0
      %876 = vmatprep.subr.mxu0 0.0
      %877 = vmatpush1.msra.mxu0 0.0
      %878 = vmatprep.mubr.f32.mxu0 0.0
      %879 = vmatmul.mubr.f32.gmra.mrb[0].mxu0 %v803
      %v880 = vpop.f32.mrb[0].mxu0
      %v881 = vadd.f32 0.0, %v880
      %v882 = vpop.f32.mrb[0].mxu0
      %883 = vmatprep.mubr.f32.mxu0 0.0
      %884 = vmatmul.mubr.f32.gmra.mrb[0].mxu0 %v806
      %v885 = vpop.f32.mrb[0].mxu0
      %v886 = vadd.f32 0.0, %v885
      %v887 = vpop.f32.mrb[0].mxu0
      %888 = vmatprep.mubr.f32.mxu0 0.0
      %889 = vmatmul.mubr.f32.gmra.mrb[0].mxu0 %v809
      %v890 = vpop.f32.mrb[0].mxu0
      %v891 = vadd.f32 0.0, %v890
      %v892 = vpop.f32.mrb[0].mxu0
      %893 = vmatprep.mubr.f32.mxu0 0.0
      %894 = vmatmul.mubr.f32.gmra.mrb[0].mxu0 %v812
      %v895 = vpop.f32.mrb[0].mxu0
      %v896 = vadd.f32 0.0, %v895
      %v897 = vpop.f32.mrb[0].mxu0
      %898 = vdwg.mxu0
      %v899 = vsub.f32 %v798, %v881
      %v900 = vsub.f32 %v799, %v886
      %v901 = vsub.f32 %v800, %v891
      %v902 = vsub.f32 %v801, %v896
      %v903 = vmul.f32 %v790, 2.0
      %v904 = vmul.f32 %v791, 2.0
      %v905 = vmul.f32 %v792, 2.0
      %v906 = vmul.f32 %v793, 2.0
      %907 = vmatprep.subr.mxu0 0.0
      %908 = vmatpush1.msra.mxu0 %v790
      %909 = vmatprep.subr.mxu0 0.0
      %910 = vmatpush1.msra.mxu0 %v791
      %911 = vmatprep.subr.mxu0 0.0
      %912 = vmatpush1.msra.mxu0 %v792
      %913 = vmatprep.subr.mxu0 0.0
      %914 = vmatpush1.msra.mxu0 %v793
      %915 = vmatprep.subr.mxu0 0.0
      %916 = vmatpush1.msra.mxu0 0.0
      %917 = vmatprep.subr.mxu0 0.0
      %918 = vmatpush1.msra.mxu0 0.0
      %919 = vmatprep.subr.mxu0 0.0
      %920 = vmatpush1.msra.mxu0 0.0
      %921 = vmatprep.subr.mxu0 0.0
      %922 = vmatpush1.msra.mxu0 0.0
      %923 = vmatprep.subr.mxu0 0.0
      %924 = vmatpush1.msra.mxu0 0.0
      %925 = vmatprep.subr.mxu0 0.0
      %926 = vmatpush1.msra.mxu0 0.0
      %927 = vmatprep.subr.mxu0 0.0
      %928 = vmatpush1.msra.mxu0 0.0
      %929 = vmatprep.subr.mxu0 0.0
      %930 = vmatpush1.msra.mxu0 0.0
      %931 = vmatprep.subr.mxu0 0.0
      %932 = vmatpush1.msra.mxu0 0.0
      %933 = vmatprep.subr.mxu0 0.0
      %934 = vmatpush1.msra.mxu0 0.0
      %935 = vmatprep.subr.mxu0 0.0
      %936 = vmatpush1.msra.mxu0 0.0
      %937 = vmatprep.subr.mxu0 0.0
      %938 = vmatpush1.msra.mxu0 0.0
      %939 = vmatprep.subr.mxu0 0.0
      %940 = vmatpush1.msra.mxu0 0.0
      %941 = vmatprep.subr.mxu0 0.0
      %942 = vmatpush1.msra.mxu0 0.0
      %943 = vmatprep.subr.mxu0 0.0
      %944 = vmatpush1.msra.mxu0 0.0
      %945 = vmatprep.subr.mxu0 0.0
      %946 = vmatpush1.msra.mxu0 0.0
      %947 = vmatprep.subr.mxu0 0.0
      %948 = vmatpush1.msra.mxu0 0.0
      %949 = vmatprep.subr.mxu0 0.0
      %950 = vmatpush1.msra.mxu0 0.0
      %951 = vmatprep.subr.mxu0 0.0
      %952 = vmatpush1.msra.mxu0 0.0
      %953 = vmatprep.subr.mxu0 0.0
      %954 = vmatpush1.msra.mxu0 0.0
      %955 = vmatprep.subr.mxu0 0.0
      %956 = vmatpush1.msra.mxu0 0.0
      %957 = vmatprep.subr.mxu0 0.0
      %958 = vmatpush1.msra.mxu0 0.0
      %959 = vmatprep.subr.mxu0 0.0
      %960 = vmatpush1.msra.mxu0 0.0
      %961 = vmatprep.subr.mxu0 0.0
      %962 = vmatpush1.msra.mxu0 0.0
      %963 = vmatprep.subr.mxu0 0.0
      %964 = vmatpush1.msra.mxu0 0.0
      %965 = vmatprep.subr.mxu0 0.0
      %966 = vmatpush1.msra.mxu0 0.0
      %967 = vmatprep.subr.mxu0 0.0
      %968 = vmatpush1.msra.mxu0 0.0
      %969 = vmatprep.subr.mxu0 0.0
      %970 = vmatpush1.msra.mxu0 0.0
      %971 = vmatprep.mubr.f32.mxu0 0.0
      %972 = vmatmul.mubr.f32.gmra.mrb[0].mxu0 %v803
      %v973 = vpop.f32.mrb[0].mxu0
      %v974 = vadd.f32 0.0, %v973
      %v975 = vpop.f32.mrb[0].mxu0
      %976 = vmatprep.mubr.f32.mxu0 0.0
      %977 = vmatmul.mubr.f32.gmra.mrb[0].mxu0 %v806
      %v978 = vpop.f32.mrb[0].mxu0
      %v979 = vadd.f32 0.0, %v978
      %v980 = vpop.f32.mrb[0].mxu0
      %981 = vmatprep.mubr.f32.mxu0 0.0
      %982 = vmatmul.mubr.f32.gmra.mrb[0].mxu0 %v809
      %v983 = vpop.f32.mrb[0].mxu0
      %v984 = vadd.f32 0.0, %v983
      %v985 = vpop.f32.mrb[0].mxu0
      %986 = vmatprep.mubr.f32.mxu0 0.0
      %987 = vmatmul.mubr.f32.gmra.mrb[0].mxu0 %v812
      %v988 = vpop.f32.mrb[0].mxu0
      %v989 = vadd.f32 0.0, %v988
      %v990 = vpop.f32.mrb[0].mxu0
      %991 = vdwg.mxu0
      %v992 = vsub.f32 %v903, %v974
      %v993 = vsub.f32 %v904, %v979
      %v994 = vsub.f32 %v905, %v984
      %v995 = vsub.f32 %v906, %v989
      %v996 = vmul.f32 %v899, 2.0
      %v997 = vmul.f32 %v900, 2.0
      %v998 = vmul.f32 %v901, 2.0
      %v999 = vmul.f32 %v902, 2.0
      %v1001 = vsel %vm765, %v992, 0
      %v1004 = vsel %vm765, %v993, 0
      %v1007 = vsel %vm765, %v994, 0
      %v1010 = vsel %vm765, %v995, 0
      %1012 = vmatprep.subr.mxu0 0.0
      %1013 = vmatpush1.msra.mxu0 %v899
      %1014 = vmatprep.subr.mxu0 0.0
      %1015 = vmatpush1.msra.mxu0 %v900
      %1016 = vmatprep.subr.mxu0 0.0
      %1017 = vmatpush1.msra.mxu0 %v901
      %1018 = vmatprep.subr.mxu0 0.0
      %1019 = vmatpush1.msra.mxu0 %v902
      %1020 = vmatprep.subr.mxu0 0.0
      %1021 = vmatpush1.msra.mxu0 0.0
      %1022 = vmatprep.subr.mxu0 0.0
      %1023 = vmatpush1.msra.mxu0 0.0
      %1024 = vmatprep.subr.mxu0 0.0
      %1025 = vmatpush1.msra.mxu0 0.0
      %1026 = vmatprep.subr.mxu0 0.0
      %1027 = vmatpush1.msra.mxu0 0.0
      %1028 = vmatprep.subr.mxu0 0.0
      %1029 = vmatpush1.msra.mxu0 0.0
      %1030 = vmatprep.subr.mxu0 0.0
      %1031 = vmatpush1.msra.mxu0 0.0
      %1032 = vmatprep.subr.mxu0 0.0
      %1033 = vmatpush1.msra.mxu0 0.0
      %1034 = vmatprep.subr.mxu0 0.0
      %1035 = vmatpush1.msra.mxu0 0.0
      %1036 = vmatprep.subr.mxu0 0.0
      %1037 = vmatpush1.msra.mxu0 0.0
      %1038 = vmatprep.subr.mxu0 0.0
      %1039 = vmatpush1.msra.mxu0 0.0
      %1040 = vmatprep.subr.mxu0 0.0
      %1041 = vmatpush1.msra.mxu0 0.0
      %1042 = vmatprep.subr.mxu0 0.0
      %1043 = vmatpush1.msra.mxu0 0.0
      %1044 = vmatprep.subr.mxu0 0.0
      %1045 = vmatpush1.msra.mxu0 0.0
      %1046 = vmatprep.subr.mxu0 0.0
      %1047 = vmatpush1.msra.mxu0 0.0
      %1048 = vmatprep.subr.mxu0 0.0
      %1049 = vmatpush1.msra.mxu0 0.0
      %1050 = vmatprep.subr.mxu0 0.0
      %1051 = vmatpush1.msra.mxu0 0.0
      %1052 = vmatprep.subr.mxu0 0.0
      %1053 = vmatpush1.msra.mxu0 0.0
      %1054 = vmatprep.subr.mxu0 0.0
      %1055 = vmatpush1.msra.mxu0 0.0
      %1056 = vmatprep.subr.mxu0 0.0
      %1057 = vmatpush1.msra.mxu0 0.0
      %1058 = vmatprep.subr.mxu0 0.0
      %1059 = vmatpush1.msra.mxu0 0.0
      %1060 = vmatprep.subr.mxu0 0.0
      %1061 = vmatpush1.msra.mxu0 0.0
      %1062 = vmatprep.subr.mxu0 0.0
      %1063 = vmatpush1.msra.mxu0 0.0
      %1064 = vmatprep.subr.mxu0 0.0
      %1065 = vmatpush1.msra.mxu0 0.0
      %1066 = vmatprep.subr.mxu0 0.0
      %1067 = vmatpush1.msra.mxu0 0.0
      %1068 = vmatprep.subr.mxu0 0.0
      %1069 = vmatpush1.msra.mxu0 0.0
      %1070 = vmatprep.subr.mxu0 0.0
      %1071 = vmatpush1.msra.mxu0 0.0
      %1072 = vmatprep.subr.mxu0 0.0
      %1073 = vmatpush1.msra.mxu0 0.0
      %1074 = vmatprep.subr.mxu0 0.0
      %1075 = vmatpush1.msra.mxu0 0.0
      %1076 = vmatprep.mubr.f32.mxu0 0.0
      %1077 = vmatmul.mubr.f32.gmra.mrb[0].mxu0 %v1001
      %v1078 = vpop.f32.mrb[0].mxu0
      %v1079 = vadd.f32 0.0, %v1078
      %v1080 = vpop.f32.mrb[0].mxu0
      %1081 = vmatprep.mubr.f32.mxu0 0.0
      %1082 = vmatmul.mubr.f32.gmra.mrb[0].mxu0 %v1004
      %v1083 = vpop.f32.mrb[0].mxu0
      %v1084 = vadd.f32 0.0, %v1083
      %v1085 = vpop.f32.mrb[0].mxu0
      %1086 = vmatprep.mubr.f32.mxu0 0.0
      %1087 = vmatmul.mubr.f32.gmra.mrb[0].mxu0 %v1007
      %v1088 = vpop.f32.mrb[0].mxu0
      %v1089 = vadd.f32 0.0, %v1088
      %v1090 = vpop.f32.mrb[0].mxu0
      %1091 = vmatprep.mubr.f32.mxu0 0.0
      %1092 = vmatmul.mubr.f32.gmra.mrb[0].mxu0 %v1010
      %v1093 = vpop.f32.mrb[0].mxu0
      %v1094 = vadd.f32 0.0, %v1093
      %v1095 = vpop.f32.mrb[0].mxu0
      %1096 = vdwg.mxu0
      %v1097 = vsub.f32 %v996, %v1079
      %v1098 = vsub.f32 %v997, %v1084
      %v1099 = vsub.f32 %v998, %v1089
      %v1100 = vsub.f32 %v999, %v1094
      %v1101 = vmul.f32 %v992, 2.0
      %v1102 = vmul.f32 %v993, 2.0
      %v1103 = vmul.f32 %v994, 2.0
      %v1104 = vmul.f32 %v995, 2.0
      %1105 = vmatprep.subr.mxu0 0.0
      %1106 = vmatpush1.msra.mxu0 %v992
      %1107 = vmatprep.subr.mxu0 0.0
      %1108 = vmatpush1.msra.mxu0 %v993
      %1109 = vmatprep.subr.mxu0 0.0
      %1110 = vmatpush1.msra.mxu0 %v994
      %1111 = vmatprep.subr.mxu0 0.0
      %1112 = vmatpush1.msra.mxu0 %v995
      %1113 = vmatprep.subr.mxu0 0.0
      %1114 = vmatpush1.msra.mxu0 0.0
      %1115 = vmatprep.subr.mxu0 0.0
      %1116 = vmatpush1.msra.mxu0 0.0
      %1117 = vmatprep.subr.mxu0 0.0
      %1118 = vmatpush1.msra.mxu0 0.0
      %1119 = vmatprep.subr.mxu0 0.0
      %1120 = vmatpush1.msra.mxu0 0.0
      %1121 = vmatprep.subr.mxu0 0.0
      %1122 = vmatpush1.msra.mxu0 0.0
      %1123 = vmatprep.subr.mxu0 0.0
      %1124 = vmatpush1.msra.mxu0 0.0
      %1125 = vmatprep.subr.mxu0 0.0
      %1126 = vmatpush1.msra.mxu0 0.0
      %1127 = vmatprep.subr.mxu0 0.0
      %1128 = vmatpush1.msra.mxu0 0.0
      %1129 = vmatprep.subr.mxu0 0.0
      %1130 = vmatpush1.msra.mxu0 0.0
      %1131 = vmatprep.subr.mxu0 0.0
      %1132 = vmatpush1.msra.mxu0 0.0
      %1133 = vmatprep.subr.mxu0 0.0
      %1134 = vmatpush1.msra.mxu0 0.0
      %1135 = vmatprep.subr.mxu0 0.0
      %1136 = vmatpush1.msra.mxu0 0.0
      %1137 = vmatprep.subr.mxu0 0.0
      %1138 = vmatpush1.msra.mxu0 0.0
      %1139 = vmatprep.subr.mxu0 0.0
      %1140 = vmatpush1.msra.mxu0 0.0
      %1141 = vmatprep.subr.mxu0 0.0
      %1142 = vmatpush1.msra.mxu0 0.0
      %1143 = vmatprep.subr.mxu0 0.0
      %1144 = vmatpush1.msra.mxu0 0.0
      %1145 = vmatprep.subr.mxu0 0.0
      %1146 = vmatpush1.msra.mxu0 0.0
      %1147 = vmatprep.subr.mxu0 0.0
      %1148 = vmatpush1.msra.mxu0 0.0
      %1149 = vmatprep.subr.mxu0 0.0
      %1150 = vmatpush1.msra.mxu0 0.0
      %1151 = vmatprep.subr.mxu0 0.0
      %1152 = vmatpush1.msra.mxu0 0.0
      %1153 = vmatprep.subr.mxu0 0.0
      %1154 = vmatpush1.msra.mxu0 0.0
      %1155 = vmatprep.subr.mxu0 0.0
      %1156 = vmatpush1.msra.mxu0 0.0
      %1157 = vmatprep.subr.mxu0 0.0
      %1158 = vmatpush1.msra.mxu0 0.0
      %1159 = vmatprep.subr.mxu0 0.0
      %1160 = vmatpush1.msra.mxu0 0.0
      %1161 = vmatprep.subr.mxu0 0.0
      %1162 = vmatpush1.msra.mxu0 0.0
      %1163 = vmatprep.subr.mxu0 0.0
      %1164 = vmatpush1.msra.mxu0 0.0
      %1165 = vmatprep.subr.mxu0 0.0
      %1166 = vmatpush1.msra.mxu0 0.0
      %1167 = vmatprep.subr.mxu0 0.0
      %1168 = vmatpush1.msra.mxu0 0.0
      %1169 = vmatprep.mubr.f32.mxu0 0.0
      %1170 = vmatmul.mubr.f32.gmra.mrb[0].mxu0 %v1001
      %v1171 = vpop.f32.mrb[0].mxu0
      %v1172 = vadd.f32 0.0, %v1171
      %v1173 = vpop.f32.mrb[0].mxu0
      %1174 = vmatprep.mubr.f32.mxu0 0.0
      %1175 = vmatmul.mubr.f32.gmra.mrb[0].mxu0 %v1004
      %v1176 = vpop.f32.mrb[0].mxu0
      %v1177 = vadd.f32 0.0, %v1176
      %v1178 = vpop.f32.mrb[0].mxu0
      %1179 = vmatprep.mubr.f32.mxu0 0.0
      %1180 = vmatmul.mubr.f32.gmra.mrb[0].mxu0 %v1007
      %v1181 = vpop.f32.mrb[0].mxu0
      %v1182 = vadd.f32 0.0, %v1181
      %v1183 = vpop.f32.mrb[0].mxu0
      %1184 = vmatprep.mubr.f32.mxu0 0.0
      %1185 = vmatmul.mubr.f32.gmra.mrb[0].mxu0 %v1010
      %v1186 = vpop.f32.mrb[0].mxu0
      %v1187 = vadd.f32 0.0, %v1186
      %v1188 = vpop.f32.mrb[0].mxu0
      %1189 = vdwg.mxu0
      %v1190 = vsub.f32 %v1101, %v1172
      %v1191 = vsub.f32 %v1102, %v1177
      %v1192 = vsub.f32 %v1103, %v1182
      %v1193 = vsub.f32 %v1104, %v1187
      %v1194 = vmul.f32 %v1097, 2.0
      %v1195 = vmul.f32 %v1098, 2.0
      %v1196 = vmul.f32 %v1099, 2.0
      %v1197 = vmul.f32 %v1100, 2.0
      %v1199 = vsel %vm765, %v1190, 0
      %v1202 = vsel %vm765, %v1191, 0
      %v1205 = vsel %vm765, %v1192, 0
      %v1208 = vsel %vm765, %v1193, 0
      %1210 = vmatprep.subr.mxu0 0.0
      %1211 = vmatpush1.msra.mxu0 %v1097
      %1212 = vmatprep.subr.mxu0 0.0
      %1213 = vmatpush1.msra.mxu0 %v1098
      %1214 = vmatprep.subr.mxu0 0.0
      %1215 = vmatpush1.msra.mxu0 %v1099
      %1216 = vmatprep.subr.mxu0 0.0
      %1217 = vmatpush1.msra.mxu0 %v1100
      %1218 = vmatprep.subr.mxu0 0.0
      %1219 = vmatpush1.msra.mxu0 0.0
      %1220 = vmatprep.subr.mxu0 0.0
      %1221 = vmatpush1.msra.mxu0 0.0
      %1222 = vmatprep.subr.mxu0 0.0
      %1223 = vmatpush1.msra.mxu0 0.0
      %1224 = vmatprep.subr.mxu0 0.0
      %1225 = vmatpush1.msra.mxu0 0.0
      %1226 = vmatprep.subr.mxu0 0.0
      %1227 = vmatpush1.msra.mxu0 0.0
      %1228 = vmatprep.subr.mxu0 0.0
      %1229 = vmatpush1.msra.mxu0 0.0
      %1230 = vmatprep.subr.mxu0 0.0
      %1231 = vmatpush1.msra.mxu0 0.0
      %1232 = vmatprep.subr.mxu0 0.0
      %1233 = vmatpush1.msra.mxu0 0.0
      %1234 = vmatprep.subr.mxu0 0.0
      %1235 = vmatpush1.msra.mxu0 0.0
      %1236 = vmatprep.subr.mxu0 0.0
      %1237 = vmatpush1.msra.mxu0 0.0
      %1238 = vmatprep.subr.mxu0 0.0
      %1239 = vmatpush1.msra.mxu0 0.0
      %1240 = vmatprep.subr.mxu0 0.0
      %1241 = vmatpush1.msra.mxu0 0.0
      %1242 = vmatprep.subr.mxu0 0.0
      %1243 = vmatpush1.msra.mxu0 0.0
      %1244 = vmatprep.subr.mxu0 0.0
      %1245 = vmatpush1.msra.mxu0 0.0
      %1246 = vmatprep.subr.mxu0 0.0
      %1247 = vmatpush1.msra.mxu0 0.0
      %1248 = vmatprep.subr.mxu0 0.0
      %1249 = vmatpush1.msra.mxu0 0.0
      %1250 = vmatprep.subr.mxu0 0.0
      %1251 = vmatpush1.msra.mxu0 0.0
      %1252 = vmatprep.subr.mxu0 0.0
      %1253 = vmatpush1.msra.mxu0 0.0
      %1254 = vmatprep.subr.mxu0 0.0
      %1255 = vmatpush1.msra.mxu0 0.0
      %1256 = vmatprep.subr.mxu0 0.0
      %1257 = vmatpush1.msra.mxu0 0.0
      %1258 = vmatprep.subr.mxu0 0.0
      %1259 = vmatpush1.msra.mxu0 0.0
      %1260 = vmatprep.subr.mxu0 0.0
      %1261 = vmatpush1.msra.mxu0 0.0
      %1262 = vmatprep.subr.mxu0 0.0
      %1263 = vmatpush1.msra.mxu0 0.0
      %1264 = vmatprep.subr.mxu0 0.0
      %1265 = vmatpush1.msra.mxu0 0.0
      %1266 = vmatprep.subr.mxu0 0.0
      %1267 = vmatpush1.msra.mxu0 0.0
      %1268 = vmatprep.subr.mxu0 0.0
      %1269 = vmatpush1.msra.mxu0 0.0
      %1270 = vmatprep.subr.mxu0 0.0
      %1271 = vmatpush1.msra.mxu0 0.0
      %1272 = vmatprep.subr.mxu0 0.0
      %1273 = vmatpush1.msra.mxu0 0.0
      %1274 = vmatprep.mubr.f32.mxu0 0.0
      %1275 = vmatmul.mubr.f32.gmra.mrb[0].mxu0 %v1199
      %v1276 = vpop.f32.mrb[0].mxu0
      %v1277 = vadd.f32 0.0, %v1276
      %v1278 = vpop.f32.mrb[0].mxu0
      %1279 = vmatprep.mubr.f32.mxu0 0.0
      %1280 = vmatmul.mubr.f32.gmra.mrb[0].mxu0 %v1202
      %v1281 = vpop.f32.mrb[0].mxu0
      %v1282 = vadd.f32 0.0, %v1281
      %v1283 = vpop.f32.mrb[0].mxu0
      %1284 = vmatprep.mubr.f32.mxu0 0.0
      %1285 = vmatmul.mubr.f32.gmra.mrb[0].mxu0 %v1205
      %v1286 = vpop.f32.mrb[0].mxu0
      %v1287 = vadd.f32 0.0, %v1286
      %v1288 = vpop.f32.mrb[0].mxu0
      %1289 = vmatprep.mubr.f32.mxu0 0.0
      %1290 = vmatmul.mubr.f32.gmra.mrb[0].mxu0 %v1208
      %v1291 = vpop.f32.mrb[0].mxu0
      %v1292 = vadd.f32 0.0, %v1291
      %v1293 = vpop.f32.mrb[0].mxu0
      %1294 = vdwg.mxu0
      %v1295 = vsub.f32 %v1194, %v1277
      %v1296 = vsub.f32 %v1195, %v1282
      %v1297 = vsub.f32 %v1196, %v1287
      %v1298 = vsub.f32 %v1197, %v1292
      %v1299 = vmul.f32 %v1190, 2.0
      %v1300 = vmul.f32 %v1191, 2.0
      %v1301 = vmul.f32 %v1192, 2.0
      %v1302 = vmul.f32 %v1193, 2.0
      %1303 = vmatprep.subr.mxu0 0.0
      %1304 = vmatpush1.msra.mxu0 %v1190
      %1305 = vmatprep.subr.mxu0 0.0
      %1306 = vmatpush1.msra.mxu0 %v1191
      %1307 = vmatprep.subr.mxu0 0.0
      %1308 = vmatpush1.msra.mxu0 %v1192
      %1309 = vmatprep.subr.mxu0 0.0
      %1310 = vmatpush1.msra.mxu0 %v1193
      %1311 = vmatprep.subr.mxu0 0.0
      %1312 = vmatpush1.msra.mxu0 0.0
      %1313 = vmatprep.subr.mxu0 0.0
      %1314 = vmatpush1.msra.mxu0 0.0
      %1315 = vmatprep.subr.mxu0 0.0
      %1316 = vmatpush1.msra.mxu0 0.0
      %1317 = vmatprep.subr.mxu0 0.0
      %1318 = vmatpush1.msra.mxu0 0.0
      %1319 = vmatprep.subr.mxu0 0.0
      %1320 = vmatpush1.msra.mxu0 0.0
      %1321 = vmatprep.subr.mxu0 0.0
      %1322 = vmatpush1.msra.mxu0 0.0
      %1323 = vmatprep.subr.mxu0 0.0
      %1324 = vmatpush1.msra.mxu0 0.0
      %1325 = vmatprep.subr.mxu0 0.0
      %1326 = vmatpush1.msra.mxu0 0.0
      %1327 = vmatprep.subr.mxu0 0.0
      %1328 = vmatpush1.msra.mxu0 0.0
      %1329 = vmatprep.subr.mxu0 0.0
      %1330 = vmatpush1.msra.mxu0 0.0
      %1331 = vmatprep.subr.mxu0 0.0
      %1332 = vmatpush1.msra.mxu0 0.0
      %1333 = vmatprep.subr.mxu0 0.0
      %1334 = vmatpush1.msra.mxu0 0.0
      %1335 = vmatprep.subr.mxu0 0.0
      %1336 = vmatpush1.msra.mxu0 0.0
      %1337 = vmatprep.subr.mxu0 0.0
      %1338 = vmatpush1.msra.mxu0 0.0
      %1339 = vmatprep.subr.mxu0 0.0
      %1340 = vmatpush1.msra.mxu0 0.0
      %1341 = vmatprep.subr.mxu0 0.0
      %1342 = vmatpush1.msra.mxu0 0.0
      %1343 = vmatprep.subr.mxu0 0.0
      %1344 = vmatpush1.msra.mxu0 0.0
      %1345 = vmatprep.subr.mxu0 0.0
      %1346 = vmatpush1.msra.mxu0 0.0
      %1347 = vmatprep.subr.mxu0 0.0
      %1348 = vmatpush1.msra.mxu0 0.0
      %1349 = vmatprep.subr.mxu0 0.0
      %1350 = vmatpush1.msra.mxu0 0.0
      %1351 = vmatprep.subr.mxu0 0.0
      %1352 = vmatpush1.msra.mxu0 0.0
      %1353 = vmatprep.subr.mxu0 0.0
      %1354 = vmatpush1.msra.mxu0 0.0
      %1355 = vmatprep.subr.mxu0 0.0
      %1356 = vmatpush1.msra.mxu0 0.0
      %1357 = vmatprep.subr.mxu0 0.0
      %1358 = vmatpush1.msra.mxu0 0.0
      %1359 = vmatprep.subr.mxu0 0.0
      %1360 = vmatpush1.msra.mxu0 0.0
      %1361 = vmatprep.subr.mxu0 0.0
      %1362 = vmatpush1.msra.mxu0 0.0
      %1363 = vmatprep.subr.mxu0 0.0
      %1364 = vmatpush1.msra.mxu0 0.0
      %1365 = vmatprep.subr.mxu0 0.0
      %1366 = vmatpush1.msra.mxu0 0.0
      %1367 = vmatprep.mubr.f32.mxu0 0.0
      %1368 = vmatmul.mubr.f32.gmra.mrb[0].mxu0 %v1199
      %v1369 = vpop.f32.mrb[0].mxu0
      %v1370 = vadd.f32 0.0, %v1369
      %v1371 = vpop.f32.mrb[0].mxu0
      %1372 = vmatprep.mubr.f32.mxu0 0.0
      %1373 = vmatmul.mubr.f32.gmra.mrb[0].mxu0 %v1202
      %v1374 = vpop.f32.mrb[0].mxu0
      %v1375 = vadd.f32 0.0, %v1374
      %v1376 = vpop.f32.mrb[0].mxu0
      %1377 = vmatprep.mubr.f32.mxu0 0.0
      %1378 = vmatmul.mubr.f32.gmra.mrb[0].mxu0 %v1205
      %v1379 = vpop.f32.mrb[0].mxu0
      %v1380 = vadd.f32 0.0, %v1379
      %v1381 = vpop.f32.mrb[0].mxu0
      %1382 = vmatprep.mubr.f32.mxu0 0.0
      %1383 = vmatmul.mubr.f32.gmra.mrb[0].mxu0 %v1208
      %v1384 = vpop.f32.mrb[0].mxu0
      %v1385 = vadd.f32 0.0, %v1384
      %v1386 = vpop.f32.mrb[0].mxu0
      %1387 = vdwg.mxu0
      %v1388 = vsub.f32 %v1299, %v1370
      %v1389 = vsub.f32 %v1300, %v1375
      %v1390 = vsub.f32 %v1301, %v1380
      %v1391 = vsub.f32 %v1302, %v1385
      %v1392 = vmul.f32 %v1295, 2.0
      %v1393 = vmul.f32 %v1296, 2.0
      %v1394 = vmul.f32 %v1297, 2.0
      %v1395 = vmul.f32 %v1298, 2.0
      %v1397 = vsel %vm765, %v1388, 0
      %v1400 = vsel %vm765, %v1389, 0
      %v1403 = vsel %vm765, %v1390, 0
      %v1406 = vsel %vm765, %v1391, 0
      %1408 = vmatprep.subr.mxu0 0.0
      %1409 = vmatpush1.msra.mxu0 %v1295
      %1410 = vmatprep.subr.mxu0 0.0
      %1411 = vmatpush1.msra.mxu0 %v1296
      %1412 = vmatprep.subr.mxu0 0.0
      %1413 = vmatpush1.msra.mxu0 %v1297
      %1414 = vmatprep.subr.mxu0 0.0
      %1415 = vmatpush1.msra.mxu0 %v1298
      %1416 = vmatprep.subr.mxu0 0.0
      %1417 = vmatpush1.msra.mxu0 0.0
      %1418 = vmatprep.subr.mxu0 0.0
      %1419 = vmatpush1.msra.mxu0 0.0
      %1420 = vmatprep.subr.mxu0 0.0
      %1421 = vmatpush1.msra.mxu0 0.0
      %1422 = vmatprep.subr.mxu0 0.0
      %1423 = vmatpush1.msra.mxu0 0.0
      %1424 = vmatprep.subr.mxu0 0.0
      %1425 = vmatpush1.msra.mxu0 0.0
      %1426 = vmatprep.subr.mxu0 0.0
      %1427 = vmatpush1.msra.mxu0 0.0
      %1428 = vmatprep.subr.mxu0 0.0
      %1429 = vmatpush1.msra.mxu0 0.0
      %1430 = vmatprep.subr.mxu0 0.0
      %1431 = vmatpush1.msra.mxu0 0.0
      %1432 = vmatprep.subr.mxu0 0.0
      %1433 = vmatpush1.msra.mxu0 0.0
      %1434 = vmatprep.subr.mxu0 0.0
      %1435 = vmatpush1.msra.mxu0 0.0
      %1436 = vmatprep.subr.mxu0 0.0
      %1437 = vmatpush1.msra.mxu0 0.0
      %1438 = vmatprep.subr.mxu0 0.0
      %1439 = vmatpush1.msra.mxu0 0.0
      %1440 = vmatprep.subr.mxu0 0.0
      %1441 = vmatpush1.msra.mxu0 0.0
      %1442 = vmatprep.subr.mxu0 0.0
      %1443 = vmatpush1.msra.mxu0 0.0
      %1444 = vmatprep.subr.mxu0 0.0
      %1445 = vmatpush1.msra.mxu0 0.0
      %1446 = vmatprep.subr.mxu0 0.0
      %1447 = vmatpush1.msra.mxu0 0.0
      %1448 = vmatprep.subr.mxu0 0.0
      %1449 = vmatpush1.msra.mxu0 0.0
      %1450 = vmatprep.subr.mxu0 0.0
      %1451 = vmatpush1.msra.mxu0 0.0
      %1452 = vmatprep.subr.mxu0 0.0
      %1453 = vmatpush1.msra.mxu0 0.0
      %1454 = vmatprep.subr.mxu0 0.0
      %1455 = vmatpush1.msra.mxu0 0.0
      %1456 = vmatprep.subr.mxu0 0.0
      %1457 = vmatpush1.msra.mxu0 0.0
      %1458 = vmatprep.subr.mxu0 0.0
      %1459 = vmatpush1.msra.mxu0 0.0
      %1460 = vmatprep.subr.mxu0 0.0
      %1461 = vmatpush1.msra.mxu0 0.0
      %1462 = vmatprep.subr.mxu0 0.0
      %1463 = vmatpush1.msra.mxu0 0.0
      %1464 = vmatprep.subr.mxu0 0.0
      %1465 = vmatpush1.msra.mxu0 0.0
      %1466 = vmatprep.subr.mxu0 0.0
      %1467 = vmatpush1.msra.mxu0 0.0
      %1468 = vmatprep.subr.mxu0 0.0
      %1469 = vmatpush1.msra.mxu0 0.0
      %1470 = vmatprep.subr.mxu0 0.0
      %1471 = vmatpush1.msra.mxu0 0.0
      %1472 = vmatprep.mubr.f32.mxu0 0.0
      %1473 = vmatmul.mubr.f32.gmra.mrb[0].mxu0 %v1397
      %v1474 = vpop.f32.mrb[0].mxu0
      %v1475 = vadd.f32 0.0, %v1474
      %v1476 = vpop.f32.mrb[0].mxu0
      %1477 = vmatprep.mubr.f32.mxu0 0.0
      %1478 = vmatmul.mubr.f32.gmra.mrb[0].mxu0 %v1400
      %v1479 = vpop.f32.mrb[0].mxu0
      %v1480 = vadd.f32 0.0, %v1479
      %v1481 = vpop.f32.mrb[0].mxu0
      %1482 = vmatprep.mubr.f32.mxu0 0.0
      %1483 = vmatmul.mubr.f32.gmra.mrb[0].mxu0 %v1403
      %v1484 = vpop.f32.mrb[0].mxu0
      %v1485 = vadd.f32 0.0, %v1484
      %v1486 = vpop.f32.mrb[0].mxu0
      %1487 = vmatprep.mubr.f32.mxu0 0.0
      %1488 = vmatmul.mubr.f32.gmra.mrb[0].mxu0 %v1406
      %v1489 = vpop.f32.mrb[0].mxu0
      %v1490 = vadd.f32 0.0, %v1489
      %v1491 = vpop.f32.mrb[0].mxu0
      %1492 = vdwg.mxu0
      %v1493 = vsub.f32 %v1392, %v1475
      %v1494 = vsub.f32 %v1393, %v1480
      %v1495 = vsub.f32 %v1394, %v1485
      %v1496 = vsub.f32 %v1395, %v1490
      %v1497 = vmul.f32 %v1388, 2.0
      %v1498 = vmul.f32 %v1389, 2.0
      %v1499 = vmul.f32 %v1390, 2.0
      %v1500 = vmul.f32 %v1391, 2.0
      %1501 = vmatprep.subr.mxu0 0.0
      %1502 = vmatpush1.msra.mxu0 %v1388
      %1503 = vmatprep.subr.mxu0 0.0
      %1504 = vmatpush1.msra.mxu0 %v1389
      %1505 = vmatprep.subr.mxu0 0.0
      %1506 = vmatpush1.msra.mxu0 %v1390
      %1507 = vmatprep.subr.mxu0 0.0
      %1508 = vmatpush1.msra.mxu0 %v1391
      %1509 = vmatprep.subr.mxu0 0.0
      %1510 = vmatpush1.msra.mxu0 0.0
      %1511 = vmatprep.subr.mxu0 0.0
      %1512 = vmatpush1.msra.mxu0 0.0
      %1513 = vmatprep.subr.mxu0 0.0
      %1514 = vmatpush1.msra.mxu0 0.0
      %1515 = vmatprep.subr.mxu0 0.0
      %1516 = vmatpush1.msra.mxu0 0.0
      %1517 = vmatprep.subr.mxu0 0.0
      %1518 = vmatpush1.msra.mxu0 0.0
      %1519 = vmatprep.subr.mxu0 0.0
      %1520 = vmatpush1.msra.mxu0 0.0
      %1521 = vmatprep.subr.mxu0 0.0
      %1522 = vmatpush1.msra.mxu0 0.0
      %1523 = vmatprep.subr.mxu0 0.0
      %1524 = vmatpush1.msra.mxu0 0.0
      %1525 = vmatprep.subr.mxu0 0.0
      %1526 = vmatpush1.msra.mxu0 0.0
      %1527 = vmatprep.subr.mxu0 0.0
      %1528 = vmatpush1.msra.mxu0 0.0
      %1529 = vmatprep.subr.mxu0 0.0
      %1530 = vmatpush1.msra.mxu0 0.0
      %1531 = vmatprep.subr.mxu0 0.0
      %1532 = vmatpush1.msra.mxu0 0.0
      %1533 = vmatprep.subr.mxu0 0.0
      %1534 = vmatpush1.msra.mxu0 0.0
      %1535 = vmatprep.subr.mxu0 0.0
      %1536 = vmatpush1.msra.mxu0 0.0
      %1537 = vmatprep.subr.mxu0 0.0
      %1538 = vmatpush1.msra.mxu0 0.0
      %1539 = vmatprep.subr.mxu0 0.0
      %1540 = vmatpush1.msra.mxu0 0.0
      %1541 = vmatprep.subr.mxu0 0.0
      %1542 = vmatpush1.msra.mxu0 0.0
      %1543 = vmatprep.subr.mxu0 0.0
      %1544 = vmatpush1.msra.mxu0 0.0
      %1545 = vmatprep.subr.mxu0 0.0
      %1546 = vmatpush1.msra.mxu0 0.0
      %1547 = vmatprep.subr.mxu0 0.0
      %1548 = vmatpush1.msra.mxu0 0.0
      %1549 = vmatprep.subr.mxu0 0.0
      %1550 = vmatpush1.msra.mxu0 0.0
      %1551 = vmatprep.subr.mxu0 0.0
      %1552 = vmatpush1.msra.mxu0 0.0
      %1553 = vmatprep.subr.mxu0 0.0
      %1554 = vmatpush1.msra.mxu0 0.0
      %1555 = vmatprep.subr.mxu0 0.0
      %1556 = vmatpush1.msra.mxu0 0.0
      %1557 = vmatprep.subr.mxu0 0.0
      %1558 = vmatpush1.msra.mxu0 0.0
      %1559 = vmatprep.subr.mxu0 0.0
      %1560 = vmatpush1.msra.mxu0 0.0
      %1561 = vmatprep.subr.mxu0 0.0
      %1562 = vmatpush1.msra.mxu0 0.0
      %1563 = vmatprep.subr.mxu0 0.0
      %1564 = vmatpush1.msra.mxu0 0.0
      %1565 = vmatprep.mubr.f32.mxu0 0.0
      %1566 = vmatmul.mubr.f32.gmra.mrb[0].mxu0 %v1397
      %v1567 = vpop.f32.mrb[0].mxu0
      %v1568 = vadd.f32 0.0, %v1567
      %v1569 = vpop.f32.mrb[0].mxu0
      %1570 = vmatprep.mubr.f32.mxu0 0.0
      %1571 = vmatmul.mubr.f32.gmra.mrb[0].mxu0 %v1400
      %v1572 = vpop.f32.mrb[0].mxu0
      %v1573 = vadd.f32 0.0, %v1572
      %v1574 = vpop.f32.mrb[0].mxu0
      %1575 = vmatprep.mubr.f32.mxu0 0.0
      %1576 = vmatmul.mubr.f32.gmra.mrb[0].mxu0 %v1403
      %v1577 = vpop.f32.mrb[0].mxu0
      %v1578 = vadd.f32 0.0, %v1577
      %v1579 = vpop.f32.mrb[0].mxu0
      %1580 = vmatprep.mubr.f32.mxu0 0.0
      %1581 = vmatmul.mubr.f32.gmra.mrb[0].mxu0 %v1406
      %v1582 = vpop.f32.mrb[0].mxu0
      %v1583 = vadd.f32 0.0, %v1582
      %v1584 = vpop.f32.mrb[0].mxu0
      %1585 = vdwg.mxu0
      %v1586 = vsub.f32 %v1497, %v1568
      %v1587 = vsub.f32 %v1498, %v1573
      %v1588 = vsub.f32 %v1499, %v1578
      %v1589 = vsub.f32 %v1500, %v1583
      %v1590 = vmul.f32 %v1493, 2.0
      %v1591 = vmul.f32 %v1494, 2.0
      %v1592 = vmul.f32 %v1495, 2.0
      %v1593 = vmul.f32 %v1496, 2.0
      %v1595 = vsel %vm765, %v1586, 0
      %v1598 = vsel %vm765, %v1587, 0
      %v1601 = vsel %vm765, %v1588, 0
      %v1604 = vsel %vm765, %v1589, 0
      %1606 = vmatprep.subr.mxu0 0.0
      %1607 = vmatpush1.msra.mxu0 %v1493
      %1608 = vmatprep.subr.mxu0 0.0
      %1609 = vmatpush1.msra.mxu0 %v1494
      %1610 = vmatprep.subr.mxu0 0.0
      %1611 = vmatpush1.msra.mxu0 %v1495
      %1612 = vmatprep.subr.mxu0 0.0
      %1613 = vmatpush1.msra.mxu0 %v1496
      %1614 = vmatprep.subr.mxu0 0.0
      %1615 = vmatpush1.msra.mxu0 0.0
      %1616 = vmatprep.subr.mxu0 0.0
      %1617 = vmatpush1.msra.mxu0 0.0
      %1618 = vmatprep.subr.mxu0 0.0
      %1619 = vmatpush1.msra.mxu0 0.0
      %1620 = vmatprep.subr.mxu0 0.0
      %1621 = vmatpush1.msra.mxu0 0.0
      %1622 = vmatprep.subr.mxu0 0.0
      %1623 = vmatpush1.msra.mxu0 0.0
      %1624 = vmatprep.subr.mxu0 0.0
      %1625 = vmatpush1.msra.mxu0 0.0
      %1626 = vmatprep.subr.mxu0 0.0
      %1627 = vmatpush1.msra.mxu0 0.0
      %1628 = vmatprep.subr.mxu0 0.0
      %1629 = vmatpush1.msra.mxu0 0.0
      %1630 = vmatprep.subr.mxu0 0.0
      %1631 = vmatpush1.msra.mxu0 0.0
      %1632 = vmatprep.subr.mxu0 0.0
      %1633 = vmatpush1.msra.mxu0 0.0
      %1634 = vmatprep.subr.mxu0 0.0
      %1635 = vmatpush1.msra.mxu0 0.0
      %1636 = vmatprep.subr.mxu0 0.0
      %1637 = vmatpush1.msra.mxu0 0.0
      %1638 = vmatprep.subr.mxu0 0.0
      %1639 = vmatpush1.msra.mxu0 0.0
      %1640 = vmatprep.subr.mxu0 0.0
      %1641 = vmatpush1.msra.mxu0 0.0
      %1642 = vmatprep.subr.mxu0 0.0
      %1643 = vmatpush1.msra.mxu0 0.0
      %1644 = vmatprep.subr.mxu0 0.0
      %1645 = vmatpush1.msra.mxu0 0.0
      %1646 = vmatprep.subr.mxu0 0.0
      %1647 = vmatpush1.msra.mxu0 0.0
      %1648 = vmatprep.subr.mxu0 0.0
      %1649 = vmatpush1.msra.mxu0 0.0
      %1650 = vmatprep.subr.mxu0 0.0
      %1651 = vmatpush1.msra.mxu0 0.0
      %1652 = vmatprep.subr.mxu0 0.0
      %1653 = vmatpush1.msra.mxu0 0.0
      %1654 = vmatprep.subr.mxu0 0.0
      %1655 = vmatpush1.msra.mxu0 0.0
      %1656 = vmatprep.subr.mxu0 0.0
      %1657 = vmatpush1.msra.mxu0 0.0
      %1658 = vmatprep.subr.mxu0 0.0
      %1659 = vmatpush1.msra.mxu0 0.0
      %1660 = vmatprep.subr.mxu0 0.0
      %1661 = vmatpush1.msra.mxu0 0.0
      %1662 = vmatprep.subr.mxu0 0.0
      %1663 = vmatpush1.msra.mxu0 0.0
      %1664 = vmatprep.subr.mxu0 0.0
      %1665 = vmatpush1.msra.mxu0 0.0
      %1666 = vmatprep.subr.mxu0 0.0
      %1667 = vmatpush1.msra.mxu0 0.0
      %1668 = vmatprep.subr.mxu0 0.0
      %1669 = vmatpush1.msra.mxu0 0.0
      %1670 = vmatprep.mubr.f32.mxu0 0.0
      %1671 = vmatmul.mubr.f32.gmra.mrb[0].mxu0 %v1595
      %v1672 = vpop.f32.mrb[0].mxu0
      %v1673 = vadd.f32 0.0, %v1672
      %v1674 = vpop.f32.mrb[0].mxu0
      %1675 = vmatprep.mubr.f32.mxu0 0.0
      %1676 = vmatmul.mubr.f32.gmra.mrb[0].mxu0 %v1598
      %v1677 = vpop.f32.mrb[0].mxu0
      %v1678 = vadd.f32 0.0, %v1677
      %v1679 = vpop.f32.mrb[0].mxu0
      %1680 = vmatprep.mubr.f32.mxu0 0.0
      %1681 = vmatmul.mubr.f32.gmra.mrb[0].mxu0 %v1601
      %v1682 = vpop.f32.mrb[0].mxu0
      %v1683 = vadd.f32 0.0, %v1682
      %v1684 = vpop.f32.mrb[0].mxu0
      %1685 = vmatprep.mubr.f32.mxu0 0.0
      %1686 = vmatmul.mubr.f32.gmra.mrb[0].mxu0 %v1604
      %v1687 = vpop.f32.mrb[0].mxu0
      %v1688 = vadd.f32 0.0, %v1687
      %v1689 = vpop.f32.mrb[0].mxu0
      %1690 = vdwg.mxu0
      %v1691 = vsub.f32 %v1590, %v1673
      %v1692 = vsub.f32 %v1591, %v1678
      %v1693 = vsub.f32 %v1592, %v1683
      %v1694 = vsub.f32 %v1593, %v1688
      %v1695 = vmul.f32 %v1586, 2.0
      %v1696 = vmul.f32 %v1587, 2.0
      %v1697 = vmul.f32 %v1588, 2.0
      %v1698 = vmul.f32 %v1589, 2.0
      %1699 = vmatprep.subr.mxu0 0.0
      %1700 = vmatpush1.msra.mxu0 %v1586
      %1701 = vmatprep.subr.mxu0 0.0
      %1702 = vmatpush1.msra.mxu0 %v1587
      %1703 = vmatprep.subr.mxu0 0.0
      %1704 = vmatpush1.msra.mxu0 %v1588
      %1705 = vmatprep.subr.mxu0 0.0
      %1706 = vmatpush1.msra.mxu0 %v1589
      %1707 = vmatprep.subr.mxu0 0.0
      %1708 = vmatpush1.msra.mxu0 0.0
      %1709 = vmatprep.subr.mxu0 0.0
      %1710 = vmatpush1.msra.mxu0 0.0
      %1711 = vmatprep.subr.mxu0 0.0
      %1712 = vmatpush1.msra.mxu0 0.0
      %1713 = vmatprep.subr.mxu0 0.0
      %1714 = vmatpush1.msra.mxu0 0.0
      %1715 = vmatprep.subr.mxu0 0.0
      %1716 = vmatpush1.msra.mxu0 0.0
      %1717 = vmatprep.subr.mxu0 0.0
      %1718 = vmatpush1.msra.mxu0 0.0
      %1719 = vmatprep.subr.mxu0 0.0
      %1720 = vmatpush1.msra.mxu0 0.0
      %1721 = vmatprep.subr.mxu0 0.0
      %1722 = vmatpush1.msra.mxu0 0.0
      %1723 = vmatprep.subr.mxu0 0.0
      %1724 = vmatpush1.msra.mxu0 0.0
      %1725 = vmatprep.subr.mxu0 0.0
      %1726 = vmatpush1.msra.mxu0 0.0
      %1727 = vmatprep.subr.mxu0 0.0
      %1728 = vmatpush1.msra.mxu0 0.0
      %1729 = vmatprep.subr.mxu0 0.0
      %1730 = vmatpush1.msra.mxu0 0.0
      %1731 = vmatprep.subr.mxu0 0.0
      %1732 = vmatpush1.msra.mxu0 0.0
      %1733 = vmatprep.subr.mxu0 0.0
      %1734 = vmatpush1.msra.mxu0 0.0
      %1735 = vmatprep.subr.mxu0 0.0
      %1736 = vmatpush1.msra.mxu0 0.0
      %1737 = vmatprep.subr.mxu0 0.0
      %1738 = vmatpush1.msra.mxu0 0.0
      %1739 = vmatprep.subr.mxu0 0.0
      %1740 = vmatpush1.msra.mxu0 0.0
      %1741 = vmatprep.subr.mxu0 0.0
      %1742 = vmatpush1.msra.mxu0 0.0
      %1743 = vmatprep.subr.mxu0 0.0
      %1744 = vmatpush1.msra.mxu0 0.0
      %1745 = vmatprep.subr.mxu0 0.0
      %1746 = vmatpush1.msra.mxu0 0.0
      %1747 = vmatprep.subr.mxu0 0.0
      %1748 = vmatpush1.msra.mxu0 0.0
      %1749 = vmatprep.subr.mxu0 0.0
      %1750 = vmatpush1.msra.mxu0 0.0
      %1751 = vmatprep.subr.mxu0 0.0
      %1752 = vmatpush1.msra.mxu0 0.0
      %1753 = vmatprep.subr.mxu0 0.0
      %1754 = vmatpush1.msra.mxu0 0.0
      %1755 = vmatprep.subr.mxu0 0.0
      %1756 = vmatpush1.msra.mxu0 0.0
      %1757 = vmatprep.subr.mxu0 0.0
      %1758 = vmatpush1.msra.mxu0 0.0
      %1759 = vmatprep.subr.mxu0 0.0
      %1760 = vmatpush1.msra.mxu0 0.0
      %1761 = vmatprep.subr.mxu0 0.0
      %1762 = vmatpush1.msra.mxu0 0.0
      %1763 = vmatprep.mubr.f32.mxu0 0.0
      %1764 = vmatmul.mubr.f32.gmra.mrb[0].mxu0 %v1595
      %v1765 = vpop.f32.mrb[0].mxu0
      %v1766 = vadd.f32 0.0, %v1765
      %v1767 = vpop.f32.mrb[0].mxu0
      %1768 = vmatprep.mubr.f32.mxu0 0.0
      %1769 = vmatmul.mubr.f32.gmra.mrb[0].mxu0 %v1598
      %v1770 = vpop.f32.mrb[0].mxu0
      %v1771 = vadd.f32 0.0, %v1770
      %v1772 = vpop.f32.mrb[0].mxu0
      %1773 = vmatprep.mubr.f32.mxu0 0.0
      %1774 = vmatmul.mubr.f32.gmra.mrb[0].mxu0 %v1601
      %v1775 = vpop.f32.mrb[0].mxu0
      %v1776 = vadd.f32 0.0, %v1775
      %v1777 = vpop.f32.mrb[0].mxu0
      %1778 = vmatprep.mubr.f32.mxu0 0.0
      %1779 = vmatmul.mubr.f32.gmra.mrb[0].mxu0 %v1604
      %v1780 = vpop.f32.mrb[0].mxu0
      %v1781 = vadd.f32 0.0, %v1780
      %v1782 = vpop.f32.mrb[0].mxu0
      %1783 = vdwg.mxu0
      %v1784 = vsub.f32 %v1695, %v1766
      %v1785 = vsub.f32 %v1696, %v1771
      %v1786 = vsub.f32 %v1697, %v1776
      %v1787 = vsub.f32 %v1698, %v1781
      %v1788 = vmul.f32 %v1691, 2.0
      %v1789 = vmul.f32 %v1692, 2.0
      %v1790 = vmul.f32 %v1693, 2.0
      %v1791 = vmul.f32 %v1694, 2.0
      %v1793 = vsel %vm765, %v1784, 0
      %v1796 = vsel %vm765, %v1785, 0
      %v1799 = vsel %vm765, %v1786, 0
      %v1802 = vsel %vm765, %v1787, 0
      %1804 = vmatprep.subr.mxu0 0.0
      %1805 = vmatpush1.msra.mxu0 %v1691
      %1806 = vmatprep.subr.mxu0 0.0
      %1807 = vmatpush1.msra.mxu0 %v1692
      %1808 = vmatprep.subr.mxu0 0.0
      %1809 = vmatpush1.msra.mxu0 %v1693
      %1810 = vmatprep.subr.mxu0 0.0
      %1811 = vmatpush1.msra.mxu0 %v1694
      %1812 = vmatprep.subr.mxu0 0.0
      %1813 = vmatpush1.msra.mxu0 0.0
      %1814 = vmatprep.subr.mxu0 0.0
      %1815 = vmatpush1.msra.mxu0 0.0
      %1816 = vmatprep.subr.mxu0 0.0
      %1817 = vmatpush1.msra.mxu0 0.0
      %1818 = vmatprep.subr.mxu0 0.0
      %1819 = vmatpush1.msra.mxu0 0.0
      %1820 = vmatprep.subr.mxu0 0.0
      %1821 = vmatpush1.msra.mxu0 0.0
      %1822 = vmatprep.subr.mxu0 0.0
      %1823 = vmatpush1.msra.mxu0 0.0
      %1824 = vmatprep.subr.mxu0 0.0
      %1825 = vmatpush1.msra.mxu0 0.0
      %1826 = vmatprep.subr.mxu0 0.0
      %1827 = vmatpush1.msra.mxu0 0.0
      %1828 = vmatprep.subr.mxu0 0.0
      %1829 = vmatpush1.msra.mxu0 0.0
      %1830 = vmatprep.subr.mxu0 0.0
      %1831 = vmatpush1.msra.mxu0 0.0
      %1832 = vmatprep.subr.mxu0 0.0
      %1833 = vmatpush1.msra.mxu0 0.0
      %1834 = vmatprep.subr.mxu0 0.0
      %1835 = vmatpush1.msra.mxu0 0.0
      %1836 = vmatprep.subr.mxu0 0.0
      %1837 = vmatpush1.msra.mxu0 0.0
      %1838 = vmatprep.subr.mxu0 0.0
      %1839 = vmatpush1.msra.mxu0 0.0
      %1840 = vmatprep.subr.mxu0 0.0
      %1841 = vmatpush1.msra.mxu0 0.0
      %1842 = vmatprep.subr.mxu0 0.0
      %1843 = vmatpush1.msra.mxu0 0.0
      %1844 = vmatprep.subr.mxu0 0.0
      %1845 = vmatpush1.msra.mxu0 0.0
      %1846 = vmatprep.subr.mxu0 0.0
      %1847 = vmatpush1.msra.mxu0 0.0
      %1848 = vmatprep.subr.mxu0 0.0
      %1849 = vmatpush1.msra.mxu0 0.0
      %1850 = vmatprep.subr.mxu0 0.0
      %1851 = vmatpush1.msra.mxu0 0.0
      %1852 = vmatprep.subr.mxu0 0.0
      %1853 = vmatpush1.msra.mxu0 0.0
      %1854 = vmatprep.subr.mxu0 0.0
      %1855 = vmatpush1.msra.mxu0 0.0
      %1856 = vmatprep.subr.mxu0 0.0
      %1857 = vmatpush1.msra.mxu0 0.0
      %1858 = vmatprep.subr.mxu0 0.0
      %1859 = vmatpush1.msra.mxu0 0.0
      %1860 = vmatprep.subr.mxu0 0.0
      %1861 = vmatpush1.msra.mxu0 0.0
      %1862 = vmatprep.subr.mxu0 0.0
      %1863 = vmatpush1.msra.mxu0 0.0
      %1864 = vmatprep.subr.mxu0 0.0
      %1865 = vmatpush1.msra.mxu0 0.0
      %1866 = vmatprep.subr.mxu0 0.0
      %1867 = vmatpush1.msra.mxu0 0.0
      %1868 = vmatprep.mubr.f32.mxu0 0.0
      %1869 = vmatmul.mubr.f32.gmra.mrb[0].mxu0 %v1793
      %v1870 = vpop.f32.mrb[0].mxu0
      %v1871 = vadd.f32 0.0, %v1870
      %v1872 = vpop.f32.mrb[0].mxu0
      %1873 = vmatprep.mubr.f32.mxu0 0.0
      %1874 = vmatmul.mubr.f32.gmra.mrb[0].mxu0 %v1796
      %v1875 = vpop.f32.mrb[0].mxu0
      %v1876 = vadd.f32 0.0, %v1875
      %v1877 = vpop.f32.mrb[0].mxu0
      %1878 = vmatprep.mubr.f32.mxu0 0.0
      %1879 = vmatmul.mubr.f32.gmra.mrb[0].mxu0 %v1799
      %v1880 = vpop.f32.mrb[0].mxu0
      %v1881 = vadd.f32 0.0, %v1880
      %v1882 = vpop.f32.mrb[0].mxu0
      %1883 = vmatprep.mubr.f32.mxu0 0.0
      %1884 = vmatmul.mubr.f32.gmra.mrb[0].mxu0 %v1802
      %v1885 = vpop.f32.mrb[0].mxu0
      %v1886 = vadd.f32 0.0, %v1885
      %v1887 = vpop.f32.mrb[0].mxu0
      %1888 = vdwg.mxu0
      %v1889 = vsub.f32 %v1788, %v1871
      %v1890 = vsub.f32 %v1789, %v1876
      %v1891 = vsub.f32 %v1790, %v1881
      %v1892 = vsub.f32 %v1791, %v1886
      %v1893 = vmul.f32 %v1784, 2.0
      %v1894 = vmul.f32 %v1785, 2.0
      %v1895 = vmul.f32 %v1786, 2.0
      %v1896 = vmul.f32 %v1787, 2.0
      %1897 = vmatprep.subr.mxu0 0.0
      %1898 = vmatpush1.msra.mxu0 %v1784
      %1899 = vmatprep.subr.mxu0 0.0
      %1900 = vmatpush1.msra.mxu0 %v1785
      %1901 = vmatprep.subr.mxu0 0.0
      %1902 = vmatpush1.msra.mxu0 %v1786
      %1903 = vmatprep.subr.mxu0 0.0
      %1904 = vmatpush1.msra.mxu0 %v1787
      %1905 = vmatprep.subr.mxu0 0.0
      %1906 = vmatpush1.msra.mxu0 0.0
      %1907 = vmatprep.subr.mxu0 0.0
      %1908 = vmatpush1.msra.mxu0 0.0
      %1909 = vmatprep.subr.mxu0 0.0
      %1910 = vmatpush1.msra.mxu0 0.0
      %1911 = vmatprep.subr.mxu0 0.0
      %1912 = vmatpush1.msra.mxu0 0.0
      %1913 = vmatprep.subr.mxu0 0.0
      %1914 = vmatpush1.msra.mxu0 0.0
      %1915 = vmatprep.subr.mxu0 0.0
      %1916 = vmatpush1.msra.mxu0 0.0
      %1917 = vmatprep.subr.mxu0 0.0
      %1918 = vmatpush1.msra.mxu0 0.0
      %1919 = vmatprep.subr.mxu0 0.0
      %1920 = vmatpush1.msra.mxu0 0.0
      %1921 = vmatprep.subr.mxu0 0.0
      %1922 = vmatpush1.msra.mxu0 0.0
      %1923 = vmatprep.subr.mxu0 0.0
      %1924 = vmatpush1.msra.mxu0 0.0
      %1925 = vmatprep.subr.mxu0 0.0
      %1926 = vmatpush1.msra.mxu0 0.0
      %1927 = vmatprep.subr.mxu0 0.0
      %1928 = vmatpush1.msra.mxu0 0.0
      %1929 = vmatprep.subr.mxu0 0.0
      %1930 = vmatpush1.msra.mxu0 0.0
      %1931 = vmatprep.subr.mxu0 0.0
      %1932 = vmatpush1.msra.mxu0 0.0
      %1933 = vmatprep.subr.mxu0 0.0
      %1934 = vmatpush1.msra.mxu0 0.0
      %1935 = vmatprep.subr.mxu0 0.0
      %1936 = vmatpush1.msra.mxu0 0.0
      %1937 = vmatprep.subr.mxu0 0.0
      %1938 = vmatpush1.msra.mxu0 0.0
      %1939 = vmatprep.subr.mxu0 0.0
      %1940 = vmatpush1.msra.mxu0 0.0
      %1941 = vmatprep.subr.mxu0 0.0
      %1942 = vmatpush1.msra.mxu0 0.0
      %1943 = vmatprep.subr.mxu0 0.0
      %1944 = vmatpush1.msra.mxu0 0.0
      %1945 = vmatprep.subr.mxu0 0.0
      %1946 = vmatpush1.msra.mxu0 0.0
      %1947 = vmatprep.subr.mxu0 0.0
      %1948 = vmatpush1.msra.mxu0 0.0
      %1949 = vmatprep.subr.mxu0 0.0
      %1950 = vmatpush1.msra.mxu0 0.0
      %1951 = vmatprep.subr.mxu0 0.0
      %1952 = vmatpush1.msra.mxu0 0.0
      %1953 = vmatprep.subr.mxu0 0.0
      %1954 = vmatpush1.msra.mxu0 0.0
      %1955 = vmatprep.subr.mxu0 0.0
      %1956 = vmatpush1.msra.mxu0 0.0
      %1957 = vmatprep.subr.mxu0 0.0
      %1958 = vmatpush1.msra.mxu0 0.0
      %1959 = vmatprep.subr.mxu0 0.0
      %1960 = vmatpush1.msra.mxu0 0.0
      %1961 = vmatprep.mubr.f32.mxu0 0.0
      %1962 = vmatmul.mubr.f32.gmra.mrb[0].mxu0 %v1793
      %v1963 = vpop.f32.mrb[0].mxu0
      %v1964 = vadd.f32 0.0, %v1963
      %v1965 = vpop.f32.mrb[0].mxu0
      %1966 = vmatprep.mubr.f32.mxu0 0.0
      %1967 = vmatmul.mubr.f32.gmra.mrb[0].mxu0 %v1796
      %v1968 = vpop.f32.mrb[0].mxu0
      %v1969 = vadd.f32 0.0, %v1968
      %v1970 = vpop.f32.mrb[0].mxu0
      %1971 = vmatprep.mubr.f32.mxu0 0.0
      %1972 = vmatmul.mubr.f32.gmra.mrb[0].mxu0 %v1799
      %v1973 = vpop.f32.mrb[0].mxu0
      %v1974 = vadd.f32 0.0, %v1973
      %v1975 = vpop.f32.mrb[0].mxu0
      %1976 = vmatprep.mubr.f32.mxu0 0.0
      %1977 = vmatmul.mubr.f32.gmra.mrb[0].mxu0 %v1802
      %v1978 = vpop.f32.mrb[0].mxu0
      %v1979 = vadd.f32 0.0, %v1978
      %v1980 = vpop.f32.mrb[0].mxu0
      %1981 = vdwg.mxu0
      %v1982 = vsub.f32 %v1893, %v1964
      %v1983 = vsub.f32 %v1894, %v1969
      %v1984 = vsub.f32 %v1895, %v1974
      %v1985 = vsub.f32 %v1896, %v1979
      %v1986 = vmul.f32 %v1889, 2.0
      %v1987 = vmul.f32 %v1890, 2.0
      %v1988 = vmul.f32 %v1891, 2.0
      %v1989 = vmul.f32 %v1892, 2.0
      %v1991 = vsel %vm765, %v1982, 0
      %v1994 = vsel %vm765, %v1983, 0
      %v1997 = vsel %vm765, %v1984, 0
      %v2000 = vsel %vm765, %v1985, 0
      %2002 = vmatprep.subr.mxu0 0.0
      %2003 = vmatpush1.msra.mxu0 %v1889
      %2004 = vmatprep.subr.mxu0 0.0
      %2005 = vmatpush1.msra.mxu0 %v1890
      %2006 = vmatprep.subr.mxu0 0.0
      %2007 = vmatpush1.msra.mxu0 %v1891
      %2008 = vmatprep.subr.mxu0 0.0
      %2009 = vmatpush1.msra.mxu0 %v1892
      %2010 = vmatprep.subr.mxu0 0.0
      %2011 = vmatpush1.msra.mxu0 0.0
      %2012 = vmatprep.subr.mxu0 0.0
      %2013 = vmatpush1.msra.mxu0 0.0
      %2014 = vmatprep.subr.mxu0 0.0
      %2015 = vmatpush1.msra.mxu0 0.0
      %2016 = vmatprep.subr.mxu0 0.0
      %2017 = vmatpush1.msra.mxu0 0.0
      %2018 = vmatprep.subr.mxu0 0.0
      %2019 = vmatpush1.msra.mxu0 0.0
      %2020 = vmatprep.subr.mxu0 0.0
      %2021 = vmatpush1.msra.mxu0 0.0
      %2022 = vmatprep.subr.mxu0 0.0
      %2023 = vmatpush1.msra.mxu0 0.0
      %2024 = vmatprep.subr.mxu0 0.0
      %2025 = vmatpush1.msra.mxu0 0.0
      %2026 = vmatprep.subr.mxu0 0.0
      %2027 = vmatpush1.msra.mxu0 0.0
      %2028 = vmatprep.subr.mxu0 0.0
      %2029 = vmatpush1.msra.mxu0 0.0
      %2030 = vmatprep.subr.mxu0 0.0
      %2031 = vmatpush1.msra.mxu0 0.0
      %2032 = vmatprep.subr.mxu0 0.0
      %2033 = vmatpush1.msra.mxu0 0.0
      %2034 = vmatprep.subr.mxu0 0.0
      %2035 = vmatpush1.msra.mxu0 0.0
      %2036 = vmatprep.subr.mxu0 0.0
      %2037 = vmatpush1.msra.mxu0 0.0
      %2038 = vmatprep.subr.mxu0 0.0
      %2039 = vmatpush1.msra.mxu0 0.0
      %2040 = vmatprep.subr.mxu0 0.0
      %2041 = vmatpush1.msra.mxu0 0.0
      %2042 = vmatprep.subr.mxu0 0.0
      %2043 = vmatpush1.msra.mxu0 0.0
      %2044 = vmatprep.subr.mxu0 0.0
      %2045 = vmatpush1.msra.mxu0 0.0
      %2046 = vmatprep.subr.mxu0 0.0
      %2047 = vmatpush1.msra.mxu0 0.0
      %2048 = vmatprep.subr.mxu0 0.0
      %2049 = vmatpush1.msra.mxu0 0.0
      %2050 = vmatprep.subr.mxu0 0.0
      %2051 = vmatpush1.msra.mxu0 0.0
      %2052 = vmatprep.subr.mxu0 0.0
      %2053 = vmatpush1.msra.mxu0 0.0
      %2054 = vmatprep.subr.mxu0 0.0
      %2055 = vmatpush1.msra.mxu0 0.0
      %2056 = vmatprep.subr.mxu0 0.0
      %2057 = vmatpush1.msra.mxu0 0.0
      %2058 = vmatprep.subr.mxu0 0.0
      %2059 = vmatpush1.msra.mxu0 0.0
      %2060 = vmatprep.subr.mxu0 0.0
      %2061 = vmatpush1.msra.mxu0 0.0
      %2062 = vmatprep.subr.mxu0 0.0
      %2063 = vmatpush1.msra.mxu0 0.0
      %2064 = vmatprep.subr.mxu0 0.0
      %2065 = vmatpush1.msra.mxu0 0.0
      %2066 = vmatprep.mubr.f32.mxu0 0.0
      %2067 = vmatmul.mubr.f32.gmra.mrb[0].mxu0 %v1991
      %v2068 = vpop.f32.mrb[0].mxu0
      %v2069 = vadd.f32 0.0, %v2068
      %v2070 = vpop.f32.mrb[0].mxu0
      %2071 = vmatprep.mubr.f32.mxu0 0.0
      %2072 = vmatmul.mubr.f32.gmra.mrb[0].mxu0 %v1994
      %v2073 = vpop.f32.mrb[0].mxu0
      %v2074 = vadd.f32 0.0, %v2073
      %v2075 = vpop.f32.mrb[0].mxu0
      %2076 = vmatprep.mubr.f32.mxu0 0.0
      %2077 = vmatmul.mubr.f32.gmra.mrb[0].mxu0 %v1997
      %v2078 = vpop.f32.mrb[0].mxu0
      %v2079 = vadd.f32 0.0, %v2078
      %v2080 = vpop.f32.mrb[0].mxu0
      %2081 = vmatprep.mubr.f32.mxu0 0.0
      %2082 = vmatmul.mubr.f32.gmra.mrb[0].mxu0 %v2000
      %v2083 = vpop.f32.mrb[0].mxu0
      %v2084 = vadd.f32 0.0, %v2083
      %v2085 = vpop.f32.mrb[0].mxu0
      %2086 = vdwg.mxu0
      %v2087 = vsub.f32 %v1986, %v2069
      %v2088 = vsub.f32 %v1987, %v2074
      %v2089 = vsub.f32 %v1988, %v2079
      %v2090 = vsub.f32 %v1989, %v2084
      %v2091 = vmul.f32 %v1982, 2.0
      %v2092 = vmul.f32 %v1983, 2.0
      %v2093 = vmul.f32 %v1984, 2.0
      %v2094 = vmul.f32 %v1985, 2.0
      %2095 = vmatprep.subr.mxu0 0.0
      %2096 = vmatpush1.msra.mxu0 %v1982
      %2097 = vmatprep.subr.mxu0 0.0
      %2098 = vmatpush1.msra.mxu0 %v1983
      %2099 = vmatprep.subr.mxu0 0.0
      %2100 = vmatpush1.msra.mxu0 %v1984
      %2101 = vmatprep.subr.mxu0 0.0
      %2102 = vmatpush1.msra.mxu0 %v1985
      %2103 = vmatprep.subr.mxu0 0.0
      %2104 = vmatpush1.msra.mxu0 0.0
      %2105 = vmatprep.subr.mxu0 0.0
      %2106 = vmatpush1.msra.mxu0 0.0
      %2107 = vmatprep.subr.mxu0 0.0
      %2108 = vmatpush1.msra.mxu0 0.0
      %2109 = vmatprep.subr.mxu0 0.0
      %2110 = vmatpush1.msra.mxu0 0.0
      %2111 = vmatprep.subr.mxu0 0.0
      %2112 = vmatpush1.msra.mxu0 0.0
      %2113 = vmatprep.subr.mxu0 0.0
      %2114 = vmatpush1.msra.mxu0 0.0
      %2115 = vmatprep.subr.mxu0 0.0
      %2116 = vmatpush1.msra.mxu0 0.0
      %2117 = vmatprep.subr.mxu0 0.0
      %2118 = vmatpush1.msra.mxu0 0.0
      %2119 = vmatprep.subr.mxu0 0.0
      %2120 = vmatpush1.msra.mxu0 0.0
      %2121 = vmatprep.subr.mxu0 0.0
      %2122 = vmatpush1.msra.mxu0 0.0
      %2123 = vmatprep.subr.mxu0 0.0
      %2124 = vmatpush1.msra.mxu0 0.0
      %2125 = vmatprep.subr.mxu0 0.0
      %2126 = vmatpush1.msra.mxu0 0.0
      %2127 = vmatprep.subr.mxu0 0.0
      %2128 = vmatpush1.msra.mxu0 0.0
      %2129 = vmatprep.subr.mxu0 0.0
      %2130 = vmatpush1.msra.mxu0 0.0
      %2131 = vmatprep.subr.mxu0 0.0
      %2132 = vmatpush1.msra.mxu0 0.0
      %2133 = vmatprep.subr.mxu0 0.0
      %2134 = vmatpush1.msra.mxu0 0.0
      %2135 = vmatprep.subr.mxu0 0.0
      %2136 = vmatpush1.msra.mxu0 0.0
      %2137 = vmatprep.subr.mxu0 0.0
      %2138 = vmatpush1.msra.mxu0 0.0
      %2139 = vmatprep.subr.mxu0 0.0
      %2140 = vmatpush1.msra.mxu0 0.0
      %2141 = vmatprep.subr.mxu0 0.0
      %2142 = vmatpush1.msra.mxu0 0.0
      %2143 = vmatprep.subr.mxu0 0.0
      %2144 = vmatpush1.msra.mxu0 0.0
      %2145 = vmatprep.subr.mxu0 0.0
      %2146 = vmatpush1.msra.mxu0 0.0
      %2147 = vmatprep.subr.mxu0 0.0
      %2148 = vmatpush1.msra.mxu0 0.0
      %2149 = vmatprep.subr.mxu0 0.0
      %2150 = vmatpush1.msra.mxu0 0.0
      %2151 = vmatprep.subr.mxu0 0.0
      %2152 = vmatpush1.msra.mxu0 0.0
      %2153 = vmatprep.subr.mxu0 0.0
      %2154 = vmatpush1.msra.mxu0 0.0
      %2155 = vmatprep.subr.mxu0 0.0
      %2156 = vmatpush1.msra.mxu0 0.0
      %2157 = vmatprep.subr.mxu0 0.0
      %2158 = vmatpush1.msra.mxu0 0.0
      %2159 = vmatprep.mubr.f32.mxu0 0.0
      %2160 = vmatmul.mubr.f32.gmra.mrb[0].mxu0 %v1991
      %v2161 = vpop.f32.mrb[0].mxu0
      %v2162 = vadd.f32 0.0, %v2161
      %v2163 = vpop.f32.mrb[0].mxu0
      %2164 = vmatprep.mubr.f32.mxu0 0.0
      %2165 = vmatmul.mubr.f32.gmra.mrb[0].mxu0 %v1994
      %v2166 = vpop.f32.mrb[0].mxu0
      %v2167 = vadd.f32 0.0, %v2166
      %v2168 = vpop.f32.mrb[0].mxu0
      %2169 = vmatprep.mubr.f32.mxu0 0.0
      %2170 = vmatmul.mubr.f32.gmra.mrb[0].mxu0 %v1997
      %v2171 = vpop.f32.mrb[0].mxu0
      %v2172 = vadd.f32 0.0, %v2171
      %v2173 = vpop.f32.mrb[0].mxu0
      %2174 = vmatprep.mubr.f32.mxu0 0.0
      %2175 = vmatmul.mubr.f32.gmra.mrb[0].mxu0 %v2000
      %v2176 = vpop.f32.mrb[0].mxu0
      %v2177 = vadd.f32 0.0, %v2176
      %v2178 = vpop.f32.mrb[0].mxu0
      %2179 = vdwg.mxu0
      %v2180 = vsub.f32 %v2091, %v2162
      %v2181 = vsub.f32 %v2092, %v2167
      %v2182 = vsub.f32 %v2093, %v2172
      %v2183 = vsub.f32 %v2094, %v2177
      %v2184 = vmul.f32 %v2087, 2.0
      %v2185 = vmul.f32 %v2088, 2.0
      %v2186 = vmul.f32 %v2089, 2.0
      %v2187 = vmul.f32 %v2090, 2.0
      %v2189 = vsel %vm765, %v2180, 0
      %v2192 = vsel %vm765, %v2181, 0
      %v2195 = vsel %vm765, %v2182, 0
      %v2198 = vsel %vm765, %v2183, 0
      %2200 = vmatprep.subr.mxu0 0.0
      %2201 = vmatpush1.msra.mxu0 %v2087
      %2202 = vmatprep.subr.mxu0 0.0
      %2203 = vmatpush1.msra.mxu0 %v2088
      %2204 = vmatprep.subr.mxu0 0.0
      %2205 = vmatpush1.msra.mxu0 %v2089
      %2206 = vmatprep.subr.mxu0 0.0
      %2207 = vmatpush1.msra.mxu0 %v2090
      %2208 = vmatprep.subr.mxu0 0.0
      %2209 = vmatpush1.msra.mxu0 0.0
      %2210 = vmatprep.subr.mxu0 0.0
      %2211 = vmatpush1.msra.mxu0 0.0
      %2212 = vmatprep.subr.mxu0 0.0
      %2213 = vmatpush1.msra.mxu0 0.0
      %2214 = vmatprep.subr.mxu0 0.0
      %2215 = vmatpush1.msra.mxu0 0.0
      %2216 = vmatprep.subr.mxu0 0.0
      %2217 = vmatpush1.msra.mxu0 0.0
      %2218 = vmatprep.subr.mxu0 0.0
      %2219 = vmatpush1.msra.mxu0 0.0
      %2220 = vmatprep.subr.mxu0 0.0
      %2221 = vmatpush1.msra.mxu0 0.0
      %2222 = vmatprep.subr.mxu0 0.0
      %2223 = vmatpush1.msra.mxu0 0.0
      %2224 = vmatprep.subr.mxu0 0.0
      %2225 = vmatpush1.msra.mxu0 0.0
      %2226 = vmatprep.subr.mxu0 0.0
      %2227 = vmatpush1.msra.mxu0 0.0
      %2228 = vmatprep.subr.mxu0 0.0
      %2229 = vmatpush1.msra.mxu0 0.0
      %2230 = vmatprep.subr.mxu0 0.0
      %2231 = vmatpush1.msra.mxu0 0.0
      %2232 = vmatprep.subr.mxu0 0.0
      %2233 = vmatpush1.msra.mxu0 0.0
      %2234 = vmatprep.subr.mxu0 0.0
      %2235 = vmatpush1.msra.mxu0 0.0
      %2236 = vmatprep.subr.mxu0 0.0
      %2237 = vmatpush1.msra.mxu0 0.0
      %2238 = vmatprep.subr.mxu0 0.0
      %2239 = vmatpush1.msra.mxu0 0.0
      %2240 = vmatprep.subr.mxu0 0.0
      %2241 = vmatpush1.msra.mxu0 0.0
      %2242 = vmatprep.subr.mxu0 0.0
      %2243 = vmatpush1.msra.mxu0 0.0
      %2244 = vmatprep.subr.mxu0 0.0
      %2245 = vmatpush1.msra.mxu0 0.0
      %2246 = vmatprep.subr.mxu0 0.0
      %2247 = vmatpush1.msra.mxu0 0.0
      %2248 = vmatprep.subr.mxu0 0.0
      %2249 = vmatpush1.msra.mxu0 0.0
      %2250 = vmatprep.subr.mxu0 0.0
      %2251 = vmatpush1.msra.mxu0 0.0
      %2252 = vmatprep.subr.mxu0 0.0
      %2253 = vmatpush1.msra.mxu0 0.0
      %2254 = vmatprep.subr.mxu0 0.0
      %2255 = vmatpush1.msra.mxu0 0.0
      %2256 = vmatprep.subr.mxu0 0.0
      %2257 = vmatpush1.msra.mxu0 0.0
      %2258 = vmatprep.subr.mxu0 0.0
      %2259 = vmatpush1.msra.mxu0 0.0
      %2260 = vmatprep.subr.mxu0 0.0
      %2261 = vmatpush1.msra.mxu0 0.0
      %2262 = vmatprep.subr.mxu0 0.0
      %2263 = vmatpush1.msra.mxu0 0.0
      %2264 = vmatprep.mubr.f32.mxu0 0.0
      %2265 = vmatmul.mubr.f32.gmra.mrb[0].mxu0 %v2189
      %v2266 = vpop.f32.mrb[0].mxu0
      %v2267 = vadd.f32 0.0, %v2266
      %v2268 = vpop.f32.mrb[0].mxu0
      %2269 = vmatprep.mubr.f32.mxu0 0.0
      %2270 = vmatmul.mubr.f32.gmra.mrb[0].mxu0 %v2192
      %v2271 = vpop.f32.mrb[0].mxu0
      %v2272 = vadd.f32 0.0, %v2271
      %v2273 = vpop.f32.mrb[0].mxu0
      %2274 = vmatprep.mubr.f32.mxu0 0.0
      %2275 = vmatmul.mubr.f32.gmra.mrb[0].mxu0 %v2195
      %v2276 = vpop.f32.mrb[0].mxu0
      %v2277 = vadd.f32 0.0, %v2276
      %v2278 = vpop.f32.mrb[0].mxu0
      %2279 = vmatprep.mubr.f32.mxu0 0.0
      %2280 = vmatmul.mubr.f32.gmra.mrb[0].mxu0 %v2198
      %v2281 = vpop.f32.mrb[0].mxu0
      %v2282 = vadd.f32 0.0, %v2281
      %v2283 = vpop.f32.mrb[0].mxu0
      %2284 = vdwg.mxu0
      %v2285 = vsub.f32 %v2184, %v2267
      %v2286 = vsub.f32 %v2185, %v2272
      %v2287 = vsub.f32 %v2186, %v2277
      %v2288 = vsub.f32 %v2187, %v2282
      %v2289 = vmul.f32 %v2180, 2.0
      %v2290 = vmul.f32 %v2181, 2.0
      %v2291 = vmul.f32 %v2182, 2.0
      %v2292 = vmul.f32 %v2183, 2.0
      %2293 = vmatprep.subr.mxu0 0.0
      %2294 = vmatpush1.msra.mxu0 %v2180
      %2295 = vmatprep.subr.mxu0 0.0
      %2296 = vmatpush1.msra.mxu0 %v2181
      %2297 = vmatprep.subr.mxu0 0.0
      %2298 = vmatpush1.msra.mxu0 %v2182
      %2299 = vmatprep.subr.mxu0 0.0
      %2300 = vmatpush1.msra.mxu0 %v2183
      %2301 = vmatprep.subr.mxu0 0.0
      %2302 = vmatpush1.msra.mxu0 0.0
      %2303 = vmatprep.subr.mxu0 0.0
      %2304 = vmatpush1.msra.mxu0 0.0
      %2305 = vmatprep.subr.mxu0 0.0
      %2306 = vmatpush1.msra.mxu0 0.0
      %2307 = vmatprep.subr.mxu0 0.0
      %2308 = vmatpush1.msra.mxu0 0.0
      %2309 = vmatprep.subr.mxu0 0.0
      %2310 = vmatpush1.msra.mxu0 0.0
      %2311 = vmatprep.subr.mxu0 0.0
      %2312 = vmatpush1.msra.mxu0 0.0
      %2313 = vmatprep.subr.mxu0 0.0
      %2314 = vmatpush1.msra.mxu0 0.0
      %2315 = vmatprep.subr.mxu0 0.0
      %2316 = vmatpush1.msra.mxu0 0.0
      %2317 = vmatprep.subr.mxu0 0.0
      %2318 = vmatpush1.msra.mxu0 0.0
      %2319 = vmatprep.subr.mxu0 0.0
      %2320 = vmatpush1.msra.mxu0 0.0
      %2321 = vmatprep.subr.mxu0 0.0
      %2322 = vmatpush1.msra.mxu0 0.0
      %2323 = vmatprep.subr.mxu0 0.0
      %2324 = vmatpush1.msra.mxu0 0.0
      %2325 = vmatprep.subr.mxu0 0.0
      %2326 = vmatpush1.msra.mxu0 0.0
      %2327 = vmatprep.subr.mxu0 0.0
      %2328 = vmatpush1.msra.mxu0 0.0
      %2329 = vmatprep.subr.mxu0 0.0
      %2330 = vmatpush1.msra.mxu0 0.0
      %2331 = vmatprep.subr.mxu0 0.0
      %2332 = vmatpush1.msra.mxu0 0.0
      %2333 = vmatprep.subr.mxu0 0.0
      %2334 = vmatpush1.msra.mxu0 0.0
      %2335 = vmatprep.subr.mxu0 0.0
      %2336 = vmatpush1.msra.mxu0 0.0
      %2337 = vmatprep.subr.mxu0 0.0
      %2338 = vmatpush1.msra.mxu0 0.0
      %2339 = vmatprep.subr.mxu0 0.0
      %2340 = vmatpush1.msra.mxu0 0.0
      %2341 = vmatprep.subr.mxu0 0.0
      %2342 = vmatpush1.msra.mxu0 0.0
      %2343 = vmatprep.subr.mxu0 0.0
      %2344 = vmatpush1.msra.mxu0 0.0
      %2345 = vmatprep.subr.mxu0 0.0
      %2346 = vmatpush1.msra.mxu0 0.0
      %2347 = vmatprep.subr.mxu0 0.0
      %2348 = vmatpush1.msra.mxu0 0.0
      %2349 = vmatprep.subr.mxu0 0.0
      %2350 = vmatpush1.msra.mxu0 0.0
      %2351 = vmatprep.subr.mxu0 0.0
      %2352 = vmatpush1.msra.mxu0 0.0
      %2353 = vmatprep.subr.mxu0 0.0
      %2354 = vmatpush1.msra.mxu0 0.0
      %2355 = vmatprep.subr.mxu0 0.0
      %2356 = vmatpush1.msra.mxu0 0.0
      %2357 = vmatprep.mubr.f32.mxu0 0.0
      %2358 = vmatmul.mubr.f32.gmra.mrb[0].mxu0 %v2189
      %v2359 = vpop.f32.mrb[0].mxu0
      %v2360 = vadd.f32 0.0, %v2359
      %v2361 = vpop.f32.mrb[0].mxu0
      %2362 = vmatprep.mubr.f32.mxu0 0.0
      %2363 = vmatmul.mubr.f32.gmra.mrb[0].mxu0 %v2192
      %v2364 = vpop.f32.mrb[0].mxu0
      %v2365 = vadd.f32 0.0, %v2364
      %v2366 = vpop.f32.mrb[0].mxu0
      %2367 = vmatprep.mubr.f32.mxu0 0.0
      %2368 = vmatmul.mubr.f32.gmra.mrb[0].mxu0 %v2195
      %v2369 = vpop.f32.mrb[0].mxu0
      %v2370 = vadd.f32 0.0, %v2369
      %v2371 = vpop.f32.mrb[0].mxu0
      %2372 = vmatprep.mubr.f32.mxu0 0.0
      %2373 = vmatmul.mubr.f32.gmra.mrb[0].mxu0 %v2198
      %v2374 = vpop.f32.mrb[0].mxu0
      %v2375 = vadd.f32 0.0, %v2374
      %v2376 = vpop.f32.mrb[0].mxu0
      %2377 = vdwg.mxu0
      %v2378 = vsub.f32 %v2289, %v2360
      %v2379 = vsub.f32 %v2290, %v2365
      %v2380 = vsub.f32 %v2291, %v2370
      %v2381 = vsub.f32 %v2292, %v2375
      %v2382 = vmul.f32 %v2285, 2.0
      %v2383 = vmul.f32 %v2286, 2.0
      %v2384 = vmul.f32 %v2287, 2.0
      %v2385 = vmul.f32 %v2288, 2.0
      %v2387 = vsel %vm765, %v2378, 0
      %v2390 = vsel %vm765, %v2379, 0
      %v2393 = vsel %vm765, %v2380, 0
      %v2396 = vsel %vm765, %v2381, 0
      %2398 = vmatprep.subr.mxu0 0.0
      %2399 = vmatpush1.msra.mxu0 %v2285
      %2400 = vmatprep.subr.mxu0 0.0
      %2401 = vmatpush1.msra.mxu0 %v2286
      %2402 = vmatprep.subr.mxu0 0.0
      %2403 = vmatpush1.msra.mxu0 %v2287
      %2404 = vmatprep.subr.mxu0 0.0
      %2405 = vmatpush1.msra.mxu0 %v2288
      %2406 = vmatprep.subr.mxu0 0.0
      %2407 = vmatpush1.msra.mxu0 0.0
      %2408 = vmatprep.subr.mxu0 0.0
      %2409 = vmatpush1.msra.mxu0 0.0
      %2410 = vmatprep.subr.mxu0 0.0
      %2411 = vmatpush1.msra.mxu0 0.0
      %2412 = vmatprep.subr.mxu0 0.0
      %2413 = vmatpush1.msra.mxu0 0.0
      %2414 = vmatprep.subr.mxu0 0.0
      %2415 = vmatpush1.msra.mxu0 0.0
      %2416 = vmatprep.subr.mxu0 0.0
      %2417 = vmatpush1.msra.mxu0 0.0
      %2418 = vmatprep.subr.mxu0 0.0
      %2419 = vmatpush1.msra.mxu0 0.0
      %2420 = vmatprep.subr.mxu0 0.0
      %2421 = vmatpush1.msra.mxu0 0.0
      %2422 = vmatprep.subr.mxu0 0.0
      %2423 = vmatpush1.msra.mxu0 0.0
      %2424 = vmatprep.subr.mxu0 0.0
      %2425 = vmatpush1.msra.mxu0 0.0
      %2426 = vmatprep.subr.mxu0 0.0
      %2427 = vmatpush1.msra.mxu0 0.0
      %2428 = vmatprep.subr.mxu0 0.0
      %2429 = vmatpush1.msra.mxu0 0.0
      %2430 = vmatprep.subr.mxu0 0.0
      %2431 = vmatpush1.msra.mxu0 0.0
      %2432 = vmatprep.subr.mxu0 0.0
      %2433 = vmatpush1.msra.mxu0 0.0
      %2434 = vmatprep.subr.mxu0 0.0
      %2435 = vmatpush1.msra.mxu0 0.0
      %2436 = vmatprep.subr.mxu0 0.0
      %2437 = vmatpush1.msra.mxu0 0.0
      %2438 = vmatprep.subr.mxu0 0.0
      %2439 = vmatpush1.msra.mxu0 0.0
      %2440 = vmatprep.subr.mxu0 0.0
      %2441 = vmatpush1.msra.mxu0 0.0
      %2442 = vmatprep.subr.mxu0 0.0
      %2443 = vmatpush1.msra.mxu0 0.0
      %2444 = vmatprep.subr.mxu0 0.0
      %2445 = vmatpush1.msra.mxu0 0.0
      %2446 = vmatprep.subr.mxu0 0.0
      %2447 = vmatpush1.msra.mxu0 0.0
      %2448 = vmatprep.subr.mxu0 0.0
      %2449 = vmatpush1.msra.mxu0 0.0
      %2450 = vmatprep.subr.mxu0 0.0
      %2451 = vmatpush1.msra.mxu0 0.0
      %2452 = vmatprep.subr.mxu0 0.0
      %2453 = vmatpush1.msra.mxu0 0.0
      %2454 = vmatprep.subr.mxu0 0.0
      %2455 = vmatpush1.msra.mxu0 0.0
      %2456 = vmatprep.subr.mxu0 0.0
      %2457 = vmatpush1.msra.mxu0 0.0
      %2458 = vmatprep.subr.mxu0 0.0
      %2459 = vmatpush1.msra.mxu0 0.0
      %2460 = vmatprep.subr.mxu0 0.0
      %2461 = vmatpush1.msra.mxu0 0.0
      %2462 = vmatprep.mubr.f32.mxu0 0.0
      %2463 = vmatmul.mubr.f32.gmra.mrb[0].mxu0 %v2387
      %v2464 = vpop.f32.mrb[0].mxu0
      %v2465 = vadd.f32 0.0, %v2464
      %v2466 = vpop.f32.mrb[0].mxu0
      %2467 = vmatprep.mubr.f32.mxu0 0.0
      %2468 = vmatmul.mubr.f32.gmra.mrb[0].mxu0 %v2390
      %v2469 = vpop.f32.mrb[0].mxu0
      %v2470 = vadd.f32 0.0, %v2469
      %v2471 = vpop.f32.mrb[0].mxu0
      %2472 = vmatprep.mubr.f32.mxu0 0.0
      %2473 = vmatmul.mubr.f32.gmra.mrb[0].mxu0 %v2393
      %v2474 = vpop.f32.mrb[0].mxu0
      %v2475 = vadd.f32 0.0, %v2474
      %v2476 = vpop.f32.mrb[0].mxu0
      %2477 = vmatprep.mubr.f32.mxu0 0.0
      %2478 = vmatmul.mubr.f32.gmra.mrb[0].mxu0 %v2396
      %v2479 = vpop.f32.mrb[0].mxu0
      %v2480 = vadd.f32 0.0, %v2479
      %v2481 = vpop.f32.mrb[0].mxu0
      %2482 = vdwg.mxu0
      %v2483 = vsub.f32 %v2382, %v2465
      %v2484 = vsub.f32 %v2383, %v2470
      %v2485 = vsub.f32 %v2384, %v2475
      %v2486 = vsub.f32 %v2385, %v2480
      %v2487 = vmul.f32 %v2378, 2.0
      %v2488 = vmul.f32 %v2379, 2.0
      %v2489 = vmul.f32 %v2380, 2.0
      %v2490 = vmul.f32 %v2381, 2.0
      %2491 = vmatprep.subr.mxu0 0.0
      %2492 = vmatpush1.msra.mxu0 %v2378
      %2493 = vmatprep.subr.mxu0 0.0
      %2494 = vmatpush1.msra.mxu0 %v2379
      %2495 = vmatprep.subr.mxu0 0.0
      %2496 = vmatpush1.msra.mxu0 %v2380
      %2497 = vmatprep.subr.mxu0 0.0
      %2498 = vmatpush1.msra.mxu0 %v2381
      %2499 = vmatprep.subr.mxu0 0.0
      %2500 = vmatpush1.msra.mxu0 0.0
      %2501 = vmatprep.subr.mxu0 0.0
      %2502 = vmatpush1.msra.mxu0 0.0
      %2503 = vmatprep.subr.mxu0 0.0
      %2504 = vmatpush1.msra.mxu0 0.0
      %2505 = vmatprep.subr.mxu0 0.0
      %2506 = vmatpush1.msra.mxu0 0.0
      %2507 = vmatprep.subr.mxu0 0.0
      %2508 = vmatpush1.msra.mxu0 0.0
      %2509 = vmatprep.subr.mxu0 0.0
      %2510 = vmatpush1.msra.mxu0 0.0
      %2511 = vmatprep.subr.mxu0 0.0
      %2512 = vmatpush1.msra.mxu0 0.0
      %2513 = vmatprep.subr.mxu0 0.0
      %2514 = vmatpush1.msra.mxu0 0.0
      %2515 = vmatprep.subr.mxu0 0.0
      %2516 = vmatpush1.msra.mxu0 0.0
      %2517 = vmatprep.subr.mxu0 0.0
      %2518 = vmatpush1.msra.mxu0 0.0
      %2519 = vmatprep.subr.mxu0 0.0
      %2520 = vmatpush1.msra.mxu0 0.0
      %2521 = vmatprep.subr.mxu0 0.0
      %2522 = vmatpush1.msra.mxu0 0.0
      %2523 = vmatprep.subr.mxu0 0.0
      %2524 = vmatpush1.msra.mxu0 0.0
      %2525 = vmatprep.subr.mxu0 0.0
      %2526 = vmatpush1.msra.mxu0 0.0
      %2527 = vmatprep.subr.mxu0 0.0
      %2528 = vmatpush1.msra.mxu0 0.0
      %2529 = vmatprep.subr.mxu0 0.0
      %2530 = vmatpush1.msra.mxu0 0.0
      %2531 = vmatprep.subr.mxu0 0.0
      %2532 = vmatpush1.msra.mxu0 0.0
      %2533 = vmatprep.subr.mxu0 0.0
      %2534 = vmatpush1.msra.mxu0 0.0
      %2535 = vmatprep.subr.mxu0 0.0
      %2536 = vmatpush1.msra.mxu0 0.0
      %2537 = vmatprep.subr.mxu0 0.0
      %2538 = vmatpush1.msra.mxu0 0.0
      %2539 = vmatprep.subr.mxu0 0.0
      %2540 = vmatpush1.msra.mxu0 0.0
      %2541 = vmatprep.subr.mxu0 0.0
      %2542 = vmatpush1.msra.mxu0 0.0
      %2543 = vmatprep.subr.mxu0 0.0
      %2544 = vmatpush1.msra.mxu0 0.0
      %2545 = vmatprep.subr.mxu0 0.0
      %2546 = vmatpush1.msra.mxu0 0.0
      %2547 = vmatprep.subr.mxu0 0.0
      %2548 = vmatpush1.msra.mxu0 0.0
      %2549 = vmatprep.subr.mxu0 0.0
      %2550 = vmatpush1.msra.mxu0 0.0
      %2551 = vmatprep.subr.mxu0 0.0
      %2552 = vmatpush1.msra.mxu0 0.0
      %2553 = vmatprep.subr.mxu0 0.0
      %2554 = vmatpush1.msra.mxu0 0.0
      %2555 = vmatprep.mubr.f32.mxu0 0.0
      %2556 = vmatmul.mubr.f32.gmra.mrb[0].mxu0 %v2387
      %v2557 = vpop.f32.mrb[0].mxu0
      %v2558 = vadd.f32 0.0, %v2557
      %v2559 = vpop.f32.mrb[0].mxu0
      %2560 = vmatprep.mubr.f32.mxu0 0.0
      %2561 = vmatmul.mubr.f32.gmra.mrb[0].mxu0 %v2390
      %v2562 = vpop.f32.mrb[0].mxu0
      %v2563 = vadd.f32 0.0, %v2562
      %v2564 = vpop.f32.mrb[0].mxu0
      %2565 = vmatprep.mubr.f32.mxu0 0.0
      %2566 = vmatmul.mubr.f32.gmra.mrb[0].mxu0 %v2393
      %v2567 = vpop.f32.mrb[0].mxu0
      %v2568 = vadd.f32 0.0, %v2567
      %v2569 = vpop.f32.mrb[0].mxu0
      %2570 = vmatprep.mubr.f32.mxu0 0.0
      %2571 = vmatmul.mubr.f32.gmra.mrb[0].mxu0 %v2396
      %v2572 = vpop.f32.mrb[0].mxu0
      %v2573 = vadd.f32 0.0, %v2572
      %v2574 = vpop.f32.mrb[0].mxu0
      %2575 = vdwg.mxu0
      %v2576 = vsub.f32 %v2487, %v2558
      %v2577 = vsub.f32 %v2488, %v2563
      %v2578 = vsub.f32 %v2489, %v2568
      %v2579 = vsub.f32 %v2490, %v2573
      %v2580 = vmul.f32 %v2483, 2.0
      %v2581 = vmul.f32 %v2484, 2.0
      %v2582 = vmul.f32 %v2485, 2.0
      %v2583 = vmul.f32 %v2486, 2.0
      %v2585 = vsel %vm765, %v2576, 0
      %v2588 = vsel %vm765, %v2577, 0
      %v2591 = vsel %vm765, %v2578, 0
      %v2594 = vsel %vm765, %v2579, 0
      %2596 = vmatprep.subr.mxu0 0.0
      %2597 = vmatpush1.msra.mxu0 %v2483
      %2598 = vmatprep.subr.mxu0 0.0
      %2599 = vmatpush1.msra.mxu0 %v2484
      %2600 = vmatprep.subr.mxu0 0.0
      %2601 = vmatpush1.msra.mxu0 %v2485
      %2602 = vmatprep.subr.mxu0 0.0
      %2603 = vmatpush1.msra.mxu0 %v2486
      %2604 = vmatprep.subr.mxu0 0.0
      %2605 = vmatpush1.msra.mxu0 0.0
      %2606 = vmatprep.subr.mxu0 0.0
      %2607 = vmatpush1.msra.mxu0 0.0
      %2608 = vmatprep.subr.mxu0 0.0
      %2609 = vmatpush1.msra.mxu0 0.0
      %2610 = vmatprep.subr.mxu0 0.0
      %2611 = vmatpush1.msra.mxu0 0.0
      %2612 = vmatprep.subr.mxu0 0.0
      %2613 = vmatpush1.msra.mxu0 0.0
      %2614 = vmatprep.subr.mxu0 0.0
      %2615 = vmatpush1.msra.mxu0 0.0
      %2616 = vmatprep.subr.mxu0 0.0
      %2617 = vmatpush1.msra.mxu0 0.0
      %2618 = vmatprep.subr.mxu0 0.0
      %2619 = vmatpush1.msra.mxu0 0.0
      %2620 = vmatprep.subr.mxu0 0.0
      %2621 = vmatpush1.msra.mxu0 0.0
      %2622 = vmatprep.subr.mxu0 0.0
      %2623 = vmatpush1.msra.mxu0 0.0
      %2624 = vmatprep.subr.mxu0 0.0
      %2625 = vmatpush1.msra.mxu0 0.0
      %2626 = vmatprep.subr.mxu0 0.0
      %2627 = vmatpush1.msra.mxu0 0.0
      %2628 = vmatprep.subr.mxu0 0.0
      %2629 = vmatpush1.msra.mxu0 0.0
      %2630 = vmatprep.subr.mxu0 0.0
      %2631 = vmatpush1.msra.mxu0 0.0
      %2632 = vmatprep.subr.mxu0 0.0
      %2633 = vmatpush1.msra.mxu0 0.0
      %2634 = vmatprep.subr.mxu0 0.0
      %2635 = vmatpush1.msra.mxu0 0.0
      %2636 = vmatprep.subr.mxu0 0.0
      %2637 = vmatpush1.msra.mxu0 0.0
      %2638 = vmatprep.subr.mxu0 0.0
      %2639 = vmatpush1.msra.mxu0 0.0
      %2640 = vmatprep.subr.mxu0 0.0
      %2641 = vmatpush1.msra.mxu0 0.0
      %2642 = vmatprep.subr.mxu0 0.0
      %2643 = vmatpush1.msra.mxu0 0.0
      %2644 = vmatprep.subr.mxu0 0.0
      %2645 = vmatpush1.msra.mxu0 0.0
      %2646 = vmatprep.subr.mxu0 0.0
      %2647 = vmatpush1.msra.mxu0 0.0
      %2648 = vmatprep.subr.mxu0 0.0
      %2649 = vmatpush1.msra.mxu0 0.0
      %2650 = vmatprep.subr.mxu0 0.0
      %2651 = vmatpush1.msra.mxu0 0.0
      %2652 = vmatprep.subr.mxu0 0.0
      %2653 = vmatpush1.msra.mxu0 0.0
      %2654 = vmatprep.subr.mxu0 0.0
      %2655 = vmatpush1.msra.mxu0 0.0
      %2656 = vmatprep.subr.mxu0 0.0
      %2657 = vmatpush1.msra.mxu0 0.0
      %2658 = vmatprep.subr.mxu0 0.0
      %2659 = vmatpush1.msra.mxu0 0.0
      %2660 = vmatprep.mubr.f32.mxu0 0.0
      %2661 = vmatmul.mubr.f32.gmra.mrb[0].mxu0 %v2585
      %v2662 = vpop.f32.mrb[0].mxu0
      %v2663 = vadd.f32 0.0, %v2662
      %v2664 = vpop.f32.mrb[0].mxu0
      %2665 = vmatprep.mubr.f32.mxu0 0.0
      %2666 = vmatmul.mubr.f32.gmra.mrb[0].mxu0 %v2588
      %v2667 = vpop.f32.mrb[0].mxu0
      %v2668 = vadd.f32 0.0, %v2667
      %v2669 = vpop.f32.mrb[0].mxu0
      %2670 = vmatprep.mubr.f32.mxu0 0.0
      %2671 = vmatmul.mubr.f32.gmra.mrb[0].mxu0 %v2591
      %v2672 = vpop.f32.mrb[0].mxu0
      %v2673 = vadd.f32 0.0, %v2672
      %v2674 = vpop.f32.mrb[0].mxu0
      %2675 = vmatprep.mubr.f32.mxu0 0.0
      %2676 = vmatmul.mubr.f32.gmra.mrb[0].mxu0 %v2594
      %v2677 = vpop.f32.mrb[0].mxu0
      %v2678 = vadd.f32 0.0, %v2677
      %v2679 = vpop.f32.mrb[0].mxu0
      %2680 = vdwg.mxu0
      %v2681 = vsub.f32 %v2580, %v2663
      %v2682 = vsub.f32 %v2581, %v2668
      %v2683 = vsub.f32 %v2582, %v2673
      %v2684 = vsub.f32 %v2583, %v2678
      %v2685 = vmul.f32 %v2576, 2.0
      %v2686 = vmul.f32 %v2577, 2.0
      %v2687 = vmul.f32 %v2578, 2.0
      %v2688 = vmul.f32 %v2579, 2.0
      %2689 = vmatprep.subr.mxu0 0.0
      %2690 = vmatpush1.msra.mxu0 %v2576
      %2691 = vmatprep.subr.mxu0 0.0
      %2692 = vmatpush1.msra.mxu0 %v2577
      %2693 = vmatprep.subr.mxu0 0.0
      %2694 = vmatpush1.msra.mxu0 %v2578
      %2695 = vmatprep.subr.mxu0 0.0
      %2696 = vmatpush1.msra.mxu0 %v2579
      %2697 = vmatprep.subr.mxu0 0.0
      %2698 = vmatpush1.msra.mxu0 0.0
      %2699 = vmatprep.subr.mxu0 0.0
      %2700 = vmatpush1.msra.mxu0 0.0
      %2701 = vmatprep.subr.mxu0 0.0
      %2702 = vmatpush1.msra.mxu0 0.0
      %2703 = vmatprep.subr.mxu0 0.0
      %2704 = vmatpush1.msra.mxu0 0.0
      %2705 = vmatprep.subr.mxu0 0.0
      %2706 = vmatpush1.msra.mxu0 0.0
      %2707 = vmatprep.subr.mxu0 0.0
      %2708 = vmatpush1.msra.mxu0 0.0
      %2709 = vmatprep.subr.mxu0 0.0
      %2710 = vmatpush1.msra.mxu0 0.0
      %2711 = vmatprep.subr.mxu0 0.0
      %2712 = vmatpush1.msra.mxu0 0.0
      %2713 = vmatprep.subr.mxu0 0.0
      %2714 = vmatpush1.msra.mxu0 0.0
      %2715 = vmatprep.subr.mxu0 0.0
      %2716 = vmatpush1.msra.mxu0 0.0
      %2717 = vmatprep.subr.mxu0 0.0
      %2718 = vmatpush1.msra.mxu0 0.0
      %2719 = vmatprep.subr.mxu0 0.0
      %2720 = vmatpush1.msra.mxu0 0.0
      %2721 = vmatprep.subr.mxu0 0.0
      %2722 = vmatpush1.msra.mxu0 0.0
      %2723 = vmatprep.subr.mxu0 0.0
      %2724 = vmatpush1.msra.mxu0 0.0
      %2725 = vmatprep.subr.mxu0 0.0
      %2726 = vmatpush1.msra.mxu0 0.0
      %2727 = vmatprep.subr.mxu0 0.0
      %2728 = vmatpush1.msra.mxu0 0.0
      %2729 = vmatprep.subr.mxu0 0.0
      %2730 = vmatpush1.msra.mxu0 0.0
      %2731 = vmatprep.subr.mxu0 0.0
      %2732 = vmatpush1.msra.mxu0 0.0
      %2733 = vmatprep.subr.mxu0 0.0
      %2734 = vmatpush1.msra.mxu0 0.0
      %2735 = vmatprep.subr.mxu0 0.0
      %2736 = vmatpush1.msra.mxu0 0.0
      %2737 = vmatprep.subr.mxu0 0.0
      %2738 = vmatpush1.msra.mxu0 0.0
      %2739 = vmatprep.subr.mxu0 0.0
      %2740 = vmatpush1.msra.mxu0 0.0
      %2741 = vmatprep.subr.mxu0 0.0
      %2742 = vmatpush1.msra.mxu0 0.0
      %2743 = vmatprep.subr.mxu0 0.0
      %2744 = vmatpush1.msra.mxu0 0.0
      %2745 = vmatprep.subr.mxu0 0.0
      %2746 = vmatpush1.msra.mxu0 0.0
      %2747 = vmatprep.subr.mxu0 0.0
      %2748 = vmatpush1.msra.mxu0 0.0
      %2749 = vmatprep.subr.mxu0 0.0
      %2750 = vmatpush1.msra.mxu0 0.0
      %2751 = vmatprep.subr.mxu0 0.0
      %2752 = vmatpush1.msra.mxu0 0.0
      %2753 = vmatprep.mubr.f32.mxu0 0.0
      %2754 = vmatmul.mubr.f32.gmra.mrb[0].mxu0 %v2585
      %v2755 = vpop.f32.mrb[0].mxu0
      %v2756 = vadd.f32 0.0, %v2755
      %v2757 = vpop.f32.mrb[0].mxu0
      %2758 = vmatprep.mubr.f32.mxu0 0.0
      %2759 = vmatmul.mubr.f32.gmra.mrb[0].mxu0 %v2588
      %v2760 = vpop.f32.mrb[0].mxu0
      %v2761 = vadd.f32 0.0, %v2760
      %v2762 = vpop.f32.mrb[0].mxu0
      %2763 = vmatprep.mubr.f32.mxu0 0.0
      %2764 = vmatmul.mubr.f32.gmra.mrb[0].mxu0 %v2591
      %v2765 = vpop.f32.mrb[0].mxu0
      %v2766 = vadd.f32 0.0, %v2765
      %v2767 = vpop.f32.mrb[0].mxu0
      %2768 = vmatprep.mubr.f32.mxu0 0.0
      %2769 = vmatmul.mubr.f32.gmra.mrb[0].mxu0 %v2594
      %v2770 = vpop.f32.mrb[0].mxu0
      %v2771 = vadd.f32 0.0, %v2770
      %v2772 = vpop.f32.mrb[0].mxu0
      %2773 = vdwg.mxu0
      %v2774 = vsub.f32 %v2685, %v2756
      %v2775 = vsub.f32 %v2686, %v2761
      %v2776 = vsub.f32 %v2687, %v2766
      %v2777 = vsub.f32 %v2688, %v2771
      %v2778 = vmul.f32 %v2681, 2.0
      %v2779 = vmul.f32 %v2682, 2.0
      %v2780 = vmul.f32 %v2683, 2.0
      %v2781 = vmul.f32 %v2684, 2.0
      %v2783 = vsel %vm765, %v2774, 0
      %v2786 = vsel %vm765, %v2775, 0
      %v2789 = vsel %vm765, %v2776, 0
      %v2792 = vsel %vm765, %v2777, 0
      %2794 = vmatprep.subr.mxu0 0.0
      %2795 = vmatpush1.msra.mxu0 %v2681
      %2796 = vmatprep.subr.mxu0 0.0
      %2797 = vmatpush1.msra.mxu0 %v2682
      %2798 = vmatprep.subr.mxu0 0.0
      %2799 = vmatpush1.msra.mxu0 %v2683
      %2800 = vmatprep.subr.mxu0 0.0
      %2801 = vmatpush1.msra.mxu0 %v2684
      %2802 = vmatprep.subr.mxu0 0.0
      %2803 = vmatpush1.msra.mxu0 0.0
      %2804 = vmatprep.subr.mxu0 0.0
      %2805 = vmatpush1.msra.mxu0 0.0
      %2806 = vmatprep.subr.mxu0 0.0
      %2807 = vmatpush1.msra.mxu0 0.0
      %2808 = vmatprep.subr.mxu0 0.0
      %2809 = vmatpush1.msra.mxu0 0.0
      %2810 = vmatprep.subr.mxu0 0.0
      %2811 = vmatpush1.msra.mxu0 0.0
      %2812 = vmatprep.subr.mxu0 0.0
      %2813 = vmatpush1.msra.mxu0 0.0
      %2814 = vmatprep.subr.mxu0 0.0
      %2815 = vmatpush1.msra.mxu0 0.0
      %2816 = vmatprep.subr.mxu0 0.0
      %2817 = vmatpush1.msra.mxu0 0.0
      %2818 = vmatprep.subr.mxu0 0.0
      %2819 = vmatpush1.msra.mxu0 0.0
      %2820 = vmatprep.subr.mxu0 0.0
      %2821 = vmatpush1.msra.mxu0 0.0
      %2822 = vmatprep.subr.mxu0 0.0
      %2823 = vmatpush1.msra.mxu0 0.0
      %2824 = vmatprep.subr.mxu0 0.0
      %2825 = vmatpush1.msra.mxu0 0.0
      %2826 = vmatprep.subr.mxu0 0.0
      %2827 = vmatpush1.msra.mxu0 0.0
      %2828 = vmatprep.subr.mxu0 0.0
      %2829 = vmatpush1.msra.mxu0 0.0
      %2830 = vmatprep.subr.mxu0 0.0
      %2831 = vmatpush1.msra.mxu0 0.0
      %2832 = vmatprep.subr.mxu0 0.0
      %2833 = vmatpush1.msra.mxu0 0.0
      %2834 = vmatprep.subr.mxu0 0.0
      %2835 = vmatpush1.msra.mxu0 0.0
      %2836 = vmatprep.subr.mxu0 0.0
      %2837 = vmatpush1.msra.mxu0 0.0
      %2838 = vmatprep.subr.mxu0 0.0
      %2839 = vmatpush1.msra.mxu0 0.0
      %2840 = vmatprep.subr.mxu0 0.0
      %2841 = vmatpush1.msra.mxu0 0.0
      %2842 = vmatprep.subr.mxu0 0.0
      %2843 = vmatpush1.msra.mxu0 0.0
      %2844 = vmatprep.subr.mxu0 0.0
      %2845 = vmatpush1.msra.mxu0 0.0
      %2846 = vmatprep.subr.mxu0 0.0
      %2847 = vmatpush1.msra.mxu0 0.0
      %2848 = vmatprep.subr.mxu0 0.0
      %2849 = vmatpush1.msra.mxu0 0.0
      %2850 = vmatprep.subr.mxu0 0.0
      %2851 = vmatpush1.msra.mxu0 0.0
      %2852 = vmatprep.subr.mxu0 0.0
      %2853 = vmatpush1.msra.mxu0 0.0
      %2854 = vmatprep.subr.mxu0 0.0
      %2855 = vmatpush1.msra.mxu0 0.0
      %2856 = vmatprep.subr.mxu0 0.0
      %2857 = vmatpush1.msra.mxu0 0.0
      %2858 = vmatprep.mubr.f32.mxu0 0.0
      %2859 = vmatmul.mubr.f32.gmra.mrb[0].mxu0 %v2783
      %v2860 = vpop.f32.mrb[0].mxu0
      %v2861 = vadd.f32 0.0, %v2860
      %v2862 = vpop.f32.mrb[0].mxu0
      %2863 = vmatprep.mubr.f32.mxu0 0.0
      %2864 = vmatmul.mubr.f32.gmra.mrb[0].mxu0 %v2786
      %v2865 = vpop.f32.mrb[0].mxu0
      %v2866 = vadd.f32 0.0, %v2865
      %v2867 = vpop.f32.mrb[0].mxu0
      %2868 = vmatprep.mubr.f32.mxu0 0.0
      %2869 = vmatmul.mubr.f32.gmra.mrb[0].mxu0 %v2789
      %v2870 = vpop.f32.mrb[0].mxu0
      %v2871 = vadd.f32 0.0, %v2870
      %v2872 = vpop.f32.mrb[0].mxu0
      %2873 = vmatprep.mubr.f32.mxu0 0.0
      %2874 = vmatmul.mubr.f32.gmra.mrb[0].mxu0 %v2792
      %v2875 = vpop.f32.mrb[0].mxu0
      %v2876 = vadd.f32 0.0, %v2875
      %v2877 = vpop.f32.mrb[0].mxu0
      %2878 = vdwg.mxu0
      %v2879 = vsub.f32 %v2778, %v2861
      %v2880 = vsub.f32 %v2779, %v2866
      %v2881 = vsub.f32 %v2780, %v2871
      %v2882 = vsub.f32 %v2781, %v2876
      %v2883 = vmul.f32 %v2774, 2.0
      %v2884 = vmul.f32 %v2775, 2.0
      %v2885 = vmul.f32 %v2776, 2.0
      %v2886 = vmul.f32 %v2777, 2.0
      %2887 = vmatprep.subr.mxu0 0.0
      %2888 = vmatpush1.msra.mxu0 %v2774
      %2889 = vmatprep.subr.mxu0 0.0
      %2890 = vmatpush1.msra.mxu0 %v2775
      %2891 = vmatprep.subr.mxu0 0.0
      %2892 = vmatpush1.msra.mxu0 %v2776
      %2893 = vmatprep.subr.mxu0 0.0
      %2894 = vmatpush1.msra.mxu0 %v2777
      %2895 = vmatprep.subr.mxu0 0.0
      %2896 = vmatpush1.msra.mxu0 0.0
      %2897 = vmatprep.subr.mxu0 0.0
      %2898 = vmatpush1.msra.mxu0 0.0
      %2899 = vmatprep.subr.mxu0 0.0
      %2900 = vmatpush1.msra.mxu0 0.0
      %2901 = vmatprep.subr.mxu0 0.0
      %2902 = vmatpush1.msra.mxu0 0.0
      %2903 = vmatprep.subr.mxu0 0.0
      %2904 = vmatpush1.msra.mxu0 0.0
      %2905 = vmatprep.subr.mxu0 0.0
      %2906 = vmatpush1.msra.mxu0 0.0
      %2907 = vmatprep.subr.mxu0 0.0
      %2908 = vmatpush1.msra.mxu0 0.0
      %2909 = vmatprep.subr.mxu0 0.0
      %2910 = vmatpush1.msra.mxu0 0.0
      %2911 = vmatprep.subr.mxu0 0.0
      %2912 = vmatpush1.msra.mxu0 0.0
      %2913 = vmatprep.subr.mxu0 0.0
      %2914 = vmatpush1.msra.mxu0 0.0
      %2915 = vmatprep.subr.mxu0 0.0
      %2916 = vmatpush1.msra.mxu0 0.0
      %2917 = vmatprep.subr.mxu0 0.0
      %2918 = vmatpush1.msra.mxu0 0.0
      %2919 = vmatprep.subr.mxu0 0.0
      %2920 = vmatpush1.msra.mxu0 0.0
      %2921 = vmatprep.subr.mxu0 0.0
      %2922 = vmatpush1.msra.mxu0 0.0
      %2923 = vmatprep.subr.mxu0 0.0
      %2924 = vmatpush1.msra.mxu0 0.0
      %2925 = vmatprep.subr.mxu0 0.0
      %2926 = vmatpush1.msra.mxu0 0.0
      %2927 = vmatprep.subr.mxu0 0.0
      %2928 = vmatpush1.msra.mxu0 0.0
      %2929 = vmatprep.subr.mxu0 0.0
      %2930 = vmatpush1.msra.mxu0 0.0
      %2931 = vmatprep.subr.mxu0 0.0
      %2932 = vmatpush1.msra.mxu0 0.0
      %2933 = vmatprep.subr.mxu0 0.0
      %2934 = vmatpush1.msra.mxu0 0.0
      %2935 = vmatprep.subr.mxu0 0.0
      %2936 = vmatpush1.msra.mxu0 0.0
      %2937 = vmatprep.subr.mxu0 0.0
      %2938 = vmatpush1.msra.mxu0 0.0
      %2939 = vmatprep.subr.mxu0 0.0
      %2940 = vmatpush1.msra.mxu0 0.0
      %2941 = vmatprep.subr.mxu0 0.0
      %2942 = vmatpush1.msra.mxu0 0.0
      %2943 = vmatprep.subr.mxu0 0.0
      %2944 = vmatpush1.msra.mxu0 0.0
      %2945 = vmatprep.subr.mxu0 0.0
      %2946 = vmatpush1.msra.mxu0 0.0
      %2947 = vmatprep.subr.mxu0 0.0
      %2948 = vmatpush1.msra.mxu0 0.0
      %2949 = vmatprep.subr.mxu0 0.0
      %2950 = vmatpush1.msra.mxu0 0.0
      %2951 = vmatprep.mubr.f32.mxu0 0.0
      %2952 = vmatmul.mubr.f32.gmra.mrb[0].mxu0 %v2783
      %v2953 = vpop.f32.mrb[0].mxu0
      %v2954 = vadd.f32 0.0, %v2953
      %v2955 = vpop.f32.mrb[0].mxu0
      %2956 = vmatprep.mubr.f32.mxu0 0.0
      %2957 = vmatmul.mubr.f32.gmra.mrb[0].mxu0 %v2786
      %v2958 = vpop.f32.mrb[0].mxu0
      %v2959 = vadd.f32 0.0, %v2958
      %v2960 = vpop.f32.mrb[0].mxu0
      %2961 = vmatprep.mubr.f32.mxu0 0.0
      %2962 = vmatmul.mubr.f32.gmra.mrb[0].mxu0 %v2789
      %v2963 = vpop.f32.mrb[0].mxu0
      %v2964 = vadd.f32 0.0, %v2963
      %v2965 = vpop.f32.mrb[0].mxu0
      %2966 = vmatprep.mubr.f32.mxu0 0.0
      %2967 = vmatmul.mubr.f32.gmra.mrb[0].mxu0 %v2792
      %v2968 = vpop.f32.mrb[0].mxu0
      %v2969 = vadd.f32 0.0, %v2968
      %v2970 = vpop.f32.mrb[0].mxu0
      %2971 = vdwg.mxu0
      %v2972 = vsub.f32 %v2883, %v2954
      %v2973 = vsub.f32 %v2884, %v2959
      %v2974 = vsub.f32 %v2885, %v2964
      %v2975 = vsub.f32 %v2886, %v2969
      %v2976 = vmul.f32 %v2879, 2.0
      %v2977 = vmul.f32 %v2880, 2.0
      %v2978 = vmul.f32 %v2881, 2.0
      %v2979 = vmul.f32 %v2882, 2.0
      %v2981 = vsel %vm765, %v2972, 0
      %v2984 = vsel %vm765, %v2973, 0
      %v2987 = vsel %vm765, %v2974, 0
      %v2990 = vsel %vm765, %v2975, 0
      %2992 = vmatprep.subr.mxu0 0.0
      %2993 = vmatpush1.msra.mxu0 %v2879
      %2994 = vmatprep.subr.mxu0 0.0
      %2995 = vmatpush1.msra.mxu0 %v2880
      %2996 = vmatprep.subr.mxu0 0.0
      %2997 = vmatpush1.msra.mxu0 %v2881
      %2998 = vmatprep.subr.mxu0 0.0
      %2999 = vmatpush1.msra.mxu0 %v2882
      %3000 = vmatprep.subr.mxu0 0.0
      %3001 = vmatpush1.msra.mxu0 0.0
      %3002 = vmatprep.subr.mxu0 0.0
      %3003 = vmatpush1.msra.mxu0 0.0
      %3004 = vmatprep.subr.mxu0 0.0
      %3005 = vmatpush1.msra.mxu0 0.0
      %3006 = vmatprep.subr.mxu0 0.0
      %3007 = vmatpush1.msra.mxu0 0.0
      %3008 = vmatprep.subr.mxu0 0.0
      %3009 = vmatpush1.msra.mxu0 0.0
      %3010 = vmatprep.subr.mxu0 0.0
      %3011 = vmatpush1.msra.mxu0 0.0
      %3012 = vmatprep.subr.mxu0 0.0
      %3013 = vmatpush1.msra.mxu0 0.0
      %3014 = vmatprep.subr.mxu0 0.0
      %3015 = vmatpush1.msra.mxu0 0.0
      %3016 = vmatprep.subr.mxu0 0.0
      %3017 = vmatpush1.msra.mxu0 0.0
      %3018 = vmatprep.subr.mxu0 0.0
      %3019 = vmatpush1.msra.mxu0 0.0
      %3020 = vmatprep.subr.mxu0 0.0
      %3021 = vmatpush1.msra.mxu0 0.0
      %3022 = vmatprep.subr.mxu0 0.0
      %3023 = vmatpush1.msra.mxu0 0.0
      %3024 = vmatprep.subr.mxu0 0.0
      %3025 = vmatpush1.msra.mxu0 0.0
      %3026 = vmatprep.subr.mxu0 0.0
      %3027 = vmatpush1.msra.mxu0 0.0
      %3028 = vmatprep.subr.mxu0 0.0
      %3029 = vmatpush1.msra.mxu0 0.0
      %3030 = vmatprep.subr.mxu0 0.0
      %3031 = vmatpush1.msra.mxu0 0.0
      %3032 = vmatprep.subr.mxu0 0.0
      %3033 = vmatpush1.msra.mxu0 0.0
      %3034 = vmatprep.subr.mxu0 0.0
      %3035 = vmatpush1.msra.mxu0 0.0
      %3036 = vmatprep.subr.mxu0 0.0
      %3037 = vmatpush1.msra.mxu0 0.0
      %3038 = vmatprep.subr.mxu0 0.0
      %3039 = vmatpush1.msra.mxu0 0.0
      %3040 = vmatprep.subr.mxu0 0.0
      %3041 = vmatpush1.msra.mxu0 0.0
      %3042 = vmatprep.subr.mxu0 0.0
      %3043 = vmatpush1.msra.mxu0 0.0
      %3044 = vmatprep.subr.mxu0 0.0
      %3045 = vmatpush1.msra.mxu0 0.0
      %3046 = vmatprep.subr.mxu0 0.0
      %3047 = vmatpush1.msra.mxu0 0.0
      %3048 = vmatprep.subr.mxu0 0.0
      %3049 = vmatpush1.msra.mxu0 0.0
      %3050 = vmatprep.subr.mxu0 0.0
      %3051 = vmatpush1.msra.mxu0 0.0
      %3052 = vmatprep.subr.mxu0 0.0
      %3053 = vmatpush1.msra.mxu0 0.0
      %3054 = vmatprep.subr.mxu0 0.0
      %3055 = vmatpush1.msra.mxu0 0.0
      %3056 = vmatprep.mubr.f32.mxu0 0.0
      %3057 = vmatmul.mubr.f32.gmra.mrb[0].mxu0 %v2981
      %v3058 = vpop.f32.mrb[0].mxu0
      %v3059 = vadd.f32 0.0, %v3058
      %v3060 = vpop.f32.mrb[0].mxu0
      %3061 = vmatprep.mubr.f32.mxu0 0.0
      %3062 = vmatmul.mubr.f32.gmra.mrb[0].mxu0 %v2984
      %v3063 = vpop.f32.mrb[0].mxu0
      %v3064 = vadd.f32 0.0, %v3063
      %v3065 = vpop.f32.mrb[0].mxu0
      %3066 = vmatprep.mubr.f32.mxu0 0.0
      %3067 = vmatmul.mubr.f32.gmra.mrb[0].mxu0 %v2987
      %v3068 = vpop.f32.mrb[0].mxu0
      %v3069 = vadd.f32 0.0, %v3068
      %v3070 = vpop.f32.mrb[0].mxu0
      %3071 = vmatprep.mubr.f32.mxu0 0.0
      %3072 = vmatmul.mubr.f32.gmra.mrb[0].mxu0 %v2990
      %v3073 = vpop.f32.mrb[0].mxu0
      %v3074 = vadd.f32 0.0, %v3073
      %v3075 = vpop.f32.mrb[0].mxu0
      %3076 = vdwg.mxu0
      %v3077 = vsub.f32 %v2976, %v3059
      %v3078 = vsub.f32 %v2977, %v3064
      %v3079 = vsub.f32 %v2978, %v3069
      %v3080 = vsub.f32 %v2979, %v3074
      %v3081 = vmul.f32 %v2972, 2.0
      %v3082 = vmul.f32 %v2973, 2.0
      %v3083 = vmul.f32 %v2974, 2.0
      %v3084 = vmul.f32 %v2975, 2.0
      %3085 = vmatprep.subr.mxu0 0.0
      %3086 = vmatpush1.msra.mxu0 %v2972
      %3087 = vmatprep.subr.mxu0 0.0
      %3088 = vmatpush1.msra.mxu0 %v2973
      %3089 = vmatprep.subr.mxu0 0.0
      %3090 = vmatpush1.msra.mxu0 %v2974
      %3091 = vmatprep.subr.mxu0 0.0
      %3092 = vmatpush1.msra.mxu0 %v2975
      %3093 = vmatprep.subr.mxu0 0.0
      %3094 = vmatpush1.msra.mxu0 0.0
      %3095 = vmatprep.subr.mxu0 0.0
      %3096 = vmatpush1.msra.mxu0 0.0
      %3097 = vmatprep.subr.mxu0 0.0
      %3098 = vmatpush1.msra.mxu0 0.0
      %3099 = vmatprep.subr.mxu0 0.0
      %3100 = vmatpush1.msra.mxu0 0.0
      %3101 = vmatprep.subr.mxu0 0.0
      %3102 = vmatpush1.msra.mxu0 0.0
      %3103 = vmatprep.subr.mxu0 0.0
      %3104 = vmatpush1.msra.mxu0 0.0
      %3105 = vmatprep.subr.mxu0 0.0
      %3106 = vmatpush1.msra.mxu0 0.0
      %3107 = vmatprep.subr.mxu0 0.0
      %3108 = vmatpush1.msra.mxu0 0.0
      %3109 = vmatprep.subr.mxu0 0.0
      %3110 = vmatpush1.msra.mxu0 0.0
      %3111 = vmatprep.subr.mxu0 0.0
      %3112 = vmatpush1.msra.mxu0 0.0
      %3113 = vmatprep.subr.mxu0 0.0
      %3114 = vmatpush1.msra.mxu0 0.0
      %3115 = vmatprep.subr.mxu0 0.0
      %3116 = vmatpush1.msra.mxu0 0.0
      %3117 = vmatprep.subr.mxu0 0.0
      %3118 = vmatpush1.msra.mxu0 0.0
      %3119 = vmatprep.subr.mxu0 0.0
      %3120 = vmatpush1.msra.mxu0 0.0
      %3121 = vmatprep.subr.mxu0 0.0
      %3122 = vmatpush1.msra.mxu0 0.0
      %3123 = vmatprep.subr.mxu0 0.0
      %3124 = vmatpush1.msra.mxu0 0.0
      %3125 = vmatprep.subr.mxu0 0.0
      %3126 = vmatpush1.msra.mxu0 0.0
      %3127 = vmatprep.subr.mxu0 0.0
      %3128 = vmatpush1.msra.mxu0 0.0
      %3129 = vmatprep.subr.mxu0 0.0
      %3130 = vmatpush1.msra.mxu0 0.0
      %3131 = vmatprep.subr.mxu0 0.0
      %3132 = vmatpush1.msra.mxu0 0.0
      %3133 = vmatprep.subr.mxu0 0.0
      %3134 = vmatpush1.msra.mxu0 0.0
      %3135 = vmatprep.subr.mxu0 0.0
      %3136 = vmatpush1.msra.mxu0 0.0
      %3137 = vmatprep.subr.mxu0 0.0
      %3138 = vmatpush1.msra.mxu0 0.0
      %3139 = vmatprep.subr.mxu0 0.0
      %3140 = vmatpush1.msra.mxu0 0.0
      %3141 = vmatprep.subr.mxu0 0.0
      %3142 = vmatpush1.msra.mxu0 0.0
      %3143 = vmatprep.subr.mxu0 0.0
      %3144 = vmatpush1.msra.mxu0 0.0
      %3145 = vmatprep.subr.mxu0 0.0
      %3146 = vmatpush1.msra.mxu0 0.0
      %3147 = vmatprep.subr.mxu0 0.0
      %3148 = vmatpush1.msra.mxu0 0.0
      %3149 = vmatprep.mubr.f32.mxu0 0.0
      %3150 = vmatmul.mubr.f32.gmra.mrb[0].mxu0 %v2981
      %v3151 = vpop.f32.mrb[0].mxu0
      %v3152 = vadd.f32 0.0, %v3151
      %v3153 = vpop.f32.mrb[0].mxu0
      %3154 = vmatprep.mubr.f32.mxu0 0.0
      %3155 = vmatmul.mubr.f32.gmra.mrb[0].mxu0 %v2984
      %v3156 = vpop.f32.mrb[0].mxu0
      %v3157 = vadd.f32 0.0, %v3156
      %v3158 = vpop.f32.mrb[0].mxu0
      %3159 = vmatprep.mubr.f32.mxu0 0.0
      %3160 = vmatmul.mubr.f32.gmra.mrb[0].mxu0 %v2987
      %v3161 = vpop.f32.mrb[0].mxu0
      %v3162 = vadd.f32 0.0, %v3161
      %v3163 = vpop.f32.mrb[0].mxu0
      %3164 = vmatprep.mubr.f32.mxu0 0.0
      %3165 = vmatmul.mubr.f32.gmra.mrb[0].mxu0 %v2990
      %v3166 = vpop.f32.mrb[0].mxu0
      %v3167 = vadd.f32 0.0, %v3166
      %v3168 = vpop.f32.mrb[0].mxu0
      %3169 = vdwg.mxu0
      %v3170 = vsub.f32 %v3081, %v3152
      %v3171 = vsub.f32 %v3082, %v3157
      %v3172 = vsub.f32 %v3083, %v3162
      %v3173 = vsub.f32 %v3084, %v3167
      %v3174 = vmul.f32 %v3077, 2.0
      %v3175 = vmul.f32 %v3078, 2.0
      %v3176 = vmul.f32 %v3079, 2.0
      %v3177 = vmul.f32 %v3080, 2.0
      %v3179 = vsel %vm765, %v3170, 0
      %v3182 = vsel %vm765, %v3171, 0
      %v3185 = vsel %vm765, %v3172, 0
      %v3188 = vsel %vm765, %v3173, 0
      %3190 = vmatprep.subr.mxu0 0.0
      %3191 = vmatpush1.msra.mxu0 %v3077
      %3192 = vmatprep.subr.mxu0 0.0
      %3193 = vmatpush1.msra.mxu0 %v3078
      %3194 = vmatprep.subr.mxu0 0.0
      %3195 = vmatpush1.msra.mxu0 %v3079
      %3196 = vmatprep.subr.mxu0 0.0
      %3197 = vmatpush1.msra.mxu0 %v3080
      %3198 = vmatprep.subr.mxu0 0.0
      %3199 = vmatpush1.msra.mxu0 0.0
      %3200 = vmatprep.subr.mxu0 0.0
      %3201 = vmatpush1.msra.mxu0 0.0
      %3202 = vmatprep.subr.mxu0 0.0
      %3203 = vmatpush1.msra.mxu0 0.0
      %3204 = vmatprep.subr.mxu0 0.0
      %3205 = vmatpush1.msra.mxu0 0.0
      %3206 = vmatprep.subr.mxu0 0.0
      %3207 = vmatpush1.msra.mxu0 0.0
      %3208 = vmatprep.subr.mxu0 0.0
      %3209 = vmatpush1.msra.mxu0 0.0
      %3210 = vmatprep.subr.mxu0 0.0
      %3211 = vmatpush1.msra.mxu0 0.0
      %3212 = vmatprep.subr.mxu0 0.0
      %3213 = vmatpush1.msra.mxu0 0.0
      %3214 = vmatprep.subr.mxu0 0.0
      %3215 = vmatpush1.msra.mxu0 0.0
      %3216 = vmatprep.subr.mxu0 0.0
      %3217 = vmatpush1.msra.mxu0 0.0
      %3218 = vmatprep.subr.mxu0 0.0
      %3219 = vmatpush1.msra.mxu0 0.0
      %3220 = vmatprep.subr.mxu0 0.0
      %3221 = vmatpush1.msra.mxu0 0.0
      %3222 = vmatprep.subr.mxu0 0.0
      %3223 = vmatpush1.msra.mxu0 0.0
      %3224 = vmatprep.subr.mxu0 0.0
      %3225 = vmatpush1.msra.mxu0 0.0
      %3226 = vmatprep.subr.mxu0 0.0
      %3227 = vmatpush1.msra.mxu0 0.0
      %3228 = vmatprep.subr.mxu0 0.0
      %3229 = vmatpush1.msra.mxu0 0.0
      %3230 = vmatprep.subr.mxu0 0.0
      %3231 = vmatpush1.msra.mxu0 0.0
      %3232 = vmatprep.subr.mxu0 0.0
      %3233 = vmatpush1.msra.mxu0 0.0
      %3234 = vmatprep.subr.mxu0 0.0
      %3235 = vmatpush1.msra.mxu0 0.0
      %3236 = vmatprep.subr.mxu0 0.0
      %3237 = vmatpush1.msra.mxu0 0.0
      %3238 = vmatprep.subr.mxu0 0.0
      %3239 = vmatpush1.msra.mxu0 0.0
      %3240 = vmatprep.subr.mxu0 0.0
      %3241 = vmatpush1.msra.mxu0 0.0
      %3242 = vmatprep.subr.mxu0 0.0
      %3243 = vmatpush1.msra.mxu0 0.0
      %3244 = vmatprep.subr.mxu0 0.0
      %3245 = vmatpush1.msra.mxu0 0.0
      %3246 = vmatprep.subr.mxu0 0.0
      %3247 = vmatpush1.msra.mxu0 0.0
      %3248 = vmatprep.subr.mxu0 0.0
      %3249 = vmatpush1.msra.mxu0 0.0
      %3250 = vmatprep.subr.mxu0 0.0
      %3251 = vmatpush1.msra.mxu0 0.0
      %3252 = vmatprep.subr.mxu0 0.0
      %3253 = vmatpush1.msra.mxu0 0.0
      %3254 = vmatprep.mubr.f32.mxu0 0.0
      %3255 = vmatmul.mubr.f32.gmra.mrb[0].mxu0 %v3179
      %v3256 = vpop.f32.mrb[0].mxu0
      %v3257 = vadd.f32 0.0, %v3256
      %v3258 = vpop.f32.mrb[0].mxu0
      %3259 = vmatprep.mubr.f32.mxu0 0.0
      %3260 = vmatmul.mubr.f32.gmra.mrb[0].mxu0 %v3182
      %v3261 = vpop.f32.mrb[0].mxu0
      %v3262 = vadd.f32 0.0, %v3261
      %v3263 = vpop.f32.mrb[0].mxu0
      %3264 = vmatprep.mubr.f32.mxu0 0.0
      %3265 = vmatmul.mubr.f32.gmra.mrb[0].mxu0 %v3185
      %v3266 = vpop.f32.mrb[0].mxu0
      %v3267 = vadd.f32 0.0, %v3266
      %v3268 = vpop.f32.mrb[0].mxu0
      %3269 = vmatprep.mubr.f32.mxu0 0.0
      %3270 = vmatmul.mubr.f32.gmra.mrb[0].mxu0 %v3188
      %v3271 = vpop.f32.mrb[0].mxu0
      %v3272 = vadd.f32 0.0, %v3271
      %v3273 = vpop.f32.mrb[0].mxu0
      %3274 = vdwg.mxu0
      %v3275 = vsub.f32 %v3174, %v3257
      %v3276 = vsub.f32 %v3175, %v3262
      %v3277 = vsub.f32 %v3176, %v3267
      %v3278 = vsub.f32 %v3177, %v3272
      %v3279 = vmul.f32 %v3170, 2.0
      %v3280 = vmul.f32 %v3171, 2.0
      %v3281 = vmul.f32 %v3172, 2.0
      %v3282 = vmul.f32 %v3173, 2.0
      %3283 = vmatprep.subr.mxu0 0.0
      %3284 = vmatpush1.msra.mxu0 %v3170
      %3285 = vmatprep.subr.mxu0 0.0
      %3286 = vmatpush1.msra.mxu0 %v3171
      %3287 = vmatprep.subr.mxu0 0.0
      %3288 = vmatpush1.msra.mxu0 %v3172
      %3289 = vmatprep.subr.mxu0 0.0
      %3290 = vmatpush1.msra.mxu0 %v3173
      %3291 = vmatprep.subr.mxu0 0.0
      %3292 = vmatpush1.msra.mxu0 0.0
      %3293 = vmatprep.subr.mxu0 0.0
      %3294 = vmatpush1.msra.mxu0 0.0
      %3295 = vmatprep.subr.mxu0 0.0
      %3296 = vmatpush1.msra.mxu0 0.0
      %3297 = vmatprep.subr.mxu0 0.0
      %3298 = vmatpush1.msra.mxu0 0.0
      %3299 = vmatprep.subr.mxu0 0.0
      %3300 = vmatpush1.msra.mxu0 0.0
      %3301 = vmatprep.subr.mxu0 0.0
      %3302 = vmatpush1.msra.mxu0 0.0
      %3303 = vmatprep.subr.mxu0 0.0
      %3304 = vmatpush1.msra.mxu0 0.0
      %3305 = vmatprep.subr.mxu0 0.0
      %3306 = vmatpush1.msra.mxu0 0.0
      %3307 = vmatprep.subr.mxu0 0.0
      %3308 = vmatpush1.msra.mxu0 0.0
      %3309 = vmatprep.subr.mxu0 0.0
      %3310 = vmatpush1.msra.mxu0 0.0
      %3311 = vmatprep.subr.mxu0 0.0
      %3312 = vmatpush1.msra.mxu0 0.0
      %3313 = vmatprep.subr.mxu0 0.0
      %3314 = vmatpush1.msra.mxu0 0.0
      %3315 = vmatprep.subr.mxu0 0.0
      %3316 = vmatpush1.msra.mxu0 0.0
      %3317 = vmatprep.subr.mxu0 0.0
      %3318 = vmatpush1.msra.mxu0 0.0
      %3319 = vmatprep.subr.mxu0 0.0
      %3320 = vmatpush1.msra.mxu0 0.0
      %3321 = vmatprep.subr.mxu0 0.0
      %3322 = vmatpush1.msra.mxu0 0.0
      %3323 = vmatprep.subr.mxu0 0.0
      %3324 = vmatpush1.msra.mxu0 0.0
      %3325 = vmatprep.subr.mxu0 0.0
      %3326 = vmatpush1.msra.mxu0 0.0
      %3327 = vmatprep.subr.mxu0 0.0
      %3328 = vmatpush1.msra.mxu0 0.0
      %3329 = vmatprep.subr.mxu0 0.0
      %3330 = vmatpush1.msra.mxu0 0.0
      %3331 = vmatprep.subr.mxu0 0.0
      %3332 = vmatpush1.msra.mxu0 0.0
      %3333 = vmatprep.subr.mxu0 0.0
      %3334 = vmatpush1.msra.mxu0 0.0
      %3335 = vmatprep.subr.mxu0 0.0
      %3336 = vmatpush1.msra.mxu0 0.0
      %3337 = vmatprep.subr.mxu0 0.0
      %3338 = vmatpush1.msra.mxu0 0.0
      %3339 = vmatprep.subr.mxu0 0.0
      %3340 = vmatpush1.msra.mxu0 0.0
      %3341 = vmatprep.subr.mxu0 0.0
      %3342 = vmatpush1.msra.mxu0 0.0
      %3343 = vmatprep.subr.mxu0 0.0
      %3344 = vmatpush1.msra.mxu0 0.0
      %3345 = vmatprep.subr.mxu0 0.0
      %3346 = vmatpush1.msra.mxu0 0.0
      %3347 = vmatprep.mubr.f32.mxu0 0.0
      %3348 = vmatmul.mubr.f32.gmra.mrb[0].mxu0 %v3179
      %v3349 = vpop.f32.mrb[0].mxu0
      %v3350 = vadd.f32 0.0, %v3349
      %v3351 = vpop.f32.mrb[0].mxu0
      %3352 = vmatprep.mubr.f32.mxu0 0.0
      %3353 = vmatmul.mubr.f32.gmra.mrb[0].mxu0 %v3182
      %v3354 = vpop.f32.mrb[0].mxu0
      %v3355 = vadd.f32 0.0, %v3354
      %v3356 = vpop.f32.mrb[0].mxu0
      %3357 = vmatprep.mubr.f32.mxu0 0.0
      %3358 = vmatmul.mubr.f32.gmra.mrb[0].mxu0 %v3185
      %v3359 = vpop.f32.mrb[0].mxu0
      %v3360 = vadd.f32 0.0, %v3359
      %v3361 = vpop.f32.mrb[0].mxu0
      %3362 = vmatprep.mubr.f32.mxu0 0.0
      %3363 = vmatmul.mubr.f32.gmra.mrb[0].mxu0 %v3188
      %v3364 = vpop.f32.mrb[0].mxu0
      %v3365 = vadd.f32 0.0, %v3364
      %v3366 = vpop.f32.mrb[0].mxu0
      %3367 = vdwg.mxu0
      %v3368 = vsub.f32 %v3279, %v3350
      %v3369 = vsub.f32 %v3280, %v3355
      %v3370 = vsub.f32 %v3281, %v3360
      %v3371 = vsub.f32 %v3282, %v3365
      %v3372 = vmul.f32 %v3275, 2.0
      %v3373 = vmul.f32 %v3276, 2.0
      %v3374 = vmul.f32 %v3277, 2.0
      %v3375 = vmul.f32 %v3278, 2.0
      %v3377 = vsel %vm765, %v3368, 0
      %v3380 = vsel %vm765, %v3369, 0
      %v3383 = vsel %vm765, %v3370, 0
      %v3386 = vsel %vm765, %v3371, 0
      %3388 = vmatprep.subr.mxu0 0.0
      %3389 = vmatpush1.msra.mxu0 %v3275
      %3390 = vmatprep.subr.mxu0 0.0
      %3391 = vmatpush1.msra.mxu0 %v3276
      %3392 = vmatprep.subr.mxu0 0.0
      %3393 = vmatpush1.msra.mxu0 %v3277
      %3394 = vmatprep.subr.mxu0 0.0
      %3395 = vmatpush1.msra.mxu0 %v3278
      %3396 = vmatprep.subr.mxu0 0.0
      %3397 = vmatpush1.msra.mxu0 0.0
      %3398 = vmatprep.subr.mxu0 0.0
      %3399 = vmatpush1.msra.mxu0 0.0
      %3400 = vmatprep.subr.mxu0 0.0
      %3401 = vmatpush1.msra.mxu0 0.0
      %3402 = vmatprep.subr.mxu0 0.0
      %3403 = vmatpush1.msra.mxu0 0.0
      %3404 = vmatprep.subr.mxu0 0.0
      %3405 = vmatpush1.msra.mxu0 0.0
      %3406 = vmatprep.subr.mxu0 0.0
      %3407 = vmatpush1.msra.mxu0 0.0
      %3408 = vmatprep.subr.mxu0 0.0
      %3409 = vmatpush1.msra.mxu0 0.0
      %3410 = vmatprep.subr.mxu0 0.0
      %3411 = vmatpush1.msra.mxu0 0.0
      %3412 = vmatprep.subr.mxu0 0.0
      %3413 = vmatpush1.msra.mxu0 0.0
      %3414 = vmatprep.subr.mxu0 0.0
      %3415 = vmatpush1.msra.mxu0 0.0
      %3416 = vmatprep.subr.mxu0 0.0
      %3417 = vmatpush1.msra.mxu0 0.0
      %3418 = vmatprep.subr.mxu0 0.0
      %3419 = vmatpush1.msra.mxu0 0.0
      %3420 = vmatprep.subr.mxu0 0.0
      %3421 = vmatpush1.msra.mxu0 0.0
      %3422 = vmatprep.subr.mxu0 0.0
      %3423 = vmatpush1.msra.mxu0 0.0
      %3424 = vmatprep.subr.mxu0 0.0
      %3425 = vmatpush1.msra.mxu0 0.0
      %3426 = vmatprep.subr.mxu0 0.0
      %3427 = vmatpush1.msra.mxu0 0.0
      %3428 = vmatprep.subr.mxu0 0.0
      %3429 = vmatpush1.msra.mxu0 0.0
      %3430 = vmatprep.subr.mxu0 0.0
      %3431 = vmatpush1.msra.mxu0 0.0
      %3432 = vmatprep.subr.mxu0 0.0
      %3433 = vmatpush1.msra.mxu0 0.0
      %3434 = vmatprep.subr.mxu0 0.0
      %3435 = vmatpush1.msra.mxu0 0.0
      %3436 = vmatprep.subr.mxu0 0.0
      %3437 = vmatpush1.msra.mxu0 0.0
      %3438 = vmatprep.subr.mxu0 0.0
      %3439 = vmatpush1.msra.mxu0 0.0
      %3440 = vmatprep.subr.mxu0 0.0
      %3441 = vmatpush1.msra.mxu0 0.0
      %3442 = vmatprep.subr.mxu0 0.0
      %3443 = vmatpush1.msra.mxu0 0.0
      %3444 = vmatprep.subr.mxu0 0.0
      %3445 = vmatpush1.msra.mxu0 0.0
      %3446 = vmatprep.subr.mxu0 0.0
      %3447 = vmatpush1.msra.mxu0 0.0
      %3448 = vmatprep.subr.mxu0 0.0
      %3449 = vmatpush1.msra.mxu0 0.0
      %3450 = vmatprep.subr.mxu0 0.0
      %3451 = vmatpush1.msra.mxu0 0.0
      %3452 = vmatprep.mubr.f32.mxu0 0.0
      %3453 = vmatmul.mubr.f32.gmra.mrb[0].mxu0 %v3377
      %v3454 = vpop.f32.mrb[0].mxu0
      %v3455 = vadd.f32 0.0, %v3454
      %v3456 = vpop.f32.mrb[0].mxu0
      %3457 = vmatprep.mubr.f32.mxu0 0.0
      %3458 = vmatmul.mubr.f32.gmra.mrb[0].mxu0 %v3380
      %v3459 = vpop.f32.mrb[0].mxu0
      %v3460 = vadd.f32 0.0, %v3459
      %v3461 = vpop.f32.mrb[0].mxu0
      %3462 = vmatprep.mubr.f32.mxu0 0.0
      %3463 = vmatmul.mubr.f32.gmra.mrb[0].mxu0 %v3383
      %v3464 = vpop.f32.mrb[0].mxu0
      %v3465 = vadd.f32 0.0, %v3464
      %v3466 = vpop.f32.mrb[0].mxu0
      %3467 = vmatprep.mubr.f32.mxu0 0.0
      %3468 = vmatmul.mubr.f32.gmra.mrb[0].mxu0 %v3386
      %v3469 = vpop.f32.mrb[0].mxu0
      %v3470 = vadd.f32 0.0, %v3469
      %v3471 = vpop.f32.mrb[0].mxu0
      %3472 = vdwg.mxu0
      %v3473 = vsub.f32 %v3372, %v3455
      %v3474 = vsub.f32 %v3373, %v3460
      %v3475 = vsub.f32 %v3374, %v3465
      %v3476 = vsub.f32 %v3375, %v3470
      %v3477 = vmul.f32 %v3368, 2.0
      %v3478 = vmul.f32 %v3369, 2.0
      %v3479 = vmul.f32 %v3370, 2.0
      %v3480 = vmul.f32 %v3371, 2.0
      %3481 = vmatprep.subr.mxu0 0.0
      %3482 = vmatpush1.msra.mxu0 %v3368
      %3483 = vmatprep.subr.mxu0 0.0
      %3484 = vmatpush1.msra.mxu0 %v3369
      %3485 = vmatprep.subr.mxu0 0.0
      %3486 = vmatpush1.msra.mxu0 %v3370
      %3487 = vmatprep.subr.mxu0 0.0
      %3488 = vmatpush1.msra.mxu0 %v3371
      %3489 = vmatprep.subr.mxu0 0.0
      %3490 = vmatpush1.msra.mxu0 0.0
      %3491 = vmatprep.subr.mxu0 0.0
      %3492 = vmatpush1.msra.mxu0 0.0
      %3493 = vmatprep.subr.mxu0 0.0
      %3494 = vmatpush1.msra.mxu0 0.0
      %3495 = vmatprep.subr.mxu0 0.0
      %3496 = vmatpush1.msra.mxu0 0.0
      %3497 = vmatprep.subr.mxu0 0.0
      %3498 = vmatpush1.msra.mxu0 0.0
      %3499 = vmatprep.subr.mxu0 0.0
      %3500 = vmatpush1.msra.mxu0 0.0
      %3501 = vmatprep.subr.mxu0 0.0
      %3502 = vmatpush1.msra.mxu0 0.0
      %3503 = vmatprep.subr.mxu0 0.0
      %3504 = vmatpush1.msra.mxu0 0.0
      %3505 = vmatprep.subr.mxu0 0.0
      %3506 = vmatpush1.msra.mxu0 0.0
      %3507 = vmatprep.subr.mxu0 0.0
      %3508 = vmatpush1.msra.mxu0 0.0
      %3509 = vmatprep.subr.mxu0 0.0
      %3510 = vmatpush1.msra.mxu0 0.0
      %3511 = vmatprep.subr.mxu0 0.0
      %3512 = vmatpush1.msra.mxu0 0.0
      %3513 = vmatprep.subr.mxu0 0.0
      %3514 = vmatpush1.msra.mxu0 0.0
      %3515 = vmatprep.subr.mxu0 0.0
      %3516 = vmatpush1.msra.mxu0 0.0
      %3517 = vmatprep.subr.mxu0 0.0
      %3518 = vmatpush1.msra.mxu0 0.0
      %3519 = vmatprep.subr.mxu0 0.0
      %3520 = vmatpush1.msra.mxu0 0.0
      %3521 = vmatprep.subr.mxu0 0.0
      %3522 = vmatpush1.msra.mxu0 0.0
      %3523 = vmatprep.subr.mxu0 0.0
      %3524 = vmatpush1.msra.mxu0 0.0
      %3525 = vmatprep.subr.mxu0 0.0
      %3526 = vmatpush1.msra.mxu0 0.0
      %3527 = vmatprep.subr.mxu0 0.0
      %3528 = vmatpush1.msra.mxu0 0.0
      %3529 = vmatprep.subr.mxu0 0.0
      %3530 = vmatpush1.msra.mxu0 0.0
      %3531 = vmatprep.subr.mxu0 0.0
      %3532 = vmatpush1.msra.mxu0 0.0
      %3533 = vmatprep.subr.mxu0 0.0
      %3534 = vmatpush1.msra.mxu0 0.0
      %3535 = vmatprep.subr.mxu0 0.0
      %3536 = vmatpush1.msra.mxu0 0.0
      %3537 = vmatprep.subr.mxu0 0.0
      %3538 = vmatpush1.msra.mxu0 0.0
      %3539 = vmatprep.subr.mxu0 0.0
      %3540 = vmatpush1.msra.mxu0 0.0
      %3541 = vmatprep.subr.mxu0 0.0
      %3542 = vmatpush1.msra.mxu0 0.0
      %3543 = vmatprep.subr.mxu0 0.0
      %3544 = vmatpush1.msra.mxu0 0.0
      %3545 = vmatprep.mubr.f32.mxu0 0.0
      %3546 = vmatmul.mubr.f32.gmra.mrb[0].mxu0 %v3377
      %v3547 = vpop.f32.mrb[0].mxu0
      %v3548 = vadd.f32 0.0, %v3547
      %v3549 = vpop.f32.mrb[0].mxu0
      %3550 = vmatprep.mubr.f32.mxu0 0.0
      %3551 = vmatmul.mubr.f32.gmra.mrb[0].mxu0 %v3380
      %v3552 = vpop.f32.mrb[0].mxu0
      %v3553 = vadd.f32 0.0, %v3552
      %v3554 = vpop.f32.mrb[0].mxu0
      %3555 = vmatprep.mubr.f32.mxu0 0.0
      %3556 = vmatmul.mubr.f32.gmra.mrb[0].mxu0 %v3383
      %v3557 = vpop.f32.mrb[0].mxu0
      %v3558 = vadd.f32 0.0, %v3557
      %v3559 = vpop.f32.mrb[0].mxu0
      %3560 = vmatprep.mubr.f32.mxu0 0.0
      %3561 = vmatmul.mubr.f32.gmra.mrb[0].mxu0 %v3386
      %v3562 = vpop.f32.mrb[0].mxu0
      %v3563 = vadd.f32 0.0, %v3562
      %v3564 = vpop.f32.mrb[0].mxu0
      %3565 = vdwg.mxu0
      %v3566 = vsub.f32 %v3477, %v3548
      %v3567 = vsub.f32 %v3478, %v3553
      %v3568 = vsub.f32 %v3479, %v3558
      %v3569 = vsub.f32 %v3480, %v3563
      %v3570 = vmul.f32 %v3473, 2.0
      %v3571 = vmul.f32 %v3474, 2.0
      %v3572 = vmul.f32 %v3475, 2.0
      %v3573 = vmul.f32 %v3476, 2.0
      %v3575 = vsel %vm765, %v3566, 0
      %v3578 = vsel %vm765, %v3567, 0
      %v3581 = vsel %vm765, %v3568, 0
      %v3584 = vsel %vm765, %v3569, 0
      %3586 = vmatprep.subr.mxu0 0.0
      %3587 = vmatpush1.msra.mxu0 %v3473
      %3588 = vmatprep.subr.mxu0 0.0
      %3589 = vmatpush1.msra.mxu0 %v3474
      %3590 = vmatprep.subr.mxu0 0.0
      %3591 = vmatpush1.msra.mxu0 %v3475
      %3592 = vmatprep.subr.mxu0 0.0
      %3593 = vmatpush1.msra.mxu0 %v3476
      %3594 = vmatprep.subr.mxu0 0.0
      %3595 = vmatpush1.msra.mxu0 0.0
      %3596 = vmatprep.subr.mxu0 0.0
      %3597 = vmatpush1.msra.mxu0 0.0
      %3598 = vmatprep.subr.mxu0 0.0
      %3599 = vmatpush1.msra.mxu0 0.0
      %3600 = vmatprep.subr.mxu0 0.0
      %3601 = vmatpush1.msra.mxu0 0.0
      %3602 = vmatprep.subr.mxu0 0.0
      %3603 = vmatpush1.msra.mxu0 0.0
      %3604 = vmatprep.subr.mxu0 0.0
      %3605 = vmatpush1.msra.mxu0 0.0
      %3606 = vmatprep.subr.mxu0 0.0
      %3607 = vmatpush1.msra.mxu0 0.0
      %3608 = vmatprep.subr.mxu0 0.0
      %3609 = vmatpush1.msra.mxu0 0.0
      %3610 = vmatprep.subr.mxu0 0.0
      %3611 = vmatpush1.msra.mxu0 0.0
      %3612 = vmatprep.subr.mxu0 0.0
      %3613 = vmatpush1.msra.mxu0 0.0
      %3614 = vmatprep.subr.mxu0 0.0
      %3615 = vmatpush1.msra.mxu0 0.0
      %3616 = vmatprep.subr.mxu0 0.0
      %3617 = vmatpush1.msra.mxu0 0.0
      %3618 = vmatprep.subr.mxu0 0.0
      %3619 = vmatpush1.msra.mxu0 0.0
      %3620 = vmatprep.subr.mxu0 0.0
      %3621 = vmatpush1.msra.mxu0 0.0
      %3622 = vmatprep.subr.mxu0 0.0
      %3623 = vmatpush1.msra.mxu0 0.0
      %3624 = vmatprep.subr.mxu0 0.0
      %3625 = vmatpush1.msra.mxu0 0.0
      %3626 = vmatprep.subr.mxu0 0.0
      %3627 = vmatpush1.msra.mxu0 0.0
      %3628 = vmatprep.subr.mxu0 0.0
      %3629 = vmatpush1.msra.mxu0 0.0
      %3630 = vmatprep.subr.mxu0 0.0
      %3631 = vmatpush1.msra.mxu0 0.0
      %3632 = vmatprep.subr.mxu0 0.0
      %3633 = vmatpush1.msra.mxu0 0.0
      %3634 = vmatprep.subr.mxu0 0.0
      %3635 = vmatpush1.msra.mxu0 0.0
      %3636 = vmatprep.subr.mxu0 0.0
      %3637 = vmatpush1.msra.mxu0 0.0
      %3638 = vmatprep.subr.mxu0 0.0
      %3639 = vmatpush1.msra.mxu0 0.0
      %3640 = vmatprep.subr.mxu0 0.0
      %3641 = vmatpush1.msra.mxu0 0.0
      %3642 = vmatprep.subr.mxu0 0.0
      %3643 = vmatpush1.msra.mxu0 0.0
      %3644 = vmatprep.subr.mxu0 0.0
      %3645 = vmatpush1.msra.mxu0 0.0
      %3646 = vmatprep.subr.mxu0 0.0
      %3647 = vmatpush1.msra.mxu0 0.0
      %3648 = vmatprep.subr.mxu0 0.0
      %3649 = vmatpush1.msra.mxu0 0.0
      %3650 = vmatprep.mubr.f32.mxu0 0.0
      %3651 = vmatmul.mubr.f32.gmra.mrb[0].mxu0 %v3575
      %v3652 = vpop.f32.mrb[0].mxu0
      %v3653 = vadd.f32 0.0, %v3652
      %v3654 = vpop.f32.mrb[0].mxu0
      %3655 = vmatprep.mubr.f32.mxu0 0.0
      %3656 = vmatmul.mubr.f32.gmra.mrb[0].mxu0 %v3578
      %v3657 = vpop.f32.mrb[0].mxu0
      %v3658 = vadd.f32 0.0, %v3657
      %v3659 = vpop.f32.mrb[0].mxu0
      %3660 = vmatprep.mubr.f32.mxu0 0.0
      %3661 = vmatmul.mubr.f32.gmra.mrb[0].mxu0 %v3581
      %v3662 = vpop.f32.mrb[0].mxu0
      %v3663 = vadd.f32 0.0, %v3662
      %v3664 = vpop.f32.mrb[0].mxu0
      %3665 = vmatprep.mubr.f32.mxu0 0.0
      %3666 = vmatmul.mubr.f32.gmra.mrb[0].mxu0 %v3584
      %v3667 = vpop.f32.mrb[0].mxu0
      %v3668 = vadd.f32 0.0, %v3667
      %v3669 = vpop.f32.mrb[0].mxu0
      %3670 = vdwg.mxu0
      %v3671 = vsub.f32 %v3570, %v3653
      %v3672 = vsub.f32 %v3571, %v3658
      %v3673 = vsub.f32 %v3572, %v3663
      %v3674 = vsub.f32 %v3573, %v3668
      %v3675 = vmul.f32 %v3566, 2.0
      %v3676 = vmul.f32 %v3567, 2.0
      %v3677 = vmul.f32 %v3568, 2.0
      %v3678 = vmul.f32 %v3569, 2.0
      %3679 = vmatprep.subr.mxu0 0.0
      %3680 = vmatpush1.msra.mxu0 %v3566
      %3681 = vmatprep.subr.mxu0 0.0
      %3682 = vmatpush1.msra.mxu0 %v3567
      %3683 = vmatprep.subr.mxu0 0.0
      %3684 = vmatpush1.msra.mxu0 %v3568
      %3685 = vmatprep.subr.mxu0 0.0
      %3686 = vmatpush1.msra.mxu0 %v3569
      %3687 = vmatprep.subr.mxu0 0.0
      %3688 = vmatpush1.msra.mxu0 0.0
      %3689 = vmatprep.subr.mxu0 0.0
      %3690 = vmatpush1.msra.mxu0 0.0
      %3691 = vmatprep.subr.mxu0 0.0
      %3692 = vmatpush1.msra.mxu0 0.0
      %3693 = vmatprep.subr.mxu0 0.0
      %3694 = vmatpush1.msra.mxu0 0.0
      %3695 = vmatprep.subr.mxu0 0.0
      %3696 = vmatpush1.msra.mxu0 0.0
      %3697 = vmatprep.subr.mxu0 0.0
      %3698 = vmatpush1.msra.mxu0 0.0
      %3699 = vmatprep.subr.mxu0 0.0
      %3700 = vmatpush1.msra.mxu0 0.0
      %3701 = vmatprep.subr.mxu0 0.0
      %3702 = vmatpush1.msra.mxu0 0.0
      %3703 = vmatprep.subr.mxu0 0.0
      %3704 = vmatpush1.msra.mxu0 0.0
      %3705 = vmatprep.subr.mxu0 0.0
      %3706 = vmatpush1.msra.mxu0 0.0
      %3707 = vmatprep.subr.mxu0 0.0
      %3708 = vmatpush1.msra.mxu0 0.0
      %3709 = vmatprep.subr.mxu0 0.0
      %3710 = vmatpush1.msra.mxu0 0.0
      %3711 = vmatprep.subr.mxu0 0.0
      %3712 = vmatpush1.msra.mxu0 0.0
      %3713 = vmatprep.subr.mxu0 0.0
      %3714 = vmatpush1.msra.mxu0 0.0
      %3715 = vmatprep.subr.mxu0 0.0
      %3716 = vmatpush1.msra.mxu0 0.0
      %3717 = vmatprep.subr.mxu0 0.0
      %3718 = vmatpush1.msra.mxu0 0.0
      %3719 = vmatprep.subr.mxu0 0.0
      %3720 = vmatpush1.msra.mxu0 0.0
      %3721 = vmatprep.subr.mxu0 0.0
      %3722 = vmatpush1.msra.mxu0 0.0
      %3723 = vmatprep.subr.mxu0 0.0
      %3724 = vmatpush1.msra.mxu0 0.0
      %3725 = vmatprep.subr.mxu0 0.0
      %3726 = vmatpush1.msra.mxu0 0.0
      %3727 = vmatprep.subr.mxu0 0.0
      %3728 = vmatpush1.msra.mxu0 0.0
      %3729 = vmatprep.subr.mxu0 0.0
      %3730 = vmatpush1.msra.mxu0 0.0
      %3731 = vmatprep.subr.mxu0 0.0
      %3732 = vmatpush1.msra.mxu0 0.0
      %3733 = vmatprep.subr.mxu0 0.0
      %3734 = vmatpush1.msra.mxu0 0.0
      %3735 = vmatprep.subr.mxu0 0.0
      %3736 = vmatpush1.msra.mxu0 0.0
      %3737 = vmatprep.subr.mxu0 0.0
      %3738 = vmatpush1.msra.mxu0 0.0
      %3739 = vmatprep.subr.mxu0 0.0
      %3740 = vmatpush1.msra.mxu0 0.0
      %3741 = vmatprep.subr.mxu0 0.0
      %3742 = vmatpush1.msra.mxu0 0.0
      %3743 = vmatprep.mubr.f32.mxu0 0.0
      %3744 = vmatmul.mubr.f32.gmra.mrb[0].mxu0 %v3575
      %v3745 = vpop.f32.mrb[0].mxu0
      %v3746 = vadd.f32 0.0, %v3745
      %v3747 = vpop.f32.mrb[0].mxu0
      %3748 = vmatprep.mubr.f32.mxu0 0.0
      %3749 = vmatmul.mubr.f32.gmra.mrb[0].mxu0 %v3578
      %v3750 = vpop.f32.mrb[0].mxu0
      %v3751 = vadd.f32 0.0, %v3750
      %v3752 = vpop.f32.mrb[0].mxu0
      %3753 = vmatprep.mubr.f32.mxu0 0.0
      %3754 = vmatmul.mubr.f32.gmra.mrb[0].mxu0 %v3581
      %v3755 = vpop.f32.mrb[0].mxu0
      %v3756 = vadd.f32 0.0, %v3755
      %v3757 = vpop.f32.mrb[0].mxu0
      %3758 = vmatprep.mubr.f32.mxu0 0.0
      %3759 = vmatmul.mubr.f32.gmra.mrb[0].mxu0 %v3584
      %v3760 = vpop.f32.mrb[0].mxu0
      %v3761 = vadd.f32 0.0, %v3760
      %v3762 = vpop.f32.mrb[0].mxu0
      %3763 = vdwg.mxu0
      %v3764 = vsub.f32 %v3675, %v3746
      %v3765 = vsub.f32 %v3676, %v3751
      %v3766 = vsub.f32 %v3677, %v3756
      %v3767 = vsub.f32 %v3678, %v3761
      %v3768 = vmul.f32 %v3671, 2.0
      %v3769 = vmul.f32 %v3672, 2.0
      %v3770 = vmul.f32 %v3673, 2.0
      %v3771 = vmul.f32 %v3674, 2.0
      %v3773 = vsel %vm765, %v3764, 0
      %v3776 = vsel %vm765, %v3765, 0
      %v3779 = vsel %vm765, %v3766, 0
      %v3782 = vsel %vm765, %v3767, 0
      %3784 = vmatprep.subr.mxu0 0.0
      %3785 = vmatpush1.msra.mxu0 %v3671
      %3786 = vmatprep.subr.mxu0 0.0
      %3787 = vmatpush1.msra.mxu0 %v3672
      %3788 = vmatprep.subr.mxu0 0.0
      %3789 = vmatpush1.msra.mxu0 %v3673
      %3790 = vmatprep.subr.mxu0 0.0
      %3791 = vmatpush1.msra.mxu0 %v3674
      %3792 = vmatprep.subr.mxu0 0.0
      %3793 = vmatpush1.msra.mxu0 0.0
      %3794 = vmatprep.subr.mxu0 0.0
      %3795 = vmatpush1.msra.mxu0 0.0
      %3796 = vmatprep.subr.mxu0 0.0
      %3797 = vmatpush1.msra.mxu0 0.0
      %3798 = vmatprep.subr.mxu0 0.0
      %3799 = vmatpush1.msra.mxu0 0.0
      %3800 = vmatprep.subr.mxu0 0.0
      %3801 = vmatpush1.msra.mxu0 0.0
      %3802 = vmatprep.subr.mxu0 0.0
      %3803 = vmatpush1.msra.mxu0 0.0
      %3804 = vmatprep.subr.mxu0 0.0
      %3805 = vmatpush1.msra.mxu0 0.0
      %3806 = vmatprep.subr.mxu0 0.0
      %3807 = vmatpush1.msra.mxu0 0.0
      %3808 = vmatprep.subr.mxu0 0.0
      %3809 = vmatpush1.msra.mxu0 0.0
      %3810 = vmatprep.subr.mxu0 0.0
      %3811 = vmatpush1.msra.mxu0 0.0
      %3812 = vmatprep.subr.mxu0 0.0
      %3813 = vmatpush1.msra.mxu0 0.0
      %3814 = vmatprep.subr.mxu0 0.0
      %3815 = vmatpush1.msra.mxu0 0.0
      %3816 = vmatprep.subr.mxu0 0.0
      %3817 = vmatpush1.msra.mxu0 0.0
      %3818 = vmatprep.subr.mxu0 0.0
      %3819 = vmatpush1.msra.mxu0 0.0
      %3820 = vmatprep.subr.mxu0 0.0
      %3821 = vmatpush1.msra.mxu0 0.0
      %3822 = vmatprep.subr.mxu0 0.0
      %3823 = vmatpush1.msra.mxu0 0.0
      %3824 = vmatprep.subr.mxu0 0.0
      %3825 = vmatpush1.msra.mxu0 0.0
      %3826 = vmatprep.subr.mxu0 0.0
      %3827 = vmatpush1.msra.mxu0 0.0
      %3828 = vmatprep.subr.mxu0 0.0
      %3829 = vmatpush1.msra.mxu0 0.0
      %3830 = vmatprep.subr.mxu0 0.0
      %3831 = vmatpush1.msra.mxu0 0.0
      %3832 = vmatprep.subr.mxu0 0.0
      %3833 = vmatpush1.msra.mxu0 0.0
      %3834 = vmatprep.subr.mxu0 0.0
      %3835 = vmatpush1.msra.mxu0 0.0
      %3836 = vmatprep.subr.mxu0 0.0
      %3837 = vmatpush1.msra.mxu0 0.0
      %3838 = vmatprep.subr.mxu0 0.0
      %3839 = vmatpush1.msra.mxu0 0.0
      %3840 = vmatprep.subr.mxu0 0.0
      %3841 = vmatpush1.msra.mxu0 0.0
      %3842 = vmatprep.subr.mxu0 0.0
      %3843 = vmatpush1.msra.mxu0 0.0
      %3844 = vmatprep.subr.mxu0 0.0
      %3845 = vmatpush1.msra.mxu0 0.0
      %3846 = vmatprep.subr.mxu0 0.0
      %3847 = vmatpush1.msra.mxu0 0.0
      %3848 = vmatprep.mubr.f32.mxu0 0.0
      %3849 = vmatmul.mubr.f32.gmra.mrb[0].mxu0 %v3773
      %v3850 = vpop.f32.mrb[0].mxu0
      %v3851 = vadd.f32 0.0, %v3850
      %v3852 = vpop.f32.mrb[0].mxu0
      %3853 = vmatprep.mubr.f32.mxu0 0.0
      %3854 = vmatmul.mubr.f32.gmra.mrb[0].mxu0 %v3776
      %v3855 = vpop.f32.mrb[0].mxu0
      %v3856 = vadd.f32 0.0, %v3855
      %v3857 = vpop.f32.mrb[0].mxu0
      %3858 = vmatprep.mubr.f32.mxu0 0.0
      %3859 = vmatmul.mubr.f32.gmra.mrb[0].mxu0 %v3779
      %v3860 = vpop.f32.mrb[0].mxu0
      %v3861 = vadd.f32 0.0, %v3860
      %v3862 = vpop.f32.mrb[0].mxu0
      %3863 = vmatprep.mubr.f32.mxu0 0.0
      %3864 = vmatmul.mubr.f32.gmra.mrb[0].mxu0 %v3782
      %v3865 = vpop.f32.mrb[0].mxu0
      %v3866 = vadd.f32 0.0, %v3865
      %v3867 = vpop.f32.mrb[0].mxu0
      %3868 = vdwg.mxu0
      %v3869 = vsub.f32 %v3768, %v3851
      %v3870 = vsub.f32 %v3769, %v3856
      %v3871 = vsub.f32 %v3770, %v3861
      %v3872 = vsub.f32 %v3771, %v3866
      %v3873 = vmul.f32 %v3764, 2.0
      %v3874 = vmul.f32 %v3765, 2.0
      %v3875 = vmul.f32 %v3766, 2.0
      %v3876 = vmul.f32 %v3767, 2.0
      %3877 = vmatprep.subr.mxu0 0.0
      %3878 = vmatpush1.msra.mxu0 %v3764
      %3879 = vmatprep.subr.mxu0 0.0
      %3880 = vmatpush1.msra.mxu0 %v3765
      %3881 = vmatprep.subr.mxu0 0.0
      %3882 = vmatpush1.msra.mxu0 %v3766
      %3883 = vmatprep.subr.mxu0 0.0
      %3884 = vmatpush1.msra.mxu0 %v3767
      %3885 = vmatprep.subr.mxu0 0.0
      %3886 = vmatpush1.msra.mxu0 0.0
      %3887 = vmatprep.subr.mxu0 0.0
      %3888 = vmatpush1.msra.mxu0 0.0
      %3889 = vmatprep.subr.mxu0 0.0
      %3890 = vmatpush1.msra.mxu0 0.0
      %3891 = vmatprep.subr.mxu0 0.0
      %3892 = vmatpush1.msra.mxu0 0.0
      %3893 = vmatprep.subr.mxu0 0.0
      %3894 = vmatpush1.msra.mxu0 0.0
      %3895 = vmatprep.subr.mxu0 0.0
      %3896 = vmatpush1.msra.mxu0 0.0
      %3897 = vmatprep.subr.mxu0 0.0
      %3898 = vmatpush1.msra.mxu0 0.0
      %3899 = vmatprep.subr.mxu0 0.0
      %3900 = vmatpush1.msra.mxu0 0.0
      %3901 = vmatprep.subr.mxu0 0.0
      %3902 = vmatpush1.msra.mxu0 0.0
      %3903 = vmatprep.subr.mxu0 0.0
      %3904 = vmatpush1.msra.mxu0 0.0
      %3905 = vmatprep.subr.mxu0 0.0
      %3906 = vmatpush1.msra.mxu0 0.0
      %3907 = vmatprep.subr.mxu0 0.0
      %3908 = vmatpush1.msra.mxu0 0.0
      %3909 = vmatprep.subr.mxu0 0.0
      %3910 = vmatpush1.msra.mxu0 0.0
      %3911 = vmatprep.subr.mxu0 0.0
      %3912 = vmatpush1.msra.mxu0 0.0
      %3913 = vmatprep.subr.mxu0 0.0
      %3914 = vmatpush1.msra.mxu0 0.0
      %3915 = vmatprep.subr.mxu0 0.0
      %3916 = vmatpush1.msra.mxu0 0.0
      %3917 = vmatprep.subr.mxu0 0.0
      %3918 = vmatpush1.msra.mxu0 0.0
      %3919 = vmatprep.subr.mxu0 0.0
      %3920 = vmatpush1.msra.mxu0 0.0
      %3921 = vmatprep.subr.mxu0 0.0
      %3922 = vmatpush1.msra.mxu0 0.0
      %3923 = vmatprep.subr.mxu0 0.0
      %3924 = vmatpush1.msra.mxu0 0.0
      %3925 = vmatprep.subr.mxu0 0.0
      %3926 = vmatpush1.msra.mxu0 0.0
      %3927 = vmatprep.subr.mxu0 0.0
      %3928 = vmatpush1.msra.mxu0 0.0
      %3929 = vmatprep.subr.mxu0 0.0
      %3930 = vmatpush1.msra.mxu0 0.0
      %3931 = vmatprep.subr.mxu0 0.0
      %3932 = vmatpush1.msra.mxu0 0.0
      %3933 = vmatprep.subr.mxu0 0.0
      %3934 = vmatpush1.msra.mxu0 0.0
      %3935 = vmatprep.subr.mxu0 0.0
      %3936 = vmatpush1.msra.mxu0 0.0
      %3937 = vmatprep.subr.mxu0 0.0
      %3938 = vmatpush1.msra.mxu0 0.0
      %3939 = vmatprep.subr.mxu0 0.0
      %3940 = vmatpush1.msra.mxu0 0.0
      %3941 = vmatprep.mubr.f32.mxu0 0.0
      %3942 = vmatmul.mubr.f32.gmra.mrb[0].mxu0 %v3773
      %v3943 = vpop.f32.mrb[0].mxu0
      %v3944 = vadd.f32 0.0, %v3943
      %v3945 = vpop.f32.mrb[0].mxu0
      %3946 = vmatprep.mubr.f32.mxu0 0.0
      %3947 = vmatmul.mubr.f32.gmra.mrb[0].mxu0 %v3776
      %v3948 = vpop.f32.mrb[0].mxu0
      %v3949 = vadd.f32 0.0, %v3948
      %v3950 = vpop.f32.mrb[0].mxu0
      %3951 = vmatprep.mubr.f32.mxu0 0.0
      %3952 = vmatmul.mubr.f32.gmra.mrb[0].mxu0 %v3779
      %v3953 = vpop.f32.mrb[0].mxu0
      %v3954 = vadd.f32 0.0, %v3953
      %v3955 = vpop.f32.mrb[0].mxu0
      %3956 = vmatprep.mubr.f32.mxu0 0.0
      %3957 = vmatmul.mubr.f32.gmra.mrb[0].mxu0 %v3782
      %v3958 = vpop.f32.mrb[0].mxu0
      %v3959 = vadd.f32 0.0, %v3958
      %v3960 = vpop.f32.mrb[0].mxu0
      %3961 = vdwg.mxu0
      %v3962 = vsub.f32 %v3873, %v3944
      %v3963 = vsub.f32 %v3874, %v3949
      %v3964 = vsub.f32 %v3875, %v3954
      %v3965 = vsub.f32 %v3876, %v3959
      %v3966 = vmul.f32 %v3869, 2.0
      %v3967 = vmul.f32 %v3870, 2.0
      %v3968 = vmul.f32 %v3871, 2.0
      %v3969 = vmul.f32 %v3872, 2.0
      %v3971 = vsel %vm765, %v3962, 0
      %v3974 = vsel %vm765, %v3963, 0
      %v3977 = vsel %vm765, %v3964, 0
      %v3980 = vsel %vm765, %v3965, 0
      %3982 = vmatprep.subr.mxu0 0.0
      %3983 = vmatpush1.msra.mxu0 %v3869
      %3984 = vmatprep.subr.mxu0 0.0
      %3985 = vmatpush1.msra.mxu0 %v3870
      %3986 = vmatprep.subr.mxu0 0.0
      %3987 = vmatpush1.msra.mxu0 %v3871
      %3988 = vmatprep.subr.mxu0 0.0
      %3989 = vmatpush1.msra.mxu0 %v3872
      %3990 = vmatprep.subr.mxu0 0.0
      %3991 = vmatpush1.msra.mxu0 0.0
      %3992 = vmatprep.subr.mxu0 0.0
      %3993 = vmatpush1.msra.mxu0 0.0
      %3994 = vmatprep.subr.mxu0 0.0
      %3995 = vmatpush1.msra.mxu0 0.0
      %3996 = vmatprep.subr.mxu0 0.0
      %3997 = vmatpush1.msra.mxu0 0.0
      %3998 = vmatprep.subr.mxu0 0.0
      %3999 = vmatpush1.msra.mxu0 0.0
      %4000 = vmatprep.subr.mxu0 0.0
      %4001 = vmatpush1.msra.mxu0 0.0
      %4002 = vmatprep.subr.mxu0 0.0
      %4003 = vmatpush1.msra.mxu0 0.0
      %4004 = vmatprep.subr.mxu0 0.0
      %4005 = vmatpush1.msra.mxu0 0.0
      %4006 = vmatprep.subr.mxu0 0.0
      %4007 = vmatpush1.msra.mxu0 0.0
      %4008 = vmatprep.subr.mxu0 0.0
      %4009 = vmatpush1.msra.mxu0 0.0
      %4010 = vmatprep.subr.mxu0 0.0
      %4011 = vmatpush1.msra.mxu0 0.0
      %4012 = vmatprep.subr.mxu0 0.0
      %4013 = vmatpush1.msra.mxu0 0.0
      %4014 = vmatprep.subr.mxu0 0.0
      %4015 = vmatpush1.msra.mxu0 0.0
      %4016 = vmatprep.subr.mxu0 0.0
      %4017 = vmatpush1.msra.mxu0 0.0
      %4018 = vmatprep.subr.mxu0 0.0
      %4019 = vmatpush1.msra.mxu0 0.0
      %4020 = vmatprep.subr.mxu0 0.0
      %4021 = vmatpush1.msra.mxu0 0.0
      %4022 = vmatprep.subr.mxu0 0.0
      %4023 = vmatpush1.msra.mxu0 0.0
      %4024 = vmatprep.subr.mxu0 0.0
      %4025 = vmatpush1.msra.mxu0 0.0
      %4026 = vmatprep.subr.mxu0 0.0
      %4027 = vmatpush1.msra.mxu0 0.0
      %4028 = vmatprep.subr.mxu0 0.0
      %4029 = vmatpush1.msra.mxu0 0.0
      %4030 = vmatprep.subr.mxu0 0.0
      %4031 = vmatpush1.msra.mxu0 0.0
      %4032 = vmatprep.subr.mxu0 0.0
      %4033 = vmatpush1.msra.mxu0 0.0
      %4034 = vmatprep.subr.mxu0 0.0
      %4035 = vmatpush1.msra.mxu0 0.0
      %4036 = vmatprep.subr.mxu0 0.0
      %4037 = vmatpush1.msra.mxu0 0.0
      %4038 = vmatprep.subr.mxu0 0.0
      %4039 = vmatpush1.msra.mxu0 0.0
      %4040 = vmatprep.subr.mxu0 0.0
      %4041 = vmatpush1.msra.mxu0 0.0
      %4042 = vmatprep.subr.mxu0 0.0
      %4043 = vmatpush1.msra.mxu0 0.0
      %4044 = vmatprep.subr.mxu0 0.0
      %4045 = vmatpush1.msra.mxu0 0.0
      %4046 = vmatprep.mubr.f32.mxu0 0.0
      %4047 = vmatmul.mubr.f32.gmra.mrb[0].mxu0 %v3971
      %v4048 = vpop.f32.mrb[0].mxu0
      %v4049 = vadd.f32 0.0, %v4048
      %v4050 = vpop.f32.mrb[0].mxu0
      %4051 = vmatprep.mubr.f32.mxu0 0.0
      %4052 = vmatmul.mubr.f32.gmra.mrb[0].mxu0 %v3974
      %v4053 = vpop.f32.mrb[0].mxu0
      %v4054 = vadd.f32 0.0, %v4053
      %v4055 = vpop.f32.mrb[0].mxu0
      %4056 = vmatprep.mubr.f32.mxu0 0.0
      %4057 = vmatmul.mubr.f32.gmra.mrb[0].mxu0 %v3977
      %v4058 = vpop.f32.mrb[0].mxu0
      %v4059 = vadd.f32 0.0, %v4058
      %v4060 = vpop.f32.mrb[0].mxu0
      %4061 = vmatprep.mubr.f32.mxu0 0.0
      %4062 = vmatmul.mubr.f32.gmra.mrb[0].mxu0 %v3980
      %v4063 = vpop.f32.mrb[0].mxu0
      %v4064 = vadd.f32 0.0, %v4063
      %v4065 = vpop.f32.mrb[0].mxu0
      %4066 = vdwg.mxu0
      %v4067 = vsub.f32 %v3966, %v4049
      %v4068 = vsub.f32 %v3967, %v4054
      %v4069 = vsub.f32 %v3968, %v4059
      %v4070 = vsub.f32 %v3969, %v4064
      %v4071 = vmul.f32 %v3962, 2.0
      %v4072 = vmul.f32 %v3963, 2.0
      %v4073 = vmul.f32 %v3964, 2.0
      %v4074 = vmul.f32 %v3965, 2.0
      %4075 = vmatprep.subr.mxu0 0.0
      %4076 = vmatpush1.msra.mxu0 %v3962
      %4077 = vmatprep.subr.mxu0 0.0
      %4078 = vmatpush1.msra.mxu0 %v3963
      %4079 = vmatprep.subr.mxu0 0.0
      %4080 = vmatpush1.msra.mxu0 %v3964
      %4081 = vmatprep.subr.mxu0 0.0
      %4082 = vmatpush1.msra.mxu0 %v3965
      %4083 = vmatprep.subr.mxu0 0.0
      %4084 = vmatpush1.msra.mxu0 0.0
      %4085 = vmatprep.subr.mxu0 0.0
      %4086 = vmatpush1.msra.mxu0 0.0
      %4087 = vmatprep.subr.mxu0 0.0
      %4088 = vmatpush1.msra.mxu0 0.0
      %4089 = vmatprep.subr.mxu0 0.0
      %4090 = vmatpush1.msra.mxu0 0.0
      %4091 = vmatprep.subr.mxu0 0.0
      %4092 = vmatpush1.msra.mxu0 0.0
      %4093 = vmatprep.subr.mxu0 0.0
      %4094 = vmatpush1.msra.mxu0 0.0
      %4095 = vmatprep.subr.mxu0 0.0
      %4096 = vmatpush1.msra.mxu0 0.0
      %4097 = vmatprep.subr.mxu0 0.0
      %4098 = vmatpush1.msra.mxu0 0.0
      %4099 = vmatprep.subr.mxu0 0.0
      %4100 = vmatpush1.msra.mxu0 0.0
      %4101 = vmatprep.subr.mxu0 0.0
      %4102 = vmatpush1.msra.mxu0 0.0
      %4103 = vmatprep.subr.mxu0 0.0
      %4104 = vmatpush1.msra.mxu0 0.0
      %4105 = vmatprep.subr.mxu0 0.0
      %4106 = vmatpush1.msra.mxu0 0.0
      %4107 = vmatprep.subr.mxu0 0.0
      %4108 = vmatpush1.msra.mxu0 0.0
      %4109 = vmatprep.subr.mxu0 0.0
      %4110 = vmatpush1.msra.mxu0 0.0
      %4111 = vmatprep.subr.mxu0 0.0
      %4112 = vmatpush1.msra.mxu0 0.0
      %4113 = vmatprep.subr.mxu0 0.0
      %4114 = vmatpush1.msra.mxu0 0.0
      %4115 = vmatprep.subr.mxu0 0.0
      %4116 = vmatpush1.msra.mxu0 0.0
      %4117 = vmatprep.subr.mxu0 0.0
      %4118 = vmatpush1.msra.mxu0 0.0
      %4119 = vmatprep.subr.mxu0 0.0
      %4120 = vmatpush1.msra.mxu0 0.0
      %4121 = vmatprep.subr.mxu0 0.0
      %4122 = vmatpush1.msra.mxu0 0.0
      %4123 = vmatprep.subr.mxu0 0.0
      %4124 = vmatpush1.msra.mxu0 0.0
      %4125 = vmatprep.subr.mxu0 0.0
      %4126 = vmatpush1.msra.mxu0 0.0
      %4127 = vmatprep.subr.mxu0 0.0
      %4128 = vmatpush1.msra.mxu0 0.0
      %4129 = vmatprep.subr.mxu0 0.0
      %4130 = vmatpush1.msra.mxu0 0.0
      %4131 = vmatprep.subr.mxu0 0.0
      %4132 = vmatpush1.msra.mxu0 0.0
      %4133 = vmatprep.subr.mxu0 0.0
      %4134 = vmatpush1.msra.mxu0 0.0
      %4135 = vmatprep.subr.mxu0 0.0
      %4136 = vmatpush1.msra.mxu0 0.0
      %4137 = vmatprep.subr.mxu0 0.0
      %4138 = vmatpush1.msra.mxu0 0.0
      %4139 = vmatprep.mubr.f32.mxu0 0.0
      %4140 = vmatmul.mubr.f32.gmra.mrb[0].mxu0 %v3971
      %v4141 = vpop.f32.mrb[0].mxu0
      %v4142 = vadd.f32 0.0, %v4141
      %v4143 = vpop.f32.mrb[0].mxu0
      %4144 = vmatprep.mubr.f32.mxu0 0.0
      %4145 = vmatmul.mubr.f32.gmra.mrb[0].mxu0 %v3974
      %v4146 = vpop.f32.mrb[0].mxu0
      %v4147 = vadd.f32 0.0, %v4146
      %v4148 = vpop.f32.mrb[0].mxu0
      %4149 = vmatprep.mubr.f32.mxu0 0.0
      %4150 = vmatmul.mubr.f32.gmra.mrb[0].mxu0 %v3977
      %v4151 = vpop.f32.mrb[0].mxu0
      %v4152 = vadd.f32 0.0, %v4151
      %v4153 = vpop.f32.mrb[0].mxu0
      %4154 = vmatprep.mubr.f32.mxu0 0.0
      %4155 = vmatmul.mubr.f32.gmra.mrb[0].mxu0 %v3980
      %v4156 = vpop.f32.mrb[0].mxu0
      %v4157 = vadd.f32 0.0, %v4156
      %v4158 = vpop.f32.mrb[0].mxu0
      %4159 = vdwg.mxu0
      %v4160 = vsub.f32 %v4071, %v4142
      %v4161 = vsub.f32 %v4072, %v4147
      %v4162 = vsub.f32 %v4073, %v4152
      %v4163 = vsub.f32 %v4074, %v4157
      %v4164 = vmul.f32 %v4067, 2.0
      %v4165 = vmul.f32 %v4068, 2.0
      %v4166 = vmul.f32 %v4069, 2.0
      %v4167 = vmul.f32 %v4070, 2.0
      %v4169 = vsel %vm765, %v4160, 0
      %v4172 = vsel %vm765, %v4161, 0
      %v4175 = vsel %vm765, %v4162, 0
      %v4178 = vsel %vm765, %v4163, 0
      %4180 = vmatprep.subr.mxu0 0.0
      %4181 = vmatpush1.msra.mxu0 %v4067
      %4182 = vmatprep.subr.mxu0 0.0
      %4183 = vmatpush1.msra.mxu0 %v4068
      %4184 = vmatprep.subr.mxu0 0.0
      %4185 = vmatpush1.msra.mxu0 %v4069
      %4186 = vmatprep.subr.mxu0 0.0
      %4187 = vmatpush1.msra.mxu0 %v4070
      %4188 = vmatprep.subr.mxu0 0.0
      %4189 = vmatpush1.msra.mxu0 0.0
      %4190 = vmatprep.subr.mxu0 0.0
      %4191 = vmatpush1.msra.mxu0 0.0
      %4192 = vmatprep.subr.mxu0 0.0
      %4193 = vmatpush1.msra.mxu0 0.0
      %4194 = vmatprep.subr.mxu0 0.0
      %4195 = vmatpush1.msra.mxu0 0.0
      %4196 = vmatprep.subr.mxu0 0.0
      %4197 = vmatpush1.msra.mxu0 0.0
      %4198 = vmatprep.subr.mxu0 0.0
      %4199 = vmatpush1.msra.mxu0 0.0
      %4200 = vmatprep.subr.mxu0 0.0
      %4201 = vmatpush1.msra.mxu0 0.0
      %4202 = vmatprep.subr.mxu0 0.0
      %4203 = vmatpush1.msra.mxu0 0.0
      %4204 = vmatprep.subr.mxu0 0.0
      %4205 = vmatpush1.msra.mxu0 0.0
      %4206 = vmatprep.subr.mxu0 0.0
      %4207 = vmatpush1.msra.mxu0 0.0
      %4208 = vmatprep.subr.mxu0 0.0
      %4209 = vmatpush1.msra.mxu0 0.0
      %4210 = vmatprep.subr.mxu0 0.0
      %4211 = vmatpush1.msra.mxu0 0.0
      %4212 = vmatprep.subr.mxu0 0.0
      %4213 = vmatpush1.msra.mxu0 0.0
      %4214 = vmatprep.subr.mxu0 0.0
      %4215 = vmatpush1.msra.mxu0 0.0
      %4216 = vmatprep.subr.mxu0 0.0
      %4217 = vmatpush1.msra.mxu0 0.0
      %4218 = vmatprep.subr.mxu0 0.0
      %4219 = vmatpush1.msra.mxu0 0.0
      %4220 = vmatprep.subr.mxu0 0.0
      %4221 = vmatpush1.msra.mxu0 0.0
      %4222 = vmatprep.subr.mxu0 0.0
      %4223 = vmatpush1.msra.mxu0 0.0
      %4224 = vmatprep.subr.mxu0 0.0
      %4225 = vmatpush1.msra.mxu0 0.0
      %4226 = vmatprep.subr.mxu0 0.0
      %4227 = vmatpush1.msra.mxu0 0.0
      %4228 = vmatprep.subr.mxu0 0.0
      %4229 = vmatpush1.msra.mxu0 0.0
      %4230 = vmatprep.subr.mxu0 0.0
      %4231 = vmatpush1.msra.mxu0 0.0
      %4232 = vmatprep.subr.mxu0 0.0
      %4233 = vmatpush1.msra.mxu0 0.0
      %4234 = vmatprep.subr.mxu0 0.0
      %4235 = vmatpush1.msra.mxu0 0.0
      %4236 = vmatprep.subr.mxu0 0.0
      %4237 = vmatpush1.msra.mxu0 0.0
      %4238 = vmatprep.subr.mxu0 0.0
      %4239 = vmatpush1.msra.mxu0 0.0
      %4240 = vmatprep.subr.mxu0 0.0
      %4241 = vmatpush1.msra.mxu0 0.0
      %4242 = vmatprep.subr.mxu0 0.0
      %4243 = vmatpush1.msra.mxu0 0.0
      %4244 = vmatprep.mubr.f32.mxu0 0.0
      %4245 = vmatmul.mubr.f32.gmra.mrb[0].mxu0 %v4169
      %v4246 = vpop.f32.mrb[0].mxu0
      %v4247 = vadd.f32 0.0, %v4246
      %v4248 = vpop.f32.mrb[0].mxu0
      %4249 = vmatprep.mubr.f32.mxu0 0.0
      %4250 = vmatmul.mubr.f32.gmra.mrb[0].mxu0 %v4172
      %v4251 = vpop.f32.mrb[0].mxu0
      %v4252 = vadd.f32 0.0, %v4251
      %v4253 = vpop.f32.mrb[0].mxu0
      %4254 = vmatprep.mubr.f32.mxu0 0.0
      %4255 = vmatmul.mubr.f32.gmra.mrb[0].mxu0 %v4175
      %v4256 = vpop.f32.mrb[0].mxu0
      %v4257 = vadd.f32 0.0, %v4256
      %v4258 = vpop.f32.mrb[0].mxu0
      %4259 = vmatprep.mubr.f32.mxu0 0.0
      %4260 = vmatmul.mubr.f32.gmra.mrb[0].mxu0 %v4178
      %v4261 = vpop.f32.mrb[0].mxu0
      %v4262 = vadd.f32 0.0, %v4261
      %v4263 = vpop.f32.mrb[0].mxu0
      %4264 = vdwg.mxu0
      %v4265 = vsub.f32 %v4164, %v4247
      %v4266 = vsub.f32 %v4165, %v4252
      %v4267 = vsub.f32 %v4166, %v4257
      %v4268 = vsub.f32 %v4167, %v4262
      %v4269 = vmul.f32 %v4160, 2.0
      %v4270 = vmul.f32 %v4161, 2.0
      %v4271 = vmul.f32 %v4162, 2.0
      %v4272 = vmul.f32 %v4163, 2.0
      %4273 = vmatprep.subr.mxu0 0.0
      %4274 = vmatpush1.msra.mxu0 %v4160
      %4275 = vmatprep.subr.mxu0 0.0
      %4276 = vmatpush1.msra.mxu0 %v4161
      %4277 = vmatprep.subr.mxu0 0.0
      %4278 = vmatpush1.msra.mxu0 %v4162
      %4279 = vmatprep.subr.mxu0 0.0
      %4280 = vmatpush1.msra.mxu0 %v4163
      %4281 = vmatprep.subr.mxu0 0.0
      %4282 = vmatpush1.msra.mxu0 0.0
      %4283 = vmatprep.subr.mxu0 0.0
      %4284 = vmatpush1.msra.mxu0 0.0
      %4285 = vmatprep.subr.mxu0 0.0
      %4286 = vmatpush1.msra.mxu0 0.0
      %4287 = vmatprep.subr.mxu0 0.0
      %4288 = vmatpush1.msra.mxu0 0.0
      %4289 = vmatprep.subr.mxu0 0.0
      %4290 = vmatpush1.msra.mxu0 0.0
      %4291 = vmatprep.subr.mxu0 0.0
      %4292 = vmatpush1.msra.mxu0 0.0
      %4293 = vmatprep.subr.mxu0 0.0
      %4294 = vmatpush1.msra.mxu0 0.0
      %4295 = vmatprep.subr.mxu0 0.0
      %4296 = vmatpush1.msra.mxu0 0.0
      %4297 = vmatprep.subr.mxu0 0.0
      %4298 = vmatpush1.msra.mxu0 0.0
      %4299 = vmatprep.subr.mxu0 0.0
      %4300 = vmatpush1.msra.mxu0 0.0
      %4301 = vmatprep.subr.mxu0 0.0
      %4302 = vmatpush1.msra.mxu0 0.0
      %4303 = vmatprep.subr.mxu0 0.0
      %4304 = vmatpush1.msra.mxu0 0.0
      %4305 = vmatprep.subr.mxu0 0.0
      %4306 = vmatpush1.msra.mxu0 0.0
      %4307 = vmatprep.subr.mxu0 0.0
      %4308 = vmatpush1.msra.mxu0 0.0
      %4309 = vmatprep.subr.mxu0 0.0
      %4310 = vmatpush1.msra.mxu0 0.0
      %4311 = vmatprep.subr.mxu0 0.0
      %4312 = vmatpush1.msra.mxu0 0.0
      %4313 = vmatprep.subr.mxu0 0.0
      %4314 = vmatpush1.msra.mxu0 0.0
      %4315 = vmatprep.subr.mxu0 0.0
      %4316 = vmatpush1.msra.mxu0 0.0
      %4317 = vmatprep.subr.mxu0 0.0
      %4318 = vmatpush1.msra.mxu0 0.0
      %4319 = vmatprep.subr.mxu0 0.0
      %4320 = vmatpush1.msra.mxu0 0.0
      %4321 = vmatprep.subr.mxu0 0.0
      %4322 = vmatpush1.msra.mxu0 0.0
      %4323 = vmatprep.subr.mxu0 0.0
      %4324 = vmatpush1.msra.mxu0 0.0
      %4325 = vmatprep.subr.mxu0 0.0
      %4326 = vmatpush1.msra.mxu0 0.0
      %4327 = vmatprep.subr.mxu0 0.0
      %4328 = vmatpush1.msra.mxu0 0.0
      %4329 = vmatprep.subr.mxu0 0.0
      %4330 = vmatpush1.msra.mxu0 0.0
      %4331 = vmatprep.subr.mxu0 0.0
      %4332 = vmatpush1.msra.mxu0 0.0
      %4333 = vmatprep.subr.mxu0 0.0
      %4334 = vmatpush1.msra.mxu0 0.0
      %4335 = vmatprep.subr.mxu0 0.0
      %4336 = vmatpush1.msra.mxu0 0.0
      %4337 = vmatprep.mubr.f32.mxu0 0.0
      %4338 = vmatmul.mubr.f32.gmra.mrb[0].mxu0 %v4169
      %v4339 = vpop.f32.mrb[0].mxu0
      %v4340 = vadd.f32 0.0, %v4339
      %v4341 = vpop.f32.mrb[0].mxu0
      %4342 = vmatprep.mubr.f32.mxu0 0.0
      %4343 = vmatmul.mubr.f32.gmra.mrb[0].mxu0 %v4172
      %v4344 = vpop.f32.mrb[0].mxu0
      %v4345 = vadd.f32 0.0, %v4344
      %v4346 = vpop.f32.mrb[0].mxu0
      %4347 = vmatprep.mubr.f32.mxu0 0.0
      %4348 = vmatmul.mubr.f32.gmra.mrb[0].mxu0 %v4175
      %v4349 = vpop.f32.mrb[0].mxu0
      %v4350 = vadd.f32 0.0, %v4349
      %v4351 = vpop.f32.mrb[0].mxu0
      %4352 = vmatprep.mubr.f32.mxu0 0.0
      %4353 = vmatmul.mubr.f32.gmra.mrb[0].mxu0 %v4178
      %v4354 = vpop.f32.mrb[0].mxu0
      %v4355 = vadd.f32 0.0, %v4354
      %v4356 = vpop.f32.mrb[0].mxu0
      %4357 = vdwg.mxu0
      %v4358 = vsub.f32 %v4269, %v4340
      %v4359 = vsub.f32 %v4270, %v4345
      %v4360 = vsub.f32 %v4271, %v4350
      %v4361 = vsub.f32 %v4272, %v4355
      %v4362 = vmul.f32 %v4265, 2.0
      %v4363 = vmul.f32 %v4266, 2.0
      %v4364 = vmul.f32 %v4267, 2.0
      %v4365 = vmul.f32 %v4268, 2.0
      %v4367 = vsel %vm765, %v4358, 0
      %v4370 = vsel %vm765, %v4359, 0
      %v4373 = vsel %vm765, %v4360, 0
      %v4376 = vsel %vm765, %v4361, 0
      %4378 = vmatprep.subr.mxu0 0.0
      %4379 = vmatpush1.msra.mxu0 %v4265
      %4380 = vmatprep.subr.mxu0 0.0
      %4381 = vmatpush1.msra.mxu0 %v4266
      %4382 = vmatprep.subr.mxu0 0.0
      %4383 = vmatpush1.msra.mxu0 %v4267
      %4384 = vmatprep.subr.mxu0 0.0
      %4385 = vmatpush1.msra.mxu0 %v4268
      %4386 = vmatprep.subr.mxu0 0.0
      %4387 = vmatpush1.msra.mxu0 0.0
      %4388 = vmatprep.subr.mxu0 0.0
      %4389 = vmatpush1.msra.mxu0 0.0
      %4390 = vmatprep.subr.mxu0 0.0
      %4391 = vmatpush1.msra.mxu0 0.0
      %4392 = vmatprep.subr.mxu0 0.0
      %4393 = vmatpush1.msra.mxu0 0.0
      %4394 = vmatprep.subr.mxu0 0.0
      %4395 = vmatpush1.msra.mxu0 0.0
      %4396 = vmatprep.subr.mxu0 0.0
      %4397 = vmatpush1.msra.mxu0 0.0
      %4398 = vmatprep.subr.mxu0 0.0
      %4399 = vmatpush1.msra.mxu0 0.0
      %4400 = vmatprep.subr.mxu0 0.0
      %4401 = vmatpush1.msra.mxu0 0.0
      %4402 = vmatprep.subr.mxu0 0.0
      %4403 = vmatpush1.msra.mxu0 0.0
      %4404 = vmatprep.subr.mxu0 0.0
      %4405 = vmatpush1.msra.mxu0 0.0
      %4406 = vmatprep.subr.mxu0 0.0
      %4407 = vmatpush1.msra.mxu0 0.0
      %4408 = vmatprep.subr.mxu0 0.0
      %4409 = vmatpush1.msra.mxu0 0.0
      %4410 = vmatprep.subr.mxu0 0.0
      %4411 = vmatpush1.msra.mxu0 0.0
      %4412 = vmatprep.subr.mxu0 0.0
      %4413 = vmatpush1.msra.mxu0 0.0
      %4414 = vmatprep.subr.mxu0 0.0
      %4415 = vmatpush1.msra.mxu0 0.0
      %4416 = vmatprep.subr.mxu0 0.0
      %4417 = vmatpush1.msra.mxu0 0.0
      %4418 = vmatprep.subr.mxu0 0.0
      %4419 = vmatpush1.msra.mxu0 0.0
      %4420 = vmatprep.subr.mxu0 0.0
      %4421 = vmatpush1.msra.mxu0 0.0
      %4422 = vmatprep.subr.mxu0 0.0
      %4423 = vmatpush1.msra.mxu0 0.0
      %4424 = vmatprep.subr.mxu0 0.0
      %4425 = vmatpush1.msra.mxu0 0.0
      %4426 = vmatprep.subr.mxu0 0.0
      %4427 = vmatpush1.msra.mxu0 0.0
      %4428 = vmatprep.subr.mxu0 0.0
      %4429 = vmatpush1.msra.mxu0 0.0
      %4430 = vmatprep.subr.mxu0 0.0
      %4431 = vmatpush1.msra.mxu0 0.0
      %4432 = vmatprep.subr.mxu0 0.0
      %4433 = vmatpush1.msra.mxu0 0.0
      %4434 = vmatprep.subr.mxu0 0.0
      %4435 = vmatpush1.msra.mxu0 0.0
      %4436 = vmatprep.subr.mxu0 0.0
      %4437 = vmatpush1.msra.mxu0 0.0
      %4438 = vmatprep.subr.mxu0 0.0
      %4439 = vmatpush1.msra.mxu0 0.0
      %4440 = vmatprep.subr.mxu0 0.0
      %4441 = vmatpush1.msra.mxu0 0.0
      %4442 = vmatprep.mubr.f32.mxu0 0.0
      %4443 = vmatmul.mubr.f32.gmra.mrb[0].mxu0 %v4367
      %v4444 = vpop.f32.mrb[0].mxu0
      %v4445 = vadd.f32 0.0, %v4444
      %v4446 = vpop.f32.mrb[0].mxu0
      %4447 = vmatprep.mubr.f32.mxu0 0.0
      %4448 = vmatmul.mubr.f32.gmra.mrb[0].mxu0 %v4370
      %v4449 = vpop.f32.mrb[0].mxu0
      %v4450 = vadd.f32 0.0, %v4449
      %v4451 = vpop.f32.mrb[0].mxu0
      %4452 = vmatprep.mubr.f32.mxu0 0.0
      %4453 = vmatmul.mubr.f32.gmra.mrb[0].mxu0 %v4373
      %v4454 = vpop.f32.mrb[0].mxu0
      %v4455 = vadd.f32 0.0, %v4454
      %v4456 = vpop.f32.mrb[0].mxu0
      %4457 = vmatprep.mubr.f32.mxu0 0.0
      %4458 = vmatmul.mubr.f32.gmra.mrb[0].mxu0 %v4376
      %v4459 = vpop.f32.mrb[0].mxu0
      %v4460 = vadd.f32 0.0, %v4459
      %v4461 = vpop.f32.mrb[0].mxu0
      %4462 = vdwg.mxu0
      %v4463 = vsub.f32 %v4362, %v4445
      %v4464 = vsub.f32 %v4363, %v4450
      %v4465 = vsub.f32 %v4364, %v4455
      %v4466 = vsub.f32 %v4365, %v4460
      %v4467 = vmul.f32 %v4358, 2.0
      %v4468 = vmul.f32 %v4359, 2.0
      %v4469 = vmul.f32 %v4360, 2.0
      %v4470 = vmul.f32 %v4361, 2.0
      %4471 = vmatprep.subr.mxu0 0.0
      %4472 = vmatpush1.msra.mxu0 %v4358
      %4473 = vmatprep.subr.mxu0 0.0
      %4474 = vmatpush1.msra.mxu0 %v4359
      %4475 = vmatprep.subr.mxu0 0.0
      %4476 = vmatpush1.msra.mxu0 %v4360
      %4477 = vmatprep.subr.mxu0 0.0
      %4478 = vmatpush1.msra.mxu0 %v4361
      %4479 = vmatprep.subr.mxu0 0.0
      %4480 = vmatpush1.msra.mxu0 0.0
      %4481 = vmatprep.subr.mxu0 0.0
      %4482 = vmatpush1.msra.mxu0 0.0
      %4483 = vmatprep.subr.mxu0 0.0
      %4484 = vmatpush1.msra.mxu0 0.0
      %4485 = vmatprep.subr.mxu0 0.0
      %4486 = vmatpush1.msra.mxu0 0.0
      %4487 = vmatprep.subr.mxu0 0.0
      %4488 = vmatpush1.msra.mxu0 0.0
      %4489 = vmatprep.subr.mxu0 0.0
      %4490 = vmatpush1.msra.mxu0 0.0
      %4491 = vmatprep.subr.mxu0 0.0
      %4492 = vmatpush1.msra.mxu0 0.0
      %4493 = vmatprep.subr.mxu0 0.0
      %4494 = vmatpush1.msra.mxu0 0.0
      %4495 = vmatprep.subr.mxu0 0.0
      %4496 = vmatpush1.msra.mxu0 0.0
      %4497 = vmatprep.subr.mxu0 0.0
      %4498 = vmatpush1.msra.mxu0 0.0
      %4499 = vmatprep.subr.mxu0 0.0
      %4500 = vmatpush1.msra.mxu0 0.0
      %4501 = vmatprep.subr.mxu0 0.0
      %4502 = vmatpush1.msra.mxu0 0.0
      %4503 = vmatprep.subr.mxu0 0.0
      %4504 = vmatpush1.msra.mxu0 0.0
      %4505 = vmatprep.subr.mxu0 0.0
      %4506 = vmatpush1.msra.mxu0 0.0
      %4507 = vmatprep.subr.mxu0 0.0
      %4508 = vmatpush1.msra.mxu0 0.0
      %4509 = vmatprep.subr.mxu0 0.0
      %4510 = vmatpush1.msra.mxu0 0.0
      %4511 = vmatprep.subr.mxu0 0.0
      %4512 = vmatpush1.msra.mxu0 0.0
      %4513 = vmatprep.subr.mxu0 0.0
      %4514 = vmatpush1.msra.mxu0 0.0
      %4515 = vmatprep.subr.mxu0 0.0
      %4516 = vmatpush1.msra.mxu0 0.0
      %4517 = vmatprep.subr.mxu0 0.0
      %4518 = vmatpush1.msra.mxu0 0.0
      %4519 = vmatprep.subr.mxu0 0.0
      %4520 = vmatpush1.msra.mxu0 0.0
      %4521 = vmatprep.subr.mxu0 0.0
      %4522 = vmatpush1.msra.mxu0 0.0
      %4523 = vmatprep.subr.mxu0 0.0
      %4524 = vmatpush1.msra.mxu0 0.0
      %4525 = vmatprep.subr.mxu0 0.0
      %4526 = vmatpush1.msra.mxu0 0.0
      %4527 = vmatprep.subr.mxu0 0.0
      %4528 = vmatpush1.msra.mxu0 0.0
      %4529 = vmatprep.subr.mxu0 0.0
      %4530 = vmatpush1.msra.mxu0 0.0
      %4531 = vmatprep.subr.mxu0 0.0
      %4532 = vmatpush1.msra.mxu0 0.0
      %4533 = vmatprep.subr.mxu0 0.0
      %4534 = vmatpush1.msra.mxu0 0.0
      %4535 = vmatprep.mubr.f32.mxu0 0.0
      %4536 = vmatmul.mubr.f32.gmra.mrb[0].mxu0 %v4367
      %v4537 = vpop.f32.mrb[0].mxu0
      %v4538 = vadd.f32 0.0, %v4537
      %v4539 = vpop.f32.mrb[0].mxu0
      %4540 = vmatprep.mubr.f32.mxu0 0.0
      %4541 = vmatmul.mubr.f32.gmra.mrb[0].mxu0 %v4370
      %v4542 = vpop.f32.mrb[0].mxu0
      %v4543 = vadd.f32 0.0, %v4542
      %v4544 = vpop.f32.mrb[0].mxu0
      %4545 = vmatprep.mubr.f32.mxu0 0.0
      %4546 = vmatmul.mubr.f32.gmra.mrb[0].mxu0 %v4373
      %v4547 = vpop.f32.mrb[0].mxu0
      %v4548 = vadd.f32 0.0, %v4547
      %v4549 = vpop.f32.mrb[0].mxu0
      %4550 = vmatprep.mubr.f32.mxu0 0.0
      %4551 = vmatmul.mubr.f32.gmra.mrb[0].mxu0 %v4376
      %v4552 = vpop.f32.mrb[0].mxu0
      %v4553 = vadd.f32 0.0, %v4552
      %v4554 = vpop.f32.mrb[0].mxu0
      %4555 = vdwg.mxu0
      %v4556 = vsub.f32 %v4467, %v4538
      %v4557 = vsub.f32 %v4468, %v4543
      %v4558 = vsub.f32 %v4469, %v4548
      %v4559 = vsub.f32 %v4470, %v4553
      %v4560 = vmul.f32 %v4463, 2.0
      %v4561 = vmul.f32 %v4464, 2.0
      %v4562 = vmul.f32 %v4465, 2.0
      %v4563 = vmul.f32 %v4466, 2.0
      %v4565 = vsel %vm765, %v4556, 0
      %v4568 = vsel %vm765, %v4557, 0
      %v4571 = vsel %vm765, %v4558, 0
      %v4574 = vsel %vm765, %v4559, 0
      %4576 = vmatprep.subr.mxu0 0.0
      %4577 = vmatpush1.msra.mxu0 %v4463
      %4578 = vmatprep.subr.mxu0 0.0
      %4579 = vmatpush1.msra.mxu0 %v4464
      %4580 = vmatprep.subr.mxu0 0.0
      %4581 = vmatpush1.msra.mxu0 %v4465
      %4582 = vmatprep.subr.mxu0 0.0
      %4583 = vmatpush1.msra.mxu0 %v4466
      %4584 = vmatprep.subr.mxu0 0.0
      %4585 = vmatpush1.msra.mxu0 0.0
      %4586 = vmatprep.subr.mxu0 0.0
      %4587 = vmatpush1.msra.mxu0 0.0
      %4588 = vmatprep.subr.mxu0 0.0
      %4589 = vmatpush1.msra.mxu0 0.0
      %4590 = vmatprep.subr.mxu0 0.0
      %4591 = vmatpush1.msra.mxu0 0.0
      %4592 = vmatprep.subr.mxu0 0.0
      %4593 = vmatpush1.msra.mxu0 0.0
      %4594 = vmatprep.subr.mxu0 0.0
      %4595 = vmatpush1.msra.mxu0 0.0
      %4596 = vmatprep.subr.mxu0 0.0
      %4597 = vmatpush1.msra.mxu0 0.0
      %4598 = vmatprep.subr.mxu0 0.0
      %4599 = vmatpush1.msra.mxu0 0.0
      %4600 = vmatprep.subr.mxu0 0.0
      %4601 = vmatpush1.msra.mxu0 0.0
      %4602 = vmatprep.subr.mxu0 0.0
      %4603 = vmatpush1.msra.mxu0 0.0
      %4604 = vmatprep.subr.mxu0 0.0
      %4605 = vmatpush1.msra.mxu0 0.0
      %4606 = vmatprep.subr.mxu0 0.0
      %4607 = vmatpush1.msra.mxu0 0.0
      %4608 = vmatprep.subr.mxu0 0.0
      %4609 = vmatpush1.msra.mxu0 0.0
      %4610 = vmatprep.subr.mxu0 0.0
      %4611 = vmatpush1.msra.mxu0 0.0
      %4612 = vmatprep.subr.mxu0 0.0
      %4613 = vmatpush1.msra.mxu0 0.0
      %4614 = vmatprep.subr.mxu0 0.0
      %4615 = vmatpush1.msra.mxu0 0.0
      %4616 = vmatprep.subr.mxu0 0.0
      %4617 = vmatpush1.msra.mxu0 0.0
      %4618 = vmatprep.subr.mxu0 0.0
      %4619 = vmatpush1.msra.mxu0 0.0
      %4620 = vmatprep.subr.mxu0 0.0
      %4621 = vmatpush1.msra.mxu0 0.0
      %4622 = vmatprep.subr.mxu0 0.0
      %4623 = vmatpush1.msra.mxu0 0.0
      %4624 = vmatprep.subr.mxu0 0.0
      %4625 = vmatpush1.msra.mxu0 0.0
      %4626 = vmatprep.subr.mxu0 0.0
      %4627 = vmatpush1.msra.mxu0 0.0
      %4628 = vmatprep.subr.mxu0 0.0
      %4629 = vmatpush1.msra.mxu0 0.0
      %4630 = vmatprep.subr.mxu0 0.0
      %4631 = vmatpush1.msra.mxu0 0.0
      %4632 = vmatprep.subr.mxu0 0.0
      %4633 = vmatpush1.msra.mxu0 0.0
      %4634 = vmatprep.subr.mxu0 0.0
      %4635 = vmatpush1.msra.mxu0 0.0
      %4636 = vmatprep.subr.mxu0 0.0
      %4637 = vmatpush1.msra.mxu0 0.0
      %4638 = vmatprep.subr.mxu0 0.0
      %4639 = vmatpush1.msra.mxu0 0.0
      %4640 = vmatprep.mubr.f32.mxu0 0.0
      %4641 = vmatmul.mubr.f32.gmra.mrb[0].mxu0 %v4565
      %v4642 = vpop.f32.mrb[0].mxu0
      %v4643 = vadd.f32 0.0, %v4642
      %v4644 = vpop.f32.mrb[0].mxu0
      %4645 = vmatprep.mubr.f32.mxu0 0.0
      %4646 = vmatmul.mubr.f32.gmra.mrb[0].mxu0 %v4568
      %v4647 = vpop.f32.mrb[0].mxu0
      %v4648 = vadd.f32 0.0, %v4647
      %v4649 = vpop.f32.mrb[0].mxu0
      %4650 = vmatprep.mubr.f32.mxu0 0.0
      %4651 = vmatmul.mubr.f32.gmra.mrb[0].mxu0 %v4571
      %v4652 = vpop.f32.mrb[0].mxu0
      %v4653 = vadd.f32 0.0, %v4652
      %v4654 = vpop.f32.mrb[0].mxu0
      %4655 = vmatprep.mubr.f32.mxu0 0.0
      %4656 = vmatmul.mubr.f32.gmra.mrb[0].mxu0 %v4574
      %v4657 = vpop.f32.mrb[0].mxu0
      %v4658 = vadd.f32 0.0, %v4657
      %v4659 = vpop.f32.mrb[0].mxu0
      %4660 = vdwg.mxu0
      %v4661 = vsub.f32 %v4560, %v4643
      %v4662 = vsub.f32 %v4561, %v4648
      %v4663 = vsub.f32 %v4562, %v4653
      %v4664 = vsub.f32 %v4563, %v4658
      %v4665 = vmul.f32 %v4556, 2.0
      %v4666 = vmul.f32 %v4557, 2.0
      %v4667 = vmul.f32 %v4558, 2.0
      %v4668 = vmul.f32 %v4559, 2.0
      %4669 = vmatprep.subr.mxu0 0.0
      %4670 = vmatpush1.msra.mxu0 %v4556
      %4671 = vmatprep.subr.mxu0 0.0
      %4672 = vmatpush1.msra.mxu0 %v4557
      %4673 = vmatprep.subr.mxu0 0.0
      %4674 = vmatpush1.msra.mxu0 %v4558
      %4675 = vmatprep.subr.mxu0 0.0
      %4676 = vmatpush1.msra.mxu0 %v4559
      %4677 = vmatprep.subr.mxu0 0.0
      %4678 = vmatpush1.msra.mxu0 0.0
      %4679 = vmatprep.subr.mxu0 0.0
      %4680 = vmatpush1.msra.mxu0 0.0
      %4681 = vmatprep.subr.mxu0 0.0
      %4682 = vmatpush1.msra.mxu0 0.0
      %4683 = vmatprep.subr.mxu0 0.0
      %4684 = vmatpush1.msra.mxu0 0.0
      %4685 = vmatprep.subr.mxu0 0.0
      %4686 = vmatpush1.msra.mxu0 0.0
      %4687 = vmatprep.subr.mxu0 0.0
      %4688 = vmatpush1.msra.mxu0 0.0
      %4689 = vmatprep.subr.mxu0 0.0
      %4690 = vmatpush1.msra.mxu0 0.0
      %4691 = vmatprep.subr.mxu0 0.0
      %4692 = vmatpush1.msra.mxu0 0.0
      %4693 = vmatprep.subr.mxu0 0.0
      %4694 = vmatpush1.msra.mxu0 0.0
      %4695 = vmatprep.subr.mxu0 0.0
      %4696 = vmatpush1.msra.mxu0 0.0
      %4697 = vmatprep.subr.mxu0 0.0
      %4698 = vmatpush1.msra.mxu0 0.0
      %4699 = vmatprep.subr.mxu0 0.0
      %4700 = vmatpush1.msra.mxu0 0.0
      %4701 = vmatprep.subr.mxu0 0.0
      %4702 = vmatpush1.msra.mxu0 0.0
      %4703 = vmatprep.subr.mxu0 0.0
      %4704 = vmatpush1.msra.mxu0 0.0
      %4705 = vmatprep.subr.mxu0 0.0
      %4706 = vmatpush1.msra.mxu0 0.0
      %4707 = vmatprep.subr.mxu0 0.0
      %4708 = vmatpush1.msra.mxu0 0.0
      %4709 = vmatprep.subr.mxu0 0.0
      %4710 = vmatpush1.msra.mxu0 0.0
      %4711 = vmatprep.subr.mxu0 0.0
      %4712 = vmatpush1.msra.mxu0 0.0
      %4713 = vmatprep.subr.mxu0 0.0
      %4714 = vmatpush1.msra.mxu0 0.0
      %4715 = vmatprep.subr.mxu0 0.0
      %4716 = vmatpush1.msra.mxu0 0.0
      %4717 = vmatprep.subr.mxu0 0.0
      %4718 = vmatpush1.msra.mxu0 0.0
      %4719 = vmatprep.subr.mxu0 0.0
      %4720 = vmatpush1.msra.mxu0 0.0
      %4721 = vmatprep.subr.mxu0 0.0
      %4722 = vmatpush1.msra.mxu0 0.0
      %4723 = vmatprep.subr.mxu0 0.0
      %4724 = vmatpush1.msra.mxu0 0.0
      %4725 = vmatprep.subr.mxu0 0.0
      %4726 = vmatpush1.msra.mxu0 0.0
      %4727 = vmatprep.subr.mxu0 0.0
      %4728 = vmatpush1.msra.mxu0 0.0
      %4729 = vmatprep.subr.mxu0 0.0
      %4730 = vmatpush1.msra.mxu0 0.0
      %4731 = vmatprep.subr.mxu0 0.0
      %4732 = vmatpush1.msra.mxu0 0.0
      %4733 = vmatprep.mubr.f32.mxu0 0.0
      %4734 = vmatmul.mubr.f32.gmra.mrb[0].mxu0 %v4565
      %v4735 = vpop.f32.mrb[0].mxu0
      %v4736 = vadd.f32 0.0, %v4735
      %v4737 = vpop.f32.mrb[0].mxu0
      %4738 = vmatprep.mubr.f32.mxu0 0.0
      %4739 = vmatmul.mubr.f32.gmra.mrb[0].mxu0 %v4568
      %v4740 = vpop.f32.mrb[0].mxu0
      %v4741 = vadd.f32 0.0, %v4740
      %v4742 = vpop.f32.mrb[0].mxu0
      %4743 = vmatprep.mubr.f32.mxu0 0.0
      %4744 = vmatmul.mubr.f32.gmra.mrb[0].mxu0 %v4571
      %v4745 = vpop.f32.mrb[0].mxu0
      %v4746 = vadd.f32 0.0, %v4745
      %v4747 = vpop.f32.mrb[0].mxu0
      %4748 = vmatprep.mubr.f32.mxu0 0.0
      %4749 = vmatmul.mubr.f32.gmra.mrb[0].mxu0 %v4574
      %v4750 = vpop.f32.mrb[0].mxu0
      %v4751 = vadd.f32 0.0, %v4750
      %v4752 = vpop.f32.mrb[0].mxu0
      %4753 = vdwg.mxu0
      %v4754 = vsub.f32 %v4665, %v4736
      %v4755 = vsub.f32 %v4666, %v4741
      %v4756 = vsub.f32 %v4667, %v4746
      %v4757 = vsub.f32 %v4668, %v4751
      %v4758 = vmul.f32 %v4661, 2.0
      %v4759 = vmul.f32 %v4662, 2.0
      %v4760 = vmul.f32 %v4663, 2.0
      %v4761 = vmul.f32 %v4664, 2.0
      %v4763 = vsel %vm765, %v4754, 0
      %v4766 = vsel %vm765, %v4755, 0
      %v4769 = vsel %vm765, %v4756, 0
      %v4772 = vsel %vm765, %v4757, 0
      %4774 = vmatprep.subr.mxu0 0.0
      %4775 = vmatpush1.msra.mxu0 %v4661
      %4776 = vmatprep.subr.mxu0 0.0
      %4777 = vmatpush1.msra.mxu0 %v4662
      %4778 = vmatprep.subr.mxu0 0.0
      %4779 = vmatpush1.msra.mxu0 %v4663
      %4780 = vmatprep.subr.mxu0 0.0
      %4781 = vmatpush1.msra.mxu0 %v4664
      %4782 = vmatprep.subr.mxu0 0.0
      %4783 = vmatpush1.msra.mxu0 0.0
      %4784 = vmatprep.subr.mxu0 0.0
      %4785 = vmatpush1.msra.mxu0 0.0
      %4786 = vmatprep.subr.mxu0 0.0
      %4787 = vmatpush1.msra.mxu0 0.0
      %4788 = vmatprep.subr.mxu0 0.0
      %4789 = vmatpush1.msra.mxu0 0.0
      %4790 = vmatprep.subr.mxu0 0.0
      %4791 = vmatpush1.msra.mxu0 0.0
      %4792 = vmatprep.subr.mxu0 0.0
      %4793 = vmatpush1.msra.mxu0 0.0
      %4794 = vmatprep.subr.mxu0 0.0
      %4795 = vmatpush1.msra.mxu0 0.0
      %4796 = vmatprep.subr.mxu0 0.0
      %4797 = vmatpush1.msra.mxu0 0.0
      %4798 = vmatprep.subr.mxu0 0.0
      %4799 = vmatpush1.msra.mxu0 0.0
      %4800 = vmatprep.subr.mxu0 0.0
      %4801 = vmatpush1.msra.mxu0 0.0
      %4802 = vmatprep.subr.mxu0 0.0
      %4803 = vmatpush1.msra.mxu0 0.0
      %4804 = vmatprep.subr.mxu0 0.0
      %4805 = vmatpush1.msra.mxu0 0.0
      %4806 = vmatprep.subr.mxu0 0.0
      %4807 = vmatpush1.msra.mxu0 0.0
      %4808 = vmatprep.subr.mxu0 0.0
      %4809 = vmatpush1.msra.mxu0 0.0
      %4810 = vmatprep.subr.mxu0 0.0
      %4811 = vmatpush1.msra.mxu0 0.0
      %4812 = vmatprep.subr.mxu0 0.0
      %4813 = vmatpush1.msra.mxu0 0.0
      %4814 = vmatprep.subr.mxu0 0.0
      %4815 = vmatpush1.msra.mxu0 0.0
      %4816 = vmatprep.subr.mxu0 0.0
      %4817 = vmatpush1.msra.mxu0 0.0
      %4818 = vmatprep.subr.mxu0 0.0
      %4819 = vmatpush1.msra.mxu0 0.0
      %4820 = vmatprep.subr.mxu0 0.0
      %4821 = vmatpush1.msra.mxu0 0.0
      %4822 = vmatprep.subr.mxu0 0.0
      %4823 = vmatpush1.msra.mxu0 0.0
      %4824 = vmatprep.subr.mxu0 0.0
      %4825 = vmatpush1.msra.mxu0 0.0
      %4826 = vmatprep.subr.mxu0 0.0
      %4827 = vmatpush1.msra.mxu0 0.0
      %4828 = vmatprep.subr.mxu0 0.0
      %4829 = vmatpush1.msra.mxu0 0.0
      %4830 = vmatprep.subr.mxu0 0.0
      %4831 = vmatpush1.msra.mxu0 0.0
      %4832 = vmatprep.subr.mxu0 0.0
      %4833 = vmatpush1.msra.mxu0 0.0
      %4834 = vmatprep.subr.mxu0 0.0
      %4835 = vmatpush1.msra.mxu0 0.0
      %4836 = vmatprep.subr.mxu0 0.0
      %4837 = vmatpush1.msra.mxu0 0.0
      %4838 = vmatprep.mubr.f32.mxu0 0.0
      %4839 = vmatmul.mubr.f32.gmra.mrb[0].mxu0 %v4763
      %v4840 = vpop.f32.mrb[0].mxu0
      %v4841 = vadd.f32 0.0, %v4840
      %v4842 = vpop.f32.mrb[0].mxu0
      %4843 = vmatprep.mubr.f32.mxu0 0.0
      %4844 = vmatmul.mubr.f32.gmra.mrb[0].mxu0 %v4766
      %v4845 = vpop.f32.mrb[0].mxu0
      %v4846 = vadd.f32 0.0, %v4845
      %v4847 = vpop.f32.mrb[0].mxu0
      %4848 = vmatprep.mubr.f32.mxu0 0.0
      %4849 = vmatmul.mubr.f32.gmra.mrb[0].mxu0 %v4769
      %v4850 = vpop.f32.mrb[0].mxu0
      %v4851 = vadd.f32 0.0, %v4850
      %v4852 = vpop.f32.mrb[0].mxu0
      %4853 = vmatprep.mubr.f32.mxu0 0.0
      %4854 = vmatmul.mubr.f32.gmra.mrb[0].mxu0 %v4772
      %v4855 = vpop.f32.mrb[0].mxu0
      %v4856 = vadd.f32 0.0, %v4855
      %v4857 = vpop.f32.mrb[0].mxu0
      %4858 = vdwg.mxu0
      %v4859 = vsub.f32 %v4758, %v4841
      %v4860 = vsub.f32 %v4759, %v4846
      %v4861 = vsub.f32 %v4760, %v4851
      %v4862 = vsub.f32 %v4761, %v4856
      %v4863 = vmul.f32 %v4754, 2.0
      %v4864 = vmul.f32 %v4755, 2.0
      %v4865 = vmul.f32 %v4756, 2.0
      %v4866 = vmul.f32 %v4757, 2.0
      %4867 = vmatprep.subr.mxu0 0.0
      %4868 = vmatpush1.msra.mxu0 %v4754
      %4869 = vmatprep.subr.mxu0 0.0
      %4870 = vmatpush1.msra.mxu0 %v4755
      %4871 = vmatprep.subr.mxu0 0.0
      %4872 = vmatpush1.msra.mxu0 %v4756
      %4873 = vmatprep.subr.mxu0 0.0
      %4874 = vmatpush1.msra.mxu0 %v4757
      %4875 = vmatprep.subr.mxu0 0.0
      %4876 = vmatpush1.msra.mxu0 0.0
      %4877 = vmatprep.subr.mxu0 0.0
      %4878 = vmatpush1.msra.mxu0 0.0
      %4879 = vmatprep.subr.mxu0 0.0
      %4880 = vmatpush1.msra.mxu0 0.0
      %4881 = vmatprep.subr.mxu0 0.0
      %4882 = vmatpush1.msra.mxu0 0.0
      %4883 = vmatprep.subr.mxu0 0.0
      %4884 = vmatpush1.msra.mxu0 0.0
      %4885 = vmatprep.subr.mxu0 0.0
      %4886 = vmatpush1.msra.mxu0 0.0
      %4887 = vmatprep.subr.mxu0 0.0
      %4888 = vmatpush1.msra.mxu0 0.0
      %4889 = vmatprep.subr.mxu0 0.0
      %4890 = vmatpush1.msra.mxu0 0.0
      %4891 = vmatprep.subr.mxu0 0.0
      %4892 = vmatpush1.msra.mxu0 0.0
      %4893 = vmatprep.subr.mxu0 0.0
      %4894 = vmatpush1.msra.mxu0 0.0
      %4895 = vmatprep.subr.mxu0 0.0
      %4896 = vmatpush1.msra.mxu0 0.0
      %4897 = vmatprep.subr.mxu0 0.0
      %4898 = vmatpush1.msra.mxu0 0.0
      %4899 = vmatprep.subr.mxu0 0.0
      %4900 = vmatpush1.msra.mxu0 0.0
      %4901 = vmatprep.subr.mxu0 0.0
      %4902 = vmatpush1.msra.mxu0 0.0
      %4903 = vmatprep.subr.mxu0 0.0
      %4904 = vmatpush1.msra.mxu0 0.0
      %4905 = vmatprep.subr.mxu0 0.0
      %4906 = vmatpush1.msra.mxu0 0.0
      %4907 = vmatprep.subr.mxu0 0.0
      %4908 = vmatpush1.msra.mxu0 0.0
      %4909 = vmatprep.subr.mxu0 0.0
      %4910 = vmatpush1.msra.mxu0 0.0
      %4911 = vmatprep.subr.mxu0 0.0
      %4912 = vmatpush1.msra.mxu0 0.0
      %4913 = vmatprep.subr.mxu0 0.0
      %4914 = vmatpush1.msra.mxu0 0.0
      %4915 = vmatprep.subr.mxu0 0.0
      %4916 = vmatpush1.msra.mxu0 0.0
      %4917 = vmatprep.subr.mxu0 0.0
      %4918 = vmatpush1.msra.mxu0 0.0
      %4919 = vmatprep.subr.mxu0 0.0
      %4920 = vmatpush1.msra.mxu0 0.0
      %4921 = vmatprep.subr.mxu0 0.0
      %4922 = vmatpush1.msra.mxu0 0.0
      %4923 = vmatprep.subr.mxu0 0.0
      %4924 = vmatpush1.msra.mxu0 0.0
      %4925 = vmatprep.subr.mxu0 0.0
      %4926 = vmatpush1.msra.mxu0 0.0
      %4927 = vmatprep.subr.mxu0 0.0
      %4928 = vmatpush1.msra.mxu0 0.0
      %4929 = vmatprep.subr.mxu0 0.0
      %4930 = vmatpush1.msra.mxu0 0.0
      %4931 = vmatprep.mubr.f32.mxu0 0.0
      %4932 = vmatmul.mubr.f32.gmra.mrb[0].mxu0 %v4763
      %v4933 = vpop.f32.mrb[0].mxu0
      %v4934 = vadd.f32 0.0, %v4933
      %v4935 = vpop.f32.mrb[0].mxu0
      %4936 = vmatprep.mubr.f32.mxu0 0.0
      %4937 = vmatmul.mubr.f32.gmra.mrb[0].mxu0 %v4766
      %v4938 = vpop.f32.mrb[0].mxu0
      %v4939 = vadd.f32 0.0, %v4938
      %v4940 = vpop.f32.mrb[0].mxu0
      %4941 = vmatprep.mubr.f32.mxu0 0.0
      %4942 = vmatmul.mubr.f32.gmra.mrb[0].mxu0 %v4769
      %v4943 = vpop.f32.mrb[0].mxu0
      %v4944 = vadd.f32 0.0, %v4943
      %v4945 = vpop.f32.mrb[0].mxu0
      %4946 = vmatprep.mubr.f32.mxu0 0.0
      %4947 = vmatmul.mubr.f32.gmra.mrb[0].mxu0 %v4772
      %v4948 = vpop.f32.mrb[0].mxu0
      %v4949 = vadd.f32 0.0, %v4948
      %v4950 = vpop.f32.mrb[0].mxu0
      %4951 = vdwg.mxu0
      %v4952 = vsub.f32 %v4863, %v4934
      %v4953 = vsub.f32 %v4864, %v4939
      %v4954 = vsub.f32 %v4865, %v4944
      %v4955 = vsub.f32 %v4866, %v4949
      %v4956 = vmul.f32 %v4859, 2.0
      %v4957 = vmul.f32 %v4860, 2.0
      %v4958 = vmul.f32 %v4861, 2.0
      %v4959 = vmul.f32 %v4862, 2.0
      %v4961 = vsel %vm765, %v4952, 0
      %v4964 = vsel %vm765, %v4953, 0
      %v4967 = vsel %vm765, %v4954, 0
      %v4970 = vsel %vm765, %v4955, 0
      %4972 = vmatprep.subr.mxu0 0.0
      %4973 = vmatpush1.msra.mxu0 %v4859
      %4974 = vmatprep.subr.mxu0 0.0
      %4975 = vmatpush1.msra.mxu0 %v4860
      %4976 = vmatprep.subr.mxu0 0.0
      %4977 = vmatpush1.msra.mxu0 %v4861
      %4978 = vmatprep.subr.mxu0 0.0
      %4979 = vmatpush1.msra.mxu0 %v4862
      %4980 = vmatprep.subr.mxu0 0.0
      %4981 = vmatpush1.msra.mxu0 0.0
      %4982 = vmatprep.subr.mxu0 0.0
      %4983 = vmatpush1.msra.mxu0 0.0
      %4984 = vmatprep.subr.mxu0 0.0
      %4985 = vmatpush1.msra.mxu0 0.0
      %4986 = vmatprep.subr.mxu0 0.0
      %4987 = vmatpush1.msra.mxu0 0.0
      %4988 = vmatprep.subr.mxu0 0.0
      %4989 = vmatpush1.msra.mxu0 0.0
      %4990 = vmatprep.subr.mxu0 0.0
      %4991 = vmatpush1.msra.mxu0 0.0
      %4992 = vmatprep.subr.mxu0 0.0
      %4993 = vmatpush1.msra.mxu0 0.0
      %4994 = vmatprep.subr.mxu0 0.0
      %4995 = vmatpush1.msra.mxu0 0.0
      %4996 = vmatprep.subr.mxu0 0.0
      %4997 = vmatpush1.msra.mxu0 0.0
      %4998 = vmatprep.subr.mxu0 0.0
      %4999 = vmatpush1.msra.mxu0 0.0
      %5000 = vmatprep.subr.mxu0 0.0
      %5001 = vmatpush1.msra.mxu0 0.0
      %5002 = vmatprep.subr.mxu0 0.0
      %5003 = vmatpush1.msra.mxu0 0.0
      %5004 = vmatprep.subr.mxu0 0.0
      %5005 = vmatpush1.msra.mxu0 0.0
      %5006 = vmatprep.subr.mxu0 0.0
      %5007 = vmatpush1.msra.mxu0 0.0
      %5008 = vmatprep.subr.mxu0 0.0
      %5009 = vmatpush1.msra.mxu0 0.0
      %5010 = vmatprep.subr.mxu0 0.0
      %5011 = vmatpush1.msra.mxu0 0.0
      %5012 = vmatprep.subr.mxu0 0.0
      %5013 = vmatpush1.msra.mxu0 0.0
      %5014 = vmatprep.subr.mxu0 0.0
      %5015 = vmatpush1.msra.mxu0 0.0
      %5016 = vmatprep.subr.mxu0 0.0
      %5017 = vmatpush1.msra.mxu0 0.0
      %5018 = vmatprep.subr.mxu0 0.0
      %5019 = vmatpush1.msra.mxu0 0.0
      %5020 = vmatprep.subr.mxu0 0.0
      %5021 = vmatpush1.msra.mxu0 0.0
      %5022 = vmatprep.subr.mxu0 0.0
      %5023 = vmatpush1.msra.mxu0 0.0
      %5024 = vmatprep.subr.mxu0 0.0
      %5025 = vmatpush1.msra.mxu0 0.0
      %5026 = vmatprep.subr.mxu0 0.0
      %5027 = vmatpush1.msra.mxu0 0.0
      %5028 = vmatprep.subr.mxu0 0.0
      %5029 = vmatpush1.msra.mxu0 0.0
      %5030 = vmatprep.subr.mxu0 0.0
      %5031 = vmatpush1.msra.mxu0 0.0
      %5032 = vmatprep.subr.mxu0 0.0
      %5033 = vmatpush1.msra.mxu0 0.0
      %5034 = vmatprep.subr.mxu0 0.0
      %5035 = vmatpush1.msra.mxu0 0.0
      %5036 = vmatprep.mubr.f32.mxu0 0.0
      %5037 = vmatmul.mubr.f32.gmra.mrb[0].mxu0 %v4961
      %v5038 = vpop.f32.mrb[0].mxu0
      %v5039 = vadd.f32 0.0, %v5038
      %v5040 = vpop.f32.mrb[0].mxu0
      %5041 = vmatprep.mubr.f32.mxu0 0.0
      %5042 = vmatmul.mubr.f32.gmra.mrb[0].mxu0 %v4964
      %v5043 = vpop.f32.mrb[0].mxu0
      %v5044 = vadd.f32 0.0, %v5043
      %v5045 = vpop.f32.mrb[0].mxu0
      %5046 = vmatprep.mubr.f32.mxu0 0.0
      %5047 = vmatmul.mubr.f32.gmra.mrb[0].mxu0 %v4967
      %v5048 = vpop.f32.mrb[0].mxu0
      %v5049 = vadd.f32 0.0, %v5048
      %v5050 = vpop.f32.mrb[0].mxu0
      %5051 = vmatprep.mubr.f32.mxu0 0.0
      %5052 = vmatmul.mubr.f32.gmra.mrb[0].mxu0 %v4970
      %v5053 = vpop.f32.mrb[0].mxu0
      %v5054 = vadd.f32 0.0, %v5053
      %v5055 = vpop.f32.mrb[0].mxu0
      %5056 = vdwg.mxu0
      %v5057 = vsub.f32 %v4956, %v5039
      %v5058 = vsub.f32 %v4957, %v5044
      %v5059 = vsub.f32 %v4958, %v5049
      %v5060 = vsub.f32 %v4959, %v5054
      %v5061 = vmul.f32 %v4952, 2.0
      %v5062 = vmul.f32 %v4953, 2.0
      %v5063 = vmul.f32 %v4954, 2.0
      %v5064 = vmul.f32 %v4955, 2.0
      %5065 = vmatprep.subr.mxu0 0.0
      %5066 = vmatpush1.msra.mxu0 %v4952
      %5067 = vmatprep.subr.mxu0 0.0
      %5068 = vmatpush1.msra.mxu0 %v4953
      %5069 = vmatprep.subr.mxu0 0.0
      %5070 = vmatpush1.msra.mxu0 %v4954
      %5071 = vmatprep.subr.mxu0 0.0
      %5072 = vmatpush1.msra.mxu0 %v4955
      %5073 = vmatprep.subr.mxu0 0.0
      %5074 = vmatpush1.msra.mxu0 0.0
      %5075 = vmatprep.subr.mxu0 0.0
      %5076 = vmatpush1.msra.mxu0 0.0
      %5077 = vmatprep.subr.mxu0 0.0
      %5078 = vmatpush1.msra.mxu0 0.0
      %5079 = vmatprep.subr.mxu0 0.0
      %5080 = vmatpush1.msra.mxu0 0.0
      %5081 = vmatprep.subr.mxu0 0.0
      %5082 = vmatpush1.msra.mxu0 0.0
      %5083 = vmatprep.subr.mxu0 0.0
      %5084 = vmatpush1.msra.mxu0 0.0
      %5085 = vmatprep.subr.mxu0 0.0
      %5086 = vmatpush1.msra.mxu0 0.0
      %5087 = vmatprep.subr.mxu0 0.0
      %5088 = vmatpush1.msra.mxu0 0.0
      %5089 = vmatprep.subr.mxu0 0.0
      %5090 = vmatpush1.msra.mxu0 0.0
      %5091 = vmatprep.subr.mxu0 0.0
      %5092 = vmatpush1.msra.mxu0 0.0
      %5093 = vmatprep.subr.mxu0 0.0
      %5094 = vmatpush1.msra.mxu0 0.0
      %5095 = vmatprep.subr.mxu0 0.0
      %5096 = vmatpush1.msra.mxu0 0.0
      %5097 = vmatprep.subr.mxu0 0.0
      %5098 = vmatpush1.msra.mxu0 0.0
      %5099 = vmatprep.subr.mxu0 0.0
      %5100 = vmatpush1.msra.mxu0 0.0
      %5101 = vmatprep.subr.mxu0 0.0
      %5102 = vmatpush1.msra.mxu0 0.0
      %5103 = vmatprep.subr.mxu0 0.0
      %5104 = vmatpush1.msra.mxu0 0.0
      %5105 = vmatprep.subr.mxu0 0.0
      %5106 = vmatpush1.msra.mxu0 0.0
      %5107 = vmatprep.subr.mxu0 0.0
      %5108 = vmatpush1.msra.mxu0 0.0
      %5109 = vmatprep.subr.mxu0 0.0
      %5110 = vmatpush1.msra.mxu0 0.0
      %5111 = vmatprep.subr.mxu0 0.0
      %5112 = vmatpush1.msra.mxu0 0.0
      %5113 = vmatprep.subr.mxu0 0.0
      %5114 = vmatpush1.msra.mxu0 0.0
      %5115 = vmatprep.subr.mxu0 0.0
      %5116 = vmatpush1.msra.mxu0 0.0
      %5117 = vmatprep.subr.mxu0 0.0
      %5118 = vmatpush1.msra.mxu0 0.0
      %5119 = vmatprep.subr.mxu0 0.0
      %5120 = vmatpush1.msra.mxu0 0.0
      %5121 = vmatprep.subr.mxu0 0.0
      %5122 = vmatpush1.msra.mxu0 0.0
      %5123 = vmatprep.subr.mxu0 0.0
      %5124 = vmatpush1.msra.mxu0 0.0
      %5125 = vmatprep.subr.mxu0 0.0
      %5126 = vmatpush1.msra.mxu0 0.0
      %5127 = vmatprep.subr.mxu0 0.0
      %5128 = vmatpush1.msra.mxu0 0.0
      %5129 = vmatprep.mubr.f32.mxu0 0.0
      %5130 = vmatmul.mubr.f32.gmra.mrb[0].mxu0 %v4961
      %v5131 = vpop.f32.mrb[0].mxu0
      %v5132 = vadd.f32 0.0, %v5131
      %v5133 = vpop.f32.mrb[0].mxu0
      %5134 = vmatprep.mubr.f32.mxu0 0.0
      %5135 = vmatmul.mubr.f32.gmra.mrb[0].mxu0 %v4964
      %v5136 = vpop.f32.mrb[0].mxu0
      %v5137 = vadd.f32 0.0, %v5136
      %v5138 = vpop.f32.mrb[0].mxu0
      %5139 = vmatprep.mubr.f32.mxu0 0.0
      %5140 = vmatmul.mubr.f32.gmra.mrb[0].mxu0 %v4967
      %v5141 = vpop.f32.mrb[0].mxu0
      %v5142 = vadd.f32 0.0, %v5141
      %v5143 = vpop.f32.mrb[0].mxu0
      %5144 = vmatprep.mubr.f32.mxu0 0.0
      %5145 = vmatmul.mubr.f32.gmra.mrb[0].mxu0 %v4970
      %v5146 = vpop.f32.mrb[0].mxu0
      %v5147 = vadd.f32 0.0, %v5146
      %v5148 = vpop.f32.mrb[0].mxu0
      %5149 = vdwg.mxu0
      %v5150 = vsub.f32 %v5061, %v5132
      %v5151 = vsub.f32 %v5062, %v5137
      %v5152 = vsub.f32 %v5063, %v5142
      %v5153 = vsub.f32 %v5064, %v5147
      %v5154 = vmul.f32 %v5057, 2.0
      %v5155 = vmul.f32 %v5058, 2.0
      %v5156 = vmul.f32 %v5059, 2.0
      %v5157 = vmul.f32 %v5060, 2.0
      %v5159 = vsel %vm765, %v5150, 0
      %v5162 = vsel %vm765, %v5151, 0
      %v5165 = vsel %vm765, %v5152, 0
      %v5168 = vsel %vm765, %v5153, 0
      %5170 = vmatprep.subr.mxu0 0.0
      %5171 = vmatpush1.msra.mxu0 %v5057
      %5172 = vmatprep.subr.mxu0 0.0
      %5173 = vmatpush1.msra.mxu0 %v5058
      %5174 = vmatprep.subr.mxu0 0.0
      %5175 = vmatpush1.msra.mxu0 %v5059
      %5176 = vmatprep.subr.mxu0 0.0
      %5177 = vmatpush1.msra.mxu0 %v5060
      %5178 = vmatprep.subr.mxu0 0.0
      %5179 = vmatpush1.msra.mxu0 0.0
      %5180 = vmatprep.subr.mxu0 0.0
      %5181 = vmatpush1.msra.mxu0 0.0
      %5182 = vmatprep.subr.mxu0 0.0
      %5183 = vmatpush1.msra.mxu0 0.0
      %5184 = vmatprep.subr.mxu0 0.0
      %5185 = vmatpush1.msra.mxu0 0.0
      %5186 = vmatprep.subr.mxu0 0.0
      %5187 = vmatpush1.msra.mxu0 0.0
      %5188 = vmatprep.subr.mxu0 0.0
      %5189 = vmatpush1.msra.mxu0 0.0
      %5190 = vmatprep.subr.mxu0 0.0
      %5191 = vmatpush1.msra.mxu0 0.0
      %5192 = vmatprep.subr.mxu0 0.0
      %5193 = vmatpush1.msra.mxu0 0.0
      %5194 = vmatprep.subr.mxu0 0.0
      %5195 = vmatpush1.msra.mxu0 0.0
      %5196 = vmatprep.subr.mxu0 0.0
      %5197 = vmatpush1.msra.mxu0 0.0
      %5198 = vmatprep.subr.mxu0 0.0
      %5199 = vmatpush1.msra.mxu0 0.0
      %5200 = vmatprep.subr.mxu0 0.0
      %5201 = vmatpush1.msra.mxu0 0.0
      %5202 = vmatprep.subr.mxu0 0.0
      %5203 = vmatpush1.msra.mxu0 0.0
      %5204 = vmatprep.subr.mxu0 0.0
      %5205 = vmatpush1.msra.mxu0 0.0
      %5206 = vmatprep.subr.mxu0 0.0
      %5207 = vmatpush1.msra.mxu0 0.0
      %5208 = vmatprep.subr.mxu0 0.0
      %5209 = vmatpush1.msra.mxu0 0.0
      %5210 = vmatprep.subr.mxu0 0.0
      %5211 = vmatpush1.msra.mxu0 0.0
      %5212 = vmatprep.subr.mxu0 0.0
      %5213 = vmatpush1.msra.mxu0 0.0
      %5214 = vmatprep.subr.mxu0 0.0
      %5215 = vmatpush1.msra.mxu0 0.0
      %5216 = vmatprep.subr.mxu0 0.0
      %5217 = vmatpush1.msra.mxu0 0.0
      %5218 = vmatprep.subr.mxu0 0.0
      %5219 = vmatpush1.msra.mxu0 0.0
      %5220 = vmatprep.subr.mxu0 0.0
      %5221 = vmatpush1.msra.mxu0 0.0
      %5222 = vmatprep.subr.mxu0 0.0
      %5223 = vmatpush1.msra.mxu0 0.0
      %5224 = vmatprep.subr.mxu0 0.0
      %5225 = vmatpush1.msra.mxu0 0.0
      %5226 = vmatprep.subr.mxu0 0.0
      %5227 = vmatpush1.msra.mxu0 0.0
      %5228 = vmatprep.subr.mxu0 0.0
      %5229 = vmatpush1.msra.mxu0 0.0
      %5230 = vmatprep.subr.mxu0 0.0
      %5231 = vmatpush1.msra.mxu0 0.0
      %5232 = vmatprep.subr.mxu0 0.0
      %5233 = vmatpush1.msra.mxu0 0.0
      %5234 = vmatprep.mubr.f32.mxu0 0.0
      %5235 = vmatmul.mubr.f32.gmra.mrb[0].mxu0 %v5159
      %v5236 = vpop.f32.mrb[0].mxu0
      %v5237 = vadd.f32 0.0, %v5236
      %v5238 = vpop.f32.mrb[0].mxu0
      %5239 = vmatprep.mubr.f32.mxu0 0.0
      %5240 = vmatmul.mubr.f32.gmra.mrb[0].mxu0 %v5162
      %v5241 = vpop.f32.mrb[0].mxu0
      %v5242 = vadd.f32 0.0, %v5241
      %v5243 = vpop.f32.mrb[0].mxu0
      %5244 = vmatprep.mubr.f32.mxu0 0.0
      %5245 = vmatmul.mubr.f32.gmra.mrb[0].mxu0 %v5165
      %v5246 = vpop.f32.mrb[0].mxu0
      %v5247 = vadd.f32 0.0, %v5246
      %v5248 = vpop.f32.mrb[0].mxu0
      %5249 = vmatprep.mubr.f32.mxu0 0.0
      %5250 = vmatmul.mubr.f32.gmra.mrb[0].mxu0 %v5168
      %v5251 = vpop.f32.mrb[0].mxu0
      %v5252 = vadd.f32 0.0, %v5251
      %v5253 = vpop.f32.mrb[0].mxu0
      %5254 = vdwg.mxu0
      %v5255 = vsub.f32 %v5154, %v5237
      %v5256 = vsub.f32 %v5155, %v5242
      %v5257 = vsub.f32 %v5156, %v5247
      %v5258 = vsub.f32 %v5157, %v5252
      %v5259 = vmul.f32 %v5150, 2.0
      %v5260 = vmul.f32 %v5151, 2.0
      %v5261 = vmul.f32 %v5152, 2.0
      %v5262 = vmul.f32 %v5153, 2.0
      %5263 = vmatprep.subr.mxu0 0.0
      %5264 = vmatpush1.msra.mxu0 %v5150
      %5265 = vmatprep.subr.mxu0 0.0
      %5266 = vmatpush1.msra.mxu0 %v5151
      %5267 = vmatprep.subr.mxu0 0.0
      %5268 = vmatpush1.msra.mxu0 %v5152
      %5269 = vmatprep.subr.mxu0 0.0
      %5270 = vmatpush1.msra.mxu0 %v5153
      %5271 = vmatprep.subr.mxu0 0.0
      %5272 = vmatpush1.msra.mxu0 0.0
      %5273 = vmatprep.subr.mxu0 0.0
      %5274 = vmatpush1.msra.mxu0 0.0
      %5275 = vmatprep.subr.mxu0 0.0
      %5276 = vmatpush1.msra.mxu0 0.0
      %5277 = vmatprep.subr.mxu0 0.0
      %5278 = vmatpush1.msra.mxu0 0.0
      %5279 = vmatprep.subr.mxu0 0.0
      %5280 = vmatpush1.msra.mxu0 0.0
      %5281 = vmatprep.subr.mxu0 0.0
      %5282 = vmatpush1.msra.mxu0 0.0
      %5283 = vmatprep.subr.mxu0 0.0
      %5284 = vmatpush1.msra.mxu0 0.0
      %5285 = vmatprep.subr.mxu0 0.0
      %5286 = vmatpush1.msra.mxu0 0.0
      %5287 = vmatprep.subr.mxu0 0.0
      %5288 = vmatpush1.msra.mxu0 0.0
      %5289 = vmatprep.subr.mxu0 0.0
      %5290 = vmatpush1.msra.mxu0 0.0
      %5291 = vmatprep.subr.mxu0 0.0
      %5292 = vmatpush1.msra.mxu0 0.0
      %5293 = vmatprep.subr.mxu0 0.0
      %5294 = vmatpush1.msra.mxu0 0.0
      %5295 = vmatprep.subr.mxu0 0.0
      %5296 = vmatpush1.msra.mxu0 0.0
      %5297 = vmatprep.subr.mxu0 0.0
      %5298 = vmatpush1.msra.mxu0 0.0
      %5299 = vmatprep.subr.mxu0 0.0
      %5300 = vmatpush1.msra.mxu0 0.0
      %5301 = vmatprep.subr.mxu0 0.0
      %5302 = vmatpush1.msra.mxu0 0.0
      %5303 = vmatprep.subr.mxu0 0.0
      %5304 = vmatpush1.msra.mxu0 0.0
      %5305 = vmatprep.subr.mxu0 0.0
      %5306 = vmatpush1.msra.mxu0 0.0
      %5307 = vmatprep.subr.mxu0 0.0
      %5308 = vmatpush1.msra.mxu0 0.0
      %5309 = vmatprep.subr.mxu0 0.0
      %5310 = vmatpush1.msra.mxu0 0.0
      %5311 = vmatprep.subr.mxu0 0.0
      %5312 = vmatpush1.msra.mxu0 0.0
      %5313 = vmatprep.subr.mxu0 0.0
      %5314 = vmatpush1.msra.mxu0 0.0
      %5315 = vmatprep.subr.mxu0 0.0
      %5316 = vmatpush1.msra.mxu0 0.0
      %5317 = vmatprep.subr.mxu0 0.0
      %5318 = vmatpush1.msra.mxu0 0.0
      %5319 = vmatprep.subr.mxu0 0.0
      %5320 = vmatpush1.msra.mxu0 0.0
      %5321 = vmatprep.subr.mxu0 0.0
      %5322 = vmatpush1.msra.mxu0 0.0
      %5323 = vmatprep.subr.mxu0 0.0
      %5324 = vmatpush1.msra.mxu0 0.0
      %5325 = vmatprep.subr.mxu0 0.0
      %5326 = vmatpush1.msra.mxu0 0.0
      %5327 = vmatprep.mubr.f32.mxu0 0.0
      %5328 = vmatmul.mubr.f32.gmra.mrb[0].mxu0 %v5159
      %v5329 = vpop.f32.mrb[0].mxu0
      %v5330 = vadd.f32 0.0, %v5329
      %v5331 = vpop.f32.mrb[0].mxu0
      %5332 = vmatprep.mubr.f32.mxu0 0.0
      %5333 = vmatmul.mubr.f32.gmra.mrb[0].mxu0 %v5162
      %v5334 = vpop.f32.mrb[0].mxu0
      %v5335 = vadd.f32 0.0, %v5334
      %v5336 = vpop.f32.mrb[0].mxu0
      %5337 = vmatprep.mubr.f32.mxu0 0.0
      %5338 = vmatmul.mubr.f32.gmra.mrb[0].mxu0 %v5165
      %v5339 = vpop.f32.mrb[0].mxu0
      %v5340 = vadd.f32 0.0, %v5339
      %v5341 = vpop.f32.mrb[0].mxu0
      %5342 = vmatprep.mubr.f32.mxu0 0.0
      %5343 = vmatmul.mubr.f32.gmra.mrb[0].mxu0 %v5168
      %v5344 = vpop.f32.mrb[0].mxu0
      %v5345 = vadd.f32 0.0, %v5344
      %v5346 = vpop.f32.mrb[0].mxu0
      %5347 = vdwg.mxu0
      %v5348 = vsub.f32 %v5259, %v5330
      %v5349 = vsub.f32 %v5260, %v5335
      %v5350 = vsub.f32 %v5261, %v5340
      %v5351 = vsub.f32 %v5262, %v5345
      %v5352 = vmul.f32 %v5255, 2.0
      %v5353 = vmul.f32 %v5256, 2.0
      %v5354 = vmul.f32 %v5257, 2.0
      %v5355 = vmul.f32 %v5258, 2.0
      %v5357 = vsel %vm765, %v5348, 0
      %v5360 = vsel %vm765, %v5349, 0
      %v5363 = vsel %vm765, %v5350, 0
      %v5366 = vsel %vm765, %v5351, 0
      %5368 = vmatprep.subr.mxu0 0.0
      %5369 = vmatpush1.msra.mxu0 %v5255
      %5370 = vmatprep.subr.mxu0 0.0
      %5371 = vmatpush1.msra.mxu0 %v5256
      %5372 = vmatprep.subr.mxu0 0.0
      %5373 = vmatpush1.msra.mxu0 %v5257
      %5374 = vmatprep.subr.mxu0 0.0
      %5375 = vmatpush1.msra.mxu0 %v5258
      %5376 = vmatprep.subr.mxu0 0.0
      %5377 = vmatpush1.msra.mxu0 0.0
      %5378 = vmatprep.subr.mxu0 0.0
      %5379 = vmatpush1.msra.mxu0 0.0
      %5380 = vmatprep.subr.mxu0 0.0
      %5381 = vmatpush1.msra.mxu0 0.0
      %5382 = vmatprep.subr.mxu0 0.0
      %5383 = vmatpush1.msra.mxu0 0.0
      %5384 = vmatprep.subr.mxu0 0.0
      %5385 = vmatpush1.msra.mxu0 0.0
      %5386 = vmatprep.subr.mxu0 0.0
      %5387 = vmatpush1.msra.mxu0 0.0
      %5388 = vmatprep.subr.mxu0 0.0
      %5389 = vmatpush1.msra.mxu0 0.0
      %5390 = vmatprep.subr.mxu0 0.0
      %5391 = vmatpush1.msra.mxu0 0.0
      %5392 = vmatprep.subr.mxu0 0.0
      %5393 = vmatpush1.msra.mxu0 0.0
      %5394 = vmatprep.subr.mxu0 0.0
      %5395 = vmatpush1.msra.mxu0 0.0
      %5396 = vmatprep.subr.mxu0 0.0
      %5397 = vmatpush1.msra.mxu0 0.0
      %5398 = vmatprep.subr.mxu0 0.0
      %5399 = vmatpush1.msra.mxu0 0.0
      %5400 = vmatprep.subr.mxu0 0.0
      %5401 = vmatpush1.msra.mxu0 0.0
      %5402 = vmatprep.subr.mxu0 0.0
      %5403 = vmatpush1.msra.mxu0 0.0
      %5404 = vmatprep.subr.mxu0 0.0
      %5405 = vmatpush1.msra.mxu0 0.0
      %5406 = vmatprep.subr.mxu0 0.0
      %5407 = vmatpush1.msra.mxu0 0.0
      %5408 = vmatprep.subr.mxu0 0.0
      %5409 = vmatpush1.msra.mxu0 0.0
      %5410 = vmatprep.subr.mxu0 0.0
      %5411 = vmatpush1.msra.mxu0 0.0
      %5412 = vmatprep.subr.mxu0 0.0
      %5413 = vmatpush1.msra.mxu0 0.0
      %5414 = vmatprep.subr.mxu0 0.0
      %5415 = vmatpush1.msra.mxu0 0.0
      %5416 = vmatprep.subr.mxu0 0.0
      %5417 = vmatpush1.msra.mxu0 0.0
      %5418 = vmatprep.subr.mxu0 0.0
      %5419 = vmatpush1.msra.mxu0 0.0
      %5420 = vmatprep.subr.mxu0 0.0
      %5421 = vmatpush1.msra.mxu0 0.0
      %5422 = vmatprep.subr.mxu0 0.0
      %5423 = vmatpush1.msra.mxu0 0.0
      %5424 = vmatprep.subr.mxu0 0.0
      %5425 = vmatpush1.msra.mxu0 0.0
      %5426 = vmatprep.subr.mxu0 0.0
      %5427 = vmatpush1.msra.mxu0 0.0
      %5428 = vmatprep.subr.mxu0 0.0
      %5429 = vmatpush1.msra.mxu0 0.0
      %5430 = vmatprep.subr.mxu0 0.0
      %5431 = vmatpush1.msra.mxu0 0.0
      %5432 = vmatprep.mubr.f32.mxu0 0.0
      %5433 = vmatmul.mubr.f32.gmra.mrb[0].mxu0 %v5357
      %v5434 = vpop.f32.mrb[0].mxu0
      %v5435 = vadd.f32 0.0, %v5434
      %v5436 = vpop.f32.mrb[0].mxu0
      %5437 = vmatprep.mubr.f32.mxu0 0.0
      %5438 = vmatmul.mubr.f32.gmra.mrb[0].mxu0 %v5360
      %v5439 = vpop.f32.mrb[0].mxu0
      %v5440 = vadd.f32 0.0, %v5439
      %v5441 = vpop.f32.mrb[0].mxu0
      %5442 = vmatprep.mubr.f32.mxu0 0.0
      %5443 = vmatmul.mubr.f32.gmra.mrb[0].mxu0 %v5363
      %v5444 = vpop.f32.mrb[0].mxu0
      %v5445 = vadd.f32 0.0, %v5444
      %v5446 = vpop.f32.mrb[0].mxu0
      %5447 = vmatprep.mubr.f32.mxu0 0.0
      %5448 = vmatmul.mubr.f32.gmra.mrb[0].mxu0 %v5366
      %v5449 = vpop.f32.mrb[0].mxu0
      %v5450 = vadd.f32 0.0, %v5449
      %v5451 = vpop.f32.mrb[0].mxu0
      %5452 = vdwg.mxu0
      %v5453 = vsub.f32 %v5352, %v5435
      %v5454 = vsub.f32 %v5353, %v5440
      %v5455 = vsub.f32 %v5354, %v5445
      %v5456 = vsub.f32 %v5355, %v5450
      %v5457 = vmul.f32 %v5348, 2.0
      %v5458 = vmul.f32 %v5349, 2.0
      %v5459 = vmul.f32 %v5350, 2.0
      %v5460 = vmul.f32 %v5351, 2.0
      %5461 = vmatprep.subr.mxu0 0.0
      %5462 = vmatpush1.msra.mxu0 %v5348
      %5463 = vmatprep.subr.mxu0 0.0
      %5464 = vmatpush1.msra.mxu0 %v5349
      %5465 = vmatprep.subr.mxu0 0.0
      %5466 = vmatpush1.msra.mxu0 %v5350
      %5467 = vmatprep.subr.mxu0 0.0
      %5468 = vmatpush1.msra.mxu0 %v5351
      %5469 = vmatprep.subr.mxu0 0.0
      %5470 = vmatpush1.msra.mxu0 0.0
      %5471 = vmatprep.subr.mxu0 0.0
      %5472 = vmatpush1.msra.mxu0 0.0
      %5473 = vmatprep.subr.mxu0 0.0
      %5474 = vmatpush1.msra.mxu0 0.0
      %5475 = vmatprep.subr.mxu0 0.0
      %5476 = vmatpush1.msra.mxu0 0.0
      %5477 = vmatprep.subr.mxu0 0.0
      %5478 = vmatpush1.msra.mxu0 0.0
      %5479 = vmatprep.subr.mxu0 0.0
      %5480 = vmatpush1.msra.mxu0 0.0
      %5481 = vmatprep.subr.mxu0 0.0
      %5482 = vmatpush1.msra.mxu0 0.0
      %5483 = vmatprep.subr.mxu0 0.0
      %5484 = vmatpush1.msra.mxu0 0.0
      %5485 = vmatprep.subr.mxu0 0.0
      %5486 = vmatpush1.msra.mxu0 0.0
      %5487 = vmatprep.subr.mxu0 0.0
      %5488 = vmatpush1.msra.mxu0 0.0
      %5489 = vmatprep.subr.mxu0 0.0
      %5490 = vmatpush1.msra.mxu0 0.0
      %5491 = vmatprep.subr.mxu0 0.0
      %5492 = vmatpush1.msra.mxu0 0.0
      %5493 = vmatprep.subr.mxu0 0.0
      %5494 = vmatpush1.msra.mxu0 0.0
      %5495 = vmatprep.subr.mxu0 0.0
      %5496 = vmatpush1.msra.mxu0 0.0
      %5497 = vmatprep.subr.mxu0 0.0
      %5498 = vmatpush1.msra.mxu0 0.0
      %5499 = vmatprep.subr.mxu0 0.0
      %5500 = vmatpush1.msra.mxu0 0.0
      %5501 = vmatprep.subr.mxu0 0.0
      %5502 = vmatpush1.msra.mxu0 0.0
      %5503 = vmatprep.subr.mxu0 0.0
      %5504 = vmatpush1.msra.mxu0 0.0
      %5505 = vmatprep.subr.mxu0 0.0
      %5506 = vmatpush1.msra.mxu0 0.0
      %5507 = vmatprep.subr.mxu0 0.0
      %5508 = vmatpush1.msra.mxu0 0.0
      %5509 = vmatprep.subr.mxu0 0.0
      %5510 = vmatpush1.msra.mxu0 0.0
      %5511 = vmatprep.subr.mxu0 0.0
      %5512 = vmatpush1.msra.mxu0 0.0
      %5513 = vmatprep.subr.mxu0 0.0
      %5514 = vmatpush1.msra.mxu0 0.0
      %5515 = vmatprep.subr.mxu0 0.0
      %5516 = vmatpush1.msra.mxu0 0.0
      %5517 = vmatprep.subr.mxu0 0.0
      %5518 = vmatpush1.msra.mxu0 0.0
      %5519 = vmatprep.subr.mxu0 0.0
      %5520 = vmatpush1.msra.mxu0 0.0
      %5521 = vmatprep.subr.mxu0 0.0
      %5522 = vmatpush1.msra.mxu0 0.0
      %5523 = vmatprep.subr.mxu0 0.0
      %5524 = vmatpush1.msra.mxu0 0.0
      %5525 = vmatprep.mubr.f32.mxu0 0.0
      %5526 = vmatmul.mubr.f32.gmra.mrb[0].mxu0 %v5357
      %v5527 = vpop.f32.mrb[0].mxu0
      %v5528 = vadd.f32 0.0, %v5527
      %v5529 = vpop.f32.mrb[0].mxu0
      %5530 = vmatprep.mubr.f32.mxu0 0.0
      %5531 = vmatmul.mubr.f32.gmra.mrb[0].mxu0 %v5360
      %v5532 = vpop.f32.mrb[0].mxu0
      %v5533 = vadd.f32 0.0, %v5532
      %v5534 = vpop.f32.mrb[0].mxu0
      %5535 = vmatprep.mubr.f32.mxu0 0.0
      %5536 = vmatmul.mubr.f32.gmra.mrb[0].mxu0 %v5363
      %v5537 = vpop.f32.mrb[0].mxu0
      %v5538 = vadd.f32 0.0, %v5537
      %v5539 = vpop.f32.mrb[0].mxu0
      %5540 = vmatprep.mubr.f32.mxu0 0.0
      %5541 = vmatmul.mubr.f32.gmra.mrb[0].mxu0 %v5366
      %v5542 = vpop.f32.mrb[0].mxu0
      %v5543 = vadd.f32 0.0, %v5542
      %v5544 = vpop.f32.mrb[0].mxu0
      %5545 = vdwg.mxu0
      %v5546 = vsub.f32 %v5457, %v5528
      %v5547 = vsub.f32 %v5458, %v5533
      %v5548 = vsub.f32 %v5459, %v5538
      %v5549 = vsub.f32 %v5460, %v5543
      %v5550 = vmul.f32 %v5453, 2.0
      %v5551 = vmul.f32 %v5454, 2.0
      %v5552 = vmul.f32 %v5455, 2.0
      %v5553 = vmul.f32 %v5456, 2.0
      %v5555 = vsel %vm765, %v5546, 0
      %v5558 = vsel %vm765, %v5547, 0
      %v5561 = vsel %vm765, %v5548, 0
      %v5564 = vsel %vm765, %v5549, 0
      %5566 = vmatprep.subr.mxu0 0.0
      %5567 = vmatpush1.msra.mxu0 %v5453
      %5568 = vmatprep.subr.mxu0 0.0
      %5569 = vmatpush1.msra.mxu0 %v5454
      %5570 = vmatprep.subr.mxu0 0.0
      %5571 = vmatpush1.msra.mxu0 %v5455
      %5572 = vmatprep.subr.mxu0 0.0
      %5573 = vmatpush1.msra.mxu0 %v5456
      %5574 = vmatprep.subr.mxu0 0.0
      %5575 = vmatpush1.msra.mxu0 0.0
      %5576 = vmatprep.subr.mxu0 0.0
      %5577 = vmatpush1.msra.mxu0 0.0
      %5578 = vmatprep.subr.mxu0 0.0
      %5579 = vmatpush1.msra.mxu0 0.0
      %5580 = vmatprep.subr.mxu0 0.0
      %5581 = vmatpush1.msra.mxu0 0.0
      %5582 = vmatprep.subr.mxu0 0.0
      %5583 = vmatpush1.msra.mxu0 0.0
      %5584 = vmatprep.subr.mxu0 0.0
      %5585 = vmatpush1.msra.mxu0 0.0
      %5586 = vmatprep.subr.mxu0 0.0
      %5587 = vmatpush1.msra.mxu0 0.0
      %5588 = vmatprep.subr.mxu0 0.0
      %5589 = vmatpush1.msra.mxu0 0.0
      %5590 = vmatprep.subr.mxu0 0.0
      %5591 = vmatpush1.msra.mxu0 0.0
      %5592 = vmatprep.subr.mxu0 0.0
      %5593 = vmatpush1.msra.mxu0 0.0
      %5594 = vmatprep.subr.mxu0 0.0
      %5595 = vmatpush1.msra.mxu0 0.0
      %5596 = vmatprep.subr.mxu0 0.0
      %5597 = vmatpush1.msra.mxu0 0.0
      %5598 = vmatprep.subr.mxu0 0.0
      %5599 = vmatpush1.msra.mxu0 0.0
      %5600 = vmatprep.subr.mxu0 0.0
      %5601 = vmatpush1.msra.mxu0 0.0
      %5602 = vmatprep.subr.mxu0 0.0
      %5603 = vmatpush1.msra.mxu0 0.0
      %5604 = vmatprep.subr.mxu0 0.0
      %5605 = vmatpush1.msra.mxu0 0.0
      %5606 = vmatprep.subr.mxu0 0.0
      %5607 = vmatpush1.msra.mxu0 0.0
      %5608 = vmatprep.subr.mxu0 0.0
      %5609 = vmatpush1.msra.mxu0 0.0
      %5610 = vmatprep.subr.mxu0 0.0
      %5611 = vmatpush1.msra.mxu0 0.0
      %5612 = vmatprep.subr.mxu0 0.0
      %5613 = vmatpush1.msra.mxu0 0.0
      %5614 = vmatprep.subr.mxu0 0.0
      %5615 = vmatpush1.msra.mxu0 0.0
      %5616 = vmatprep.subr.mxu0 0.0
      %5617 = vmatpush1.msra.mxu0 0.0
      %5618 = vmatprep.subr.mxu0 0.0
      %5619 = vmatpush1.msra.mxu0 0.0
      %5620 = vmatprep.subr.mxu0 0.0
      %5621 = vmatpush1.msra.mxu0 0.0
      %5622 = vmatprep.subr.mxu0 0.0
      %5623 = vmatpush1.msra.mxu0 0.0
      %5624 = vmatprep.subr.mxu0 0.0
      %5625 = vmatpush1.msra.mxu0 0.0
      %5626 = vmatprep.subr.mxu0 0.0
      %5627 = vmatpush1.msra.mxu0 0.0
      %5628 = vmatprep.subr.mxu0 0.0
      %5629 = vmatpush1.msra.mxu0 0.0
      %5630 = vmatprep.mubr.f32.mxu0 0.0
      %5631 = vmatmul.mubr.f32.gmra.mrb[0].mxu0 %v5555
      %v5632 = vpop.f32.mrb[0].mxu0
      %v5633 = vadd.f32 0.0, %v5632
      %v5634 = vpop.f32.mrb[0].mxu0
      %5635 = vmatprep.mubr.f32.mxu0 0.0
      %5636 = vmatmul.mubr.f32.gmra.mrb[0].mxu0 %v5558
      %v5637 = vpop.f32.mrb[0].mxu0
      %v5638 = vadd.f32 0.0, %v5637
      %v5639 = vpop.f32.mrb[0].mxu0
      %5640 = vmatprep.mubr.f32.mxu0 0.0
      %5641 = vmatmul.mubr.f32.gmra.mrb[0].mxu0 %v5561
      %v5642 = vpop.f32.mrb[0].mxu0
      %v5643 = vadd.f32 0.0, %v5642
      %v5644 = vpop.f32.mrb[0].mxu0
      %5645 = vmatprep.mubr.f32.mxu0 0.0
      %5646 = vmatmul.mubr.f32.gmra.mrb[0].mxu0 %v5564
      %v5647 = vpop.f32.mrb[0].mxu0
      %v5648 = vadd.f32 0.0, %v5647
      %v5649 = vpop.f32.mrb[0].mxu0
      %5650 = vdwg.mxu0
      %v5651 = vsub.f32 %v5550, %v5633
      %v5652 = vsub.f32 %v5551, %v5638
      %v5653 = vsub.f32 %v5552, %v5643
      %v5654 = vsub.f32 %v5553, %v5648
      %v5655 = vmul.f32 %v5546, 2.0
      %v5656 = vmul.f32 %v5547, 2.0
      %v5657 = vmul.f32 %v5548, 2.0
      %v5658 = vmul.f32 %v5549, 2.0
      %5659 = vmatprep.subr.mxu0 0.0
      %5660 = vmatpush1.msra.mxu0 %v5546
      %5661 = vmatprep.subr.mxu0 0.0
      %5662 = vmatpush1.msra.mxu0 %v5547
      %5663 = vmatprep.subr.mxu0 0.0
      %5664 = vmatpush1.msra.mxu0 %v5548
      %5665 = vmatprep.subr.mxu0 0.0
      %5666 = vmatpush1.msra.mxu0 %v5549
      %5667 = vmatprep.subr.mxu0 0.0
      %5668 = vmatpush1.msra.mxu0 0.0
      %5669 = vmatprep.subr.mxu0 0.0
      %5670 = vmatpush1.msra.mxu0 0.0
      %5671 = vmatprep.subr.mxu0 0.0
      %5672 = vmatpush1.msra.mxu0 0.0
      %5673 = vmatprep.subr.mxu0 0.0
      %5674 = vmatpush1.msra.mxu0 0.0
      %5675 = vmatprep.subr.mxu0 0.0
      %5676 = vmatpush1.msra.mxu0 0.0
      %5677 = vmatprep.subr.mxu0 0.0
      %5678 = vmatpush1.msra.mxu0 0.0
      %5679 = vmatprep.subr.mxu0 0.0
      %5680 = vmatpush1.msra.mxu0 0.0
      %5681 = vmatprep.subr.mxu0 0.0
      %5682 = vmatpush1.msra.mxu0 0.0
      %5683 = vmatprep.subr.mxu0 0.0
      %5684 = vmatpush1.msra.mxu0 0.0
      %5685 = vmatprep.subr.mxu0 0.0
      %5686 = vmatpush1.msra.mxu0 0.0
      %5687 = vmatprep.subr.mxu0 0.0
      %5688 = vmatpush1.msra.mxu0 0.0
      %5689 = vmatprep.subr.mxu0 0.0
      %5690 = vmatpush1.msra.mxu0 0.0
      %5691 = vmatprep.subr.mxu0 0.0
      %5692 = vmatpush1.msra.mxu0 0.0
      %5693 = vmatprep.subr.mxu0 0.0
      %5694 = vmatpush1.msra.mxu0 0.0
      %5695 = vmatprep.subr.mxu0 0.0
      %5696 = vmatpush1.msra.mxu0 0.0
      %5697 = vmatprep.subr.mxu0 0.0
      %5698 = vmatpush1.msra.mxu0 0.0
      %5699 = vmatprep.subr.mxu0 0.0
      %5700 = vmatpush1.msra.mxu0 0.0
      %5701 = vmatprep.subr.mxu0 0.0
      %5702 = vmatpush1.msra.mxu0 0.0
      %5703 = vmatprep.subr.mxu0 0.0
      %5704 = vmatpush1.msra.mxu0 0.0
      %5705 = vmatprep.subr.mxu0 0.0
      %5706 = vmatpush1.msra.mxu0 0.0
      %5707 = vmatprep.subr.mxu0 0.0
      %5708 = vmatpush1.msra.mxu0 0.0
      %5709 = vmatprep.subr.mxu0 0.0
      %5710 = vmatpush1.msra.mxu0 0.0
      %5711 = vmatprep.subr.mxu0 0.0
      %5712 = vmatpush1.msra.mxu0 0.0
      %5713 = vmatprep.subr.mxu0 0.0
      %5714 = vmatpush1.msra.mxu0 0.0
      %5715 = vmatprep.subr.mxu0 0.0
      %5716 = vmatpush1.msra.mxu0 0.0
      %5717 = vmatprep.subr.mxu0 0.0
      %5718 = vmatpush1.msra.mxu0 0.0
      %5719 = vmatprep.subr.mxu0 0.0
      %5720 = vmatpush1.msra.mxu0 0.0
      %5721 = vmatprep.subr.mxu0 0.0
      %5722 = vmatpush1.msra.mxu0 0.0
      %5723 = vmatprep.mubr.f32.mxu0 0.0
      %5724 = vmatmul.mubr.f32.gmra.mrb[0].mxu0 %v5555
      %v5725 = vpop.f32.mrb[0].mxu0
      %v5726 = vadd.f32 0.0, %v5725
      %v5727 = vpop.f32.mrb[0].mxu0
      %5728 = vmatprep.mubr.f32.mxu0 0.0
      %5729 = vmatmul.mubr.f32.gmra.mrb[0].mxu0 %v5558
      %v5730 = vpop.f32.mrb[0].mxu0
      %v5731 = vadd.f32 0.0, %v5730
      %v5732 = vpop.f32.mrb[0].mxu0
      %5733 = vmatprep.mubr.f32.mxu0 0.0
      %5734 = vmatmul.mubr.f32.gmra.mrb[0].mxu0 %v5561
      %v5735 = vpop.f32.mrb[0].mxu0
      %v5736 = vadd.f32 0.0, %v5735
      %v5737 = vpop.f32.mrb[0].mxu0
      %5738 = vmatprep.mubr.f32.mxu0 0.0
      %5739 = vmatmul.mubr.f32.gmra.mrb[0].mxu0 %v5564
      %v5740 = vpop.f32.mrb[0].mxu0
      %v5741 = vadd.f32 0.0, %v5740
      %v5742 = vpop.f32.mrb[0].mxu0
      %5743 = vdwg.mxu0
      %v5744 = vsub.f32 %v5655, %v5726
      %v5745 = vsub.f32 %v5656, %v5731
      %v5746 = vsub.f32 %v5657, %v5736
      %v5747 = vsub.f32 %v5658, %v5741
      %v5748 = vmul.f32 %v5651, 2.0
      %v5749 = vmul.f32 %v5652, 2.0
      %v5750 = vmul.f32 %v5653, 2.0
      %v5751 = vmul.f32 %v5654, 2.0
      %v5753 = vsel %vm765, %v5744, 0
      %v5756 = vsel %vm765, %v5745, 0
      %v5759 = vsel %vm765, %v5746, 0
      %v5762 = vsel %vm765, %v5747, 0
      %5764 = vmatprep.subr.mxu0 0.0
      %5765 = vmatpush1.msra.mxu0 %v5651
      %5766 = vmatprep.subr.mxu0 0.0
      %5767 = vmatpush1.msra.mxu0 %v5652
      %5768 = vmatprep.subr.mxu0 0.0
      %5769 = vmatpush1.msra.mxu0 %v5653
      %5770 = vmatprep.subr.mxu0 0.0
      %5771 = vmatpush1.msra.mxu0 %v5654
      %5772 = vmatprep.subr.mxu0 0.0
      %5773 = vmatpush1.msra.mxu0 0.0
      %5774 = vmatprep.subr.mxu0 0.0
      %5775 = vmatpush1.msra.mxu0 0.0
      %5776 = vmatprep.subr.mxu0 0.0
      %5777 = vmatpush1.msra.mxu0 0.0
      %5778 = vmatprep.subr.mxu0 0.0
      %5779 = vmatpush1.msra.mxu0 0.0
      %5780 = vmatprep.subr.mxu0 0.0
      %5781 = vmatpush1.msra.mxu0 0.0
      %5782 = vmatprep.subr.mxu0 0.0
      %5783 = vmatpush1.msra.mxu0 0.0
      %5784 = vmatprep.subr.mxu0 0.0
      %5785 = vmatpush1.msra.mxu0 0.0
      %5786 = vmatprep.subr.mxu0 0.0
      %5787 = vmatpush1.msra.mxu0 0.0
      %5788 = vmatprep.subr.mxu0 0.0
      %5789 = vmatpush1.msra.mxu0 0.0
      %5790 = vmatprep.subr.mxu0 0.0
      %5791 = vmatpush1.msra.mxu0 0.0
      %5792 = vmatprep.subr.mxu0 0.0
      %5793 = vmatpush1.msra.mxu0 0.0
      %5794 = vmatprep.subr.mxu0 0.0
      %5795 = vmatpush1.msra.mxu0 0.0
      %5796 = vmatprep.subr.mxu0 0.0
      %5797 = vmatpush1.msra.mxu0 0.0
      %5798 = vmatprep.subr.mxu0 0.0
      %5799 = vmatpush1.msra.mxu0 0.0
      %5800 = vmatprep.subr.mxu0 0.0
      %5801 = vmatpush1.msra.mxu0 0.0
      %5802 = vmatprep.subr.mxu0 0.0
      %5803 = vmatpush1.msra.mxu0 0.0
      %5804 = vmatprep.subr.mxu0 0.0
      %5805 = vmatpush1.msra.mxu0 0.0
      %5806 = vmatprep.subr.mxu0 0.0
      %5807 = vmatpush1.msra.mxu0 0.0
      %5808 = vmatprep.subr.mxu0 0.0
      %5809 = vmatpush1.msra.mxu0 0.0
      %5810 = vmatprep.subr.mxu0 0.0
      %5811 = vmatpush1.msra.mxu0 0.0
      %5812 = vmatprep.subr.mxu0 0.0
      %5813 = vmatpush1.msra.mxu0 0.0
      %5814 = vmatprep.subr.mxu0 0.0
      %5815 = vmatpush1.msra.mxu0 0.0
      %5816 = vmatprep.subr.mxu0 0.0
      %5817 = vmatpush1.msra.mxu0 0.0
      %5818 = vmatprep.subr.mxu0 0.0
      %5819 = vmatpush1.msra.mxu0 0.0
      %5820 = vmatprep.subr.mxu0 0.0
      %5821 = vmatpush1.msra.mxu0 0.0
      %5822 = vmatprep.subr.mxu0 0.0
      %5823 = vmatpush1.msra.mxu0 0.0
      %5824 = vmatprep.subr.mxu0 0.0
      %5825 = vmatpush1.msra.mxu0 0.0
      %5826 = vmatprep.subr.mxu0 0.0
      %5827 = vmatpush1.msra.mxu0 0.0
      %5828 = vmatprep.mubr.f32.mxu0 0.0
      %5829 = vmatmul.mubr.f32.gmra.mrb[0].mxu0 %v5753
      %v5830 = vpop.f32.mrb[0].mxu0
      %v5831 = vadd.f32 0.0, %v5830
      %v5832 = vpop.f32.mrb[0].mxu0
      %5833 = vmatprep.mubr.f32.mxu0 0.0
      %5834 = vmatmul.mubr.f32.gmra.mrb[0].mxu0 %v5756
      %v5835 = vpop.f32.mrb[0].mxu0
      %v5836 = vadd.f32 0.0, %v5835
      %v5837 = vpop.f32.mrb[0].mxu0
      %5838 = vmatprep.mubr.f32.mxu0 0.0
      %5839 = vmatmul.mubr.f32.gmra.mrb[0].mxu0 %v5759
      %v5840 = vpop.f32.mrb[0].mxu0
      %v5841 = vadd.f32 0.0, %v5840
      %v5842 = vpop.f32.mrb[0].mxu0
      %5843 = vmatprep.mubr.f32.mxu0 0.0
      %5844 = vmatmul.mubr.f32.gmra.mrb[0].mxu0 %v5762
      %v5845 = vpop.f32.mrb[0].mxu0
      %v5846 = vadd.f32 0.0, %v5845
      %v5847 = vpop.f32.mrb[0].mxu0
      %5848 = vdwg.mxu0
      %v5849 = vsub.f32 %v5748, %v5831
      %v5850 = vsub.f32 %v5749, %v5836
      %v5851 = vsub.f32 %v5750, %v5841
      %v5852 = vsub.f32 %v5751, %v5846
      %v5853 = vmul.f32 %v5744, 2.0
      %v5854 = vmul.f32 %v5745, 2.0
      %v5855 = vmul.f32 %v5746, 2.0
      %v5856 = vmul.f32 %v5747, 2.0
      %5857 = vmatprep.subr.mxu0 0.0
      %5858 = vmatpush1.msra.mxu0 %v5744
      %5859 = vmatprep.subr.mxu0 0.0
      %5860 = vmatpush1.msra.mxu0 %v5745
      %5861 = vmatprep.subr.mxu0 0.0
      %5862 = vmatpush1.msra.mxu0 %v5746
      %5863 = vmatprep.subr.mxu0 0.0
      %5864 = vmatpush1.msra.mxu0 %v5747
      %5865 = vmatprep.subr.mxu0 0.0
      %5866 = vmatpush1.msra.mxu0 0.0
      %5867 = vmatprep.subr.mxu0 0.0
      %5868 = vmatpush1.msra.mxu0 0.0
      %5869 = vmatprep.subr.mxu0 0.0
      %5870 = vmatpush1.msra.mxu0 0.0
      %5871 = vmatprep.subr.mxu0 0.0
      %5872 = vmatpush1.msra.mxu0 0.0
      %5873 = vmatprep.subr.mxu0 0.0
      %5874 = vmatpush1.msra.mxu0 0.0
      %5875 = vmatprep.subr.mxu0 0.0
      %5876 = vmatpush1.msra.mxu0 0.0
      %5877 = vmatprep.subr.mxu0 0.0
      %5878 = vmatpush1.msra.mxu0 0.0
      %5879 = vmatprep.subr.mxu0 0.0
      %5880 = vmatpush1.msra.mxu0 0.0
      %5881 = vmatprep.subr.mxu0 0.0
      %5882 = vmatpush1.msra.mxu0 0.0
      %5883 = vmatprep.subr.mxu0 0.0
      %5884 = vmatpush1.msra.mxu0 0.0
      %5885 = vmatprep.subr.mxu0 0.0
      %5886 = vmatpush1.msra.mxu0 0.0
      %5887 = vmatprep.subr.mxu0 0.0
      %5888 = vmatpush1.msra.mxu0 0.0
      %5889 = vmatprep.subr.mxu0 0.0
      %5890 = vmatpush1.msra.mxu0 0.0
      %5891 = vmatprep.subr.mxu0 0.0
      %5892 = vmatpush1.msra.mxu0 0.0
      %5893 = vmatprep.subr.mxu0 0.0
      %5894 = vmatpush1.msra.mxu0 0.0
      %5895 = vmatprep.subr.mxu0 0.0
      %5896 = vmatpush1.msra.mxu0 0.0
      %5897 = vmatprep.subr.mxu0 0.0
      %5898 = vmatpush1.msra.mxu0 0.0
      %5899 = vmatprep.subr.mxu0 0.0
      %5900 = vmatpush1.msra.mxu0 0.0
      %5901 = vmatprep.subr.mxu0 0.0
      %5902 = vmatpush1.msra.mxu0 0.0
      %5903 = vmatprep.subr.mxu0 0.0
      %5904 = vmatpush1.msra.mxu0 0.0
      %5905 = vmatprep.subr.mxu0 0.0
      %5906 = vmatpush1.msra.mxu0 0.0
      %5907 = vmatprep.subr.mxu0 0.0
      %5908 = vmatpush1.msra.mxu0 0.0
      %5909 = vmatprep.subr.mxu0 0.0
      %5910 = vmatpush1.msra.mxu0 0.0
      %5911 = vmatprep.subr.mxu0 0.0
      %5912 = vmatpush1.msra.mxu0 0.0
      %5913 = vmatprep.subr.mxu0 0.0
      %5914 = vmatpush1.msra.mxu0 0.0
      %5915 = vmatprep.subr.mxu0 0.0
      %5916 = vmatpush1.msra.mxu0 0.0
      %5917 = vmatprep.subr.mxu0 0.0
      %5918 = vmatpush1.msra.mxu0 0.0
      %5919 = vmatprep.subr.mxu0 0.0
      %5920 = vmatpush1.msra.mxu0 0.0
      %5921 = vmatprep.mubr.f32.mxu0 0.0
      %5922 = vmatmul.mubr.f32.gmra.mrb[0].mxu0 %v5753
      %v5923 = vpop.f32.mrb[0].mxu0
      %v5924 = vadd.f32 0.0, %v5923
      %v5925 = vpop.f32.mrb[0].mxu0
      %5926 = vmatprep.mubr.f32.mxu0 0.0
      %5927 = vmatmul.mubr.f32.gmra.mrb[0].mxu0 %v5756
      %v5928 = vpop.f32.mrb[0].mxu0
      %v5929 = vadd.f32 0.0, %v5928
      %v5930 = vpop.f32.mrb[0].mxu0
      %5931 = vmatprep.mubr.f32.mxu0 0.0
      %5932 = vmatmul.mubr.f32.gmra.mrb[0].mxu0 %v5759
      %v5933 = vpop.f32.mrb[0].mxu0
      %v5934 = vadd.f32 0.0, %v5933
      %v5935 = vpop.f32.mrb[0].mxu0
      %5936 = vmatprep.mubr.f32.mxu0 0.0
      %5937 = vmatmul.mubr.f32.gmra.mrb[0].mxu0 %v5762
      %v5938 = vpop.f32.mrb[0].mxu0
      %v5939 = vadd.f32 0.0, %v5938
      %v5940 = vpop.f32.mrb[0].mxu0
      %5941 = vdwg.mxu0
      %v5942 = vsub.f32 %v5853, %v5924
      %v5943 = vsub.f32 %v5854, %v5929
      %v5944 = vsub.f32 %v5855, %v5934
      %v5945 = vsub.f32 %v5856, %v5939
      %v5946 = vmul.f32 %v5849, 2.0
      %v5947 = vmul.f32 %v5850, 2.0
      %v5948 = vmul.f32 %v5851, 2.0
      %v5949 = vmul.f32 %v5852, 2.0
      %v5951 = vsel %vm765, %v5942, 0
      %v5954 = vsel %vm765, %v5943, 0
      %v5957 = vsel %vm765, %v5944, 0
      %v5960 = vsel %vm765, %v5945, 0
      %5962 = vmatprep.subr.mxu0 0.0
      %5963 = vmatpush1.msra.mxu0 %v5849
      %5964 = vmatprep.subr.mxu0 0.0
      %5965 = vmatpush1.msra.mxu0 %v5850
      %5966 = vmatprep.subr.mxu0 0.0
      %5967 = vmatpush1.msra.mxu0 %v5851
      %5968 = vmatprep.subr.mxu0 0.0
      %5969 = vmatpush1.msra.mxu0 %v5852
      %5970 = vmatprep.subr.mxu0 0.0
      %5971 = vmatpush1.msra.mxu0 0.0
      %5972 = vmatprep.subr.mxu0 0.0
      %5973 = vmatpush1.msra.mxu0 0.0
      %5974 = vmatprep.subr.mxu0 0.0
      %5975 = vmatpush1.msra.mxu0 0.0
      %5976 = vmatprep.subr.mxu0 0.0
      %5977 = vmatpush1.msra.mxu0 0.0
      %5978 = vmatprep.subr.mxu0 0.0
      %5979 = vmatpush1.msra.mxu0 0.0
      %5980 = vmatprep.subr.mxu0 0.0
      %5981 = vmatpush1.msra.mxu0 0.0
      %5982 = vmatprep.subr.mxu0 0.0
      %5983 = vmatpush1.msra.mxu0 0.0
      %5984 = vmatprep.subr.mxu0 0.0
      %5985 = vmatpush1.msra.mxu0 0.0
      %5986 = vmatprep.subr.mxu0 0.0
      %5987 = vmatpush1.msra.mxu0 0.0
      %5988 = vmatprep.subr.mxu0 0.0
      %5989 = vmatpush1.msra.mxu0 0.0
      %5990 = vmatprep.subr.mxu0 0.0
      %5991 = vmatpush1.msra.mxu0 0.0
      %5992 = vmatprep.subr.mxu0 0.0
      %5993 = vmatpush1.msra.mxu0 0.0
      %5994 = vmatprep.subr.mxu0 0.0
      %5995 = vmatpush1.msra.mxu0 0.0
      %5996 = vmatprep.subr.mxu0 0.0
      %5997 = vmatpush1.msra.mxu0 0.0
      %5998 = vmatprep.subr.mxu0 0.0
      %5999 = vmatpush1.msra.mxu0 0.0
      %6000 = vmatprep.subr.mxu0 0.0
      %6001 = vmatpush1.msra.mxu0 0.0
      %6002 = vmatprep.subr.mxu0 0.0
      %6003 = vmatpush1.msra.mxu0 0.0
      %6004 = vmatprep.subr.mxu0 0.0
      %6005 = vmatpush1.msra.mxu0 0.0
      %6006 = vmatprep.subr.mxu0 0.0
      %6007 = vmatpush1.msra.mxu0 0.0
      %6008 = vmatprep.subr.mxu0 0.0
      %6009 = vmatpush1.msra.mxu0 0.0
      %6010 = vmatprep.subr.mxu0 0.0
      %6011 = vmatpush1.msra.mxu0 0.0
      %6012 = vmatprep.subr.mxu0 0.0
      %6013 = vmatpush1.msra.mxu0 0.0
      %6014 = vmatprep.subr.mxu0 0.0
      %6015 = vmatpush1.msra.mxu0 0.0
      %6016 = vmatprep.subr.mxu0 0.0
      %6017 = vmatpush1.msra.mxu0 0.0
      %6018 = vmatprep.subr.mxu0 0.0
      %6019 = vmatpush1.msra.mxu0 0.0
      %6020 = vmatprep.subr.mxu0 0.0
      %6021 = vmatpush1.msra.mxu0 0.0
      %6022 = vmatprep.subr.mxu0 0.0
      %6023 = vmatpush1.msra.mxu0 0.0
      %6024 = vmatprep.subr.mxu0 0.0
      %6025 = vmatpush1.msra.mxu0 0.0
      %6026 = vmatprep.mubr.f32.mxu0 0.0
      %6027 = vmatmul.mubr.f32.gmra.mrb[0].mxu0 %v5951
      %v6028 = vpop.f32.mrb[0].mxu0
      %v6029 = vadd.f32 0.0, %v6028
      %v6030 = vpop.f32.mrb[0].mxu0
      %6031 = vmatprep.mubr.f32.mxu0 0.0
      %6032 = vmatmul.mubr.f32.gmra.mrb[0].mxu0 %v5954
      %v6033 = vpop.f32.mrb[0].mxu0
      %v6034 = vadd.f32 0.0, %v6033
      %v6035 = vpop.f32.mrb[0].mxu0
      %6036 = vmatprep.mubr.f32.mxu0 0.0
      %6037 = vmatmul.mubr.f32.gmra.mrb[0].mxu0 %v5957
      %v6038 = vpop.f32.mrb[0].mxu0
      %v6039 = vadd.f32 0.0, %v6038
      %v6040 = vpop.f32.mrb[0].mxu0
      %6041 = vmatprep.mubr.f32.mxu0 0.0
      %6042 = vmatmul.mubr.f32.gmra.mrb[0].mxu0 %v5960
      %v6043 = vpop.f32.mrb[0].mxu0
      %v6044 = vadd.f32 0.0, %v6043
      %v6045 = vpop.f32.mrb[0].mxu0
      %6046 = vdwg.mxu0
      %v6047 = vsub.f32 %v5946, %v6029
      %v6048 = vsub.f32 %v5947, %v6034
      %v6049 = vsub.f32 %v5948, %v6039
      %v6050 = vsub.f32 %v5949, %v6044
      %v6051 = vmul.f32 %v5942, 2.0
      %v6052 = vmul.f32 %v5943, 2.0
      %v6053 = vmul.f32 %v5944, 2.0
      %v6054 = vmul.f32 %v5945, 2.0
      %6055 = vmatprep.subr.mxu0 0.0
      %6056 = vmatpush1.msra.mxu0 %v5942
      %6057 = vmatprep.subr.mxu0 0.0
      %6058 = vmatpush1.msra.mxu0 %v5943
      %6059 = vmatprep.subr.mxu0 0.0
      %6060 = vmatpush1.msra.mxu0 %v5944
      %6061 = vmatprep.subr.mxu0 0.0
      %6062 = vmatpush1.msra.mxu0 %v5945
      %6063 = vmatprep.subr.mxu0 0.0
      %6064 = vmatpush1.msra.mxu0 0.0
      %6065 = vmatprep.subr.mxu0 0.0
      %6066 = vmatpush1.msra.mxu0 0.0
      %6067 = vmatprep.subr.mxu0 0.0
      %6068 = vmatpush1.msra.mxu0 0.0
      %6069 = vmatprep.subr.mxu0 0.0
      %6070 = vmatpush1.msra.mxu0 0.0
      %6071 = vmatprep.subr.mxu0 0.0
      %6072 = vmatpush1.msra.mxu0 0.0
      %6073 = vmatprep.subr.mxu0 0.0
      %6074 = vmatpush1.msra.mxu0 0.0
      %6075 = vmatprep.subr.mxu0 0.0
      %6076 = vmatpush1.msra.mxu0 0.0
      %6077 = vmatprep.subr.mxu0 0.0
      %6078 = vmatpush1.msra.mxu0 0.0
      %6079 = vmatprep.subr.mxu0 0.0
      %6080 = vmatpush1.msra.mxu0 0.0
      %6081 = vmatprep.subr.mxu0 0.0
      %6082 = vmatpush1.msra.mxu0 0.0
      %6083 = vmatprep.subr.mxu0 0.0
      %6084 = vmatpush1.msra.mxu0 0.0
      %6085 = vmatprep.subr.mxu0 0.0
      %6086 = vmatpush1.msra.mxu0 0.0
      %6087 = vmatprep.subr.mxu0 0.0
      %6088 = vmatpush1.msra.mxu0 0.0
      %6089 = vmatprep.subr.mxu0 0.0
      %6090 = vmatpush1.msra.mxu0 0.0
      %6091 = vmatprep.subr.mxu0 0.0
      %6092 = vmatpush1.msra.mxu0 0.0
      %6093 = vmatprep.subr.mxu0 0.0
      %6094 = vmatpush1.msra.mxu0 0.0
      %6095 = vmatprep.subr.mxu0 0.0
      %6096 = vmatpush1.msra.mxu0 0.0
      %6097 = vmatprep.subr.mxu0 0.0
      %6098 = vmatpush1.msra.mxu0 0.0
      %6099 = vmatprep.subr.mxu0 0.0
      %6100 = vmatpush1.msra.mxu0 0.0
      %6101 = vmatprep.subr.mxu0 0.0
      %6102 = vmatpush1.msra.mxu0 0.0
      %6103 = vmatprep.subr.mxu0 0.0
      %6104 = vmatpush1.msra.mxu0 0.0
      %6105 = vmatprep.subr.mxu0 0.0
      %6106 = vmatpush1.msra.mxu0 0.0
      %6107 = vmatprep.subr.mxu0 0.0
      %6108 = vmatpush1.msra.mxu0 0.0
      %6109 = vmatprep.subr.mxu0 0.0
      %6110 = vmatpush1.msra.mxu0 0.0
      %6111 = vmatprep.subr.mxu0 0.0
      %6112 = vmatpush1.msra.mxu0 0.0
      %6113 = vmatprep.subr.mxu0 0.0
      %6114 = vmatpush1.msra.mxu0 0.0
      %6115 = vmatprep.subr.mxu0 0.0
      %6116 = vmatpush1.msra.mxu0 0.0
      %6117 = vmatprep.subr.mxu0 0.0
      %6118 = vmatpush1.msra.mxu0 0.0
      %6119 = vmatprep.mubr.f32.mxu0 0.0
      %6120 = vmatmul.mubr.f32.gmra.mrb[0].mxu0 %v5951
      %v6121 = vpop.f32.mrb[0].mxu0
      %v6122 = vadd.f32 0.0, %v6121
      %v6123 = vpop.f32.mrb[0].mxu0
      %6124 = vmatprep.mubr.f32.mxu0 0.0
      %6125 = vmatmul.mubr.f32.gmra.mrb[0].mxu0 %v5954
      %v6126 = vpop.f32.mrb[0].mxu0
      %v6127 = vadd.f32 0.0, %v6126
      %v6128 = vpop.f32.mrb[0].mxu0
      %6129 = vmatprep.mubr.f32.mxu0 0.0
      %6130 = vmatmul.mubr.f32.gmra.mrb[0].mxu0 %v5957
      %v6131 = vpop.f32.mrb[0].mxu0
      %v6132 = vadd.f32 0.0, %v6131
      %v6133 = vpop.f32.mrb[0].mxu0
      %6134 = vmatprep.mubr.f32.mxu0 0.0
      %6135 = vmatmul.mubr.f32.gmra.mrb[0].mxu0 %v5960
      %v6136 = vpop.f32.mrb[0].mxu0
      %v6137 = vadd.f32 0.0, %v6136
      %v6138 = vpop.f32.mrb[0].mxu0
      %6139 = vdwg.mxu0
      %v6140 = vsub.f32 %v6051, %v6122
      %v6141 = vsub.f32 %v6052, %v6127
      %v6142 = vsub.f32 %v6053, %v6132
      %v6143 = vsub.f32 %v6054, %v6137
      %v6144 = vmul.f32 %v6047, 2.0
      %v6145 = vmul.f32 %v6048, 2.0
      %v6146 = vmul.f32 %v6049, 2.0
      %v6147 = vmul.f32 %v6050, 2.0
      %v6149 = vsel %vm765, %v6140, 0
      %v6152 = vsel %vm765, %v6141, 0
      %v6155 = vsel %vm765, %v6142, 0
      %v6158 = vsel %vm765, %v6143, 0
      %6160 = vmatprep.subr.mxu0 0.0
      %6161 = vmatpush1.msra.mxu0 %v6047
      %6162 = vmatprep.subr.mxu0 0.0
      %6163 = vmatpush1.msra.mxu0 %v6048
      %6164 = vmatprep.subr.mxu0 0.0
      %6165 = vmatpush1.msra.mxu0 %v6049
      %6166 = vmatprep.subr.mxu0 0.0
      %6167 = vmatpush1.msra.mxu0 %v6050
      %6168 = vmatprep.subr.mxu0 0.0
      %6169 = vmatpush1.msra.mxu0 0.0
      %6170 = vmatprep.subr.mxu0 0.0
      %6171 = vmatpush1.msra.mxu0 0.0
      %6172 = vmatprep.subr.mxu0 0.0
      %6173 = vmatpush1.msra.mxu0 0.0
      %6174 = vmatprep.subr.mxu0 0.0
      %6175 = vmatpush1.msra.mxu0 0.0
      %6176 = vmatprep.subr.mxu0 0.0
      %6177 = vmatpush1.msra.mxu0 0.0
      %6178 = vmatprep.subr.mxu0 0.0
      %6179 = vmatpush1.msra.mxu0 0.0
      %6180 = vmatprep.subr.mxu0 0.0
      %6181 = vmatpush1.msra.mxu0 0.0
      %6182 = vmatprep.subr.mxu0 0.0
      %6183 = vmatpush1.msra.mxu0 0.0
      %6184 = vmatprep.subr.mxu0 0.0
      %6185 = vmatpush1.msra.mxu0 0.0
      %6186 = vmatprep.subr.mxu0 0.0
      %6187 = vmatpush1.msra.mxu0 0.0
      %6188 = vmatprep.subr.mxu0 0.0
      %6189 = vmatpush1.msra.mxu0 0.0
      %6190 = vmatprep.subr.mxu0 0.0
      %6191 = vmatpush1.msra.mxu0 0.0
      %6192 = vmatprep.subr.mxu0 0.0
      %6193 = vmatpush1.msra.mxu0 0.0
      %6194 = vmatprep.subr.mxu0 0.0
      %6195 = vmatpush1.msra.mxu0 0.0
      %6196 = vmatprep.subr.mxu0 0.0
      %6197 = vmatpush1.msra.mxu0 0.0
      %6198 = vmatprep.subr.mxu0 0.0
      %6199 = vmatpush1.msra.mxu0 0.0
      %6200 = vmatprep.subr.mxu0 0.0
      %6201 = vmatpush1.msra.mxu0 0.0
      %6202 = vmatprep.subr.mxu0 0.0
      %6203 = vmatpush1.msra.mxu0 0.0
      %6204 = vmatprep.subr.mxu0 0.0
      %6205 = vmatpush1.msra.mxu0 0.0
      %6206 = vmatprep.subr.mxu0 0.0
      %6207 = vmatpush1.msra.mxu0 0.0
      %6208 = vmatprep.subr.mxu0 0.0
      %6209 = vmatpush1.msra.mxu0 0.0
      %6210 = vmatprep.subr.mxu0 0.0
      %6211 = vmatpush1.msra.mxu0 0.0
      %6212 = vmatprep.subr.mxu0 0.0
      %6213 = vmatpush1.msra.mxu0 0.0
      %6214 = vmatprep.subr.mxu0 0.0
      %6215 = vmatpush1.msra.mxu0 0.0
      %6216 = vmatprep.subr.mxu0 0.0
      %6217 = vmatpush1.msra.mxu0 0.0
      %6218 = vmatprep.subr.mxu0 0.0
      %6219 = vmatpush1.msra.mxu0 0.0
      %6220 = vmatprep.subr.mxu0 0.0
      %6221 = vmatpush1.msra.mxu0 0.0
      %6222 = vmatprep.subr.mxu0 0.0
      %6223 = vmatpush1.msra.mxu0 0.0
      %6224 = vmatprep.mubr.f32.mxu0 0.0
      %6225 = vmatmul.mubr.f32.gmra.mrb[0].mxu0 %v6149
      %v6226 = vpop.f32.mrb[0].mxu0
      %v6227 = vadd.f32 0.0, %v6226
      %v6228 = vpop.f32.mrb[0].mxu0
      %6229 = vmatprep.mubr.f32.mxu0 0.0
      %6230 = vmatmul.mubr.f32.gmra.mrb[0].mxu0 %v6152
      %v6231 = vpop.f32.mrb[0].mxu0
      %v6232 = vadd.f32 0.0, %v6231
      %v6233 = vpop.f32.mrb[0].mxu0
      %6234 = vmatprep.mubr.f32.mxu0 0.0
      %6235 = vmatmul.mubr.f32.gmra.mrb[0].mxu0 %v6155
      %v6236 = vpop.f32.mrb[0].mxu0
      %v6237 = vadd.f32 0.0, %v6236
      %v6238 = vpop.f32.mrb[0].mxu0
      %6239 = vmatprep.mubr.f32.mxu0 0.0
      %6240 = vmatmul.mubr.f32.gmra.mrb[0].mxu0 %v6158
      %v6241 = vpop.f32.mrb[0].mxu0
      %v6242 = vadd.f32 0.0, %v6241
      %v6243 = vpop.f32.mrb[0].mxu0
      %6244 = vdwg.mxu0
      %v6245 = vsub.f32 %v6144, %v6227
      %v6246 = vsub.f32 %v6145, %v6232
      %v6247 = vsub.f32 %v6146, %v6237
      %v6248 = vsub.f32 %v6147, %v6242
      %v6249 = vmul.f32 %v6140, 2.0
      %v6250 = vmul.f32 %v6141, 2.0
      %v6251 = vmul.f32 %v6142, 2.0
      %v6252 = vmul.f32 %v6143, 2.0
      %6253 = vmatprep.subr.mxu0 0.0
      %6254 = vmatpush1.msra.mxu0 %v6140
      %6255 = vmatprep.subr.mxu0 0.0
      %6256 = vmatpush1.msra.mxu0 %v6141
      %6257 = vmatprep.subr.mxu0 0.0
      %6258 = vmatpush1.msra.mxu0 %v6142
      %6259 = vmatprep.subr.mxu0 0.0
      %6260 = vmatpush1.msra.mxu0 %v6143
      %6261 = vmatprep.subr.mxu0 0.0
      %6262 = vmatpush1.msra.mxu0 0.0
      %6263 = vmatprep.subr.mxu0 0.0
      %6264 = vmatpush1.msra.mxu0 0.0
      %6265 = vmatprep.subr.mxu0 0.0
      %6266 = vmatpush1.msra.mxu0 0.0
      %6267 = vmatprep.subr.mxu0 0.0
      %6268 = vmatpush1.msra.mxu0 0.0
      %6269 = vmatprep.subr.mxu0 0.0
      %6270 = vmatpush1.msra.mxu0 0.0
      %6271 = vmatprep.subr.mxu0 0.0
      %6272 = vmatpush1.msra.mxu0 0.0
      %6273 = vmatprep.subr.mxu0 0.0
      %6274 = vmatpush1.msra.mxu0 0.0
      %6275 = vmatprep.subr.mxu0 0.0
      %6276 = vmatpush1.msra.mxu0 0.0
      %6277 = vmatprep.subr.mxu0 0.0
      %6278 = vmatpush1.msra.mxu0 0.0
      %6279 = vmatprep.subr.mxu0 0.0
      %6280 = vmatpush1.msra.mxu0 0.0
      %6281 = vmatprep.subr.mxu0 0.0
      %6282 = vmatpush1.msra.mxu0 0.0
      %6283 = vmatprep.subr.mxu0 0.0
      %6284 = vmatpush1.msra.mxu0 0.0
      %6285 = vmatprep.subr.mxu0 0.0
      %6286 = vmatpush1.msra.mxu0 0.0
      %6287 = vmatprep.subr.mxu0 0.0
      %6288 = vmatpush1.msra.mxu0 0.0
      %6289 = vmatprep.subr.mxu0 0.0
      %6290 = vmatpush1.msra.mxu0 0.0
      %6291 = vmatprep.subr.mxu0 0.0
      %6292 = vmatpush1.msra.mxu0 0.0
      %6293 = vmatprep.subr.mxu0 0.0
      %6294 = vmatpush1.msra.mxu0 0.0
      %6295 = vmatprep.subr.mxu0 0.0
      %6296 = vmatpush1.msra.mxu0 0.0
      %6297 = vmatprep.subr.mxu0 0.0
      %6298 = vmatpush1.msra.mxu0 0.0
      %6299 = vmatprep.subr.mxu0 0.0
      %6300 = vmatpush1.msra.mxu0 0.0
      %6301 = vmatprep.subr.mxu0 0.0
      %6302 = vmatpush1.msra.mxu0 0.0
      %6303 = vmatprep.subr.mxu0 0.0
      %6304 = vmatpush1.msra.mxu0 0.0
      %6305 = vmatprep.subr.mxu0 0.0
      %6306 = vmatpush1.msra.mxu0 0.0
      %6307 = vmatprep.subr.mxu0 0.0
      %6308 = vmatpush1.msra.mxu0 0.0
      %6309 = vmatprep.subr.mxu0 0.0
      %6310 = vmatpush1.msra.mxu0 0.0
      %6311 = vmatprep.subr.mxu0 0.0
      %6312 = vmatpush1.msra.mxu0 0.0
      %6313 = vmatprep.subr.mxu0 0.0
      %6314 = vmatpush1.msra.mxu0 0.0
      %6315 = vmatprep.subr.mxu0 0.0
      %6316 = vmatpush1.msra.mxu0 0.0
      %6317 = vmatprep.mubr.f32.mxu0 0.0
      %6318 = vmatmul.mubr.f32.gmra.mrb[0].mxu0 %v6149
      %v6319 = vpop.f32.mrb[0].mxu0
      %v6320 = vadd.f32 0.0, %v6319
      %v6321 = vpop.f32.mrb[0].mxu0
      %6322 = vmatprep.mubr.f32.mxu0 0.0
      %6323 = vmatmul.mubr.f32.gmra.mrb[0].mxu0 %v6152
      %v6324 = vpop.f32.mrb[0].mxu0
      %v6325 = vadd.f32 0.0, %v6324
      %v6326 = vpop.f32.mrb[0].mxu0
      %6327 = vmatprep.mubr.f32.mxu0 0.0
      %6328 = vmatmul.mubr.f32.gmra.mrb[0].mxu0 %v6155
      %v6329 = vpop.f32.mrb[0].mxu0
      %v6330 = vadd.f32 0.0, %v6329
      %v6331 = vpop.f32.mrb[0].mxu0
      %6332 = vmatprep.mubr.f32.mxu0 0.0
      %6333 = vmatmul.mubr.f32.gmra.mrb[0].mxu0 %v6158
      %v6334 = vpop.f32.mrb[0].mxu0
      %v6335 = vadd.f32 0.0, %v6334
      %v6336 = vpop.f32.mrb[0].mxu0
      %6337 = vdwg.mxu0
      %v6338 = vsub.f32 %v6249, %v6320
      %v6339 = vsub.f32 %v6250, %v6325
      %v6340 = vsub.f32 %v6251, %v6330
      %v6341 = vsub.f32 %v6252, %v6335
      %v6342 = vmul.f32 %v6245, 2.0
      %v6343 = vmul.f32 %v6246, 2.0
      %v6344 = vmul.f32 %v6247, 2.0
      %v6345 = vmul.f32 %v6248, 2.0
      %v6347 = vsel %vm765, %v6338, 0
      %v6350 = vsel %vm765, %v6339, 0
      %v6353 = vsel %vm765, %v6340, 0
      %v6356 = vsel %vm765, %v6341, 0
      %6358 = vmatprep.subr.mxu0 0.0
      %6359 = vmatpush1.msra.mxu0 %v6245
      %6360 = vmatprep.subr.mxu0 0.0
      %6361 = vmatpush1.msra.mxu0 %v6246
      %6362 = vmatprep.subr.mxu0 0.0
      %6363 = vmatpush1.msra.mxu0 %v6247
      %6364 = vmatprep.subr.mxu0 0.0
      %6365 = vmatpush1.msra.mxu0 %v6248
      %6366 = vmatprep.subr.mxu0 0.0
      %6367 = vmatpush1.msra.mxu0 0.0
      %6368 = vmatprep.subr.mxu0 0.0
      %6369 = vmatpush1.msra.mxu0 0.0
      %6370 = vmatprep.subr.mxu0 0.0
      %6371 = vmatpush1.msra.mxu0 0.0
      %6372 = vmatprep.subr.mxu0 0.0
      %6373 = vmatpush1.msra.mxu0 0.0
      %6374 = vmatprep.subr.mxu0 0.0
      %6375 = vmatpush1.msra.mxu0 0.0
      %6376 = vmatprep.subr.mxu0 0.0
      %6377 = vmatpush1.msra.mxu0 0.0
      %6378 = vmatprep.subr.mxu0 0.0
      %6379 = vmatpush1.msra.mxu0 0.0
      %6380 = vmatprep.subr.mxu0 0.0
      %6381 = vmatpush1.msra.mxu0 0.0
      %6382 = vmatprep.subr.mxu0 0.0
      %6383 = vmatpush1.msra.mxu0 0.0
      %6384 = vmatprep.subr.mxu0 0.0
      %6385 = vmatpush1.msra.mxu0 0.0
      %6386 = vmatprep.subr.mxu0 0.0
      %6387 = vmatpush1.msra.mxu0 0.0
      %6388 = vmatprep.subr.mxu0 0.0
      %6389 = vmatpush1.msra.mxu0 0.0
      %6390 = vmatprep.subr.mxu0 0.0
      %6391 = vmatpush1.msra.mxu0 0.0
      %6392 = vmatprep.subr.mxu0 0.0
      %6393 = vmatpush1.msra.mxu0 0.0
      %6394 = vmatprep.subr.mxu0 0.0
      %6395 = vmatpush1.msra.mxu0 0.0
      %6396 = vmatprep.subr.mxu0 0.0
      %6397 = vmatpush1.msra.mxu0 0.0
      %6398 = vmatprep.subr.mxu0 0.0
      %6399 = vmatpush1.msra.mxu0 0.0
      %6400 = vmatprep.subr.mxu0 0.0
      %6401 = vmatpush1.msra.mxu0 0.0
      %6402 = vmatprep.subr.mxu0 0.0
      %6403 = vmatpush1.msra.mxu0 0.0
      %6404 = vmatprep.subr.mxu0 0.0
      %6405 = vmatpush1.msra.mxu0 0.0
      %6406 = vmatprep.subr.mxu0 0.0
      %6407 = vmatpush1.msra.mxu0 0.0
      %6408 = vmatprep.subr.mxu0 0.0
      %6409 = vmatpush1.msra.mxu0 0.0
      %6410 = vmatprep.subr.mxu0 0.0
      %6411 = vmatpush1.msra.mxu0 0.0
      %6412 = vmatprep.subr.mxu0 0.0
      %6413 = vmatpush1.msra.mxu0 0.0
      %6414 = vmatprep.subr.mxu0 0.0
      %6415 = vmatpush1.msra.mxu0 0.0
      %6416 = vmatprep.subr.mxu0 0.0
      %6417 = vmatpush1.msra.mxu0 0.0
      %6418 = vmatprep.subr.mxu0 0.0
      %6419 = vmatpush1.msra.mxu0 0.0
      %6420 = vmatprep.subr.mxu0 0.0
      %6421 = vmatpush1.msra.mxu0 0.0
      %6422 = vmatprep.mubr.f32.mxu0 0.0
      %6423 = vmatmul.mubr.f32.gmra.mrb[0].mxu0 %v6347
      %v6424 = vpop.f32.mrb[0].mxu0
      %v6425 = vadd.f32 0.0, %v6424
      %v6426 = vpop.f32.mrb[0].mxu0
      %6427 = vmatprep.mubr.f32.mxu0 0.0
      %6428 = vmatmul.mubr.f32.gmra.mrb[0].mxu0 %v6350
      %v6429 = vpop.f32.mrb[0].mxu0
      %v6430 = vadd.f32 0.0, %v6429
      %v6431 = vpop.f32.mrb[0].mxu0
      %6432 = vmatprep.mubr.f32.mxu0 0.0
      %6433 = vmatmul.mubr.f32.gmra.mrb[0].mxu0 %v6353
      %v6434 = vpop.f32.mrb[0].mxu0
      %v6435 = vadd.f32 0.0, %v6434
      %v6436 = vpop.f32.mrb[0].mxu0
      %6437 = vmatprep.mubr.f32.mxu0 0.0
      %6438 = vmatmul.mubr.f32.gmra.mrb[0].mxu0 %v6356
      %v6439 = vpop.f32.mrb[0].mxu0
      %v6440 = vadd.f32 0.0, %v6439
      %v6441 = vpop.f32.mrb[0].mxu0
      %6442 = vdwg.mxu0
      %v6443 = vsub.f32 %v6342, %v6425
      %v6444 = vsub.f32 %v6343, %v6430
      %v6445 = vsub.f32 %v6344, %v6435
      %v6446 = vsub.f32 %v6345, %v6440
      %v6447 = vmul.f32 %v6338, 2.0
      %v6448 = vmul.f32 %v6339, 2.0
      %v6449 = vmul.f32 %v6340, 2.0
      %v6450 = vmul.f32 %v6341, 2.0
      %6451 = vmatprep.subr.mxu0 0.0
      %6452 = vmatpush1.msra.mxu0 %v6338
      %6453 = vmatprep.subr.mxu0 0.0
      %6454 = vmatpush1.msra.mxu0 %v6339
      %6455 = vmatprep.subr.mxu0 0.0
      %6456 = vmatpush1.msra.mxu0 %v6340
      %6457 = vmatprep.subr.mxu0 0.0
      %6458 = vmatpush1.msra.mxu0 %v6341
      %6459 = vmatprep.subr.mxu0 0.0
      %6460 = vmatpush1.msra.mxu0 0.0
      %6461 = vmatprep.subr.mxu0 0.0
      %6462 = vmatpush1.msra.mxu0 0.0
      %6463 = vmatprep.subr.mxu0 0.0
      %6464 = vmatpush1.msra.mxu0 0.0
      %6465 = vmatprep.subr.mxu0 0.0
      %6466 = vmatpush1.msra.mxu0 0.0
      %6467 = vmatprep.subr.mxu0 0.0
      %6468 = vmatpush1.msra.mxu0 0.0
      %6469 = vmatprep.subr.mxu0 0.0
      %6470 = vmatpush1.msra.mxu0 0.0
      %6471 = vmatprep.subr.mxu0 0.0
      %6472 = vmatpush1.msra.mxu0 0.0
      %6473 = vmatprep.subr.mxu0 0.0
      %6474 = vmatpush1.msra.mxu0 0.0
      %6475 = vmatprep.subr.mxu0 0.0
      %6476 = vmatpush1.msra.mxu0 0.0
      %6477 = vmatprep.subr.mxu0 0.0
      %6478 = vmatpush1.msra.mxu0 0.0
      %6479 = vmatprep.subr.mxu0 0.0
      %6480 = vmatpush1.msra.mxu0 0.0
      %6481 = vmatprep.subr.mxu0 0.0
      %6482 = vmatpush1.msra.mxu0 0.0
      %6483 = vmatprep.subr.mxu0 0.0
      %6484 = vmatpush1.msra.mxu0 0.0
      %6485 = vmatprep.subr.mxu0 0.0
      %6486 = vmatpush1.msra.mxu0 0.0
      %6487 = vmatprep.subr.mxu0 0.0
      %6488 = vmatpush1.msra.mxu0 0.0
      %6489 = vmatprep.subr.mxu0 0.0
      %6490 = vmatpush1.msra.mxu0 0.0
      %6491 = vmatprep.subr.mxu0 0.0
      %6492 = vmatpush1.msra.mxu0 0.0
      %6493 = vmatprep.subr.mxu0 0.0
      %6494 = vmatpush1.msra.mxu0 0.0
      %6495 = vmatprep.subr.mxu0 0.0
      %6496 = vmatpush1.msra.mxu0 0.0
      %6497 = vmatprep.subr.mxu0 0.0
      %6498 = vmatpush1.msra.mxu0 0.0
      %6499 = vmatprep.subr.mxu0 0.0
      %6500 = vmatpush1.msra.mxu0 0.0
      %6501 = vmatprep.subr.mxu0 0.0
      %6502 = vmatpush1.msra.mxu0 0.0
      %6503 = vmatprep.subr.mxu0 0.0
      %6504 = vmatpush1.msra.mxu0 0.0
      %6505 = vmatprep.subr.mxu0 0.0
      %6506 = vmatpush1.msra.mxu0 0.0
      %6507 = vmatprep.subr.mxu0 0.0
      %6508 = vmatpush1.msra.mxu0 0.0
      %6509 = vmatprep.subr.mxu0 0.0
      %6510 = vmatpush1.msra.mxu0 0.0
      %6511 = vmatprep.subr.mxu0 0.0
      %6512 = vmatpush1.msra.mxu0 0.0
      %6513 = vmatprep.subr.mxu0 0.0
      %6514 = vmatpush1.msra.mxu0 0.0
      %6515 = vmatprep.mubr.f32.mxu0 0.0
      %6516 = vmatmul.mubr.f32.gmra.mrb[0].mxu0 %v6347
      %v6517 = vpop.f32.mrb[0].mxu0
      %v6518 = vadd.f32 0.0, %v6517
      %v6519 = vpop.f32.mrb[0].mxu0
      %6520 = vmatprep.mubr.f32.mxu0 0.0
      %6521 = vmatmul.mubr.f32.gmra.mrb[0].mxu0 %v6350
      %v6522 = vpop.f32.mrb[0].mxu0
      %v6523 = vadd.f32 0.0, %v6522
      %v6524 = vpop.f32.mrb[0].mxu0
      %6525 = vmatprep.mubr.f32.mxu0 0.0
      %6526 = vmatmul.mubr.f32.gmra.mrb[0].mxu0 %v6353
      %v6527 = vpop.f32.mrb[0].mxu0
      %v6528 = vadd.f32 0.0, %v6527
      %v6529 = vpop.f32.mrb[0].mxu0
      %6530 = vmatprep.mubr.f32.mxu0 0.0
      %6531 = vmatmul.mubr.f32.gmra.mrb[0].mxu0 %v6356
      %v6532 = vpop.f32.mrb[0].mxu0
      %v6533 = vadd.f32 0.0, %v6532
      %v6534 = vpop.f32.mrb[0].mxu0
      %6535 = vdwg.mxu0
      %v6536 = vsub.f32 %v6447, %v6518
      %v6537 = vsub.f32 %v6448, %v6523
      %v6538 = vsub.f32 %v6449, %v6528
      %v6539 = vsub.f32 %v6450, %v6533
      %v6540 = vmul.f32 %v6443, 2.0
      %v6541 = vmul.f32 %v6444, 2.0
      %v6542 = vmul.f32 %v6445, 2.0
      %v6543 = vmul.f32 %v6446, 2.0
      %v6545 = vsel %vm765, %v6536, 0
      %v6548 = vsel %vm765, %v6537, 0
      %v6551 = vsel %vm765, %v6538, 0
      %v6554 = vsel %vm765, %v6539, 0
      %6556 = vmatprep.subr.mxu0 0.0
      %6557 = vmatpush1.msra.mxu0 %v6443
      %6558 = vmatprep.subr.mxu0 0.0
      %6559 = vmatpush1.msra.mxu0 %v6444
      %6560 = vmatprep.subr.mxu0 0.0
      %6561 = vmatpush1.msra.mxu0 %v6445
      %6562 = vmatprep.subr.mxu0 0.0
      %6563 = vmatpush1.msra.mxu0 %v6446
      %6564 = vmatprep.subr.mxu0 0.0
      %6565 = vmatpush1.msra.mxu0 0.0
      %6566 = vmatprep.subr.mxu0 0.0
      %6567 = vmatpush1.msra.mxu0 0.0
      %6568 = vmatprep.subr.mxu0 0.0
      %6569 = vmatpush1.msra.mxu0 0.0
      %6570 = vmatprep.subr.mxu0 0.0
      %6571 = vmatpush1.msra.mxu0 0.0
      %6572 = vmatprep.subr.mxu0 0.0
      %6573 = vmatpush1.msra.mxu0 0.0
      %6574 = vmatprep.subr.mxu0 0.0
      %6575 = vmatpush1.msra.mxu0 0.0
      %6576 = vmatprep.subr.mxu0 0.0
      %6577 = vmatpush1.msra.mxu0 0.0
      %6578 = vmatprep.subr.mxu0 0.0
      %6579 = vmatpush1.msra.mxu0 0.0
      %6580 = vmatprep.subr.mxu0 0.0
      %6581 = vmatpush1.msra.mxu0 0.0
      %6582 = vmatprep.subr.mxu0 0.0
      %6583 = vmatpush1.msra.mxu0 0.0
      %6584 = vmatprep.subr.mxu0 0.0
      %6585 = vmatpush1.msra.mxu0 0.0
      %6586 = vmatprep.subr.mxu0 0.0
      %6587 = vmatpush1.msra.mxu0 0.0
      %6588 = vmatprep.subr.mxu0 0.0
      %6589 = vmatpush1.msra.mxu0 0.0
      %6590 = vmatprep.subr.mxu0 0.0
      %6591 = vmatpush1.msra.mxu0 0.0
      %6592 = vmatprep.subr.mxu0 0.0
      %6593 = vmatpush1.msra.mxu0 0.0
      %6594 = vmatprep.subr.mxu0 0.0
      %6595 = vmatpush1.msra.mxu0 0.0
      %6596 = vmatprep.subr.mxu0 0.0
      %6597 = vmatpush1.msra.mxu0 0.0
      %6598 = vmatprep.subr.mxu0 0.0
      %6599 = vmatpush1.msra.mxu0 0.0
      %6600 = vmatprep.subr.mxu0 0.0
      %6601 = vmatpush1.msra.mxu0 0.0
      %6602 = vmatprep.subr.mxu0 0.0
      %6603 = vmatpush1.msra.mxu0 0.0
      %6604 = vmatprep.subr.mxu0 0.0
      %6605 = vmatpush1.msra.mxu0 0.0
      %6606 = vmatprep.subr.mxu0 0.0
      %6607 = vmatpush1.msra.mxu0 0.0
      %6608 = vmatprep.subr.mxu0 0.0
      %6609 = vmatpush1.msra.mxu0 0.0
      %6610 = vmatprep.subr.mxu0 0.0
      %6611 = vmatpush1.msra.mxu0 0.0
      %6612 = vmatprep.subr.mxu0 0.0
      %6613 = vmatpush1.msra.mxu0 0.0
      %6614 = vmatprep.subr.mxu0 0.0
      %6615 = vmatpush1.msra.mxu0 0.0
      %6616 = vmatprep.subr.mxu0 0.0
      %6617 = vmatpush1.msra.mxu0 0.0
      %6618 = vmatprep.subr.mxu0 0.0
      %6619 = vmatpush1.msra.mxu0 0.0
      %6620 = vmatprep.mubr.f32.mxu0 0.0
      %6621 = vmatmul.mubr.f32.gmra.mrb[0].mxu0 %v6545
      %v6622 = vpop.f32.mrb[0].mxu0
      %v6623 = vadd.f32 0.0, %v6622
      %v6624 = vpop.f32.mrb[0].mxu0
      %6625 = vmatprep.mubr.f32.mxu0 0.0
      %6626 = vmatmul.mubr.f32.gmra.mrb[0].mxu0 %v6548
      %v6627 = vpop.f32.mrb[0].mxu0
      %v6628 = vadd.f32 0.0, %v6627
      %v6629 = vpop.f32.mrb[0].mxu0
      %6630 = vmatprep.mubr.f32.mxu0 0.0
      %6631 = vmatmul.mubr.f32.gmra.mrb[0].mxu0 %v6551
      %v6632 = vpop.f32.mrb[0].mxu0
      %v6633 = vadd.f32 0.0, %v6632
      %v6634 = vpop.f32.mrb[0].mxu0
      %6635 = vmatprep.mubr.f32.mxu0 0.0
      %6636 = vmatmul.mubr.f32.gmra.mrb[0].mxu0 %v6554
      %v6637 = vpop.f32.mrb[0].mxu0
      %v6638 = vadd.f32 0.0, %v6637
      %v6639 = vpop.f32.mrb[0].mxu0
      %6640 = vdwg.mxu0
      %v6641 = vsub.f32 %v6540, %v6623
      %v6642 = vsub.f32 %v6541, %v6628
      %v6643 = vsub.f32 %v6542, %v6633
      %v6644 = vsub.f32 %v6543, %v6638
      %v6645 = vmul.f32 %v6536, 2.0
      %v6646 = vmul.f32 %v6537, 2.0
      %v6647 = vmul.f32 %v6538, 2.0
      %v6648 = vmul.f32 %v6539, 2.0
      %6649 = vmatprep.subr.mxu0 0.0
      %6650 = vmatpush1.msra.mxu0 %v6536
      %6651 = vmatprep.subr.mxu0 0.0
      %6652 = vmatpush1.msra.mxu0 %v6537
      %6653 = vmatprep.subr.mxu0 0.0
      %6654 = vmatpush1.msra.mxu0 %v6538
      %6655 = vmatprep.subr.mxu0 0.0
      %6656 = vmatpush1.msra.mxu0 %v6539
      %6657 = vmatprep.subr.mxu0 0.0
      %6658 = vmatpush1.msra.mxu0 0.0
      %6659 = vmatprep.subr.mxu0 0.0
      %6660 = vmatpush1.msra.mxu0 0.0
      %6661 = vmatprep.subr.mxu0 0.0
      %6662 = vmatpush1.msra.mxu0 0.0
      %6663 = vmatprep.subr.mxu0 0.0
      %6664 = vmatpush1.msra.mxu0 0.0
      %6665 = vmatprep.subr.mxu0 0.0
      %6666 = vmatpush1.msra.mxu0 0.0
      %6667 = vmatprep.subr.mxu0 0.0
      %6668 = vmatpush1.msra.mxu0 0.0
      %6669 = vmatprep.subr.mxu0 0.0
      %6670 = vmatpush1.msra.mxu0 0.0
      %6671 = vmatprep.subr.mxu0 0.0
      %6672 = vmatpush1.msra.mxu0 0.0
      %6673 = vmatprep.subr.mxu0 0.0
      %6674 = vmatpush1.msra.mxu0 0.0
      %6675 = vmatprep.subr.mxu0 0.0
      %6676 = vmatpush1.msra.mxu0 0.0
      %6677 = vmatprep.subr.mxu0 0.0
      %6678 = vmatpush1.msra.mxu0 0.0
      %6679 = vmatprep.subr.mxu0 0.0
      %6680 = vmatpush1.msra.mxu0 0.0
      %6681 = vmatprep.subr.mxu0 0.0
      %6682 = vmatpush1.msra.mxu0 0.0
      %6683 = vmatprep.subr.mxu0 0.0
      %6684 = vmatpush1.msra.mxu0 0.0
      %6685 = vmatprep.subr.mxu0 0.0
      %6686 = vmatpush1.msra.mxu0 0.0
      %6687 = vmatprep.subr.mxu0 0.0
      %6688 = vmatpush1.msra.mxu0 0.0
      %6689 = vmatprep.subr.mxu0 0.0
      %6690 = vmatpush1.msra.mxu0 0.0
      %6691 = vmatprep.subr.mxu0 0.0
      %6692 = vmatpush1.msra.mxu0 0.0
      %6693 = vmatprep.subr.mxu0 0.0
      %6694 = vmatpush1.msra.mxu0 0.0
      %6695 = vmatprep.subr.mxu0 0.0
      %6696 = vmatpush1.msra.mxu0 0.0
      %6697 = vmatprep.subr.mxu0 0.0
      %6698 = vmatpush1.msra.mxu0 0.0
      %6699 = vmatprep.subr.mxu0 0.0
      %6700 = vmatpush1.msra.mxu0 0.0
      %6701 = vmatprep.subr.mxu0 0.0
      %6702 = vmatpush1.msra.mxu0 0.0
      %6703 = vmatprep.subr.mxu0 0.0
      %6704 = vmatpush1.msra.mxu0 0.0
      %6705 = vmatprep.subr.mxu0 0.0
      %6706 = vmatpush1.msra.mxu0 0.0
      %6707 = vmatprep.subr.mxu0 0.0
      %6708 = vmatpush1.msra.mxu0 0.0
      %6709 = vmatprep.subr.mxu0 0.0
      %6710 = vmatpush1.msra.mxu0 0.0
      %6711 = vmatprep.subr.mxu0 0.0
      %6712 = vmatpush1.msra.mxu0 0.0
      %6713 = vmatprep.mubr.f32.mxu0 0.0
      %6714 = vmatmul.mubr.f32.gmra.mrb[0].mxu0 %v6545
      %v6715 = vpop.f32.mrb[0].mxu0
      %v6716 = vadd.f32 0.0, %v6715
      %v6717 = vpop.f32.mrb[0].mxu0
      %6718 = vmatprep.mubr.f32.mxu0 0.0
      %6719 = vmatmul.mubr.f32.gmra.mrb[0].mxu0 %v6548
      %v6720 = vpop.f32.mrb[0].mxu0
      %v6721 = vadd.f32 0.0, %v6720
      %v6722 = vpop.f32.mrb[0].mxu0
      %6723 = vmatprep.mubr.f32.mxu0 0.0
      %6724 = vmatmul.mubr.f32.gmra.mrb[0].mxu0 %v6551
      %v6725 = vpop.f32.mrb[0].mxu0
      %v6726 = vadd.f32 0.0, %v6725
      %v6727 = vpop.f32.mrb[0].mxu0
      %6728 = vmatprep.mubr.f32.mxu0 0.0
      %6729 = vmatmul.mubr.f32.gmra.mrb[0].mxu0 %v6554
      %v6730 = vpop.f32.mrb[0].mxu0
      %v6731 = vadd.f32 0.0, %v6730
      %v6732 = vpop.f32.mrb[0].mxu0
      %6733 = vdwg.mxu0
      %v6734 = vsub.f32 %v6645, %v6716
      %v6735 = vsub.f32 %v6646, %v6721
      %v6736 = vsub.f32 %v6647, %v6726
      %v6737 = vsub.f32 %v6648, %v6731
      %v6738 = vmul.f32 %v6641, 2.0
      %v6739 = vmul.f32 %v6642, 2.0
      %v6740 = vmul.f32 %v6643, 2.0
      %v6741 = vmul.f32 %v6644, 2.0
      %v6743 = vsel %vm765, %v6734, 0
      %v6746 = vsel %vm765, %v6735, 0
      %v6749 = vsel %vm765, %v6736, 0
      %v6752 = vsel %vm765, %v6737, 0
      %6754 = vmatprep.subr.mxu0 0.0
      %6755 = vmatpush1.msra.mxu0 %v6641
      %6756 = vmatprep.subr.mxu0 0.0
      %6757 = vmatpush1.msra.mxu0 %v6642
      %6758 = vmatprep.subr.mxu0 0.0
      %6759 = vmatpush1.msra.mxu0 %v6643
      %6760 = vmatprep.subr.mxu0 0.0
      %6761 = vmatpush1.msra.mxu0 %v6644
      %6762 = vmatprep.subr.mxu0 0.0
      %6763 = vmatpush1.msra.mxu0 0.0
      %6764 = vmatprep.subr.mxu0 0.0
      %6765 = vmatpush1.msra.mxu0 0.0
      %6766 = vmatprep.subr.mxu0 0.0
      %6767 = vmatpush1.msra.mxu0 0.0
      %6768 = vmatprep.subr.mxu0 0.0
      %6769 = vmatpush1.msra.mxu0 0.0
      %6770 = vmatprep.subr.mxu0 0.0
      %6771 = vmatpush1.msra.mxu0 0.0
      %6772 = vmatprep.subr.mxu0 0.0
      %6773 = vmatpush1.msra.mxu0 0.0
      %6774 = vmatprep.subr.mxu0 0.0
      %6775 = vmatpush1.msra.mxu0 0.0
      %6776 = vmatprep.subr.mxu0 0.0
      %6777 = vmatpush1.msra.mxu0 0.0
      %6778 = vmatprep.subr.mxu0 0.0
      %6779 = vmatpush1.msra.mxu0 0.0
      %6780 = vmatprep.subr.mxu0 0.0
      %6781 = vmatpush1.msra.mxu0 0.0
      %6782 = vmatprep.subr.mxu0 0.0
      %6783 = vmatpush1.msra.mxu0 0.0
      %6784 = vmatprep.subr.mxu0 0.0
      %6785 = vmatpush1.msra.mxu0 0.0
      %6786 = vmatprep.subr.mxu0 0.0
      %6787 = vmatpush1.msra.mxu0 0.0
      %6788 = vmatprep.subr.mxu0 0.0
      %6789 = vmatpush1.msra.mxu0 0.0
      %6790 = vmatprep.subr.mxu0 0.0
      %6791 = vmatpush1.msra.mxu0 0.0
      %6792 = vmatprep.subr.mxu0 0.0
      %6793 = vmatpush1.msra.mxu0 0.0
      %6794 = vmatprep.subr.mxu0 0.0
      %6795 = vmatpush1.msra.mxu0 0.0
      %6796 = vmatprep.subr.mxu0 0.0
      %6797 = vmatpush1.msra.mxu0 0.0
      %6798 = vmatprep.subr.mxu0 0.0
      %6799 = vmatpush1.msra.mxu0 0.0
      %6800 = vmatprep.subr.mxu0 0.0
      %6801 = vmatpush1.msra.mxu0 0.0
      %6802 = vmatprep.subr.mxu0 0.0
      %6803 = vmatpush1.msra.mxu0 0.0
      %6804 = vmatprep.subr.mxu0 0.0
      %6805 = vmatpush1.msra.mxu0 0.0
      %6806 = vmatprep.subr.mxu0 0.0
      %6807 = vmatpush1.msra.mxu0 0.0
      %6808 = vmatprep.subr.mxu0 0.0
      %6809 = vmatpush1.msra.mxu0 0.0
      %6810 = vmatprep.subr.mxu0 0.0
      %6811 = vmatpush1.msra.mxu0 0.0
      %6812 = vmatprep.subr.mxu0 0.0
      %6813 = vmatpush1.msra.mxu0 0.0
      %6814 = vmatprep.subr.mxu0 0.0
      %6815 = vmatpush1.msra.mxu0 0.0
      %6816 = vmatprep.subr.mxu0 0.0
      %6817 = vmatpush1.msra.mxu0 0.0
      %6818 = vmatprep.mubr.f32.mxu0 0.0
      %6819 = vmatmul.mubr.f32.gmra.mrb[0].mxu0 %v6743
      %v6820 = vpop.f32.mrb[0].mxu0
      %v6821 = vadd.f32 0.0, %v6820
      %v6822 = vpop.f32.mrb[0].mxu0
      %6823 = vmatprep.mubr.f32.mxu0 0.0
      %6824 = vmatmul.mubr.f32.gmra.mrb[0].mxu0 %v6746
      %v6825 = vpop.f32.mrb[0].mxu0
      %v6826 = vadd.f32 0.0, %v6825
      %v6827 = vpop.f32.mrb[0].mxu0
      %6828 = vmatprep.mubr.f32.mxu0 0.0
      %6829 = vmatmul.mubr.f32.gmra.mrb[0].mxu0 %v6749
      %v6830 = vpop.f32.mrb[0].mxu0
      %v6831 = vadd.f32 0.0, %v6830
      %v6832 = vpop.f32.mrb[0].mxu0
      %6833 = vmatprep.mubr.f32.mxu0 0.0
      %6834 = vmatmul.mubr.f32.gmra.mrb[0].mxu0 %v6752
      %v6835 = vpop.f32.mrb[0].mxu0
      %v6836 = vadd.f32 0.0, %v6835
      %v6837 = vpop.f32.mrb[0].mxu0
      %6838 = vdwg.mxu0
      %v6839 = vsub.f32 %v6738, %v6821
      %v6840 = vsub.f32 %v6739, %v6826
      %v6841 = vsub.f32 %v6740, %v6831
      %v6842 = vsub.f32 %v6741, %v6836
      %v6843 = vmul.f32 %v6734, 2.0
      %v6844 = vmul.f32 %v6735, 2.0
      %v6845 = vmul.f32 %v6736, 2.0
      %v6846 = vmul.f32 %v6737, 2.0
      %6847 = vmatprep.subr.mxu0 0.0
      %6848 = vmatpush1.msra.mxu0 %v6734
      %6849 = vmatprep.subr.mxu0 0.0
      %6850 = vmatpush1.msra.mxu0 %v6735
      %6851 = vmatprep.subr.mxu0 0.0
      %6852 = vmatpush1.msra.mxu0 %v6736
      %6853 = vmatprep.subr.mxu0 0.0
      %6854 = vmatpush1.msra.mxu0 %v6737
      %6855 = vmatprep.subr.mxu0 0.0
      %6856 = vmatpush1.msra.mxu0 0.0
      %6857 = vmatprep.subr.mxu0 0.0
      %6858 = vmatpush1.msra.mxu0 0.0
      %6859 = vmatprep.subr.mxu0 0.0
      %6860 = vmatpush1.msra.mxu0 0.0
      %6861 = vmatprep.subr.mxu0 0.0
      %6862 = vmatpush1.msra.mxu0 0.0
      %6863 = vmatprep.subr.mxu0 0.0
      %6864 = vmatpush1.msra.mxu0 0.0
      %6865 = vmatprep.subr.mxu0 0.0
      %6866 = vmatpush1.msra.mxu0 0.0
      %6867 = vmatprep.subr.mxu0 0.0
      %6868 = vmatpush1.msra.mxu0 0.0
      %6869 = vmatprep.subr.mxu0 0.0
      %6870 = vmatpush1.msra.mxu0 0.0
      %6871 = vmatprep.subr.mxu0 0.0
      %6872 = vmatpush1.msra.mxu0 0.0
      %6873 = vmatprep.subr.mxu0 0.0
      %6874 = vmatpush1.msra.mxu0 0.0
      %6875 = vmatprep.subr.mxu0 0.0
      %6876 = vmatpush1.msra.mxu0 0.0
      %6877 = vmatprep.subr.mxu0 0.0
      %6878 = vmatpush1.msra.mxu0 0.0
      %6879 = vmatprep.subr.mxu0 0.0
      %6880 = vmatpush1.msra.mxu0 0.0
      %6881 = vmatprep.subr.mxu0 0.0
      %6882 = vmatpush1.msra.mxu0 0.0
      %6883 = vmatprep.subr.mxu0 0.0
      %6884 = vmatpush1.msra.mxu0 0.0
      %6885 = vmatprep.subr.mxu0 0.0
      %6886 = vmatpush1.msra.mxu0 0.0
      %6887 = vmatprep.subr.mxu0 0.0
      %6888 = vmatpush1.msra.mxu0 0.0
      %6889 = vmatprep.subr.mxu0 0.0
      %6890 = vmatpush1.msra.mxu0 0.0
      %6891 = vmatprep.subr.mxu0 0.0
      %6892 = vmatpush1.msra.mxu0 0.0
      %6893 = vmatprep.subr.mxu0 0.0
      %6894 = vmatpush1.msra.mxu0 0.0
      %6895 = vmatprep.subr.mxu0 0.0
      %6896 = vmatpush1.msra.mxu0 0.0
      %6897 = vmatprep.subr.mxu0 0.0
      %6898 = vmatpush1.msra.mxu0 0.0
      %6899 = vmatprep.subr.mxu0 0.0
      %6900 = vmatpush1.msra.mxu0 0.0
      %6901 = vmatprep.subr.mxu0 0.0
      %6902 = vmatpush1.msra.mxu0 0.0
      %6903 = vmatprep.subr.mxu0 0.0
      %6904 = vmatpush1.msra.mxu0 0.0
      %6905 = vmatprep.subr.mxu0 0.0
      %6906 = vmatpush1.msra.mxu0 0.0
      %6907 = vmatprep.subr.mxu0 0.0
      %6908 = vmatpush1.msra.mxu0 0.0
      %6909 = vmatprep.subr.mxu0 0.0
      %6910 = vmatpush1.msra.mxu0 0.0
      %6911 = vmatprep.mubr.f32.mxu0 0.0
      %6912 = vmatmul.mubr.f32.gmra.mrb[0].mxu0 %v6743
      %v6913 = vpop.f32.mrb[0].mxu0
      %v6914 = vadd.f32 0.0, %v6913
      %v6915 = vpop.f32.mrb[0].mxu0
      %6916 = vmatprep.mubr.f32.mxu0 0.0
      %6917 = vmatmul.mubr.f32.gmra.mrb[0].mxu0 %v6746
      %v6918 = vpop.f32.mrb[0].mxu0
      %v6919 = vadd.f32 0.0, %v6918
      %v6920 = vpop.f32.mrb[0].mxu0
      %6921 = vmatprep.mubr.f32.mxu0 0.0
      %6922 = vmatmul.mubr.f32.gmra.mrb[0].mxu0 %v6749
      %v6923 = vpop.f32.mrb[0].mxu0
      %v6924 = vadd.f32 0.0, %v6923
      %v6925 = vpop.f32.mrb[0].mxu0
      %6926 = vmatprep.mubr.f32.mxu0 0.0
      %6927 = vmatmul.mubr.f32.gmra.mrb[0].mxu0 %v6752
      %v6928 = vpop.f32.mrb[0].mxu0
      %v6929 = vadd.f32 0.0, %v6928
      %v6930 = vpop.f32.mrb[0].mxu0
      %6931 = vdwg.mxu0
      %v6932 = vsub.f32 %v6843, %v6914
      %v6933 = vsub.f32 %v6844, %v6919
      %v6934 = vsub.f32 %v6845, %v6924
      %v6935 = vsub.f32 %v6846, %v6929
      %v6936 = vmul.f32 %v6839, 2.0
      %v6937 = vmul.f32 %v6840, 2.0
      %v6938 = vmul.f32 %v6841, 2.0
      %v6939 = vmul.f32 %v6842, 2.0
      %v6941 = vsel %vm765, %v6932, 0
      %v6944 = vsel %vm765, %v6933, 0
      %v6947 = vsel %vm765, %v6934, 0
      %v6950 = vsel %vm765, %v6935, 0
      %6952 = vmatprep.subr.mxu0 0.0
      %6953 = vmatpush1.msra.mxu0 %v6839
      %6954 = vmatprep.subr.mxu0 0.0
      %6955 = vmatpush1.msra.mxu0 %v6840
      %6956 = vmatprep.subr.mxu0 0.0
      %6957 = vmatpush1.msra.mxu0 %v6841
      %6958 = vmatprep.subr.mxu0 0.0
      %6959 = vmatpush1.msra.mxu0 %v6842
      %6960 = vmatprep.subr.mxu0 0.0
      %6961 = vmatpush1.msra.mxu0 0.0
      %6962 = vmatprep.subr.mxu0 0.0
      %6963 = vmatpush1.msra.mxu0 0.0
      %6964 = vmatprep.subr.mxu0 0.0
      %6965 = vmatpush1.msra.mxu0 0.0
      %6966 = vmatprep.subr.mxu0 0.0
      %6967 = vmatpush1.msra.mxu0 0.0
      %6968 = vmatprep.subr.mxu0 0.0
      %6969 = vmatpush1.msra.mxu0 0.0
      %6970 = vmatprep.subr.mxu0 0.0
      %6971 = vmatpush1.msra.mxu0 0.0
      %6972 = vmatprep.subr.mxu0 0.0
      %6973 = vmatpush1.msra.mxu0 0.0
      %6974 = vmatprep.subr.mxu0 0.0
      %6975 = vmatpush1.msra.mxu0 0.0
      %6976 = vmatprep.subr.mxu0 0.0
      %6977 = vmatpush1.msra.mxu0 0.0
      %6978 = vmatprep.subr.mxu0 0.0
      %6979 = vmatpush1.msra.mxu0 0.0
      %6980 = vmatprep.subr.mxu0 0.0
      %6981 = vmatpush1.msra.mxu0 0.0
      %6982 = vmatprep.subr.mxu0 0.0
      %6983 = vmatpush1.msra.mxu0 0.0
      %6984 = vmatprep.subr.mxu0 0.0
      %6985 = vmatpush1.msra.mxu0 0.0
      %6986 = vmatprep.subr.mxu0 0.0
      %6987 = vmatpush1.msra.mxu0 0.0
      %6988 = vmatprep.subr.mxu0 0.0
      %6989 = vmatpush1.msra.mxu0 0.0
      %6990 = vmatprep.subr.mxu0 0.0
      %6991 = vmatpush1.msra.mxu0 0.0
      %6992 = vmatprep.subr.mxu0 0.0
      %6993 = vmatpush1.msra.mxu0 0.0
      %6994 = vmatprep.subr.mxu0 0.0
      %6995 = vmatpush1.msra.mxu0 0.0
      %6996 = vmatprep.subr.mxu0 0.0
      %6997 = vmatpush1.msra.mxu0 0.0
      %6998 = vmatprep.subr.mxu0 0.0
      %6999 = vmatpush1.msra.mxu0 0.0
      %7000 = vmatprep.subr.mxu0 0.0
      %7001 = vmatpush1.msra.mxu0 0.0
      %7002 = vmatprep.subr.mxu0 0.0
      %7003 = vmatpush1.msra.mxu0 0.0
      %7004 = vmatprep.subr.mxu0 0.0
      %7005 = vmatpush1.msra.mxu0 0.0
      %7006 = vmatprep.subr.mxu0 0.0
      %7007 = vmatpush1.msra.mxu0 0.0
      %7008 = vmatprep.subr.mxu0 0.0
      %7009 = vmatpush1.msra.mxu0 0.0
      %7010 = vmatprep.subr.mxu0 0.0
      %7011 = vmatpush1.msra.mxu0 0.0
      %7012 = vmatprep.subr.mxu0 0.0
      %7013 = vmatpush1.msra.mxu0 0.0
      %7014 = vmatprep.subr.mxu0 0.0
      %7015 = vmatpush1.msra.mxu0 0.0
      %7016 = vmatprep.mubr.f32.mxu0 0.0
      %7017 = vmatmul.mubr.f32.gmra.mrb[0].mxu0 %v6941
      %v7018 = vpop.f32.mrb[0].mxu0
      %v7019 = vadd.f32 0.0, %v7018
      %v7020 = vpop.f32.mrb[0].mxu0
      %7021 = vmatprep.mubr.f32.mxu0 0.0
      %7022 = vmatmul.mubr.f32.gmra.mrb[0].mxu0 %v6944
      %v7023 = vpop.f32.mrb[0].mxu0
      %v7024 = vadd.f32 0.0, %v7023
      %v7025 = vpop.f32.mrb[0].mxu0
      %7026 = vmatprep.mubr.f32.mxu0 0.0
      %7027 = vmatmul.mubr.f32.gmra.mrb[0].mxu0 %v6947
      %v7028 = vpop.f32.mrb[0].mxu0
      %v7029 = vadd.f32 0.0, %v7028
      %v7030 = vpop.f32.mrb[0].mxu0
      %7031 = vmatprep.mubr.f32.mxu0 0.0
      %7032 = vmatmul.mubr.f32.gmra.mrb[0].mxu0 %v6950
      %v7033 = vpop.f32.mrb[0].mxu0
      %v7034 = vadd.f32 0.0, %v7033
      %v7035 = vpop.f32.mrb[0].mxu0
      %7036 = vdwg.mxu0
      %v7037 = vsub.f32 %v6936, %v7019
      %v7038 = vsub.f32 %v6937, %v7024
      %v7039 = vsub.f32 %v6938, %v7029
      %v7040 = vsub.f32 %v6939, %v7034
      %v7041 = vmul.f32 %v6932, 2.0
      %v7042 = vmul.f32 %v6933, 2.0
      %v7043 = vmul.f32 %v6934, 2.0
      %v7044 = vmul.f32 %v6935, 2.0
      %7045 = vmatprep.subr.mxu0 0.0
      %7046 = vmatpush1.msra.mxu0 %v6932
      %7047 = vmatprep.subr.mxu0 0.0
      %7048 = vmatpush1.msra.mxu0 %v6933
      %7049 = vmatprep.subr.mxu0 0.0
      %7050 = vmatpush1.msra.mxu0 %v6934
      %7051 = vmatprep.subr.mxu0 0.0
      %7052 = vmatpush1.msra.mxu0 %v6935
      %7053 = vmatprep.subr.mxu0 0.0
      %7054 = vmatpush1.msra.mxu0 0.0
      %7055 = vmatprep.subr.mxu0 0.0
      %7056 = vmatpush1.msra.mxu0 0.0
      %7057 = vmatprep.subr.mxu0 0.0
      %7058 = vmatpush1.msra.mxu0 0.0
      %7059 = vmatprep.subr.mxu0 0.0
      %7060 = vmatpush1.msra.mxu0 0.0
      %7061 = vmatprep.subr.mxu0 0.0
      %7062 = vmatpush1.msra.mxu0 0.0
      %7063 = vmatprep.subr.mxu0 0.0
      %7064 = vmatpush1.msra.mxu0 0.0
      %7065 = vmatprep.subr.mxu0 0.0
      %7066 = vmatpush1.msra.mxu0 0.0
      %7067 = vmatprep.subr.mxu0 0.0
      %7068 = vmatpush1.msra.mxu0 0.0
      %7069 = vmatprep.subr.mxu0 0.0
      %7070 = vmatpush1.msra.mxu0 0.0
      %7071 = vmatprep.subr.mxu0 0.0
      %7072 = vmatpush1.msra.mxu0 0.0
      %7073 = vmatprep.subr.mxu0 0.0
      %7074 = vmatpush1.msra.mxu0 0.0
      %7075 = vmatprep.subr.mxu0 0.0
      %7076 = vmatpush1.msra.mxu0 0.0
      %7077 = vmatprep.subr.mxu0 0.0
      %7078 = vmatpush1.msra.mxu0 0.0
      %7079 = vmatprep.subr.mxu0 0.0
      %7080 = vmatpush1.msra.mxu0 0.0
      %7081 = vmatprep.subr.mxu0 0.0
      %7082 = vmatpush1.msra.mxu0 0.0
      %7083 = vmatprep.subr.mxu0 0.0
      %7084 = vmatpush1.msra.mxu0 0.0
      %7085 = vmatprep.subr.mxu0 0.0
      %7086 = vmatpush1.msra.mxu0 0.0
      %7087 = vmatprep.subr.mxu0 0.0
      %7088 = vmatpush1.msra.mxu0 0.0
      %7089 = vmatprep.subr.mxu0 0.0
      %7090 = vmatpush1.msra.mxu0 0.0
      %7091 = vmatprep.subr.mxu0 0.0
      %7092 = vmatpush1.msra.mxu0 0.0
      %7093 = vmatprep.subr.mxu0 0.0
      %7094 = vmatpush1.msra.mxu0 0.0
      %7095 = vmatprep.subr.mxu0 0.0
      %7096 = vmatpush1.msra.mxu0 0.0
      %7097 = vmatprep.subr.mxu0 0.0
      %7098 = vmatpush1.msra.mxu0 0.0
      %7099 = vmatprep.subr.mxu0 0.0
      %7100 = vmatpush1.msra.mxu0 0.0
      %7101 = vmatprep.subr.mxu0 0.0
      %7102 = vmatpush1.msra.mxu0 0.0
      %7103 = vmatprep.subr.mxu0 0.0
      %7104 = vmatpush1.msra.mxu0 0.0
      %7105 = vmatprep.subr.mxu0 0.0
      %7106 = vmatpush1.msra.mxu0 0.0
      %7107 = vmatprep.subr.mxu0 0.0
      %7108 = vmatpush1.msra.mxu0 0.0
      %7109 = vmatprep.mubr.f32.mxu0 0.0
      %7110 = vmatmul.mubr.f32.gmra.mrb[0].mxu0 %v6941
      %v7111 = vpop.f32.mrb[0].mxu0
      %v7112 = vadd.f32 0.0, %v7111
      %v7113 = vpop.f32.mrb[0].mxu0
      %7114 = vmatprep.mubr.f32.mxu0 0.0
      %7115 = vmatmul.mubr.f32.gmra.mrb[0].mxu0 %v6944
      %v7116 = vpop.f32.mrb[0].mxu0
      %v7117 = vadd.f32 0.0, %v7116
      %v7118 = vpop.f32.mrb[0].mxu0
      %7119 = vmatprep.mubr.f32.mxu0 0.0
      %7120 = vmatmul.mubr.f32.gmra.mrb[0].mxu0 %v6947
      %v7121 = vpop.f32.mrb[0].mxu0
      %v7122 = vadd.f32 0.0, %v7121
      %v7123 = vpop.f32.mrb[0].mxu0
      %7124 = vmatprep.mubr.f32.mxu0 0.0
      %7125 = vmatmul.mubr.f32.gmra.mrb[0].mxu0 %v6950
      %v7126 = vpop.f32.mrb[0].mxu0
      %v7127 = vadd.f32 0.0, %v7126
      %v7128 = vpop.f32.mrb[0].mxu0
      %7129 = vdwg.mxu0
      %v7130 = vsub.f32 %v7041, %v7112
      %v7131 = vsub.f32 %v7042, %v7117
      %v7132 = vsub.f32 %v7043, %v7122
      %v7133 = vsub.f32 %v7044, %v7127
      %v7134 = vmul.f32 %v7037, 2.0
      %v7135 = vmul.f32 %v7038, 2.0
      %v7136 = vmul.f32 %v7039, 2.0
      %v7137 = vmul.f32 %v7040, 2.0
      %v7139 = vsel %vm765, %v7130, 0
      %v7142 = vsel %vm765, %v7131, 0
      %v7145 = vsel %vm765, %v7132, 0
      %v7148 = vsel %vm765, %v7133, 0
      %7150 = vmatprep.subr.mxu0 0.0
      %7151 = vmatpush1.msra.mxu0 %v7037
      %7152 = vmatprep.subr.mxu0 0.0
      %7153 = vmatpush1.msra.mxu0 %v7038
      %7154 = vmatprep.subr.mxu0 0.0
      %7155 = vmatpush1.msra.mxu0 %v7039
      %7156 = vmatprep.subr.mxu0 0.0
      %7157 = vmatpush1.msra.mxu0 %v7040
      %7158 = vmatprep.subr.mxu0 0.0
      %7159 = vmatpush1.msra.mxu0 0.0
      %7160 = vmatprep.subr.mxu0 0.0
      %7161 = vmatpush1.msra.mxu0 0.0
      %7162 = vmatprep.subr.mxu0 0.0
      %7163 = vmatpush1.msra.mxu0 0.0
      %7164 = vmatprep.subr.mxu0 0.0
      %7165 = vmatpush1.msra.mxu0 0.0
      %7166 = vmatprep.subr.mxu0 0.0
      %7167 = vmatpush1.msra.mxu0 0.0
      %7168 = vmatprep.subr.mxu0 0.0
      %7169 = vmatpush1.msra.mxu0 0.0
      %7170 = vmatprep.subr.mxu0 0.0
      %7171 = vmatpush1.msra.mxu0 0.0
      %7172 = vmatprep.subr.mxu0 0.0
      %7173 = vmatpush1.msra.mxu0 0.0
      %7174 = vmatprep.subr.mxu0 0.0
      %7175 = vmatpush1.msra.mxu0 0.0
      %7176 = vmatprep.subr.mxu0 0.0
      %7177 = vmatpush1.msra.mxu0 0.0
      %7178 = vmatprep.subr.mxu0 0.0
      %7179 = vmatpush1.msra.mxu0 0.0
      %7180 = vmatprep.subr.mxu0 0.0
      %7181 = vmatpush1.msra.mxu0 0.0
      %7182 = vmatprep.subr.mxu0 0.0
      %7183 = vmatpush1.msra.mxu0 0.0
      %7184 = vmatprep.subr.mxu0 0.0
      %7185 = vmatpush1.msra.mxu0 0.0
      %7186 = vmatprep.subr.mxu0 0.0
      %7187 = vmatpush1.msra.mxu0 0.0
      %7188 = vmatprep.subr.mxu0 0.0
      %7189 = vmatpush1.msra.mxu0 0.0
      %7190 = vmatprep.subr.mxu0 0.0
      %7191 = vmatpush1.msra.mxu0 0.0
      %7192 = vmatprep.subr.mxu0 0.0
      %7193 = vmatpush1.msra.mxu0 0.0
      %7194 = vmatprep.subr.mxu0 0.0
      %7195 = vmatpush1.msra.mxu0 0.0
      %7196 = vmatprep.subr.mxu0 0.0
      %7197 = vmatpush1.msra.mxu0 0.0
      %7198 = vmatprep.subr.mxu0 0.0
      %7199 = vmatpush1.msra.mxu0 0.0
      %7200 = vmatprep.subr.mxu0 0.0
      %7201 = vmatpush1.msra.mxu0 0.0
      %7202 = vmatprep.subr.mxu0 0.0
      %7203 = vmatpush1.msra.mxu0 0.0
      %7204 = vmatprep.subr.mxu0 0.0
      %7205 = vmatpush1.msra.mxu0 0.0
      %7206 = vmatprep.subr.mxu0 0.0
      %7207 = vmatpush1.msra.mxu0 0.0
      %7208 = vmatprep.subr.mxu0 0.0
      %7209 = vmatpush1.msra.mxu0 0.0
      %7210 = vmatprep.subr.mxu0 0.0
      %7211 = vmatpush1.msra.mxu0 0.0
      %7212 = vmatprep.subr.mxu0 0.0
      %7213 = vmatpush1.msra.mxu0 0.0
      %7214 = vmatprep.mubr.f32.mxu0 0.0
      %7215 = vmatmul.mubr.f32.gmra.mrb[0].mxu0 %v7139
      %v7216 = vpop.f32.mrb[0].mxu0
      %v7217 = vadd.f32 0.0, %v7216
      %v7218 = vpop.f32.mrb[0].mxu0
      %7219 = vmatprep.mubr.f32.mxu0 0.0
      %7220 = vmatmul.mubr.f32.gmra.mrb[0].mxu0 %v7142
      %v7221 = vpop.f32.mrb[0].mxu0
      %v7222 = vadd.f32 0.0, %v7221
      %v7223 = vpop.f32.mrb[0].mxu0
      %7224 = vmatprep.mubr.f32.mxu0 0.0
      %7225 = vmatmul.mubr.f32.gmra.mrb[0].mxu0 %v7145
      %v7226 = vpop.f32.mrb[0].mxu0
      %v7227 = vadd.f32 0.0, %v7226
      %v7228 = vpop.f32.mrb[0].mxu0
      %7229 = vmatprep.mubr.f32.mxu0 0.0
      %7230 = vmatmul.mubr.f32.gmra.mrb[0].mxu0 %v7148
      %v7231 = vpop.f32.mrb[0].mxu0
      %v7232 = vadd.f32 0.0, %v7231
      %v7233 = vpop.f32.mrb[0].mxu0
      %7234 = vdwg.mxu0
      %v7235 = vsub.f32 %v7134, %v7217
      %v7236 = vsub.f32 %v7135, %v7222
      %v7237 = vsub.f32 %v7136, %v7227
      %v7238 = vsub.f32 %v7137, %v7232
      %v7239 = vmul.f32 %v7130, 2.0
      %v7240 = vmul.f32 %v7131, 2.0
      %v7241 = vmul.f32 %v7132, 2.0
      %v7242 = vmul.f32 %v7133, 2.0
      %7243 = vmatprep.subr.mxu0 0.0
      %7244 = vmatpush1.msra.mxu0 %v7130
      %7245 = vmatprep.subr.mxu0 0.0
      %7246 = vmatpush1.msra.mxu0 %v7131
      %7247 = vmatprep.subr.mxu0 0.0
      %7248 = vmatpush1.msra.mxu0 %v7132
      %7249 = vmatprep.subr.mxu0 0.0
      %7250 = vmatpush1.msra.mxu0 %v7133
      %7251 = vmatprep.subr.mxu0 0.0
      %7252 = vmatpush1.msra.mxu0 0.0
      %7253 = vmatprep.subr.mxu0 0.0
      %7254 = vmatpush1.msra.mxu0 0.0
      %7255 = vmatprep.subr.mxu0 0.0
      %7256 = vmatpush1.msra.mxu0 0.0
      %7257 = vmatprep.subr.mxu0 0.0
      %7258 = vmatpush1.msra.mxu0 0.0
      %7259 = vmatprep.subr.mxu0 0.0
      %7260 = vmatpush1.msra.mxu0 0.0
      %7261 = vmatprep.subr.mxu0 0.0
      %7262 = vmatpush1.msra.mxu0 0.0
      %7263 = vmatprep.subr.mxu0 0.0
      %7264 = vmatpush1.msra.mxu0 0.0
      %7265 = vmatprep.subr.mxu0 0.0
      %7266 = vmatpush1.msra.mxu0 0.0
      %7267 = vmatprep.subr.mxu0 0.0
      %7268 = vmatpush1.msra.mxu0 0.0
      %7269 = vmatprep.subr.mxu0 0.0
      %7270 = vmatpush1.msra.mxu0 0.0
      %7271 = vmatprep.subr.mxu0 0.0
      %7272 = vmatpush1.msra.mxu0 0.0
      %7273 = vmatprep.subr.mxu0 0.0
      %7274 = vmatpush1.msra.mxu0 0.0
      %7275 = vmatprep.subr.mxu0 0.0
      %7276 = vmatpush1.msra.mxu0 0.0
      %7277 = vmatprep.subr.mxu0 0.0
      %7278 = vmatpush1.msra.mxu0 0.0
      %7279 = vmatprep.subr.mxu0 0.0
      %7280 = vmatpush1.msra.mxu0 0.0
      %7281 = vmatprep.subr.mxu0 0.0
      %7282 = vmatpush1.msra.mxu0 0.0
      %7283 = vmatprep.subr.mxu0 0.0
      %7284 = vmatpush1.msra.mxu0 0.0
      %7285 = vmatprep.subr.mxu0 0.0
      %7286 = vmatpush1.msra.mxu0 0.0
      %7287 = vmatprep.subr.mxu0 0.0
      %7288 = vmatpush1.msra.mxu0 0.0
      %7289 = vmatprep.subr.mxu0 0.0
      %7290 = vmatpush1.msra.mxu0 0.0
      %7291 = vmatprep.subr.mxu0 0.0
      %7292 = vmatpush1.msra.mxu0 0.0
      %7293 = vmatprep.subr.mxu0 0.0
      %7294 = vmatpush1.msra.mxu0 0.0
      %7295 = vmatprep.subr.mxu0 0.0
      %7296 = vmatpush1.msra.mxu0 0.0
      %7297 = vmatprep.subr.mxu0 0.0
      %7298 = vmatpush1.msra.mxu0 0.0
      %7299 = vmatprep.subr.mxu0 0.0
      %7300 = vmatpush1.msra.mxu0 0.0
      %7301 = vmatprep.subr.mxu0 0.0
      %7302 = vmatpush1.msra.mxu0 0.0
      %7303 = vmatprep.subr.mxu0 0.0
      %7304 = vmatpush1.msra.mxu0 0.0
      %7305 = vmatprep.subr.mxu0 0.0
      %7306 = vmatpush1.msra.mxu0 0.0
      %7307 = vmatprep.mubr.f32.mxu0 0.0
      %7308 = vmatmul.mubr.f32.gmra.mrb[0].mxu0 %v7139
      %v7309 = vpop.f32.mrb[0].mxu0
      %v7310 = vadd.f32 0.0, %v7309
      %v7311 = vpop.f32.mrb[0].mxu0
      %7312 = vmatprep.mubr.f32.mxu0 0.0
      %7313 = vmatmul.mubr.f32.gmra.mrb[0].mxu0 %v7142
      %v7314 = vpop.f32.mrb[0].mxu0
      %v7315 = vadd.f32 0.0, %v7314
      %v7316 = vpop.f32.mrb[0].mxu0
      %7317 = vmatprep.mubr.f32.mxu0 0.0
      %7318 = vmatmul.mubr.f32.gmra.mrb[0].mxu0 %v7145
      %v7319 = vpop.f32.mrb[0].mxu0
      %v7320 = vadd.f32 0.0, %v7319
      %v7321 = vpop.f32.mrb[0].mxu0
      %7322 = vmatprep.mubr.f32.mxu0 0.0
      %7323 = vmatmul.mubr.f32.gmra.mrb[0].mxu0 %v7148
      %v7324 = vpop.f32.mrb[0].mxu0
      %v7325 = vadd.f32 0.0, %v7324
      %v7326 = vpop.f32.mrb[0].mxu0
      %7327 = vdwg.mxu0
      %v7328 = vsub.f32 %v7239, %v7310
      %v7329 = vsub.f32 %v7240, %v7315
      %v7330 = vsub.f32 %v7241, %v7320
      %v7331 = vsub.f32 %v7242, %v7325
      %v7332 = vmul.f32 %v7235, 2.0
      %v7333 = vmul.f32 %v7236, 2.0
      %v7334 = vmul.f32 %v7237, 2.0
      %v7335 = vmul.f32 %v7238, 2.0
      %v7337 = vsel %vm765, %v7328, 0
      %v7340 = vsel %vm765, %v7329, 0
      %v7343 = vsel %vm765, %v7330, 0
      %v7346 = vsel %vm765, %v7331, 0
      %7348 = vmatprep.subr.mxu0 0.0
      %7349 = vmatpush1.msra.mxu0 %v7235
      %7350 = vmatprep.subr.mxu0 0.0
      %7351 = vmatpush1.msra.mxu0 %v7236
      %7352 = vmatprep.subr.mxu0 0.0
      %7353 = vmatpush1.msra.mxu0 %v7237
      %7354 = vmatprep.subr.mxu0 0.0
      %7355 = vmatpush1.msra.mxu0 %v7238
      %7356 = vmatprep.subr.mxu0 0.0
      %7357 = vmatpush1.msra.mxu0 0.0
      %7358 = vmatprep.subr.mxu0 0.0
      %7359 = vmatpush1.msra.mxu0 0.0
      %7360 = vmatprep.subr.mxu0 0.0
      %7361 = vmatpush1.msra.mxu0 0.0
      %7362 = vmatprep.subr.mxu0 0.0
      %7363 = vmatpush1.msra.mxu0 0.0
      %7364 = vmatprep.subr.mxu0 0.0
      %7365 = vmatpush1.msra.mxu0 0.0
      %7366 = vmatprep.subr.mxu0 0.0
      %7367 = vmatpush1.msra.mxu0 0.0
      %7368 = vmatprep.subr.mxu0 0.0
      %7369 = vmatpush1.msra.mxu0 0.0
      %7370 = vmatprep.subr.mxu0 0.0
      %7371 = vmatpush1.msra.mxu0 0.0
      %7372 = vmatprep.subr.mxu0 0.0
      %7373 = vmatpush1.msra.mxu0 0.0
      %7374 = vmatprep.subr.mxu0 0.0
      %7375 = vmatpush1.msra.mxu0 0.0
      %7376 = vmatprep.subr.mxu0 0.0
      %7377 = vmatpush1.msra.mxu0 0.0
      %7378 = vmatprep.subr.mxu0 0.0
      %7379 = vmatpush1.msra.mxu0 0.0
      %7380 = vmatprep.subr.mxu0 0.0
      %7381 = vmatpush1.msra.mxu0 0.0
      %7382 = vmatprep.subr.mxu0 0.0
      %7383 = vmatpush1.msra.mxu0 0.0
      %7384 = vmatprep.subr.mxu0 0.0
      %7385 = vmatpush1.msra.mxu0 0.0
      %7386 = vmatprep.subr.mxu0 0.0
      %7387 = vmatpush1.msra.mxu0 0.0
      %7388 = vmatprep.subr.mxu0 0.0
      %7389 = vmatpush1.msra.mxu0 0.0
      %7390 = vmatprep.subr.mxu0 0.0
      %7391 = vmatpush1.msra.mxu0 0.0
      %7392 = vmatprep.subr.mxu0 0.0
      %7393 = vmatpush1.msra.mxu0 0.0
      %7394 = vmatprep.subr.mxu0 0.0
      %7395 = vmatpush1.msra.mxu0 0.0
      %7396 = vmatprep.subr.mxu0 0.0
      %7397 = vmatpush1.msra.mxu0 0.0
      %7398 = vmatprep.subr.mxu0 0.0
      %7399 = vmatpush1.msra.mxu0 0.0
      %7400 = vmatprep.subr.mxu0 0.0
      %7401 = vmatpush1.msra.mxu0 0.0
      %7402 = vmatprep.subr.mxu0 0.0
      %7403 = vmatpush1.msra.mxu0 0.0
      %7404 = vmatprep.subr.mxu0 0.0
      %7405 = vmatpush1.msra.mxu0 0.0
      %7406 = vmatprep.subr.mxu0 0.0
      %7407 = vmatpush1.msra.mxu0 0.0
      %7408 = vmatprep.subr.mxu0 0.0
      %7409 = vmatpush1.msra.mxu0 0.0
      %7410 = vmatprep.subr.mxu0 0.0
      %7411 = vmatpush1.msra.mxu0 0.0
      %7412 = vmatprep.mubr.f32.mxu0 0.0
      %7413 = vmatmul.mubr.f32.gmra.mrb[0].mxu0 %v7337
      %v7414 = vpop.f32.mrb[0].mxu0
      %v7415 = vadd.f32 0.0, %v7414
      %v7416 = vpop.f32.mrb[0].mxu0
      %7417 = vmatprep.mubr.f32.mxu0 0.0
      %7418 = vmatmul.mubr.f32.gmra.mrb[0].mxu0 %v7340
      %v7419 = vpop.f32.mrb[0].mxu0
      %v7420 = vadd.f32 0.0, %v7419
      %v7421 = vpop.f32.mrb[0].mxu0
      %7422 = vmatprep.mubr.f32.mxu0 0.0
      %7423 = vmatmul.mubr.f32.gmra.mrb[0].mxu0 %v7343
      %v7424 = vpop.f32.mrb[0].mxu0
      %v7425 = vadd.f32 0.0, %v7424
      %v7426 = vpop.f32.mrb[0].mxu0
      %7427 = vmatprep.mubr.f32.mxu0 0.0
      %7428 = vmatmul.mubr.f32.gmra.mrb[0].mxu0 %v7346
      %v7429 = vpop.f32.mrb[0].mxu0
      %v7430 = vadd.f32 0.0, %v7429
      %v7431 = vpop.f32.mrb[0].mxu0
      %7432 = vdwg.mxu0
      %v7433 = vsub.f32 %v7332, %v7415
      %v7434 = vsub.f32 %v7333, %v7420
      %v7435 = vsub.f32 %v7334, %v7425
      %v7436 = vsub.f32 %v7335, %v7430
      %v7437 = vmul.f32 %v7328, 2.0
      %v7438 = vmul.f32 %v7329, 2.0
      %v7439 = vmul.f32 %v7330, 2.0
      %v7440 = vmul.f32 %v7331, 2.0
      %7441 = vmatprep.subr.mxu0 0.0
      %7442 = vmatpush1.msra.mxu0 %v7328
      %7443 = vmatprep.subr.mxu0 0.0
      %7444 = vmatpush1.msra.mxu0 %v7329
      %7445 = vmatprep.subr.mxu0 0.0
      %7446 = vmatpush1.msra.mxu0 %v7330
      %7447 = vmatprep.subr.mxu0 0.0
      %7448 = vmatpush1.msra.mxu0 %v7331
      %7449 = vmatprep.subr.mxu0 0.0
      %7450 = vmatpush1.msra.mxu0 0.0
      %7451 = vmatprep.subr.mxu0 0.0
      %7452 = vmatpush1.msra.mxu0 0.0
      %7453 = vmatprep.subr.mxu0 0.0
      %7454 = vmatpush1.msra.mxu0 0.0
      %7455 = vmatprep.subr.mxu0 0.0
      %7456 = vmatpush1.msra.mxu0 0.0
      %7457 = vmatprep.subr.mxu0 0.0
      %7458 = vmatpush1.msra.mxu0 0.0
      %7459 = vmatprep.subr.mxu0 0.0
      %7460 = vmatpush1.msra.mxu0 0.0
      %7461 = vmatprep.subr.mxu0 0.0
      %7462 = vmatpush1.msra.mxu0 0.0
      %7463 = vmatprep.subr.mxu0 0.0
      %7464 = vmatpush1.msra.mxu0 0.0
      %7465 = vmatprep.subr.mxu0 0.0
      %7466 = vmatpush1.msra.mxu0 0.0
      %7467 = vmatprep.subr.mxu0 0.0
      %7468 = vmatpush1.msra.mxu0 0.0
      %7469 = vmatprep.subr.mxu0 0.0
      %7470 = vmatpush1.msra.mxu0 0.0
      %7471 = vmatprep.subr.mxu0 0.0
      %7472 = vmatpush1.msra.mxu0 0.0
      %7473 = vmatprep.subr.mxu0 0.0
      %7474 = vmatpush1.msra.mxu0 0.0
      %7475 = vmatprep.subr.mxu0 0.0
      %7476 = vmatpush1.msra.mxu0 0.0
      %7477 = vmatprep.subr.mxu0 0.0
      %7478 = vmatpush1.msra.mxu0 0.0
      %7479 = vmatprep.subr.mxu0 0.0
      %7480 = vmatpush1.msra.mxu0 0.0
      %7481 = vmatprep.subr.mxu0 0.0
      %7482 = vmatpush1.msra.mxu0 0.0
      %7483 = vmatprep.subr.mxu0 0.0
      %7484 = vmatpush1.msra.mxu0 0.0
      %7485 = vmatprep.subr.mxu0 0.0
      %7486 = vmatpush1.msra.mxu0 0.0
      %7487 = vmatprep.subr.mxu0 0.0
      %7488 = vmatpush1.msra.mxu0 0.0
      %7489 = vmatprep.subr.mxu0 0.0
      %7490 = vmatpush1.msra.mxu0 0.0
      %7491 = vmatprep.subr.mxu0 0.0
      %7492 = vmatpush1.msra.mxu0 0.0
      %7493 = vmatprep.subr.mxu0 0.0
      %7494 = vmatpush1.msra.mxu0 0.0
      %7495 = vmatprep.subr.mxu0 0.0
      %7496 = vmatpush1.msra.mxu0 0.0
      %7497 = vmatprep.subr.mxu0 0.0
      %7498 = vmatpush1.msra.mxu0 0.0
      %7499 = vmatprep.subr.mxu0 0.0
      %7500 = vmatpush1.msra.mxu0 0.0
      %7501 = vmatprep.subr.mxu0 0.0
      %7502 = vmatpush1.msra.mxu0 0.0
      %7503 = vmatprep.subr.mxu0 0.0
      %7504 = vmatpush1.msra.mxu0 0.0
      %7505 = vmatprep.mubr.f32.mxu0 0.0
      %7506 = vmatmul.mubr.f32.gmra.mrb[0].mxu0 %v7337
      %v7507 = vpop.f32.mrb[0].mxu0
      %v7508 = vadd.f32 0.0, %v7507
      %v7509 = vpop.f32.mrb[0].mxu0
      %7510 = vmatprep.mubr.f32.mxu0 0.0
      %7511 = vmatmul.mubr.f32.gmra.mrb[0].mxu0 %v7340
      %v7512 = vpop.f32.mrb[0].mxu0
      %v7513 = vadd.f32 0.0, %v7512
      %v7514 = vpop.f32.mrb[0].mxu0
      %7515 = vmatprep.mubr.f32.mxu0 0.0
      %7516 = vmatmul.mubr.f32.gmra.mrb[0].mxu0 %v7343
      %v7517 = vpop.f32.mrb[0].mxu0
      %v7518 = vadd.f32 0.0, %v7517
      %v7519 = vpop.f32.mrb[0].mxu0
      %7520 = vmatprep.mubr.f32.mxu0 0.0
      %7521 = vmatmul.mubr.f32.gmra.mrb[0].mxu0 %v7346
      %v7522 = vpop.f32.mrb[0].mxu0
      %v7523 = vadd.f32 0.0, %v7522
      %v7524 = vpop.f32.mrb[0].mxu0
      %7525 = vdwg.mxu0
      %v7526 = vsub.f32 %v7437, %v7508
      %v7527 = vsub.f32 %v7438, %v7513
      %v7528 = vsub.f32 %v7439, %v7518
      %v7529 = vsub.f32 %v7440, %v7523
      %v7530 = vmul.f32 %v7433, 2.0
      %v7531 = vmul.f32 %v7434, 2.0
      %v7532 = vmul.f32 %v7435, 2.0
      %v7533 = vmul.f32 %v7436, 2.0
      %v7535 = vsel %vm765, %v7526, 0
      %v7538 = vsel %vm765, %v7527, 0
      %v7541 = vsel %vm765, %v7528, 0
      %v7544 = vsel %vm765, %v7529, 0
      %7546 = vmatprep.subr.mxu0 0.0
      %7547 = vmatpush1.msra.mxu0 %v7433
      %7548 = vmatprep.subr.mxu0 0.0
      %7549 = vmatpush1.msra.mxu0 %v7434
      %7550 = vmatprep.subr.mxu0 0.0
      %7551 = vmatpush1.msra.mxu0 %v7435
      %7552 = vmatprep.subr.mxu0 0.0
      %7553 = vmatpush1.msra.mxu0 %v7436
      %7554 = vmatprep.subr.mxu0 0.0
      %7555 = vmatpush1.msra.mxu0 0.0
      %7556 = vmatprep.subr.mxu0 0.0
      %7557 = vmatpush1.msra.mxu0 0.0
      %7558 = vmatprep.subr.mxu0 0.0
      %7559 = vmatpush1.msra.mxu0 0.0
      %7560 = vmatprep.subr.mxu0 0.0
      %7561 = vmatpush1.msra.mxu0 0.0
      %7562 = vmatprep.subr.mxu0 0.0
      %7563 = vmatpush1.msra.mxu0 0.0
      %7564 = vmatprep.subr.mxu0 0.0
      %7565 = vmatpush1.msra.mxu0 0.0
      %7566 = vmatprep.subr.mxu0 0.0
      %7567 = vmatpush1.msra.mxu0 0.0
      %7568 = vmatprep.subr.mxu0 0.0
      %7569 = vmatpush1.msra.mxu0 0.0
      %7570 = vmatprep.subr.mxu0 0.0
      %7571 = vmatpush1.msra.mxu0 0.0
      %7572 = vmatprep.subr.mxu0 0.0
      %7573 = vmatpush1.msra.mxu0 0.0
      %7574 = vmatprep.subr.mxu0 0.0
      %7575 = vmatpush1.msra.mxu0 0.0
      %7576 = vmatprep.subr.mxu0 0.0
      %7577 = vmatpush1.msra.mxu0 0.0
      %7578 = vmatprep.subr.mxu0 0.0
      %7579 = vmatpush1.msra.mxu0 0.0
      %7580 = vmatprep.subr.mxu0 0.0
      %7581 = vmatpush1.msra.mxu0 0.0
      %7582 = vmatprep.subr.mxu0 0.0
      %7583 = vmatpush1.msra.mxu0 0.0
      %7584 = vmatprep.subr.mxu0 0.0
      %7585 = vmatpush1.msra.mxu0 0.0
      %7586 = vmatprep.subr.mxu0 0.0
      %7587 = vmatpush1.msra.mxu0 0.0
      %7588 = vmatprep.subr.mxu0 0.0
      %7589 = vmatpush1.msra.mxu0 0.0
      %7590 = vmatprep.subr.mxu0 0.0
      %7591 = vmatpush1.msra.mxu0 0.0
      %7592 = vmatprep.subr.mxu0 0.0
      %7593 = vmatpush1.msra.mxu0 0.0
      %7594 = vmatprep.subr.mxu0 0.0
      %7595 = vmatpush1.msra.mxu0 0.0
      %7596 = vmatprep.subr.mxu0 0.0
      %7597 = vmatpush1.msra.mxu0 0.0
      %7598 = vmatprep.subr.mxu0 0.0
      %7599 = vmatpush1.msra.mxu0 0.0
      %7600 = vmatprep.subr.mxu0 0.0
      %7601 = vmatpush1.msra.mxu0 0.0
      %7602 = vmatprep.subr.mxu0 0.0
      %7603 = vmatpush1.msra.mxu0 0.0
      %7604 = vmatprep.subr.mxu0 0.0
      %7605 = vmatpush1.msra.mxu0 0.0
      %7606 = vmatprep.subr.mxu0 0.0
      %7607 = vmatpush1.msra.mxu0 0.0
      %7608 = vmatprep.subr.mxu0 0.0
      %7609 = vmatpush1.msra.mxu0 0.0
      %7610 = vmatprep.mubr.f32.mxu0 0.0
      %7611 = vmatmul.mubr.f32.gmra.mrb[0].mxu0 %v7535
      %v7612 = vpop.f32.mrb[0].mxu0
      %v7613 = vadd.f32 0.0, %v7612
      %v7614 = vpop.f32.mrb[0].mxu0
      %7615 = vmatprep.mubr.f32.mxu0 0.0
      %7616 = vmatmul.mubr.f32.gmra.mrb[0].mxu0 %v7538
      %v7617 = vpop.f32.mrb[0].mxu0
      %v7618 = vadd.f32 0.0, %v7617
      %v7619 = vpop.f32.mrb[0].mxu0
      %7620 = vmatprep.mubr.f32.mxu0 0.0
      %7621 = vmatmul.mubr.f32.gmra.mrb[0].mxu0 %v7541
      %v7622 = vpop.f32.mrb[0].mxu0
      %v7623 = vadd.f32 0.0, %v7622
      %v7624 = vpop.f32.mrb[0].mxu0
      %7625 = vmatprep.mubr.f32.mxu0 0.0
      %7626 = vmatmul.mubr.f32.gmra.mrb[0].mxu0 %v7544
      %v7627 = vpop.f32.mrb[0].mxu0
      %v7628 = vadd.f32 0.0, %v7627
      %v7629 = vpop.f32.mrb[0].mxu0
      %7630 = vdwg.mxu0
      %v7631 = vsub.f32 %v7530, %v7613
      %v7632 = vsub.f32 %v7531, %v7618
      %v7633 = vsub.f32 %v7532, %v7623
      %v7634 = vsub.f32 %v7533, %v7628
      %v7635 = vmul.f32 %v7526, 2.0
      %v7636 = vmul.f32 %v7527, 2.0
      %v7637 = vmul.f32 %v7528, 2.0
      %v7638 = vmul.f32 %v7529, 2.0
      %7639 = vmatprep.subr.mxu0 0.0
      %7640 = vmatpush1.msra.mxu0 %v7526
      %7641 = vmatprep.subr.mxu0 0.0
      %7642 = vmatpush1.msra.mxu0 %v7527
      %7643 = vmatprep.subr.mxu0 0.0
      %7644 = vmatpush1.msra.mxu0 %v7528
      %7645 = vmatprep.subr.mxu0 0.0
      %7646 = vmatpush1.msra.mxu0 %v7529
      %7647 = vmatprep.subr.mxu0 0.0
      %7648 = vmatpush1.msra.mxu0 0.0
      %7649 = vmatprep.subr.mxu0 0.0
      %7650 = vmatpush1.msra.mxu0 0.0
      %7651 = vmatprep.subr.mxu0 0.0
      %7652 = vmatpush1.msra.mxu0 0.0
      %7653 = vmatprep.subr.mxu0 0.0
      %7654 = vmatpush1.msra.mxu0 0.0
      %7655 = vmatprep.subr.mxu0 0.0
      %7656 = vmatpush1.msra.mxu0 0.0
      %7657 = vmatprep.subr.mxu0 0.0
      %7658 = vmatpush1.msra.mxu0 0.0
      %7659 = vmatprep.subr.mxu0 0.0
      %7660 = vmatpush1.msra.mxu0 0.0
      %7661 = vmatprep.subr.mxu0 0.0
      %7662 = vmatpush1.msra.mxu0 0.0
      %7663 = vmatprep.subr.mxu0 0.0
      %7664 = vmatpush1.msra.mxu0 0.0
      %7665 = vmatprep.subr.mxu0 0.0
      %7666 = vmatpush1.msra.mxu0 0.0
      %7667 = vmatprep.subr.mxu0 0.0
      %7668 = vmatpush1.msra.mxu0 0.0
      %7669 = vmatprep.subr.mxu0 0.0
      %7670 = vmatpush1.msra.mxu0 0.0
      %7671 = vmatprep.subr.mxu0 0.0
      %7672 = vmatpush1.msra.mxu0 0.0
      %7673 = vmatprep.subr.mxu0 0.0
      %7674 = vmatpush1.msra.mxu0 0.0
      %7675 = vmatprep.subr.mxu0 0.0
      %7676 = vmatpush1.msra.mxu0 0.0
      %7677 = vmatprep.subr.mxu0 0.0
      %7678 = vmatpush1.msra.mxu0 0.0
      %7679 = vmatprep.subr.mxu0 0.0
      %7680 = vmatpush1.msra.mxu0 0.0
      %7681 = vmatprep.subr.mxu0 0.0
      %7682 = vmatpush1.msra.mxu0 0.0
      %7683 = vmatprep.subr.mxu0 0.0
      %7684 = vmatpush1.msra.mxu0 0.0
      %7685 = vmatprep.subr.mxu0 0.0
      %7686 = vmatpush1.msra.mxu0 0.0
      %7687 = vmatprep.subr.mxu0 0.0
      %7688 = vmatpush1.msra.mxu0 0.0
      %7689 = vmatprep.subr.mxu0 0.0
      %7690 = vmatpush1.msra.mxu0 0.0
      %7691 = vmatprep.subr.mxu0 0.0
      %7692 = vmatpush1.msra.mxu0 0.0
      %7693 = vmatprep.subr.mxu0 0.0
      %7694 = vmatpush1.msra.mxu0 0.0
      %7695 = vmatprep.subr.mxu0 0.0
      %7696 = vmatpush1.msra.mxu0 0.0
      %7697 = vmatprep.subr.mxu0 0.0
      %7698 = vmatpush1.msra.mxu0 0.0
      %7699 = vmatprep.subr.mxu0 0.0
      %7700 = vmatpush1.msra.mxu0 0.0
      %7701 = vmatprep.subr.mxu0 0.0
      %7702 = vmatpush1.msra.mxu0 0.0
      %7703 = vmatprep.mubr.f32.mxu0 0.0
      %7704 = vmatmul.mubr.f32.gmra.mrb[0].mxu0 %v7535
      %v7705 = vpop.f32.mrb[0].mxu0
      %v7706 = vadd.f32 0.0, %v7705
      %v7707 = vpop.f32.mrb[0].mxu0
      %7708 = vmatprep.mubr.f32.mxu0 0.0
      %7709 = vmatmul.mubr.f32.gmra.mrb[0].mxu0 %v7538
      %v7710 = vpop.f32.mrb[0].mxu0
      %v7711 = vadd.f32 0.0, %v7710
      %v7712 = vpop.f32.mrb[0].mxu0
      %7713 = vmatprep.mubr.f32.mxu0 0.0
      %7714 = vmatmul.mubr.f32.gmra.mrb[0].mxu0 %v7541
      %v7715 = vpop.f32.mrb[0].mxu0
      %v7716 = vadd.f32 0.0, %v7715
      %v7717 = vpop.f32.mrb[0].mxu0
      %7718 = vmatprep.mubr.f32.mxu0 0.0
      %7719 = vmatmul.mubr.f32.gmra.mrb[0].mxu0 %v7544
      %v7720 = vpop.f32.mrb[0].mxu0
      %v7721 = vadd.f32 0.0, %v7720
      %v7722 = vpop.f32.mrb[0].mxu0
      %7723 = vdwg.mxu0
      %v7724 = vsub.f32 %v7635, %v7706
      %v7725 = vsub.f32 %v7636, %v7711
      %v7726 = vsub.f32 %v7637, %v7716
      %v7727 = vsub.f32 %v7638, %v7721
      %v7728 = vmul.f32 %v7631, 2.0
      %v7729 = vmul.f32 %v7632, 2.0
      %v7730 = vmul.f32 %v7633, 2.0
      %v7731 = vmul.f32 %v7634, 2.0
      %v7733 = vsel %vm765, %v7724, 0
      %v7736 = vsel %vm765, %v7725, 0
      %v7739 = vsel %vm765, %v7726, 0
      %v7742 = vsel %vm765, %v7727, 0
      %7744 = vmatprep.subr.mxu0 0.0
      %7745 = vmatpush1.msra.mxu0 %v7631
      %7746 = vmatprep.subr.mxu0 0.0
      %7747 = vmatpush1.msra.mxu0 %v7632
      %7748 = vmatprep.subr.mxu0 0.0
      %7749 = vmatpush1.msra.mxu0 %v7633
      %7750 = vmatprep.subr.mxu0 0.0
      %7751 = vmatpush1.msra.mxu0 %v7634
      %7752 = vmatprep.subr.mxu0 0.0
      %7753 = vmatpush1.msra.mxu0 0.0
      %7754 = vmatprep.subr.mxu0 0.0
      %7755 = vmatpush1.msra.mxu0 0.0
      %7756 = vmatprep.subr.mxu0 0.0
      %7757 = vmatpush1.msra.mxu0 0.0
      %7758 = vmatprep.subr.mxu0 0.0
      %7759 = vmatpush1.msra.mxu0 0.0
      %7760 = vmatprep.subr.mxu0 0.0
      %7761 = vmatpush1.msra.mxu0 0.0
      %7762 = vmatprep.subr.mxu0 0.0
      %7763 = vmatpush1.msra.mxu0 0.0
      %7764 = vmatprep.subr.mxu0 0.0
      %7765 = vmatpush1.msra.mxu0 0.0
      %7766 = vmatprep.subr.mxu0 0.0
      %7767 = vmatpush1.msra.mxu0 0.0
      %7768 = vmatprep.subr.mxu0 0.0
      %7769 = vmatpush1.msra.mxu0 0.0
      %7770 = vmatprep.subr.mxu0 0.0
      %7771 = vmatpush1.msra.mxu0 0.0
      %7772 = vmatprep.subr.mxu0 0.0
      %7773 = vmatpush1.msra.mxu0 0.0
      %7774 = vmatprep.subr.mxu0 0.0
      %7775 = vmatpush1.msra.mxu0 0.0
      %7776 = vmatprep.subr.mxu0 0.0
      %7777 = vmatpush1.msra.mxu0 0.0
      %7778 = vmatprep.subr.mxu0 0.0
      %7779 = vmatpush1.msra.mxu0 0.0
      %7780 = vmatprep.subr.mxu0 0.0
      %7781 = vmatpush1.msra.mxu0 0.0
      %7782 = vmatprep.subr.mxu0 0.0
      %7783 = vmatpush1.msra.mxu0 0.0
      %7784 = vmatprep.subr.mxu0 0.0
      %7785 = vmatpush1.msra.mxu0 0.0
      %7786 = vmatprep.subr.mxu0 0.0
      %7787 = vmatpush1.msra.mxu0 0.0
      %7788 = vmatprep.subr.mxu0 0.0
      %7789 = vmatpush1.msra.mxu0 0.0
      %7790 = vmatprep.subr.mxu0 0.0
      %7791 = vmatpush1.msra.mxu0 0.0
      %7792 = vmatprep.subr.mxu0 0.0
      %7793 = vmatpush1.msra.mxu0 0.0
      %7794 = vmatprep.subr.mxu0 0.0
      %7795 = vmatpush1.msra.mxu0 0.0
      %7796 = vmatprep.subr.mxu0 0.0
      %7797 = vmatpush1.msra.mxu0 0.0
      %7798 = vmatprep.subr.mxu0 0.0
      %7799 = vmatpush1.msra.mxu0 0.0
      %7800 = vmatprep.subr.mxu0 0.0
      %7801 = vmatpush1.msra.mxu0 0.0
      %7802 = vmatprep.subr.mxu0 0.0
      %7803 = vmatpush1.msra.mxu0 0.0
      %7804 = vmatprep.subr.mxu0 0.0
      %7805 = vmatpush1.msra.mxu0 0.0
      %7806 = vmatprep.subr.mxu0 0.0
      %7807 = vmatpush1.msra.mxu0 0.0
      %7808 = vmatprep.mubr.f32.mxu0 0.0
      %7809 = vmatmul.mubr.f32.gmra.mrb[0].mxu0 %v7733
      %v7810 = vpop.f32.mrb[0].mxu0
      %v7811 = vadd.f32 0.0, %v7810
      %v7812 = vpop.f32.mrb[0].mxu0
      %7813 = vmatprep.mubr.f32.mxu0 0.0
      %7814 = vmatmul.mubr.f32.gmra.mrb[0].mxu0 %v7736
      %v7815 = vpop.f32.mrb[0].mxu0
      %v7816 = vadd.f32 0.0, %v7815
      %v7817 = vpop.f32.mrb[0].mxu0
      %7818 = vmatprep.mubr.f32.mxu0 0.0
      %7819 = vmatmul.mubr.f32.gmra.mrb[0].mxu0 %v7739
      %v7820 = vpop.f32.mrb[0].mxu0
      %v7821 = vadd.f32 0.0, %v7820
      %v7822 = vpop.f32.mrb[0].mxu0
      %7823 = vmatprep.mubr.f32.mxu0 0.0
      %7824 = vmatmul.mubr.f32.gmra.mrb[0].mxu0 %v7742
      %v7825 = vpop.f32.mrb[0].mxu0
      %v7826 = vadd.f32 0.0, %v7825
      %v7827 = vpop.f32.mrb[0].mxu0
      %7828 = vdwg.mxu0
      %v7829 = vsub.f32 %v7728, %v7811
      %v7830 = vsub.f32 %v7729, %v7816
      %v7831 = vsub.f32 %v7730, %v7821
      %v7832 = vsub.f32 %v7731, %v7826
      %7833 = vst.msk [vmem:[%s197] sm:$0xff] %vm257, %v7829
      %7834 = vst.msk [vmem:[%s197 + $0x8] sm:$0xff] %vm257, %v7830
      %7835 = vst.msk [vmem:[%s197 + $0x10] sm:$0xff] %vm257, %v7831
      %7836 = vst.msk [vmem:[%s197 + $0x18] sm:$0xff] %vm257, %v7832
      %p7837 = scmp.lt.s32.totalorder %s15, 1
      %s7838 = scalar_select %p7837, %s15, 1
      %s7839 = smul.addr %s7838, 4
      %s7840 = smul.addr %s7839, 8
      %s7841 = scalar_lea.vmem %s4, %s7840
      // Predicated region
      $region37: #{rae_forward.1} parent=35 // pred_check
        %p7842 = pneg %p122
      $region38: #{rae_forward.1} parent=35 // pred_check_branch
        %7844 = sbr.rel (%p7842) target = $region40
      $region39: #{rae_forward.1} parent=35 // pred_region
        _
      $region40: #{rae_forward.1} parent=35 // pred_fallthru
        _
    $region36: #{rae_forward.1} parent=5 // pred_fallthru
      _
    %p7845 = scmp.le.s32.totalorder 2, %s10
    // Predicated region
    $region41: #{rae_forward.1} parent=5 // pred_check
      %p7846 = pneg %p7845
    $region42: #{rae_forward.1} parent=5 // pred_check_branch
      %7848 = sbr.rel (%p7846) target = $region44
    $region43: #{rae_forward.1} parent=5 // pred_region
      %s7849 = ssub.s32 %s10, 2
      // Predicated region
      $region45: #{rae_forward.1} parent=43 // pred_check
        %p7850 = pneg %p128
      $region46: #{rae_forward.1} parent=43 // pred_check_branch
        %7852 = sbr.rel (%p7850) target = $region48
      $region47: #{rae_forward.1} parent=43 // pred_region
        %p7853 = scmp.lt.s32.totalorder %s16, 1
        %s7854 = scalar_select %p7853, %s16, 1
        %s7855 = smul.addr %s7854, 4
        %s7856 = smul.addr %s7855, 8
        %s7857 = scalar_lea.vmem %s4, %s7856
      $region48: #{rae_forward.1} parent=43 // pred_fallthru
        _
    $region44: #{rae_forward.1} parent=5 // pred_fallthru
      _
  $region6: #{rae_forward.1} parent=0 // loop_footer
    %s14 = sadd.s32 1, %s10
  $region7: #{rae_forward.1} parent=0 // loop_footer_branch
    %9 = sbr.rel target = $region3
  $region8: #{rae_forward.1} parent=0 // loop_exit
    _

</llo_original>
